<compile_context>
chip_gen: v6e
topology: v6e:2x2x1
jax: 0.10.0
libtpu: 0.0.40
codegen_flags: <defaults>
</compile_context>

<pallas_src>
import jax
import jax.numpy as jnp
from jax.experimental import pallas as pl
from jax.experimental.pallas import tpu as pltpu

Z_SIZE = 4
CLASSIFIER_SIZE = 1
IN_DIM = 784
HID = 512
HEAD_DIM = 16  # packed head slab layout: [mu(4) | logvar(4) | rot(1) | pad(7)]


def _vae_kernel(x_ref, eps_ref,
                w1_ref, b1_ref, w23_ref, b23_ref,
                w4_ref, b4_ref, w5_ref, b5_ref,
                w6_ref, b6_ref,
                xr_ref, head_ref):
    bf16 = jnp.bfloat16
    x = x_ref[...]

    # ---- encode: fc1 + relu (bf16 MXU operands, f32 accumulation) ----
    h1 = jnp.dot(x.astype(bf16), w1_ref[...],
                 preferred_element_type=jnp.float32) + b1_ref[...]
    h1 = jnp.maximum(h1, 0.0)

    # ---- fused fc2|fc3: one (512, 2*Z) matmul, then split mu / logvar ----
    mulv = jnp.dot(h1.astype(bf16), w23_ref[...],
                   preferred_element_type=jnp.float32) + b23_ref[...]
    mu = mulv[:, :Z_SIZE]
    lv = mulv[:, Z_SIZE:]

    # ---- sample (torch.rand_like -> uniform [0,1) noise supplied by host) ----
    std = jnp.exp(0.5 * lv)
    z = mu + eps_ref[...] * std

    # ---- fc6 head (classifier_size == 1): scalar mul+add on the VPU, no MXU pass ----
    rot = z[:, :CLASSIFIER_SIZE] * w6_ref[0, 0] + b6_ref[0, 0]

    # ---- decode ----
    h3 = jnp.dot(z.astype(bf16), w4_ref[...],
                 preferred_element_type=jnp.float32) + b4_ref[...]
    h3 = jnp.maximum(h3, 0.0)
    logits = jnp.dot(h3.astype(bf16), w5_ref[...],
                     preferred_element_type=jnp.float32) + b5_ref[...]
    xr_ref[...] = jax.nn.sigmoid(logits)

    # ---- single packed head output block: [mu | logvar | rot | zero pad] ----
    head_ref[...] = jnp.zeros_like(head_ref)
    head_ref[:, 0:2 * Z_SIZE] = mulv
    head_ref[:, 2 * Z_SIZE:2 * Z_SIZE + 1] = rot


def pack_params(params):
    """Repack nn.Linear params for the kernel: bf16 matmul weights, fused fc2|fc3 weight,
    fc6 as SMEM scalars. Biases stay f32 (added after f32 accumulation)."""
    (w1, b1, w2, b2, w3, b3, w4, b4, w5, b5, w6, b6) = params
    bf16 = jnp.bfloat16
    w23 = jnp.concatenate([w2, w3], axis=1).astype(bf16)
    b23 = jnp.concatenate([b2, b3], axis=1).astype(jnp.float32)
    return [
        w1.astype(bf16), b1.astype(jnp.float32),
        w23, b23,
        w4.astype(bf16), b4.astype(jnp.float32),
        w5.astype(bf16), b5.astype(jnp.float32),
        w6.astype(jnp.float32).reshape(1, 1),
        b6.astype(jnp.float32).reshape(1, 1),
    ]


def scale_vae_forward(x, eps, kparams, *, tile_b=128):
    """Returns (x_, mu, logvar, rot_) matching ScaleVAE.forward."""
    B = x.shape[0]
    if B <= tile_b:
        tb, bp = B, B
    else:
        tb = tile_b
        bp = pl.cdiv(B, tb) * tb
        if bp != B:
            x = jnp.pad(x, ((0, bp - B), (0, 0)))
            eps = jnp.pad(eps, ((0, bp - B), (0, 0)))

    def const2d(shape):
        # Constant block index -> weight stays VMEM-resident across grid steps.
        return pl.BlockSpec(shape, lambda i: (0, 0))

    smem = pl.BlockSpec(memory_space=pltpu.MemorySpace.SMEM)

    in_specs = [
        pl.BlockSpec((tb, IN_DIM), lambda i: (i, 0)),            # x tile
        pl.BlockSpec((tb, Z_SIZE), lambda i: (i, 0)),            # eps tile
        const2d((IN_DIM, HID)), const2d((1, HID)),               # fc1
        const2d((HID, 2 * Z_SIZE)), const2d((1, 2 * Z_SIZE)),    # fused fc2|fc3
        const2d((Z_SIZE, HID)), const2d((1, HID)),               # fc4
        const2d((HID, IN_DIM)), const2d((1, IN_DIM)),            # fc5
        smem, smem,                                              # fc6 scalars
    ]
    out_specs = (
        pl.BlockSpec((tb, IN_DIM), lambda i: (i, 0)),            # x_
        pl.BlockSpec((tb, HEAD_DIM), lambda i: (i, 0)),          # packed [mu|lv|rot]
    )

    xr, head = pl.pallas_call(
        _vae_kernel,
        grid=(bp // tb,),
        out_shape=(
            jax.ShapeDtypeStruct((bp, IN_DIM), jnp.float32),
            jax.ShapeDtypeStruct((bp, HEAD_DIM), jnp.float32),
        ),
        in_specs=in_specs,
        out_specs=out_specs,
        compiler_params=pltpu.CompilerParams(
            dimension_semantics=("parallel",)),
    )(x, eps, *kparams)

    xr = xr[:B]
    mu = head[:B, :Z_SIZE]
    lv = head[:B, Z_SIZE:2 * Z_SIZE]
    rot = head[:B, 2 * Z_SIZE:2 * Z_SIZE + 1]
    return xr, mu, lv, rot


def init_params(key):
    """Deterministic init mirroring nn.Linear default (uniform +-1/sqrt(fan_in)).
    Weights stored as (in_features, out_features)."""
    dims = [
        (IN_DIM, HID),         # fc1
        (HID, Z_SIZE),         # fc2
        (HID, Z_SIZE),         # fc3
        (Z_SIZE, HID),         # fc4
        (HID, IN_DIM),         # fc5
        (CLASSIFIER_SIZE, 1),  # fc6
    ]
    params = []
    for fan_in, fan_out in dims:
        kw, kb, key = jax.random.split(key, 3)
        bound = 1.0 / jnp.sqrt(float(fan_in))
        w = jax.random.uniform(kw, (fan_in, fan_out), jnp.float32, -bound, bound)
        b = jax.random.uniform(kb, (1, fan_out), jnp.float32, -bound, bound)
        params.extend([w, b])
    return params


def reference_forward(x, eps, kparams):
    """Pure-JAX reference performing the exact same arithmetic (bf16 operands, f32 accum)."""
    (w1, b1, w23, b23, w4, b4, w5, b5, w6, b6) = kparams
    bf16 = jnp.bfloat16
    h1 = jax.nn.relu(
        jnp.dot(x.astype(bf16), w1, preferred_element_type=jnp.float32) + b1)
    mulv = jnp.dot(h1.astype(bf16), w23, preferred_element_type=jnp.float32) + b23
    mu, lv = mulv[:, :Z_SIZE], mulv[:, Z_SIZE:]
    z = mu + eps * jnp.exp(0.5 * lv)
    rot = z[:, :CLASSIFIER_SIZE] * w6[0, 0] + b6[0, 0]
    h3 = jax.nn.relu(
        jnp.dot(z.astype(bf16), w4, preferred_element_type=jnp.float32) + b4)
    xr = jax.nn.sigmoid(
        jnp.dot(h3.astype(bf16), w5, preferred_element_type=jnp.float32) + b5)
    return xr, mu, lv, rot


if __name__ == "__main__":
    key = jax.random.PRNGKey(0)
    kx, keps, kp = jax.random.split(key, 3)

    B = 256  # real-ish MNIST batch; tile_b=128 -> 2 grid steps, still tiny/fast
    x = jax.random.uniform(kx, (B, IN_DIM), jnp.float32)        # MNIST-like in [0,1)
    eps = jax.random.uniform(keps, (B, Z_SIZE), jnp.float32)    # matches torch.rand_like
    params = init_params(kp)
    kparams = pack_params(params)

    outs = scale_vae_forward(x, eps, kparams, tile_b=128)
    outs = jax.block_until_ready(outs)

    refs = reference_forward(x, eps, kparams)
    for o, r in zip(outs, refs):
        assert o.shape == r.shape and o.dtype == r.dtype
        assert jnp.allclose(o, r, atol=2e-3, rtol=2e-3), "mismatch vs reference"

    print("KERNEL_OK")
</pallas_src>

<mosaic_0001>
module attributes {stable_mosaic.version = 11 : i64} {
  func.func @_vae_kernel(%arg0: i32, %arg1: memref<128x784xf32, #tpu.memory_space<vmem>>, %arg2: memref<128x4xf32, #tpu.memory_space<vmem>>, %arg3: memref<784x512xbf16, #tpu.memory_space<vmem>>, %arg4: memref<1x512xf32, #tpu.memory_space<vmem>>, %arg5: memref<512x8xbf16, #tpu.memory_space<vmem>>, %arg6: memref<1x8xf32, #tpu.memory_space<vmem>>, %arg7: memref<4x512xbf16, #tpu.memory_space<vmem>>, %arg8: memref<1x512xf32, #tpu.memory_space<vmem>>, %arg9: memref<512x784xbf16, #tpu.memory_space<vmem>>, %arg10: memref<1x784xf32, #tpu.memory_space<vmem>>, %arg11: memref<1x1xf32, #tpu.memory_space<smem>>, %arg12: memref<1x1xf32, #tpu.memory_space<smem>>, %arg13: memref<128x784xf32, #tpu.memory_space<vmem>>, %arg14: memref<128x16xf32, #tpu.memory_space<vmem>>) attributes {dimension_semantics = [#tpu.dimension_semantics<parallel>], iteration_bounds = array<i64: 2>, scalar_prefetch = 0 : i64, scratch_operands = 0 : i64, tpu.core_type = #tpu.core_type<tc>, window_params = [{transform_indices = @transform_0, window_bounds = array<i64: 128, 784>}, {transform_indices = @transform_1, window_bounds = array<i64: 128, 4>}, {pipeline_mode = #tpu.pipeline_mode<synchronous>, transform_indices = @transform_2, window_bounds = array<i64: 784, 512>}, {pipeline_mode = #tpu.pipeline_mode<synchronous>, transform_indices = @transform_3, window_bounds = array<i64: 1, 512>}, {pipeline_mode = #tpu.pipeline_mode<synchronous>, transform_indices = @transform_4, window_bounds = array<i64: 512, 8>}, {pipeline_mode = #tpu.pipeline_mode<synchronous>, transform_indices = @transform_5, window_bounds = array<i64: 1, 8>}, {pipeline_mode = #tpu.pipeline_mode<synchronous>, transform_indices = @transform_6, window_bounds = array<i64: 4, 512>}, {pipeline_mode = #tpu.pipeline_mode<synchronous>, transform_indices = @transform_7, window_bounds = array<i64: 1, 512>}, {pipeline_mode = #tpu.pipeline_mode<synchronous>, transform_indices = @transform_8, window_bounds = array<i64: 512, 784>}, {pipeline_mode = #tpu.pipeline_mode<synchronous>, transform_indices = @transform_9, window_bounds = array<i64: 1, 784>}, {transform_indices = @transform_10, window_bounds = array<i64: 1, 1>}, {transform_indices = @transform_11, window_bounds = array<i64: 1, 1>}, {transform_indices = @transform_12, window_bounds = array<i64: 128, 784>}, {transform_indices = @transform_13, window_bounds = array<i64: 128, 16>}]} {
    %c0 = arith.constant 0 : index
    %c0_0 = arith.constant 0 : index
    %0 = vector.load %arg1[%c0, %c0_0] : memref<128x784xf32, #tpu.memory_space<vmem>>, vector<128x784xf32>
    %1 = arith.truncf %0 : vector<128x784xf32> to vector<128x784xbf16>
    %c0_1 = arith.constant 0 : index
    %c0_2 = arith.constant 0 : index
    %2 = vector.load %arg3[%c0_1, %c0_2] : memref<784x512xbf16, #tpu.memory_space<vmem>>, vector<784x512xbf16>
    %cst = arith.constant dense<0.000000e+00> : vector<128x512xf32>
    %3 = tpu.matmul %1, %2, %cst {dimension_numbers = #tpu.dot_dimension_numbers<[1], [0], [0], [1], [0, 0, 1, 1], [], []>} : vector<128x784xbf16>, vector<784x512xbf16>, vector<128x512xf32> -> vector<128x512xf32>
    %c0_3 = arith.constant 0 : index
    %c0_4 = arith.constant 0 : index
    %4 = vector.load %arg4[%c0_3, %c0_4] : memref<1x512xf32, #tpu.memory_space<vmem>>, vector<1x512xf32>
    %5 = vector.broadcast %4 : vector<1x512xf32> to vector<128x512xf32>
    %6 = arith.addf %3, %5 : vector<128x512xf32>
    %cst_5 = arith.constant 0.000000e+00 : f32
    %7 = vector.broadcast %cst_5 : f32 to vector<128x512xf32>
    %8 = arith.maximumf %6, %7 : vector<128x512xf32>
    %9 = arith.truncf %8 : vector<128x512xf32> to vector<128x512xbf16>
    %c0_6 = arith.constant 0 : index
    %c0_7 = arith.constant 0 : index
    %10 = vector.load %arg5[%c0_6, %c0_7] : memref<512x8xbf16, #tpu.memory_space<vmem>>, vector<512x8xbf16>
    %cst_8 = arith.constant dense<0.000000e+00> : vector<128x8xf32>
    %11 = tpu.matmul %9, %10, %cst_8 {dimension_numbers = #tpu.dot_dimension_numbers<[1], [0], [0], [1], [0, 0, 1, 1], [], []>} : vector<128x512xbf16>, vector<512x8xbf16>, vector<128x8xf32> -> vector<128x8xf32>
    %c0_9 = arith.constant 0 : index
    %c0_10 = arith.constant 0 : index
    %12 = vector.load %arg6[%c0_9, %c0_10] : memref<1x8xf32, #tpu.memory_space<vmem>>, vector<1x8xf32>
    %13 = vector.broadcast %12 : vector<1x8xf32> to vector<128x8xf32>
    %14 = arith.addf %11, %13 : vector<128x8xf32>
    %15 = vector.extract_strided_slice %14 {offsets = [0, 0], sizes = [128, 4], strides = [1, 1]} : vector<128x8xf32> to vector<128x4xf32>
    %16 = vector.extract_strided_slice %14 {offsets = [0, 4], sizes = [128, 4], strides = [1, 1]} : vector<128x8xf32> to vector<128x4xf32>
    %cst_11 = arith.constant 5.000000e-01 : f32
    %17 = vector.broadcast %cst_11 : f32 to vector<128x4xf32>
    %18 = arith.mulf %17, %16 : vector<128x4xf32>
    %19 = math.exp %18 : vector<128x4xf32>
    %c0_12 = arith.constant 0 : index
    %c0_13 = arith.constant 0 : index
    %20 = vector.load %arg2[%c0_12, %c0_13] : memref<128x4xf32, #tpu.memory_space<vmem>>, vector<128x4xf32>
    %21 = arith.mulf %20, %19 : vector<128x4xf32>
    %22 = arith.addf %15, %21 : vector<128x4xf32>
    %23 = vector.extract_strided_slice %22 {offsets = [0, 0], sizes = [128, 1], strides = [1, 1]} : vector<128x4xf32> to vector<128x1xf32>
    %c0_14 = arith.constant 0 : index
    %c0_15 = arith.constant 0 : index
    %24 = memref.load %arg11[%c0_14, %c0_15] : memref<1x1xf32, #tpu.memory_space<smem>>
    %25 = vector.broadcast %24 : f32 to vector<128x1xf32>
    %26 = arith.mulf %23, %25 : vector<128x1xf32>
    %c0_16 = arith.constant 0 : index
    %c0_17 = arith.constant 0 : index
    %27 = memref.load %arg12[%c0_16, %c0_17] : memref<1x1xf32, #tpu.memory_space<smem>>
    %28 = vector.broadcast %27 : f32 to vector<128x1xf32>
    %29 = arith.addf %26, %28 : vector<128x1xf32>
    %30 = arith.truncf %22 : vector<128x4xf32> to vector<128x4xbf16>
    %c0_18 = arith.constant 0 : index
    %c0_19 = arith.constant 0 : index
    %31 = vector.load %arg7[%c0_18, %c0_19] : memref<4x512xbf16, #tpu.memory_space<vmem>>, vector<4x512xbf16>
    %cst_20 = arith.constant dense<0.000000e+00> : vector<128x512xf32>
    %32 = tpu.matmul %30, %31, %cst_20 {dimension_numbers = #tpu.dot_dimension_numbers<[1], [0], [0], [1], [0, 0, 1, 1], [], []>} : vector<128x4xbf16>, vector<4x512xbf16>, vector<128x512xf32> -> vector<128x512xf32>
    %c0_21 = arith.constant 0 : index
    %c0_22 = arith.constant 0 : index
    %33 = vector.load %arg8[%c0_21, %c0_22] : memref<1x512xf32, #tpu.memory_space<vmem>>, vector<1x512xf32>
    %34 = vector.broadcast %33 : vector<1x512xf32> to vector<128x512xf32>
    %35 = arith.addf %32, %34 : vector<128x512xf32>
    %cst_23 = arith.constant 0.000000e+00 : f32
    %36 = vector.broadcast %cst_23 : f32 to vector<128x512xf32>
    %37 = arith.maximumf %35, %36 : vector<128x512xf32>
    %38 = arith.truncf %37 : vector<128x512xf32> to vector<128x512xbf16>
    %c0_24 = arith.constant 0 : index
    %c0_25 = arith.constant 0 : index
    %39 = vector.load %arg9[%c0_24, %c0_25] : memref<512x784xbf16, #tpu.memory_space<vmem>>, vector<512x784xbf16>
    %cst_26 = arith.constant dense<0.000000e+00> : vector<128x784xf32>
    %40 = tpu.matmul %38, %39, %cst_26 {dimension_numbers = #tpu.dot_dimension_numbers<[1], [0], [0], [1], [0, 0, 1, 1], [], []>} : vector<128x512xbf16>, vector<512x784xbf16>, vector<128x784xf32> -> vector<128x784xf32>
    %c0_27 = arith.constant 0 : index
    %c0_28 = arith.constant 0 : index
    %41 = vector.load %arg10[%c0_27, %c0_28] : memref<1x784xf32, #tpu.memory_space<vmem>>, vector<1x784xf32>
    %42 = vector.broadcast %41 : vector<1x784xf32> to vector<128x784xf32>
    %43 = arith.addf %40, %42 : vector<128x784xf32>
    %44 = arith.negf %43 : vector<128x784xf32>
    %45 = math.exp %44 : vector<128x784xf32>
    %cst_29 = arith.constant 1.000000e+00 : f32
    %46 = vector.broadcast %cst_29 : f32 to vector<128x784xf32>
    %47 = arith.addf %46, %45 : vector<128x784xf32>
    %48 = arith.divf %46, %47 : vector<128x784xf32>
    %c0_30 = arith.constant 0 : index
    %c0_31 = arith.constant 0 : index
    %49 = vector.load %arg13[%c0_30, %c0_31] : memref<128x784xf32, #tpu.memory_space<vmem>>, vector<128x784xf32>
    tpu.vector_store %arg13[%c0_30, %c0_31], %48 {strides = array<i32>} : memref<128x784xf32, #tpu.memory_space<vmem>>, vector<128x784xf32>,
    %cst_32 = arith.constant 0.000000e+00 : f32
    %50 = vector.broadcast %cst_32 : f32 to vector<128x16xf32>
    %c0_33 = arith.constant 0 : index
    %c0_34 = arith.constant 0 : index
    %51 = vector.load %arg14[%c0_33, %c0_34] : memref<128x16xf32, #tpu.memory_space<vmem>>, vector<128x16xf32>
    tpu.vector_store %arg14[%c0_33, %c0_34], %50 {strides = array<i32>} : memref<128x16xf32, #tpu.memory_space<vmem>>, vector<128x16xf32>,
    %c0_35 = arith.constant 0 : index
    %c0_36 = arith.constant 0 : index
    %52 = vector.load %arg14[%c0_35, %c0_36] : memref<128x16xf32, #tpu.memory_space<vmem>>, vector<128x8xf32>
    tpu.vector_store %arg14[%c0_35, %c0_36], %14 {strides = array<i32>} : memref<128x16xf32, #tpu.memory_space<vmem>>, vector<128x8xf32>,
    %c0_37 = arith.constant 0 : index
    %c8 = arith.constant 8 : index
    %53 = vector.load %arg14[%c0_37, %c8] : memref<128x16xf32, #tpu.memory_space<vmem>>, vector<128x1xf32>
    tpu.vector_store %arg14[%c0_37, %c8], %29 {strides = array<i32>} : memref<128x16xf32, #tpu.memory_space<vmem>>, vector<128x1xf32>,
    return
  }
  func.func @transform_0(%arg0: i32) -> (i32, i32) {
    %c0_i32 = arith.constant 0 : i32
    %c0_i32_0 = arith.constant 0 : i32
    return %arg0, %c0_i32 : i32, i32
  }
  func.func @transform_1(%arg0: i32) -> (i32, i32) {
    %c0_i32 = arith.constant 0 : i32
    %c0_i32_0 = arith.constant 0 : i32
    return %arg0, %c0_i32 : i32, i32
  }
  func.func @transform_2(%arg0: i32) -> (i32, i32) {
    %c0_i32 = arith.constant 0 : i32
    %c0_i32_0 = arith.constant 0 : i32
    %c0_i32_1 = arith.constant 0 : i32
    return %c0_i32, %c0_i32_0 : i32, i32
  }
  func.func @transform_3(%arg0: i32) -> (i32, i32) {
    %c0_i32 = arith.constant 0 : i32
    %c0_i32_0 = arith.constant 0 : i32
    %c0_i32_1 = arith.constant 0 : i32
    return %c0_i32, %c0_i32_0 : i32, i32
  }
  func.func @transform_4(%arg0: i32) -> (i32, i32) {
    %c0_i32 = arith.constant 0 : i32
    %c0_i32_0 = arith.constant 0 : i32
    %c0_i32_1 = arith.constant 0 : i32
    return %c0_i32, %c0_i32_0 : i32, i32
  }
  func.func @transform_5(%arg0: i32) -> (i32, i32) {
    %c0_i32 = arith.constant 0 : i32
    %c0_i32_0 = arith.constant 0 : i32
    %c0_i32_1 = arith.constant 0 : i32
    return %c0_i32, %c0_i32_0 : i32, i32
  }
  func.func @transform_6(%arg0: i32) -> (i32, i32) {
    %c0_i32 = arith.constant 0 : i32
    %c0_i32_0 = arith.constant 0 : i32
    %c0_i32_1 = arith.constant 0 : i32
    return %c0_i32, %c0_i32_0 : i32, i32
  }
  func.func @transform_7(%arg0: i32) -> (i32, i32) {
    %c0_i32 = arith.constant 0 : i32
    %c0_i32_0 = arith.constant 0 : i32
    %c0_i32_1 = arith.constant 0 : i32
    return %c0_i32, %c0_i32_0 : i32, i32
  }
  func.func @transform_8(%arg0: i32) -> (i32, i32) {
    %c0_i32 = arith.constant 0 : i32
    %c0_i32_0 = arith.constant 0 : i32
    %c0_i32_1 = arith.constant 0 : i32
    return %c0_i32, %c0_i32_0 : i32, i32
  }
  func.func @transform_9(%arg0: i32) -> (i32, i32) {
    %c0_i32 = arith.constant 0 : i32
    %c0_i32_0 = arith.constant 0 : i32
    %c0_i32_1 = arith.constant 0 : i32
    return %c0_i32, %c0_i32_0 : i32, i32
  }
  func.func @transform_10(%arg0: i32) -> (i32, i32) {
    %c0_i32 = arith.constant 0 : i32
    %c0_i32_0 = arith.constant 0 : i32
    %c0_i32_1 = arith.constant 0 : i32
    return %c0_i32, %c0_i32_0 : i32, i32
  }
  func.func @transform_11(%arg0: i32) -> (i32, i32) {
    %c0_i32 = arith.constant 0 : i32
    %c0_i32_0 = arith.constant 0 : i32
    %c0_i32_1 = arith.constant 0 : i32
    return %c0_i32, %c0_i32_0 : i32, i32
  }
  func.func @transform_12(%arg0: i32) -> (i32, i32) {
    %c0_i32 = arith.constant 0 : i32
    %c0_i32_0 = arith.constant 0 : i32
    return %arg0, %c0_i32 : i32, i32
  }
  func.func @transform_13(%arg0: i32) -> (i32, i32) {
    %c0_i32 = arith.constant 0 : i32
    %c0_i32_0 = arith.constant 0 : i32
    return %arg0, %c0_i32 : i32, i32
  }
}

</mosaic_0001>

<llo_original>
// kernel: tpu_custom_call.1
$region0: #{tpu_custom_call.1}
  #allocation0 [shape = 'u32[]', space=smem, size = 0x4, offset = 0x4, fixed_abs, tag = 'smem constant byte address 0x4 - core index']
  #allocation1 [shape = 'u32[144,128]{1,0:T(1,128)}', space=vmem, size = 0x12000, scoped, tag = 'internal scratch']
  #allocation2 [shape = 'f32[1,1]{1,0:T(1,128)S(6)}', space=smem, size = 0x200, scoped, tag = 'scoped memory for tpu_custom_call.1']
  #allocation3 [shape = 'f32[1,1]{1,0:T(1,128)S(6)}', space=smem, size = 0x200, scoped, tag = 'scoped memory for tpu_custom_call.1']
  %s0 = inlined_call_operand.vmem [shape: f32[256,784], index: 0, kind: input, shape index: {}]
  %s1 = inlined_call_operand.vmem [shape: f32[256,4], index: 1, kind: input, shape index: {}]
  %s2 = inlined_call_operand.vmem [shape: bf16[784,512], index: 2, kind: input, shape index: {}]
  %s3 = inlined_call_operand.vmem [shape: f32[1,512], index: 3, kind: input, shape index: {}]
  %s4 = inlined_call_operand.vmem [shape: bf16[512,8], index: 4, kind: input, shape index: {}]
  %s5 = inlined_call_operand.vmem [shape: f32[1,8], index: 5, kind: input, shape index: {}]
  %s6 = inlined_call_operand.vmem [shape: bf16[4,512], index: 6, kind: input, shape index: {}]
  %s7 = inlined_call_operand.vmem [shape: f32[1,512], index: 7, kind: input, shape index: {}]
  %s8 = inlined_call_operand.vmem [shape: bf16[512,784], index: 8, kind: input, shape index: {}]
  %s9 = inlined_call_operand.vmem [shape: f32[1,784], index: 9, kind: input, shape index: {}]
  %s10 = inlined_call_operand.<no memory space> [shape: f32[1,1], index: 10, kind: input, shape index: {}]
  %s11 = inlined_call_operand.<no memory space> [shape: f32[1,1], index: 11, kind: input, shape index: {}]
  %s12 = inlined_call_operand.vmem [shape: f32[256,784], index: 12, kind: output, shape index: {0}]
  %s13 = inlined_call_operand.vmem [shape: f32[256,16], index: 13, kind: output, shape index: {1}]
  %14 = xla_tuple %s12, %s13
  %s15 = sld [smem:[#allocation0]]
  $region89: #{tpu_custom_call.1} parent=0
    _
  %s17 = ssub.s32 1, %s15
  %s18 = scalar_select 0, %s17, %s15
  %19 = sst [smem:[#allocation2]] %s10
  %20 = sst [smem:[#allocation3]] %s11
  loop: start=0, step=1, limit=4
  $region2: #{tpu_custom_call.1} parent=0 // loop_pre_header
    _
  $region3: #{tpu_custom_call.1} parent=0 // loop_header
    %s22 = sphi 0, %s26
    %p23 = scmp.ge.s32.totalorder %s22, 4
    %s32 = sphi 0, %s34
    %s35 = sphi 0, %s32
    %s36 = sphi 0, %s35
    %s52 = sphi 0, %s36
    %s58 = sphi 0, %s60
    %s61 = sphi 0, %s58
    %s62 = sphi 0, %s61
    %s78 = sphi 0, %s62
    %s82 = sphi 0, %s82
    %s84 = sphi 0, %s82
    %s85 = sphi 0, %s84
    %s99 = sphi 0, %s85
    %s103 = sphi 0, %s103
    %s105 = sphi 0, %s103
    %s106 = sphi 0, %s105
    %s120 = sphi 0, %s106
    %s124 = sphi 0, %s124
    %s126 = sphi 0, %s124
    %s127 = sphi 0, %s126
    %s141 = sphi 0, %s127
    %s145 = sphi 0, %s145
    %s147 = sphi 0, %s145
    %s148 = sphi 0, %s147
    %s162 = sphi 0, %s148
    %s166 = sphi 0, %s166
    %s168 = sphi 0, %s166
    %s169 = sphi 0, %s168
    %s183 = sphi 0, %s169
    %s187 = sphi 0, %s187
    %s189 = sphi 0, %s187
    %s190 = sphi 0, %s189
    %s204 = sphi 0, %s190
    %s208 = sphi 0, %s208
    %s210 = sphi 0, %s208
    %s211 = sphi 0, %s210
    %s225 = sphi 0, %s211
    %s229 = sphi 0, %s229
    %s231 = sphi 0, %s229
    %s232 = sphi 0, %s231
    %s246 = sphi 0, %s232
    %s250 = sphi 0, %s250
    %s252 = sphi 0, %s250
    %s253 = sphi 0, %s252
    %s267 = sphi 0, %s253
    %s271 = sphi 0, %s271
    %s273 = sphi 0, %s271
    %s274 = sphi 0, %s273
    %s288 = sphi 0, %s274
    %s294 = sphi 0, %s296
    %s297 = sphi 0, %s294
    %s298 = sphi 0, %s297
    %s314 = sphi 0, %s298
    %s320 = sphi 0, %s322
    %s323 = sphi 0, %s320
    %s324 = sphi 0, %s323
    %s340 = sphi 0, %s324
  $region4: #{tpu_custom_call.1} parent=0 // loop_header_branch
    %25 = sbr.rel (%p23) target = $region8
  $region5: #{tpu_custom_call.1} parent=0 // loop_body
    %s27 = ssub.s32 %s22, 1
    %s28 = ssub.s32 %s22, 2
    %s29 = sadd.s32 %s22, 1
    %s30 = ssub.s32 %s22, %s29
    %p31 = scmp.eq.s32.totalorder %s30, 0
    %s33 = sadd.s32 %s32, 1
    %s34 = scalar_select %p31, %s32, %s33
    %p37 = pneg %p31
    %p38 = scmp.eq.s32.totalorder %s22, 1
    %p39 = por %p37, %p38
    %p40 = scmp.ne.s32.totalorder %s32, %s35
    %p41 = scmp.eq.s32.totalorder %s22, 0
    %p42 = por %p40, %p41
    %p43 = scmp.ne.s32.totalorder %s32, %s35
    %p44 = scmp.eq.s32.totalorder %s27, 1
    %p45 = por %p43, %p44
    %p46 = scmp.ne.s32.totalorder %s35, %s36
    %p47 = scmp.eq.s32.totalorder %s27, 0
    %p48 = por %p46, %p47
    %p49 = scmp.ne.s32.totalorder %s35, %s36
    %p50 = scmp.eq.s32.totalorder %s28, 1
    %p51 = por %p49, %p50
    %p53 = scmp.ne.s32.totalorder %s36, %s52
    %p54 = scmp.eq.s32.totalorder %s28, 0
    %p55 = por %p53, %p54
    %s56 = ssub.s32 %s22, %s29
    %p57 = scmp.eq.s32.totalorder %s56, 0
    %s59 = sadd.s32 %s58, 1
    %s60 = scalar_select %p57, %s58, %s59
    %p63 = pneg %p57
    %p64 = scmp.eq.s32.totalorder %s22, 1
    %p65 = por %p63, %p64
    %p66 = scmp.ne.s32.totalorder %s58, %s61
    %p67 = scmp.eq.s32.totalorder %s22, 0
    %p68 = por %p66, %p67
    %p69 = scmp.ne.s32.totalorder %s58, %s61
    %p70 = scmp.eq.s32.totalorder %s27, 1
    %p71 = por %p69, %p70
    %p72 = scmp.ne.s32.totalorder %s61, %s62
    %p73 = scmp.eq.s32.totalorder %s27, 0
    %p74 = por %p72, %p73
    %p75 = scmp.ne.s32.totalorder %s61, %s62
    %p76 = scmp.eq.s32.totalorder %s28, 1
    %p77 = por %p75, %p76
    %p79 = scmp.ne.s32.totalorder %s62, %s78
    %p80 = scmp.eq.s32.totalorder %s28, 0
    %p81 = por %p79, %p80
    %s83 = sadd.s32 %s82, 1
    %p86 = scmp.eq.s32.totalorder %s22, 1
    %p87 = scmp.ne.s32.totalorder %s82, %s84
    %p88 = scmp.eq.s32.totalorder %s22, 0
    %p89 = por %p87, %p88
    %p90 = scmp.ne.s32.totalorder %s82, %s84
    %p91 = scmp.eq.s32.totalorder %s27, 1
    %p92 = por %p90, %p91
    %p93 = scmp.ne.s32.totalorder %s84, %s85
    %p94 = scmp.eq.s32.totalorder %s27, 0
    %p95 = por %p93, %p94
    %p96 = scmp.ne.s32.totalorder %s84, %s85
    %p97 = scmp.eq.s32.totalorder %s28, 1
    %p98 = por %p96, %p97
    %p100 = scmp.ne.s32.totalorder %s85, %s99
    %p101 = scmp.eq.s32.totalorder %s28, 0
    %p102 = por %p100, %p101
    %s104 = sadd.s32 %s103, 1
    %p107 = scmp.eq.s32.totalorder %s22, 1
    %p108 = scmp.ne.s32.totalorder %s103, %s105
    %p109 = scmp.eq.s32.totalorder %s22, 0
    %p110 = por %p108, %p109
    %p111 = scmp.ne.s32.totalorder %s103, %s105
    %p112 = scmp.eq.s32.totalorder %s27, 1
    %p113 = por %p111, %p112
    %p114 = scmp.ne.s32.totalorder %s105, %s106
    %p115 = scmp.eq.s32.totalorder %s27, 0
    %p116 = por %p114, %p115
    %p117 = scmp.ne.s32.totalorder %s105, %s106
    %p118 = scmp.eq.s32.totalorder %s28, 1
    %p119 = por %p117, %p118
    %p121 = scmp.ne.s32.totalorder %s106, %s120
    %p122 = scmp.eq.s32.totalorder %s28, 0
    %p123 = por %p121, %p122
    %s125 = sadd.s32 %s124, 1
    %p128 = scmp.eq.s32.totalorder %s22, 1
    %p129 = scmp.ne.s32.totalorder %s124, %s126
    %p130 = scmp.eq.s32.totalorder %s22, 0
    %p131 = por %p129, %p130
    %p132 = scmp.ne.s32.totalorder %s124, %s126
    %p133 = scmp.eq.s32.totalorder %s27, 1
    %p134 = por %p132, %p133
    %p135 = scmp.ne.s32.totalorder %s126, %s127
    %p136 = scmp.eq.s32.totalorder %s27, 0
    %p137 = por %p135, %p136
    %p138 = scmp.ne.s32.totalorder %s126, %s127
    %p139 = scmp.eq.s32.totalorder %s28, 1
    %p140 = por %p138, %p139
    %p142 = scmp.ne.s32.totalorder %s127, %s141
    %p143 = scmp.eq.s32.totalorder %s28, 0
    %p144 = por %p142, %p143
    %s146 = sadd.s32 %s145, 1
    %p149 = scmp.eq.s32.totalorder %s22, 1
    %p150 = scmp.ne.s32.totalorder %s145, %s147
    %p151 = scmp.eq.s32.totalorder %s22, 0
    %p152 = por %p150, %p151
    %p153 = scmp.ne.s32.totalorder %s145, %s147
    %p154 = scmp.eq.s32.totalorder %s27, 1
    %p155 = por %p153, %p154
    %p156 = scmp.ne.s32.totalorder %s147, %s148
    %p157 = scmp.eq.s32.totalorder %s27, 0
    %p158 = por %p156, %p157
    %p159 = scmp.ne.s32.totalorder %s147, %s148
    %p160 = scmp.eq.s32.totalorder %s28, 1
    %p161 = por %p159, %p160
    %p163 = scmp.ne.s32.totalorder %s148, %s162
    %p164 = scmp.eq.s32.totalorder %s28, 0
    %p165 = por %p163, %p164
    %s167 = sadd.s32 %s166, 1
    %p170 = scmp.eq.s32.totalorder %s22, 1
    %p171 = scmp.ne.s32.totalorder %s166, %s168
    %p172 = scmp.eq.s32.totalorder %s22, 0
    %p173 = por %p171, %p172
    %p174 = scmp.ne.s32.totalorder %s166, %s168
    %p175 = scmp.eq.s32.totalorder %s27, 1
    %p176 = por %p174, %p175
    %p177 = scmp.ne.s32.totalorder %s168, %s169
    %p178 = scmp.eq.s32.totalorder %s27, 0
    %p179 = por %p177, %p178
    %p180 = scmp.ne.s32.totalorder %s168, %s169
    %p181 = scmp.eq.s32.totalorder %s28, 1
    %p182 = por %p180, %p181
    %p184 = scmp.ne.s32.totalorder %s169, %s183
    %p185 = scmp.eq.s32.totalorder %s28, 0
    %p186 = por %p184, %p185
    %s188 = sadd.s32 %s187, 1
    %p191 = scmp.eq.s32.totalorder %s22, 1
    %p192 = scmp.ne.s32.totalorder %s187, %s189
    %p193 = scmp.eq.s32.totalorder %s22, 0
    %p194 = por %p192, %p193
    %p195 = scmp.ne.s32.totalorder %s187, %s189
    %p196 = scmp.eq.s32.totalorder %s27, 1
    %p197 = por %p195, %p196
    %p198 = scmp.ne.s32.totalorder %s189, %s190
    %p199 = scmp.eq.s32.totalorder %s27, 0
    %p200 = por %p198, %p199
    %p201 = scmp.ne.s32.totalorder %s189, %s190
    %p202 = scmp.eq.s32.totalorder %s28, 1
    %p203 = por %p201, %p202
    %p205 = scmp.ne.s32.totalorder %s190, %s204
    %p206 = scmp.eq.s32.totalorder %s28, 0
    %p207 = por %p205, %p206
    %s209 = sadd.s32 %s208, 1
    %p212 = scmp.eq.s32.totalorder %s22, 1
    %p213 = scmp.ne.s32.totalorder %s208, %s210
    %p214 = scmp.eq.s32.totalorder %s22, 0
    %p215 = por %p213, %p214
    %p216 = scmp.ne.s32.totalorder %s208, %s210
    %p217 = scmp.eq.s32.totalorder %s27, 1
    %p218 = por %p216, %p217
    %p219 = scmp.ne.s32.totalorder %s210, %s211
    %p220 = scmp.eq.s32.totalorder %s27, 0
    %p221 = por %p219, %p220
    %p222 = scmp.ne.s32.totalorder %s210, %s211
    %p223 = scmp.eq.s32.totalorder %s28, 1
    %p224 = por %p222, %p223
    %p226 = scmp.ne.s32.totalorder %s211, %s225
    %p227 = scmp.eq.s32.totalorder %s28, 0
    %p228 = por %p226, %p227
    %s230 = sadd.s32 %s229, 1
    %p233 = scmp.eq.s32.totalorder %s22, 1
    %p234 = scmp.ne.s32.totalorder %s229, %s231
    %p235 = scmp.eq.s32.totalorder %s22, 0
    %p236 = por %p234, %p235
    %p237 = scmp.ne.s32.totalorder %s229, %s231
    %p238 = scmp.eq.s32.totalorder %s27, 1
    %p239 = por %p237, %p238
    %p240 = scmp.ne.s32.totalorder %s231, %s232
    %p241 = scmp.eq.s32.totalorder %s27, 0
    %p242 = por %p240, %p241
    %p243 = scmp.ne.s32.totalorder %s231, %s232
    %p244 = scmp.eq.s32.totalorder %s28, 1
    %p245 = por %p243, %p244
    %p247 = scmp.ne.s32.totalorder %s232, %s246
    %p248 = scmp.eq.s32.totalorder %s28, 0
    %p249 = por %p247, %p248
    %s251 = sadd.s32 %s250, 1
    %p254 = scmp.eq.s32.totalorder %s22, 1
    %p255 = scmp.ne.s32.totalorder %s250, %s252
    %p256 = scmp.eq.s32.totalorder %s22, 0
    %p257 = por %p255, %p256
    %p258 = scmp.ne.s32.totalorder %s250, %s252
    %p259 = scmp.eq.s32.totalorder %s27, 1
    %p260 = por %p258, %p259
    %p261 = scmp.ne.s32.totalorder %s252, %s253
    %p262 = scmp.eq.s32.totalorder %s27, 0
    %p263 = por %p261, %p262
    %p264 = scmp.ne.s32.totalorder %s252, %s253
    %p265 = scmp.eq.s32.totalorder %s28, 1
    %p266 = por %p264, %p265
    %p268 = scmp.ne.s32.totalorder %s253, %s267
    %p269 = scmp.eq.s32.totalorder %s28, 0
    %p270 = por %p268, %p269
    %s272 = sadd.s32 %s271, 1
    %p275 = scmp.eq.s32.totalorder %s22, 1
    %p276 = scmp.ne.s32.totalorder %s271, %s273
    %p277 = scmp.eq.s32.totalorder %s22, 0
    %p278 = por %p276, %p277
    %p279 = scmp.ne.s32.totalorder %s271, %s273
    %p280 = scmp.eq.s32.totalorder %s27, 1
    %p281 = por %p279, %p280
    %p282 = scmp.ne.s32.totalorder %s273, %s274
    %p283 = scmp.eq.s32.totalorder %s27, 0
    %p284 = por %p282, %p283
    %p285 = scmp.ne.s32.totalorder %s273, %s274
    %p286 = scmp.eq.s32.totalorder %s28, 1
    %p287 = por %p285, %p286
    %p289 = scmp.ne.s32.totalorder %s274, %s288
    %p290 = scmp.eq.s32.totalorder %s28, 0
    %p291 = por %p289, %p290
    %s292 = ssub.s32 %s22, %s29
    %p293 = scmp.eq.s32.totalorder %s292, 0
    %s295 = sadd.s32 %s294, 1
    %s296 = scalar_select %p293, %s294, %s295
    %p299 = pneg %p293
    %p300 = scmp.eq.s32.totalorder %s22, 1
    %p301 = por %p299, %p300
    %p302 = scmp.ne.s32.totalorder %s294, %s297
    %p303 = scmp.eq.s32.totalorder %s22, 0
    %p304 = por %p302, %p303
    %p305 = scmp.ne.s32.totalorder %s294, %s297
    %p306 = scmp.eq.s32.totalorder %s27, 1
    %p307 = por %p305, %p306
    %p308 = scmp.ne.s32.totalorder %s297, %s298
    %p309 = scmp.eq.s32.totalorder %s27, 0
    %p310 = por %p308, %p309
    %p311 = scmp.ne.s32.totalorder %s297, %s298
    %p312 = scmp.eq.s32.totalorder %s28, 1
    %p313 = por %p311, %p312
    %p315 = scmp.ne.s32.totalorder %s298, %s314
    %p316 = scmp.eq.s32.totalorder %s28, 0
    %p317 = por %p315, %p316
    %s318 = ssub.s32 %s22, %s29
    %p319 = scmp.eq.s32.totalorder %s318, 0
    %s321 = sadd.s32 %s320, 1
    %s322 = scalar_select %p319, %s320, %s321
    %p325 = pneg %p319
    %p326 = scmp.eq.s32.totalorder %s22, 1
    %p327 = por %p325, %p326
    %p328 = scmp.ne.s32.totalorder %s320, %s323
    %p329 = scmp.eq.s32.totalorder %s22, 0
    %p330 = por %p328, %p329
    %p331 = scmp.ne.s32.totalorder %s320, %s323
    %p332 = scmp.eq.s32.totalorder %s27, 1
    %p333 = por %p331, %p332
    %p334 = scmp.ne.s32.totalorder %s323, %s324
    %p335 = scmp.eq.s32.totalorder %s27, 0
    %p336 = por %p334, %p335
    %p337 = scmp.ne.s32.totalorder %s323, %s324
    %p338 = scmp.eq.s32.totalorder %s28, 1
    %p339 = por %p337, %p338
    %p341 = scmp.ne.s32.totalorder %s324, %s340
    %p342 = scmp.eq.s32.totalorder %s28, 0
    %p343 = por %p341, %p342
    %p344 = scmp.le.s32.totalorder 1, %s22
    %p345 = scmp.lt.s32.totalorder %s22, 3
    %p346 = pnand %p344, %p345
    %p347 = pneg %p346
    // Predicated region
    $region9: #{tpu_custom_call.1} parent=5 // pred_check
      _
    $region10: #{tpu_custom_call.1} parent=5 // pred_check_branch
      %349 = sbr.rel (%p346) target = $region12
    $region11: #{tpu_custom_call.1} parent=5 // pred_region
      %s350 = ssub.s32 %s22, 1
      // Predicated region
      $region13: #{tpu_custom_call.1} parent=11 // pred_check
        %p351 = pneg %p95
      $region14: #{tpu_custom_call.1} parent=11 // pred_check_branch
        %353 = sbr.rel (%p351) target = $region16
      $region15: #{tpu_custom_call.1} parent=11 // pred_region
        _
      $region16: #{tpu_custom_call.1} parent=11 // pred_fallthru
        _
      // Predicated region
      $region17: #{tpu_custom_call.1} parent=11 // pred_check
        %p354 = pneg %p116
      $region18: #{tpu_custom_call.1} parent=11 // pred_check_branch
        %356 = sbr.rel (%p354) target = $region20
      $region19: #{tpu_custom_call.1} parent=11 // pred_region
        _
      $region20: #{tpu_custom_call.1} parent=11 // pred_fallthru
        _
      // Predicated region
      $region21: #{tpu_custom_call.1} parent=11 // pred_check
        %p357 = pneg %p137
      $region22: #{tpu_custom_call.1} parent=11 // pred_check_branch
        %359 = sbr.rel (%p357) target = $region24
      $region23: #{tpu_custom_call.1} parent=11 // pred_region
        _
      $region24: #{tpu_custom_call.1} parent=11 // pred_fallthru
        _
      // Predicated region
      $region25: #{tpu_custom_call.1} parent=11 // pred_check
        %p360 = pneg %p158
      $region26: #{tpu_custom_call.1} parent=11 // pred_check_branch
        %362 = sbr.rel (%p360) target = $region28
      $region27: #{tpu_custom_call.1} parent=11 // pred_region
        _
      $region28: #{tpu_custom_call.1} parent=11 // pred_fallthru
        _
      // Predicated region
      $region29: #{tpu_custom_call.1} parent=11 // pred_check
        %p363 = pneg %p179
      $region30: #{tpu_custom_call.1} parent=11 // pred_check_branch
        %365 = sbr.rel (%p363) target = $region32
      $region31: #{tpu_custom_call.1} parent=11 // pred_region
        _
      $region32: #{tpu_custom_call.1} parent=11 // pred_fallthru
        _
      // Predicated region
      $region33: #{tpu_custom_call.1} parent=11 // pred_check
        %p366 = pneg %p200
      $region34: #{tpu_custom_call.1} parent=11 // pred_check_branch
        %368 = sbr.rel (%p366) target = $region36
      $region35: #{tpu_custom_call.1} parent=11 // pred_region
        _
      $region36: #{tpu_custom_call.1} parent=11 // pred_fallthru
        _
      // Predicated region
      $region37: #{tpu_custom_call.1} parent=11 // pred_check
        %p369 = pneg %p221
      $region38: #{tpu_custom_call.1} parent=11 // pred_check_branch
        %371 = sbr.rel (%p369) target = $region40
      $region39: #{tpu_custom_call.1} parent=11 // pred_region
        _
      $region40: #{tpu_custom_call.1} parent=11 // pred_fallthru
        _
      // Predicated region
      $region41: #{tpu_custom_call.1} parent=11 // pred_check
        %p372 = pneg %p242
      $region42: #{tpu_custom_call.1} parent=11 // pred_check_branch
        %374 = sbr.rel (%p372) target = $region44
      $region43: #{tpu_custom_call.1} parent=11 // pred_region
        _
      $region44: #{tpu_custom_call.1} parent=11 // pred_fallthru
        _
      // Predicated region
      $region45: #{tpu_custom_call.1} parent=11 // pred_check
        %p375 = pneg %p263
      $region46: #{tpu_custom_call.1} parent=11 // pred_check_branch
        %377 = sbr.rel (%p375) target = $region48
      $region47: #{tpu_custom_call.1} parent=11 // pred_region
        _
      $region48: #{tpu_custom_call.1} parent=11 // pred_fallthru
        _
      // Predicated region
      $region49: #{tpu_custom_call.1} parent=11 // pred_check
        %p378 = pneg %p284
      $region50: #{tpu_custom_call.1} parent=11 // pred_check_branch
        %380 = sbr.rel (%p378) target = $region52
      $region51: #{tpu_custom_call.1} parent=11 // pred_region
        _
      $region52: #{tpu_custom_call.1} parent=11 // pred_fallthru
        _
    $region12: #{tpu_custom_call.1} parent=5 // pred_fallthru
      _
    %p381 = scmp.lt.s32.totalorder %s22, 2
    // Predicated region
    $region53: #{tpu_custom_call.1} parent=5 // pred_check
      %p382 = pneg %p381
    $region54: #{tpu_custom_call.1} parent=5 // pred_check_branch
      %384 = sbr.rel (%p382) target = $region56
    $region55: #{tpu_custom_call.1} parent=5 // pred_region
      // Predicated region
      $region57: #{tpu_custom_call.1} parent=55 // pred_check
        %p385 = pneg %p42
      $region58: #{tpu_custom_call.1} parent=55 // pred_check_branch
        %387 = sbr.rel (%p385) target = $region60
      $region59: #{tpu_custom_call.1} parent=55 // pred_region
        %s388 = smul.u32 16, %s22
        %p389 = scmp.lt.s32.totalorder %s388, 31
        %s390 = scalar_select %p389, %s388, 31
        %s391 = smul.addr %s390, 7
        %s392 = smul.addr %s391, 8
        %s393 = scalar_lea.vmem %s0, %s392
        %s394 = smul.u32 16, %s22
      $region60: #{tpu_custom_call.1} parent=55 // pred_fallthru
        _
      // Predicated region
      $region61: #{tpu_custom_call.1} parent=55 // pred_check
        %p395 = pneg %p68
      $region62: #{tpu_custom_call.1} parent=55 // pred_check_branch
        %397 = sbr.rel (%p395) target = $region64
      $region63: #{tpu_custom_call.1} parent=55 // pred_region
        %s398 = smul.u32 16, %s22
        %p399 = scmp.lt.s32.totalorder %s398, 31
        %s400 = scalar_select %p399, %s398, 31
        %s401 = smul.addr %s400, 8
        %s402 = scalar_lea.vmem %s1, %s401
        %s403 = smul.u32 16, %s22
      $region64: #{tpu_custom_call.1} parent=55 // pred_fallthru
        _
    $region56: #{tpu_custom_call.1} parent=5 // pred_fallthru
      _
    %p404 = scmp.le.s32.totalorder 1, %s22
    %p405 = scmp.lt.s32.totalorder %s22, 3
    %p406 = pnand %p404, %p405
    %p407 = pneg %p406
    // Predicated region
    $region65: #{tpu_custom_call.1} parent=5 // pred_check
      _
    $region66: #{tpu_custom_call.1} parent=5 // pred_check_branch
      %409 = sbr.rel (%p406) target = $region68
    $region67: #{tpu_custom_call.1} parent=5 // pred_region
      %s410 = ssub.s32 %s22, 1
      %s411 = smul.u32 16, %s27
      %p412 = scmp.lt.s32.totalorder %s411, 31
      %s413 = scalar_select %p412, %s411, 31
      %s414 = smul.addr %s413, 7
      %s415 = smul.addr %s414, 8
      %s416 = scalar_lea.vmem %s0, %s415
      %p417 = pneg %p48
      %p418 = pneg %p45
      %s419 = smul.u32 16, %s27
      %p420 = scmp.lt.s32.totalorder %s419, 31
      %s421 = scalar_select %p420, %s419, 31
      %s422 = smul.addr %s421, 8
      %s423 = scalar_lea.vmem %s1, %s422
      %p424 = pneg %p74
      %p425 = pneg %p71
      %p426 = pneg %p95
      %p427 = pneg %p92
      %p428 = pneg %p116
      %p429 = pneg %p113
      %p430 = pneg %p137
      %p431 = pneg %p134
      %p432 = pneg %p158
      %p433 = pneg %p155
      %p434 = pneg %p179
      %p435 = pneg %p176
      %p436 = pneg %p200
      %p437 = pneg %p197
      %p438 = pneg %p221
      %p439 = pneg %p218
      %p440 = pneg %p242
      %p441 = pneg %p239
      %p442 = pneg %p263
      %p443 = pneg %p260
      %p444 = pneg %p284
      %p445 = pneg %p281
      %p446 = pneg %p310
      %p447 = pneg %p307
      %s448 = smul.u32 16, %s27
      %p449 = scmp.lt.s32.totalorder %s448, 31
      %s450 = scalar_select %p449, %s448, 31
      %s451 = smul.addr %s450, 7
      %s452 = smul.addr %s451, 8
      %s453 = scalar_lea.vmem %s12, %s452
      %p454 = pneg %p336
      %p455 = pneg %p333
      %s456 = smul.u32 16, %s27
      %p457 = scmp.lt.s32.totalorder %s456, 31
      %s458 = scalar_select %p457, %s456, 31
      %s459 = smul.addr %s458, 8
      %s460 = scalar_lea.vmem %s13, %s459
      %s461 = smul.u32 16, %s27
      %p462 = scmp.lt.s32.totalorder %s461, 31
      %s463 = scalar_select %p462, %s461, 31
      %s464 = smul.addr %s463, 7
      %s465 = smul.addr %s464, 8
      %s466 = scalar_lea.vmem %s0, %s465
      %s467 = smul.u32 16, %s27
      %s468 = smul.u32 16, %s27
      %p469 = scmp.lt.s32.totalorder %s468, 31
      %s470 = scalar_select %p469, %s468, 31
      %s471 = smul.addr %s470, 8
      %s472 = scalar_lea.vmem %s1, %s471
      %s473 = smul.u32 16, %s27
      %s474 = smul.u32 16, %s27
      %p475 = scmp.lt.s32.totalorder %s474, 31
      %s476 = scalar_select %p475, %s474, 31
      %s477 = smul.addr %s476, 7
      %s478 = smul.addr %s477, 8
      %s479 = scalar_lea.vmem %s12, %s478
      %s480 = smul.u32 16, %s27
      %s481 = smul.u32 16, %s27
      %p482 = scmp.lt.s32.totalorder %s481, 31
      %s483 = scalar_select %p482, %s481, 31
      %s484 = smul.addr %s483, 8
      %s485 = scalar_lea.vmem %s13, %s484
      %s486 = smul.u32 16, %s27
      %v488 = vld [vmem:[%s466] sm:$0xff]
      %v489 = vld [vmem:[%s466 + $0x8] sm:$0xff]
      %v490 = vld [vmem:[%s466 + $0x10] sm:$0xff]
      %v491 = vld [vmem:[%s466 + $0x18] sm:$0xff]
      %v492 = vld [vmem:[%s466 + $0x20] sm:$0xff]
      %v493 = vld [vmem:[%s466 + $0x28] sm:$0xff]
      %v494 = vld [vmem:[%s466 + $0x30] sm:$0xff]
      %v495 = vld [vmem:[%s466 + $0x38] sm:$0xff]
      %v496 = vld [vmem:[%s466 + $0x40] sm:$0xff]
      %v497 = vld [vmem:[%s466 + $0x48] sm:$0xff]
      %v498 = vld [vmem:[%s466 + $0x50] sm:$0xff]
      %v499 = vld [vmem:[%s466 + $0x58] sm:$0xff]
      %v500 = vld [vmem:[%s466 + $0x60] sm:$0xff]
      %v501 = vld [vmem:[%s466 + $0x68] sm:$0xff]
      %v502 = vld [vmem:[%s466 + $0x70] sm:$0xff]
      %v503 = vld [vmem:[%s466 + $0x78] sm:$0xff]
      %v504 = vld [vmem:[%s466 + $0x80] sm:$0xff]
      %v505 = vld [vmem:[%s466 + $0x88] sm:$0xff]
      %v506 = vld [vmem:[%s466 + $0x90] sm:$0xff]
      %v507 = vld [vmem:[%s466 + $0x98] sm:$0xff]
      %v508 = vld [vmem:[%s466 + $0xa0] sm:$0xff]
      %v509 = vld [vmem:[%s466 + $0xa8] sm:$0xff]
      %v510 = vld [vmem:[%s466 + $0xb0] sm:$0xff]
      %v511 = vld [vmem:[%s466 + $0xb8] sm:$0xff]
      %v512 = vld [vmem:[%s466 + $0xc0] sm:$0xff]
      %v513 = vld [vmem:[%s466 + $0xc8] sm:$0xff]
      %v514 = vld [vmem:[%s466 + $0xd0] sm:$0xff]
      %v515 = vld [vmem:[%s466 + $0xd8] sm:$0xff]
      %v516 = vld [vmem:[%s466 + $0xe0] sm:$0xff]
      %v517 = vld [vmem:[%s466 + $0xe8] sm:$0xff]
      %v518 = vld [vmem:[%s466 + $0xf0] sm:$0xff]
      %v519 = vld [vmem:[%s466 + $0xf8] sm:$0xff]
      %v520 = vld [vmem:[%s466 + $0x100] sm:$0xff]
      %v521 = vld [vmem:[%s466 + $0x108] sm:$0xff]
      %v522 = vld [vmem:[%s466 + $0x110] sm:$0xff]
      %v523 = vld [vmem:[%s466 + $0x118] sm:$0xff]
      %v524 = vld [vmem:[%s466 + $0x120] sm:$0xff]
      %v525 = vld [vmem:[%s466 + $0x128] sm:$0xff]
      %v526 = vld [vmem:[%s466 + $0x130] sm:$0xff]
      %v527 = vld [vmem:[%s466 + $0x138] sm:$0xff]
      %v528 = vld [vmem:[%s466 + $0x140] sm:$0xff]
      %v529 = vld [vmem:[%s466 + $0x148] sm:$0xff]
      %v530 = vld [vmem:[%s466 + $0x150] sm:$0xff]
      %v531 = vld [vmem:[%s466 + $0x158] sm:$0xff]
      %v532 = vld [vmem:[%s466 + $0x160] sm:$0xff]
      %v533 = vld [vmem:[%s466 + $0x168] sm:$0xff]
      %v534 = vld [vmem:[%s466 + $0x170] sm:$0xff]
      %v535 = vld [vmem:[%s466 + $0x178] sm:$0xff]
      %v536 = vld [vmem:[%s466 + $0x180] sm:$0xff]
      %v537 = vld [vmem:[%s466 + $0x188] sm:$0xff]
      %v538 = vld [vmem:[%s466 + $0x190] sm:$0xff]
      %v539 = vld [vmem:[%s466 + $0x198] sm:$0xff]
      %v540 = vld [vmem:[%s466 + $0x1a0] sm:$0xff]
      %v541 = vld [vmem:[%s466 + $0x1a8] sm:$0xff]
      %v542 = vld [vmem:[%s466 + $0x1b0] sm:$0xff]
      %v543 = vld [vmem:[%s466 + $0x1b8] sm:$0xff]
      %v544 = vld [vmem:[%s466 + $0x1c0] sm:$0xff]
      %v545 = vld [vmem:[%s466 + $0x1c8] sm:$0xff]
      %v546 = vld [vmem:[%s466 + $0x1d0] sm:$0xff]
      %v547 = vld [vmem:[%s466 + $0x1d8] sm:$0xff]
      %v548 = vld [vmem:[%s466 + $0x1e0] sm:$0xff]
      %v549 = vld [vmem:[%s466 + $0x1e8] sm:$0xff]
      %v550 = vld [vmem:[%s466 + $0x1f0] sm:$0xff]
      %v551 = vld [vmem:[%s466 + $0x1f8] sm:$0xff]
      %v552 = vld [vmem:[%s466 + $0x200] sm:$0xff]
      %v553 = vld [vmem:[%s466 + $0x208] sm:$0xff]
      %v554 = vld [vmem:[%s466 + $0x210] sm:$0xff]
      %v555 = vld [vmem:[%s466 + $0x218] sm:$0xff]
      %v556 = vld [vmem:[%s466 + $0x220] sm:$0xff]
      %v557 = vld [vmem:[%s466 + $0x228] sm:$0xff]
      %v558 = vld [vmem:[%s466 + $0x230] sm:$0xff]
      %v559 = vld [vmem:[%s466 + $0x238] sm:$0xff]
      %v560 = vld [vmem:[%s466 + $0x240] sm:$0xff]
      %v561 = vld [vmem:[%s466 + $0x248] sm:$0xff]
      %v562 = vld [vmem:[%s466 + $0x250] sm:$0xff]
      %v563 = vld [vmem:[%s466 + $0x258] sm:$0xff]
      %v564 = vld [vmem:[%s466 + $0x260] sm:$0xff]
      %v565 = vld [vmem:[%s466 + $0x268] sm:$0xff]
      %v566 = vld [vmem:[%s466 + $0x270] sm:$0xff]
      %v567 = vld [vmem:[%s466 + $0x278] sm:$0xff]
      %v568 = vld [vmem:[%s466 + $0x280] sm:$0xff]
      %v569 = vld [vmem:[%s466 + $0x288] sm:$0xff]
      %v570 = vld [vmem:[%s466 + $0x290] sm:$0xff]
      %v571 = vld [vmem:[%s466 + $0x298] sm:$0xff]
      %v572 = vld [vmem:[%s466 + $0x2a0] sm:$0xff]
      %v573 = vld [vmem:[%s466 + $0x2a8] sm:$0xff]
      %v574 = vld [vmem:[%s466 + $0x2b0] sm:$0xff]
      %v575 = vld [vmem:[%s466 + $0x2b8] sm:$0xff]
      %v576 = vld [vmem:[%s466 + $0x2c0] sm:$0xff]
      %v577 = vld [vmem:[%s466 + $0x2c8] sm:$0xff]
      %v578 = vld [vmem:[%s466 + $0x2d0] sm:$0xff]
      %v579 = vld [vmem:[%s466 + $0x2d8] sm:$0xff]
      %v580 = vld [vmem:[%s466 + $0x2e0] sm:$0xff]
      %v581 = vld [vmem:[%s466 + $0x2e8] sm:$0xff]
      %v582 = vld [vmem:[%s466 + $0x2f0] sm:$0xff]
      %v583 = vld [vmem:[%s466 + $0x2f8] sm:$0xff]
      %v584 = vld [vmem:[%s466 + $0x300] sm:$0xff]
      %v585 = vld [vmem:[%s466 + $0x308] sm:$0xff]
      %v586 = vld [vmem:[%s466 + $0x310] sm:$0xff]
      %v587 = vld [vmem:[%s466 + $0x318] sm:$0xff]
      %v588 = vld [vmem:[%s466 + $0x320] sm:$0xff]
      %v589 = vld [vmem:[%s466 + $0x328] sm:$0xff]
      %v590 = vld [vmem:[%s466 + $0x330] sm:$0xff]
      %v591 = vld [vmem:[%s466 + $0x338] sm:$0xff]
      %v592 = vld [vmem:[%s466 + $0x340] sm:$0xff]
      %v593 = vld [vmem:[%s466 + $0x348] sm:$0xff]
      %v594 = vld [vmem:[%s466 + $0x350] sm:$0xff]
      %v595 = vld [vmem:[%s466 + $0x358] sm:$0xff]
      %v596 = vld [vmem:[%s466 + $0x360] sm:$0xff]
      %v597 = vld [vmem:[%s466 + $0x368] sm:$0xff]
      %v598 = vld [vmem:[%s466 + $0x370] sm:$0xff]
      %v599 = vld [vmem:[%s466 + $0x378] sm:$0xff]
      %v600 = vpack.c.bf16 %v495, %v488
      %v601 = vpack.c.bf16 %v496, %v489
      %v602 = vpack.c.bf16 %v497, %v490
      %v603 = vpack.c.bf16 %v498, %v491
      %v604 = vpack.c.bf16 %v499, %v492
      %v605 = vpack.c.bf16 %v500, %v493
      %v606 = vpack.c.bf16 %v501, %v494
      %v607 = vpack.c.bf16 %v509, %v502
      %v608 = vpack.c.bf16 %v510, %v503
      %v609 = vpack.c.bf16 %v511, %v504
      %v610 = vpack.c.bf16 %v512, %v505
      %v611 = vpack.c.bf16 %v513, %v506
      %v612 = vpack.c.bf16 %v514, %v507
      %v613 = vpack.c.bf16 %v515, %v508
      %v614 = vpack.c.bf16 %v523, %v516
      %v615 = vpack.c.bf16 %v524, %v517
      %v616 = vpack.c.bf16 %v525, %v518
      %v617 = vpack.c.bf16 %v526, %v519
      %v618 = vpack.c.bf16 %v527, %v520
      %v619 = vpack.c.bf16 %v528, %v521
      %v620 = vpack.c.bf16 %v529, %v522
      %v621 = vpack.c.bf16 %v537, %v530
      %v622 = vpack.c.bf16 %v538, %v531
      %v623 = vpack.c.bf16 %v539, %v532
      %v624 = vpack.c.bf16 %v540, %v533
      %v625 = vpack.c.bf16 %v541, %v534
      %v626 = vpack.c.bf16 %v542, %v535
      %v627 = vpack.c.bf16 %v543, %v536
      %v628 = vpack.c.bf16 %v551, %v544
      %v629 = vpack.c.bf16 %v552, %v545
      %v630 = vpack.c.bf16 %v553, %v546
      %v631 = vpack.c.bf16 %v554, %v547
      %v632 = vpack.c.bf16 %v555, %v548
      %v633 = vpack.c.bf16 %v556, %v549
      %v634 = vpack.c.bf16 %v557, %v550
      %v635 = vpack.c.bf16 %v565, %v558
      %v636 = vpack.c.bf16 %v566, %v559
      %v637 = vpack.c.bf16 %v567, %v560
      %v638 = vpack.c.bf16 %v568, %v561
      %v639 = vpack.c.bf16 %v569, %v562
      %v640 = vpack.c.bf16 %v570, %v563
      %v641 = vpack.c.bf16 %v571, %v564
      %v642 = vpack.c.bf16 %v579, %v572
      %v643 = vpack.c.bf16 %v580, %v573
      %v644 = vpack.c.bf16 %v581, %v574
      %v645 = vpack.c.bf16 %v582, %v575
      %v646 = vpack.c.bf16 %v583, %v576
      %v647 = vpack.c.bf16 %v584, %v577
      %v648 = vpack.c.bf16 %v585, %v578
      %v649 = vpack.c.bf16 %v593, %v586
      %v650 = vpack.c.bf16 %v594, %v587
      %v651 = vpack.c.bf16 %v595, %v588
      %v652 = vpack.c.bf16 %v596, %v589
      %v653 = vpack.c.bf16 %v597, %v590
      %v654 = vpack.c.bf16 %v598, %v591
      %v655 = vpack.c.bf16 %v599, %v592
      %v656 = vld [vmem:[%s2] sm:$0xff]
      %v657 = vld [vmem:[%s2 + $0x8] sm:$0xff]
      %v658 = vld [vmem:[%s2 + $0x10] sm:$0xff]
      %v659 = vld [vmem:[%s2 + $0x18] sm:$0xff]
      %v660 = vld [vmem:[%s2 + $0x20] sm:$0xff]
      %v661 = vld [vmem:[%s2 + $0x28] sm:$0xff]
      %v662 = vld [vmem:[%s2 + $0x30] sm:$0xff]
      %v663 = vld [vmem:[%s2 + $0x38] sm:$0xff]
      %v664 = vld [vmem:[%s2 + $0x40] sm:$0xff]
      %v665 = vld [vmem:[%s2 + $0x48] sm:$0xff]
      %v666 = vld [vmem:[%s2 + $0x50] sm:$0xff]
      %v667 = vld [vmem:[%s2 + $0x58] sm:$0xff]
      %v668 = vld [vmem:[%s2 + $0x60] sm:$0xff]
      %v669 = vld [vmem:[%s2 + $0x68] sm:$0xff]
      %v670 = vld [vmem:[%s2 + $0x70] sm:$0xff]
      %v671 = vld [vmem:[%s2 + $0x78] sm:$0xff]
      %v672 = vld [vmem:[%s2 + $0x80] sm:$0xff]
      %v673 = vld [vmem:[%s2 + $0x88] sm:$0xff]
      %v674 = vld [vmem:[%s2 + $0x90] sm:$0xff]
      %v675 = vld [vmem:[%s2 + $0x98] sm:$0xff]
      %v676 = vld [vmem:[%s2 + $0xa0] sm:$0xff]
      %v677 = vld [vmem:[%s2 + $0xa8] sm:$0xff]
      %v678 = vld [vmem:[%s2 + $0xb0] sm:$0xff]
      %v679 = vld [vmem:[%s2 + $0xb8] sm:$0xff]
      %v680 = vld [vmem:[%s2 + $0xc0] sm:$0xff]
      %v681 = vld [vmem:[%s2 + $0xc8] sm:$0xff]
      %v682 = vld [vmem:[%s2 + $0xd0] sm:$0xff]
      %v683 = vld [vmem:[%s2 + $0xd8] sm:$0xff]
      %v684 = vld [vmem:[%s2 + $0xe0] sm:$0xff]
      %v685 = vld [vmem:[%s2 + $0xe8] sm:$0xff]
      %v686 = vld [vmem:[%s2 + $0xf0] sm:$0xff]
      %v687 = vld [vmem:[%s2 + $0xf8] sm:$0xff]
      %v688 = vld [vmem:[%s2 + $0x100] sm:$0xff]
      %v689 = vld [vmem:[%s2 + $0x108] sm:$0xff]
      %v690 = vld [vmem:[%s2 + $0x110] sm:$0xff]
      %v691 = vld [vmem:[%s2 + $0x118] sm:$0xff]
      %v692 = vld [vmem:[%s2 + $0x120] sm:$0xff]
      %v693 = vld [vmem:[%s2 + $0x128] sm:$0xff]
      %v694 = vld [vmem:[%s2 + $0x130] sm:$0xff]
      %v695 = vld [vmem:[%s2 + $0x138] sm:$0xff]
      %v696 = vld [vmem:[%s2 + $0x140] sm:$0xff]
      %v697 = vld [vmem:[%s2 + $0x148] sm:$0xff]
      %v698 = vld [vmem:[%s2 + $0x150] sm:$0xff]
      %v699 = vld [vmem:[%s2 + $0x158] sm:$0xff]
      %v700 = vld [vmem:[%s2 + $0x160] sm:$0xff]
      %v701 = vld [vmem:[%s2 + $0x168] sm:$0xff]
      %v702 = vld [vmem:[%s2 + $0x170] sm:$0xff]
      %v703 = vld [vmem:[%s2 + $0x178] sm:$0xff]
      %v704 = vld [vmem:[%s2 + $0x180] sm:$0xff]
      %v705 = vld [vmem:[%s2 + $0x188] sm:$0xff]
      %v706 = vld [vmem:[%s2 + $0x190] sm:$0xff]
      %v707 = vld [vmem:[%s2 + $0x198] sm:$0xff]
      %v708 = vld [vmem:[%s2 + $0x1a0] sm:$0xff]
      %v709 = vld [vmem:[%s2 + $0x1a8] sm:$0xff]
      %v710 = vld [vmem:[%s2 + $0x1b0] sm:$0xff]
      %v711 = vld [vmem:[%s2 + $0x1b8] sm:$0xff]
      %v712 = vld [vmem:[%s2 + $0x1c0] sm:$0xff]
      %v713 = vld [vmem:[%s2 + $0x1c8] sm:$0xff]
      %v714 = vld [vmem:[%s2 + $0x1d0] sm:$0xff]
      %v715 = vld [vmem:[%s2 + $0x1d8] sm:$0xff]
      %v716 = vld [vmem:[%s2 + $0x1e0] sm:$0xff]
      %v717 = vld [vmem:[%s2 + $0x1e8] sm:$0xff]
      %v718 = vld [vmem:[%s2 + $0x1f0] sm:$0xff]
      %v719 = vld [vmem:[%s2 + $0x1f8] sm:$0xff]
      %v720 = vld [vmem:[%s2 + $0x200] sm:$0xff]
      %v721 = vld [vmem:[%s2 + $0x208] sm:$0xff]
      %v722 = vld [vmem:[%s2 + $0x210] sm:$0xff]
      %v723 = vld [vmem:[%s2 + $0x218] sm:$0xff]
      %v724 = vld [vmem:[%s2 + $0x220] sm:$0xff]
      %v725 = vld [vmem:[%s2 + $0x228] sm:$0xff]
      %v726 = vld [vmem:[%s2 + $0x230] sm:$0xff]
      %v727 = vld [vmem:[%s2 + $0x238] sm:$0xff]
      %v728 = vld [vmem:[%s2 + $0x240] sm:$0xff]
      %v729 = vld [vmem:[%s2 + $0x248] sm:$0xff]
      %v730 = vld [vmem:[%s2 + $0x250] sm:$0xff]
      %v731 = vld [vmem:[%s2 + $0x258] sm:$0xff]
      %v732 = vld [vmem:[%s2 + $0x260] sm:$0xff]
      %v733 = vld [vmem:[%s2 + $0x268] sm:$0xff]
      %v734 = vld [vmem:[%s2 + $0x270] sm:$0xff]
      %v735 = vld [vmem:[%s2 + $0x278] sm:$0xff]
      %v736 = vld [vmem:[%s2 + $0x280] sm:$0xff]
      %v737 = vld [vmem:[%s2 + $0x288] sm:$0xff]
      %v738 = vld [vmem:[%s2 + $0x290] sm:$0xff]
      %v739 = vld [vmem:[%s2 + $0x298] sm:$0xff]
      %v740 = vld [vmem:[%s2 + $0x2a0] sm:$0xff]
      %v741 = vld [vmem:[%s2 + $0x2a8] sm:$0xff]
      %v742 = vld [vmem:[%s2 + $0x2b0] sm:$0xff]
      %v743 = vld [vmem:[%s2 + $0x2b8] sm:$0xff]
      %v744 = vld [vmem:[%s2 + $0x2c0] sm:$0xff]
      %v745 = vld [vmem:[%s2 + $0x2c8] sm:$0xff]
      %v746 = vld [vmem:[%s2 + $0x2d0] sm:$0xff]
      %v747 = vld [vmem:[%s2 + $0x2d8] sm:$0xff]
      %v748 = vld [vmem:[%s2 + $0x2e0] sm:$0xff]
      %v749 = vld [vmem:[%s2 + $0x2e8] sm:$0xff]
      %v750 = vld [vmem:[%s2 + $0x2f0] sm:$0xff]
      %v751 = vld [vmem:[%s2 + $0x2f8] sm:$0xff]
      %v752 = vld [vmem:[%s2 + $0x300] sm:$0xff]
      %v753 = vld [vmem:[%s2 + $0x308] sm:$0xff]
      %v754 = vld [vmem:[%s2 + $0x310] sm:$0xff]
      %v755 = vld [vmem:[%s2 + $0x318] sm:$0xff]
      %v756 = vld [vmem:[%s2 + $0x320] sm:$0xff]
      %v757 = vld [vmem:[%s2 + $0x328] sm:$0xff]
      %v758 = vld [vmem:[%s2 + $0x330] sm:$0xff]
      %v759 = vld [vmem:[%s2 + $0x338] sm:$0xff]
      %v760 = vld [vmem:[%s2 + $0x340] sm:$0xff]
      %v761 = vld [vmem:[%s2 + $0x348] sm:$0xff]
      %v762 = vld [vmem:[%s2 + $0x350] sm:$0xff]
      %v763 = vld [vmem:[%s2 + $0x358] sm:$0xff]
      %v764 = vld [vmem:[%s2 + $0x360] sm:$0xff]
      %v765 = vld [vmem:[%s2 + $0x368] sm:$0xff]
      %v766 = vld [vmem:[%s2 + $0x370] sm:$0xff]
      %v767 = vld [vmem:[%s2 + $0x378] sm:$0xff]
      %v768 = vld [vmem:[%s2 + $0x380] sm:$0xff]
      %v769 = vld [vmem:[%s2 + $0x388] sm:$0xff]
      %v770 = vld [vmem:[%s2 + $0x390] sm:$0xff]
      %v771 = vld [vmem:[%s2 + $0x398] sm:$0xff]
      %v772 = vld [vmem:[%s2 + $0x3a0] sm:$0xff]
      %v773 = vld [vmem:[%s2 + $0x3a8] sm:$0xff]
      %v774 = vld [vmem:[%s2 + $0x3b0] sm:$0xff]
      %v775 = vld [vmem:[%s2 + $0x3b8] sm:$0xff]
      %v776 = vld [vmem:[%s2 + $0x3c0] sm:$0xff]
      %v777 = vld [vmem:[%s2 + $0x3c8] sm:$0xff]
      %v778 = vld [vmem:[%s2 + $0x3d0] sm:$0xff]
      %v779 = vld [vmem:[%s2 + $0x3d8] sm:$0xff]
      %v780 = vld [vmem:[%s2 + $0x3e0] sm:$0xff]
      %v781 = vld [vmem:[%s2 + $0x3e8] sm:$0xff]
      %v782 = vld [vmem:[%s2 + $0x3f0] sm:$0xff]
      %v783 = vld [vmem:[%s2 + $0x3f8] sm:$0xff]
      %v784 = vld [vmem:[%s2 + $0x400] sm:$0xff]
      %v785 = vld [vmem:[%s2 + $0x408] sm:$0xff]
      %v786 = vld [vmem:[%s2 + $0x410] sm:$0xff]
      %v787 = vld [vmem:[%s2 + $0x418] sm:$0xff]
      %v788 = vld [vmem:[%s2 + $0x420] sm:$0xff]
      %v789 = vld [vmem:[%s2 + $0x428] sm:$0xff]
      %v790 = vld [vmem:[%s2 + $0x430] sm:$0xff]
      %v791 = vld [vmem:[%s2 + $0x438] sm:$0xff]
      %v792 = vld [vmem:[%s2 + $0x440] sm:$0xff]
      %v793 = vld [vmem:[%s2 + $0x448] sm:$0xff]
      %v794 = vld [vmem:[%s2 + $0x450] sm:$0xff]
      %v795 = vld [vmem:[%s2 + $0x458] sm:$0xff]
      %v796 = vld [vmem:[%s2 + $0x460] sm:$0xff]
      %v797 = vld [vmem:[%s2 + $0x468] sm:$0xff]
      %v798 = vld [vmem:[%s2 + $0x470] sm:$0xff]
      %v799 = vld [vmem:[%s2 + $0x478] sm:$0xff]
      %v800 = vld [vmem:[%s2 + $0x480] sm:$0xff]
      %v801 = vld [vmem:[%s2 + $0x488] sm:$0xff]
      %v802 = vld [vmem:[%s2 + $0x490] sm:$0xff]
      %v803 = vld [vmem:[%s2 + $0x498] sm:$0xff]
      %v804 = vld [vmem:[%s2 + $0x4a0] sm:$0xff]
      %v805 = vld [vmem:[%s2 + $0x4a8] sm:$0xff]
      %v806 = vld [vmem:[%s2 + $0x4b0] sm:$0xff]
      %v807 = vld [vmem:[%s2 + $0x4b8] sm:$0xff]
      %v808 = vld [vmem:[%s2 + $0x4c0] sm:$0xff]
      %v809 = vld [vmem:[%s2 + $0x4c8] sm:$0xff]
      %v810 = vld [vmem:[%s2 + $0x4d0] sm:$0xff]
      %v811 = vld [vmem:[%s2 + $0x4d8] sm:$0xff]
      %v812 = vld [vmem:[%s2 + $0x4e0] sm:$0xff]
      %v813 = vld [vmem:[%s2 + $0x4e8] sm:$0xff]
      %v814 = vld [vmem:[%s2 + $0x4f0] sm:$0xff]
      %v815 = vld [vmem:[%s2 + $0x4f8] sm:$0xff]
      %v816 = vld [vmem:[%s2 + $0x500] sm:$0xff]
      %v817 = vld [vmem:[%s2 + $0x508] sm:$0xff]
      %v818 = vld [vmem:[%s2 + $0x510] sm:$0xff]
      %v819 = vld [vmem:[%s2 + $0x518] sm:$0xff]
      %v820 = vld [vmem:[%s2 + $0x520] sm:$0xff]
      %v821 = vld [vmem:[%s2 + $0x528] sm:$0xff]
      %v822 = vld [vmem:[%s2 + $0x530] sm:$0xff]
      %v823 = vld [vmem:[%s2 + $0x538] sm:$0xff]
      %v824 = vld [vmem:[%s2 + $0x540] sm:$0xff]
      %v825 = vld [vmem:[%s2 + $0x548] sm:$0xff]
      %v826 = vld [vmem:[%s2 + $0x550] sm:$0xff]
      %v827 = vld [vmem:[%s2 + $0x558] sm:$0xff]
      %v828 = vld [vmem:[%s2 + $0x560] sm:$0xff]
      %v829 = vld [vmem:[%s2 + $0x568] sm:$0xff]
      %v830 = vld [vmem:[%s2 + $0x570] sm:$0xff]
      %v831 = vld [vmem:[%s2 + $0x578] sm:$0xff]
      %v832 = vld [vmem:[%s2 + $0x580] sm:$0xff]
      %v833 = vld [vmem:[%s2 + $0x588] sm:$0xff]
      %v834 = vld [vmem:[%s2 + $0x590] sm:$0xff]
      %v835 = vld [vmem:[%s2 + $0x598] sm:$0xff]
      %v836 = vld [vmem:[%s2 + $0x5a0] sm:$0xff]
      %v837 = vld [vmem:[%s2 + $0x5a8] sm:$0xff]
      %v838 = vld [vmem:[%s2 + $0x5b0] sm:$0xff]
      %v839 = vld [vmem:[%s2 + $0x5b8] sm:$0xff]
      %v840 = vld [vmem:[%s2 + $0x5c0] sm:$0xff]
      %v841 = vld [vmem:[%s2 + $0x5c8] sm:$0xff]
      %v842 = vld [vmem:[%s2 + $0x5d0] sm:$0xff]
      %v843 = vld [vmem:[%s2 + $0x5d8] sm:$0xff]
      %v844 = vld [vmem:[%s2 + $0x5e0] sm:$0xff]
      %v845 = vld [vmem:[%s2 + $0x5e8] sm:$0xff]
      %v846 = vld [vmem:[%s2 + $0x5f0] sm:$0xff]
      %v847 = vld [vmem:[%s2 + $0x5f8] sm:$0xff]
      %v848 = vld [vmem:[%s2 + $0x600] sm:$0xff]
      %v849 = vld [vmem:[%s2 + $0x608] sm:$0xff]
      %v850 = vld [vmem:[%s2 + $0x610] sm:$0xff]
      %v851 = vld [vmem:[%s2 + $0x618] sm:$0xff]
      %v852 = vld [vmem:[%s3] sm:$0xf]
      %v854 = vlaneseq
      %v855 = vshrl.u32 %v854, 7
      %v856 = vsub.s32 0, %v855
      %v857 = vrot.slane %v852, %v856
      %v858 = vlaneseq
      %v859 = vshrl.u32 %v858, 7
      %v860 = vsub.s32 1, %v859
      %v861 = vrot.slane %v852, %v860
      %v862 = vlaneseq
      %v863 = vshrl.u32 %v862, 7
      %v864 = vsub.s32 2, %v863
      %v865 = vrot.slane %v852, %v864
      %v866 = vlaneseq
      %v867 = vshrl.u32 %v866, 7
      %v868 = vsub.s32 3, %v867
      %v869 = vrot.slane %v852, %v868
      %v1070 = vunpack.c.l.b16 %v656
      %v1071 = vunpack.c.h.b16 %v656
      %v1072 = vunpack.c.l.b16 %v657
      %v1073 = vunpack.c.h.b16 %v657
      %v1074 = vunpack.c.l.b16 %v658
      %v1075 = vunpack.c.h.b16 %v658
      %v1076 = vunpack.c.l.b16 %v659
      %v1077 = vunpack.c.h.b16 %v659
      %v1078 = vunpack.c.l.b16 %v660
      %v1079 = vunpack.c.h.b16 %v660
      %v1080 = vunpack.c.l.b16 %v661
      %v1081 = vunpack.c.h.b16 %v661
      %v1082 = vunpack.c.l.b16 %v662
      %v1083 = vunpack.c.h.b16 %v662
      %v1084 = vunpack.c.l.b16 %v663
      %v1085 = vunpack.c.h.b16 %v663
      %v1086 = vunpack.c.l.b16 %v664
      %v1087 = vunpack.c.h.b16 %v664
      %v1088 = vunpack.c.l.b16 %v665
      %v1089 = vunpack.c.h.b16 %v665
      %v1090 = vunpack.c.l.b16 %v666
      %v1091 = vunpack.c.h.b16 %v666
      %v1092 = vunpack.c.l.b16 %v667
      %v1093 = vunpack.c.h.b16 %v667
      %v1094 = vunpack.c.l.b16 %v668
      %v1095 = vunpack.c.h.b16 %v668
      %v1096 = vunpack.c.l.b16 %v669
      %v1097 = vunpack.c.h.b16 %v669
      %v1098 = vunpack.c.l.b16 %v670
      %v1099 = vunpack.c.h.b16 %v670
      %v1100 = vunpack.c.l.b16 %v671
      %v1101 = vunpack.c.h.b16 %v671
      %v1102 = vunpack.c.l.b16 %v672
      %v1103 = vunpack.c.h.b16 %v672
      %v1104 = vunpack.c.l.b16 %v673
      %v1105 = vunpack.c.h.b16 %v673
      %v1106 = vunpack.c.l.b16 %v674
      %v1107 = vunpack.c.h.b16 %v674
      %v1108 = vunpack.c.l.b16 %v675
      %v1109 = vunpack.c.h.b16 %v675
      %v1110 = vunpack.c.l.b16 %v676
      %v1111 = vunpack.c.h.b16 %v676
      %v1112 = vunpack.c.l.b16 %v677
      %v1113 = vunpack.c.h.b16 %v677
      %v1114 = vunpack.c.l.b16 %v678
      %v1115 = vunpack.c.h.b16 %v678
      %v1116 = vunpack.c.l.b16 %v679
      %v1117 = vunpack.c.h.b16 %v679
      %v1118 = vunpack.c.l.b16 %v680
      %v1119 = vunpack.c.h.b16 %v680
      %v1120 = vunpack.c.l.b16 %v681
      %v1121 = vunpack.c.h.b16 %v681
      %v1122 = vunpack.c.l.b16 %v682
      %v1123 = vunpack.c.h.b16 %v682
      %v1124 = vunpack.c.l.b16 %v683
      %v1125 = vunpack.c.h.b16 %v683
      %v1126 = vunpack.c.l.b16 %v684
      %v1127 = vunpack.c.h.b16 %v684
      %v1128 = vunpack.c.l.b16 %v685
      %v1129 = vunpack.c.h.b16 %v685
      %v1130 = vunpack.c.l.b16 %v686
      %v1131 = vunpack.c.h.b16 %v686
      %v1132 = vunpack.c.l.b16 %v687
      %v1133 = vunpack.c.h.b16 %v687
      %v1134 = vunpack.c.l.b16 %v688
      %v1135 = vunpack.c.h.b16 %v688
      %v1136 = vunpack.c.l.b16 %v689
      %v1137 = vunpack.c.h.b16 %v689
      %v1138 = vunpack.c.l.b16 %v690
      %v1139 = vunpack.c.h.b16 %v690
      %v1140 = vunpack.c.l.b16 %v691
      %v1141 = vunpack.c.h.b16 %v691
      %v1142 = vunpack.c.l.b16 %v692
      %v1143 = vunpack.c.h.b16 %v692
      %v1144 = vunpack.c.l.b16 %v693
      %v1145 = vunpack.c.h.b16 %v693
      %v1146 = vunpack.c.l.b16 %v694
      %v1147 = vunpack.c.h.b16 %v694
      %v1148 = vunpack.c.l.b16 %v695
      %v1149 = vunpack.c.h.b16 %v695
      %v1150 = vunpack.c.l.b16 %v696
      %v1151 = vunpack.c.h.b16 %v696
      %v1152 = vunpack.c.l.b16 %v697
      %v1153 = vunpack.c.h.b16 %v697
      %v1154 = vunpack.c.l.b16 %v698
      %v1155 = vunpack.c.h.b16 %v698
      %v1156 = vunpack.c.l.b16 %v699
      %v1157 = vunpack.c.h.b16 %v699
      %v1158 = vunpack.c.l.b16 %v700
      %v1159 = vunpack.c.h.b16 %v700
      %v1160 = vunpack.c.l.b16 %v701
      %v1161 = vunpack.c.h.b16 %v701
      %v1162 = vunpack.c.l.b16 %v702
      %v1163 = vunpack.c.h.b16 %v702
      %v1164 = vunpack.c.l.b16 %v703
      %v1165 = vunpack.c.h.b16 %v703
      %v1166 = vunpack.c.l.b16 %v704
      %v1167 = vunpack.c.h.b16 %v704
      %v1168 = vunpack.c.l.b16 %v705
      %v1169 = vunpack.c.h.b16 %v705
      %v1170 = vunpack.c.l.b16 %v706
      %v1171 = vunpack.c.h.b16 %v706
      %v1172 = vunpack.c.l.b16 %v707
      %v1173 = vunpack.c.h.b16 %v707
      %v1174 = vunpack.c.l.b16 %v708
      %v1175 = vunpack.c.h.b16 %v708
      %v1176 = vunpack.c.l.b16 %v709
      %v1177 = vunpack.c.h.b16 %v709
      %v1178 = vunpack.c.l.b16 %v710
      %v1179 = vunpack.c.h.b16 %v710
      %v1180 = vunpack.c.l.b16 %v711
      %v1181 = vunpack.c.h.b16 %v711
      %v1182 = vunpack.c.l.b16 %v712
      %v1183 = vunpack.c.h.b16 %v712
      %v1184 = vunpack.c.l.b16 %v713
      %v1185 = vunpack.c.h.b16 %v713
      %v1186 = vunpack.c.l.b16 %v714
      %v1187 = vunpack.c.h.b16 %v714
      %v1188 = vunpack.c.l.b16 %v715
      %v1189 = vunpack.c.h.b16 %v715
      %v1190 = vunpack.c.l.b16 %v716
      %v1191 = vunpack.c.h.b16 %v716
      %v1192 = vunpack.c.l.b16 %v717
      %v1193 = vunpack.c.h.b16 %v717
      %v1194 = vunpack.c.l.b16 %v718
      %v1195 = vunpack.c.h.b16 %v718
      %v1196 = vunpack.c.l.b16 %v719
      %v1197 = vunpack.c.h.b16 %v719
      %v1198 = vunpack.c.l.b16 %v720
      %v1199 = vunpack.c.h.b16 %v720
      %v1200 = vunpack.c.l.b16 %v721
      %v1201 = vunpack.c.h.b16 %v721
      %v1202 = vunpack.c.l.b16 %v722
      %v1203 = vunpack.c.h.b16 %v722
      %v1204 = vunpack.c.l.b16 %v723
      %v1205 = vunpack.c.h.b16 %v723
      %v1206 = vunpack.c.l.b16 %v724
      %v1207 = vunpack.c.h.b16 %v724
      %v1208 = vunpack.c.l.b16 %v725
      %v1209 = vunpack.c.h.b16 %v725
      %v1210 = vunpack.c.l.b16 %v726
      %v1211 = vunpack.c.h.b16 %v726
      %v1212 = vunpack.c.l.b16 %v727
      %v1213 = vunpack.c.h.b16 %v727
      %v1214 = vunpack.c.l.b16 %v728
      %v1215 = vunpack.c.h.b16 %v728
      %v1216 = vunpack.c.l.b16 %v729
      %v1217 = vunpack.c.h.b16 %v729
      %v1218 = vunpack.c.l.b16 %v730
      %v1219 = vunpack.c.h.b16 %v730
      %v1220 = vunpack.c.l.b16 %v731
      %v1221 = vunpack.c.h.b16 %v731
      %v1222 = vunpack.c.l.b16 %v732
      %v1223 = vunpack.c.h.b16 %v732
      %v1224 = vunpack.c.l.b16 %v733
      %v1225 = vunpack.c.h.b16 %v733
      %v1226 = vunpack.c.l.b16 %v734
      %v1227 = vunpack.c.h.b16 %v734
      %v1228 = vunpack.c.l.b16 %v735
      %v1229 = vunpack.c.h.b16 %v735
      %v1230 = vunpack.c.l.b16 %v736
      %v1231 = vunpack.c.h.b16 %v736
      %v1232 = vunpack.c.l.b16 %v737
      %v1233 = vunpack.c.h.b16 %v737
      %v1234 = vunpack.c.l.b16 %v738
      %v1235 = vunpack.c.h.b16 %v738
      %v1236 = vunpack.c.l.b16 %v739
      %v1237 = vunpack.c.h.b16 %v739
      %v1238 = vunpack.c.l.b16 %v740
      %v1239 = vunpack.c.h.b16 %v740
      %v1240 = vunpack.c.l.b16 %v741
      %v1241 = vunpack.c.h.b16 %v741
      %v1242 = vunpack.c.l.b16 %v742
      %v1243 = vunpack.c.h.b16 %v742
      %v1244 = vunpack.c.l.b16 %v743
      %v1245 = vunpack.c.h.b16 %v743
      %v1246 = vunpack.c.l.b16 %v744
      %v1247 = vunpack.c.h.b16 %v744
      %v1248 = vunpack.c.l.b16 %v745
      %v1249 = vunpack.c.h.b16 %v745
      %v1250 = vunpack.c.l.b16 %v746
      %v1251 = vunpack.c.h.b16 %v746
      %v1252 = vunpack.c.l.b16 %v747
      %v1253 = vunpack.c.h.b16 %v747
      %v1254 = vunpack.c.l.b16 %v748
      %v1255 = vunpack.c.h.b16 %v748
      %v1256 = vunpack.c.l.b16 %v749
      %v1257 = vunpack.c.h.b16 %v749
      %v1258 = vunpack.c.l.b16 %v750
      %v1259 = vunpack.c.h.b16 %v750
      %v1260 = vunpack.c.l.b16 %v751
      %v1261 = vunpack.c.h.b16 %v751
      %v1262 = vunpack.c.l.b16 %v752
      %v1263 = vunpack.c.h.b16 %v752
      %v1264 = vunpack.c.l.b16 %v753
      %v1265 = vunpack.c.h.b16 %v753
      %v1266 = vunpack.c.l.b16 %v754
      %v1267 = vunpack.c.h.b16 %v754
      %v1268 = vunpack.c.l.b16 %v755
      %v1269 = vunpack.c.h.b16 %v755
      %v1270 = vunpack.c.l.b16 %v756
      %v1271 = vunpack.c.h.b16 %v756
      %v1272 = vunpack.c.l.b16 %v757
      %v1273 = vunpack.c.h.b16 %v757
      %v1274 = vunpack.c.l.b16 %v758
      %v1275 = vunpack.c.h.b16 %v758
      %v1276 = vunpack.c.l.b16 %v759
      %v1277 = vunpack.c.h.b16 %v759
      %v1278 = vunpack.c.l.b16 %v760
      %v1279 = vunpack.c.h.b16 %v760
      %v1280 = vunpack.c.l.b16 %v761
      %v1281 = vunpack.c.h.b16 %v761
      %v1282 = vunpack.c.l.b16 %v762
      %v1283 = vunpack.c.h.b16 %v762
      %v1284 = vunpack.c.l.b16 %v763
      %v1285 = vunpack.c.h.b16 %v763
      %v1286 = vunpack.c.l.b16 %v764
      %v1287 = vunpack.c.h.b16 %v764
      %v1288 = vunpack.c.l.b16 %v765
      %v1289 = vunpack.c.h.b16 %v765
      %v1290 = vunpack.c.l.b16 %v766
      %v1291 = vunpack.c.h.b16 %v766
      %v1292 = vunpack.c.l.b16 %v767
      %v1293 = vunpack.c.h.b16 %v767
      %v1294 = vunpack.c.l.b16 %v768
      %v1295 = vunpack.c.h.b16 %v768
      %v1296 = vunpack.c.l.b16 %v769
      %v1297 = vunpack.c.h.b16 %v769
      %v1298 = vunpack.c.l.b16 %v770
      %v1299 = vunpack.c.h.b16 %v770
      %v1300 = vunpack.c.l.b16 %v771
      %v1301 = vunpack.c.h.b16 %v771
      %v1302 = vunpack.c.l.b16 %v772
      %v1303 = vunpack.c.h.b16 %v772
      %v1304 = vunpack.c.l.b16 %v773
      %v1305 = vunpack.c.h.b16 %v773
      %v1306 = vunpack.c.l.b16 %v774
      %v1307 = vunpack.c.h.b16 %v774
      %v1308 = vunpack.c.l.b16 %v775
      %v1309 = vunpack.c.h.b16 %v775
      %v1310 = vunpack.c.l.b16 %v776
      %v1311 = vunpack.c.h.b16 %v776
      %v1312 = vunpack.c.l.b16 %v777
      %v1313 = vunpack.c.h.b16 %v777
      %v1314 = vunpack.c.l.b16 %v778
      %v1315 = vunpack.c.h.b16 %v778
      %v1316 = vunpack.c.l.b16 %v779
      %v1317 = vunpack.c.h.b16 %v779
      %v1318 = vunpack.c.l.b16 %v780
      %v1319 = vunpack.c.h.b16 %v780
      %v1320 = vunpack.c.l.b16 %v781
      %v1321 = vunpack.c.h.b16 %v781
      %v1322 = vunpack.c.l.b16 %v782
      %v1323 = vunpack.c.h.b16 %v782
      %v1324 = vunpack.c.l.b16 %v783
      %v1325 = vunpack.c.h.b16 %v783
      %v1326 = vunpack.c.l.b16 %v784
      %v1327 = vunpack.c.h.b16 %v784
      %v1328 = vunpack.c.l.b16 %v785
      %v1329 = vunpack.c.h.b16 %v785
      %v1330 = vunpack.c.l.b16 %v786
      %v1331 = vunpack.c.h.b16 %v786
      %v1332 = vunpack.c.l.b16 %v787
      %v1333 = vunpack.c.h.b16 %v787
      %v1334 = vunpack.c.l.b16 %v788
      %v1335 = vunpack.c.h.b16 %v788
      %v1336 = vunpack.c.l.b16 %v789
      %v1337 = vunpack.c.h.b16 %v789
      %v1338 = vunpack.c.l.b16 %v790
      %v1339 = vunpack.c.h.b16 %v790
      %v1340 = vunpack.c.l.b16 %v791
      %v1341 = vunpack.c.h.b16 %v791
      %v1342 = vunpack.c.l.b16 %v792
      %v1343 = vunpack.c.h.b16 %v792
      %v1344 = vunpack.c.l.b16 %v793
      %v1345 = vunpack.c.h.b16 %v793
      %v1346 = vunpack.c.l.b16 %v794
      %v1347 = vunpack.c.h.b16 %v794
      %v1348 = vunpack.c.l.b16 %v795
      %v1349 = vunpack.c.h.b16 %v795
      %v1350 = vunpack.c.l.b16 %v796
      %v1351 = vunpack.c.h.b16 %v796
      %v1352 = vunpack.c.l.b16 %v797
      %v1353 = vunpack.c.h.b16 %v797
      %v1354 = vunpack.c.l.b16 %v798
      %v1355 = vunpack.c.h.b16 %v798
      %v1356 = vunpack.c.l.b16 %v799
      %v1357 = vunpack.c.h.b16 %v799
      %v1358 = vunpack.c.l.b16 %v800
      %v1359 = vunpack.c.h.b16 %v800
      %v1360 = vunpack.c.l.b16 %v801
      %v1361 = vunpack.c.h.b16 %v801
      %v1362 = vunpack.c.l.b16 %v802
      %v1363 = vunpack.c.h.b16 %v802
      %v1364 = vunpack.c.l.b16 %v803
      %v1365 = vunpack.c.h.b16 %v803
      %v1366 = vunpack.c.l.b16 %v804
      %v1367 = vunpack.c.h.b16 %v804
      %v1368 = vunpack.c.l.b16 %v805
      %v1369 = vunpack.c.h.b16 %v805
      %v1370 = vunpack.c.l.b16 %v806
      %v1371 = vunpack.c.h.b16 %v806
      %v1372 = vunpack.c.l.b16 %v807
      %v1373 = vunpack.c.h.b16 %v807
      %v1374 = vunpack.c.l.b16 %v808
      %v1375 = vunpack.c.h.b16 %v808
      %v1376 = vunpack.c.l.b16 %v809
      %v1377 = vunpack.c.h.b16 %v809
      %v1378 = vunpack.c.l.b16 %v810
      %v1379 = vunpack.c.h.b16 %v810
      %v1380 = vunpack.c.l.b16 %v811
      %v1381 = vunpack.c.h.b16 %v811
      %v1382 = vunpack.c.l.b16 %v812
      %v1383 = vunpack.c.h.b16 %v812
      %v1384 = vunpack.c.l.b16 %v813
      %v1385 = vunpack.c.h.b16 %v813
      %v1386 = vunpack.c.l.b16 %v814
      %v1387 = vunpack.c.h.b16 %v814
      %v1388 = vunpack.c.l.b16 %v815
      %v1389 = vunpack.c.h.b16 %v815
      %v1390 = vunpack.c.l.b16 %v816
      %v1391 = vunpack.c.h.b16 %v816
      %v1392 = vunpack.c.l.b16 %v817
      %v1393 = vunpack.c.h.b16 %v817
      %v1394 = vunpack.c.l.b16 %v818
      %v1395 = vunpack.c.h.b16 %v818
      %v1396 = vunpack.c.l.b16 %v819
      %v1397 = vunpack.c.h.b16 %v819
      %v1398 = vunpack.c.l.b16 %v820
      %v1399 = vunpack.c.h.b16 %v820
      %v1400 = vunpack.c.l.b16 %v821
      %v1401 = vunpack.c.h.b16 %v821
      %v1402 = vunpack.c.l.b16 %v822
      %v1403 = vunpack.c.h.b16 %v822
      %v1404 = vunpack.c.l.b16 %v823
      %v1405 = vunpack.c.h.b16 %v823
      %v1406 = vunpack.c.l.b16 %v824
      %v1407 = vunpack.c.h.b16 %v824
      %v1408 = vunpack.c.l.b16 %v825
      %v1409 = vunpack.c.h.b16 %v825
      %v1410 = vunpack.c.l.b16 %v826
      %v1411 = vunpack.c.h.b16 %v826
      %v1412 = vunpack.c.l.b16 %v827
      %v1413 = vunpack.c.h.b16 %v827
      %v1414 = vunpack.c.l.b16 %v828
      %v1415 = vunpack.c.h.b16 %v828
      %v1416 = vunpack.c.l.b16 %v829
      %v1417 = vunpack.c.h.b16 %v829
      %v1418 = vunpack.c.l.b16 %v830
      %v1419 = vunpack.c.h.b16 %v830
      %v1420 = vunpack.c.l.b16 %v831
      %v1421 = vunpack.c.h.b16 %v831
      %v1422 = vunpack.c.l.b16 %v832
      %v1423 = vunpack.c.h.b16 %v832
      %v1424 = vunpack.c.l.b16 %v833
      %v1425 = vunpack.c.h.b16 %v833
      %v1426 = vunpack.c.l.b16 %v834
      %v1427 = vunpack.c.h.b16 %v834
      %v1428 = vunpack.c.l.b16 %v835
      %v1429 = vunpack.c.h.b16 %v835
      %v1430 = vunpack.c.l.b16 %v836
      %v1431 = vunpack.c.h.b16 %v836
      %v1432 = vunpack.c.l.b16 %v837
      %v1433 = vunpack.c.h.b16 %v837
      %v1434 = vunpack.c.l.b16 %v838
      %v1435 = vunpack.c.h.b16 %v838
      %v1436 = vunpack.c.l.b16 %v839
      %v1437 = vunpack.c.h.b16 %v839
      %v1438 = vunpack.c.l.b16 %v840
      %v1439 = vunpack.c.h.b16 %v840
      %v1440 = vunpack.c.l.b16 %v841
      %v1441 = vunpack.c.h.b16 %v841
      %v1442 = vunpack.c.l.b16 %v842
      %v1443 = vunpack.c.h.b16 %v842
      %v1444 = vunpack.c.l.b16 %v843
      %v1445 = vunpack.c.h.b16 %v843
      %v1446 = vunpack.c.l.b16 %v844
      %v1447 = vunpack.c.h.b16 %v844
      %v1448 = vunpack.c.l.b16 %v845
      %v1449 = vunpack.c.h.b16 %v845
      %v1450 = vunpack.c.l.b16 %v846
      %v1451 = vunpack.c.h.b16 %v846
      %v1452 = vunpack.c.l.b16 %v847
      %v1453 = vunpack.c.h.b16 %v847
      %v1454 = vunpack.c.l.b16 %v848
      %v1455 = vunpack.c.h.b16 %v848
      %v1456 = vunpack.c.l.b16 %v849
      %v1457 = vunpack.c.h.b16 %v849
      %v1458 = vunpack.c.l.b16 %v850
      %v1459 = vunpack.c.h.b16 %v850
      %v1460 = vunpack.c.l.b16 %v851
      %v1461 = vunpack.c.h.b16 %v851
      %v1462 = vpack.c.b16 %v1074, %v1070
      %v1463 = vpack.c.b16 %v1075, %v1071
      %v1464 = vpack.c.b16 %v1076, %v1072
      %v1465 = vpack.c.b16 %v1077, %v1073
      %v1466 = vpack.c.b16 %v1082, %v1078
      %v1467 = vpack.c.b16 %v1083, %v1079
      %v1468 = vpack.c.b16 %v1084, %v1080
      %v1469 = vpack.c.b16 %v1085, %v1081
      %v1470 = vpack.c.b16 %v1090, %v1086
      %v1471 = vpack.c.b16 %v1091, %v1087
      %v1472 = vpack.c.b16 %v1092, %v1088
      %v1473 = vpack.c.b16 %v1093, %v1089
      %v1474 = vpack.c.b16 %v1098, %v1094
      %v1475 = vpack.c.b16 %v1099, %v1095
      %v1476 = vpack.c.b16 %v1100, %v1096
      %v1477 = vpack.c.b16 %v1101, %v1097
      %v1478 = vpack.c.b16 %v1106, %v1102
      %v1479 = vpack.c.b16 %v1107, %v1103
      %v1480 = vpack.c.b16 %v1108, %v1104
      %v1481 = vpack.c.b16 %v1109, %v1105
      %v1482 = vpack.c.b16 %v1114, %v1110
      %v1483 = vpack.c.b16 %v1115, %v1111
      %v1484 = vpack.c.b16 %v1116, %v1112
      %v1485 = vpack.c.b16 %v1117, %v1113
      %v1486 = vpack.c.b16 %v1122, %v1118
      %v1487 = vpack.c.b16 %v1123, %v1119
      %v1488 = vpack.c.b16 %v1124, %v1120
      %v1489 = vpack.c.b16 %v1125, %v1121
      %v1490 = vpack.c.b16 %v1130, %v1126
      %v1491 = vpack.c.b16 %v1131, %v1127
      %v1492 = vpack.c.b16 %v1132, %v1128
      %v1493 = vpack.c.b16 %v1133, %v1129
      %v1494 = vpack.c.b16 %v1138, %v1134
      %v1495 = vpack.c.b16 %v1139, %v1135
      %v1496 = vpack.c.b16 %v1140, %v1136
      %v1497 = vpack.c.b16 %v1141, %v1137
      %v1498 = vpack.c.b16 %v1146, %v1142
      %v1499 = vpack.c.b16 %v1147, %v1143
      %v1500 = vpack.c.b16 %v1148, %v1144
      %v1501 = vpack.c.b16 %v1149, %v1145
      %v1502 = vpack.c.b16 %v1154, %v1150
      %v1503 = vpack.c.b16 %v1155, %v1151
      %v1504 = vpack.c.b16 %v1156, %v1152
      %v1505 = vpack.c.b16 %v1157, %v1153
      %v1506 = vpack.c.b16 %v1162, %v1158
      %v1507 = vpack.c.b16 %v1163, %v1159
      %v1508 = vpack.c.b16 %v1164, %v1160
      %v1509 = vpack.c.b16 %v1165, %v1161
      %v1510 = vpack.c.b16 %v1170, %v1166
      %v1511 = vpack.c.b16 %v1171, %v1167
      %v1512 = vpack.c.b16 %v1172, %v1168
      %v1513 = vpack.c.b16 %v1173, %v1169
      %v1514 = vpack.c.b16 %v1178, %v1174
      %v1515 = vpack.c.b16 %v1179, %v1175
      %v1516 = vpack.c.b16 %v1180, %v1176
      %v1517 = vpack.c.b16 %v1181, %v1177
      %v1518 = vpack.c.b16 %v1186, %v1182
      %v1519 = vpack.c.b16 %v1187, %v1183
      %v1520 = vpack.c.b16 %v1188, %v1184
      %v1521 = vpack.c.b16 %v1189, %v1185
      %v1522 = vpack.c.b16 %v1194, %v1190
      %v1523 = vpack.c.b16 %v1195, %v1191
      %v1524 = vpack.c.b16 %v1196, %v1192
      %v1525 = vpack.c.b16 %v1197, %v1193
      %v1526 = vpack.c.b16 %v1202, %v1198
      %v1527 = vpack.c.b16 %v1203, %v1199
      %v1528 = vpack.c.b16 %v1204, %v1200
      %v1529 = vpack.c.b16 %v1205, %v1201
      %v1530 = vpack.c.b16 %v1210, %v1206
      %v1531 = vpack.c.b16 %v1211, %v1207
      %v1532 = vpack.c.b16 %v1212, %v1208
      %v1533 = vpack.c.b16 %v1213, %v1209
      %v1534 = vpack.c.b16 %v1218, %v1214
      %v1535 = vpack.c.b16 %v1219, %v1215
      %v1536 = vpack.c.b16 %v1220, %v1216
      %v1537 = vpack.c.b16 %v1221, %v1217
      %v1538 = vpack.c.b16 %v1226, %v1222
      %v1539 = vpack.c.b16 %v1227, %v1223
      %v1540 = vpack.c.b16 %v1228, %v1224
      %v1541 = vpack.c.b16 %v1229, %v1225
      %v1542 = vpack.c.b16 %v1234, %v1230
      %v1543 = vpack.c.b16 %v1235, %v1231
      %v1544 = vpack.c.b16 %v1236, %v1232
      %v1545 = vpack.c.b16 %v1237, %v1233
      %v1546 = vpack.c.b16 %v1242, %v1238
      %v1547 = vpack.c.b16 %v1243, %v1239
      %v1548 = vpack.c.b16 %v1244, %v1240
      %v1549 = vpack.c.b16 %v1245, %v1241
      %v1550 = vpack.c.b16 %v1250, %v1246
      %v1551 = vpack.c.b16 %v1251, %v1247
      %v1552 = vpack.c.b16 %v1252, %v1248
      %v1553 = vpack.c.b16 %v1253, %v1249
      %v1554 = vpack.c.b16 %v1258, %v1254
      %v1555 = vpack.c.b16 %v1259, %v1255
      %v1556 = vpack.c.b16 %v1260, %v1256
      %v1557 = vpack.c.b16 %v1261, %v1257
      %v1558 = vpack.c.b16 %v1266, %v1262
      %v1559 = vpack.c.b16 %v1267, %v1263
      %v1560 = vpack.c.b16 %v1268, %v1264
      %v1561 = vpack.c.b16 %v1269, %v1265
      %v1562 = vpack.c.b16 %v1274, %v1270
      %v1563 = vpack.c.b16 %v1275, %v1271
      %v1564 = vpack.c.b16 %v1276, %v1272
      %v1565 = vpack.c.b16 %v1277, %v1273
      %v1566 = vpack.c.b16 %v1282, %v1278
      %v1567 = vpack.c.b16 %v1283, %v1279
      %v1568 = vpack.c.b16 %v1284, %v1280
      %v1569 = vpack.c.b16 %v1285, %v1281
      %v1570 = vpack.c.b16 %v1290, %v1286
      %v1571 = vpack.c.b16 %v1291, %v1287
      %v1572 = vpack.c.b16 %v1292, %v1288
      %v1573 = vpack.c.b16 %v1293, %v1289
      %v1574 = vpack.c.b16 %v1298, %v1294
      %v1575 = vpack.c.b16 %v1299, %v1295
      %v1576 = vpack.c.b16 %v1300, %v1296
      %v1577 = vpack.c.b16 %v1301, %v1297
      %v1578 = vpack.c.b16 %v1306, %v1302
      %v1579 = vpack.c.b16 %v1307, %v1303
      %v1580 = vpack.c.b16 %v1308, %v1304
      %v1581 = vpack.c.b16 %v1309, %v1305
      %v1582 = vpack.c.b16 %v1314, %v1310
      %v1583 = vpack.c.b16 %v1315, %v1311
      %v1584 = vpack.c.b16 %v1316, %v1312
      %v1585 = vpack.c.b16 %v1317, %v1313
      %v1586 = vpack.c.b16 %v1322, %v1318
      %v1587 = vpack.c.b16 %v1323, %v1319
      %v1588 = vpack.c.b16 %v1324, %v1320
      %v1589 = vpack.c.b16 %v1325, %v1321
      %v1590 = vpack.c.b16 %v1330, %v1326
      %v1591 = vpack.c.b16 %v1331, %v1327
      %v1592 = vpack.c.b16 %v1332, %v1328
      %v1593 = vpack.c.b16 %v1333, %v1329
      %v1594 = vpack.c.b16 %v1338, %v1334
      %v1595 = vpack.c.b16 %v1339, %v1335
      %v1596 = vpack.c.b16 %v1340, %v1336
      %v1597 = vpack.c.b16 %v1341, %v1337
      %v1598 = vpack.c.b16 %v1346, %v1342
      %v1599 = vpack.c.b16 %v1347, %v1343
      %v1600 = vpack.c.b16 %v1348, %v1344
      %v1601 = vpack.c.b16 %v1349, %v1345
      %v1602 = vpack.c.b16 %v1354, %v1350
      %v1603 = vpack.c.b16 %v1355, %v1351
      %v1604 = vpack.c.b16 %v1356, %v1352
      %v1605 = vpack.c.b16 %v1357, %v1353
      %v1606 = vpack.c.b16 %v1362, %v1358
      %v1607 = vpack.c.b16 %v1363, %v1359
      %v1608 = vpack.c.b16 %v1364, %v1360
      %v1609 = vpack.c.b16 %v1365, %v1361
      %v1610 = vpack.c.b16 %v1370, %v1366
      %v1611 = vpack.c.b16 %v1371, %v1367
      %v1612 = vpack.c.b16 %v1372, %v1368
      %v1613 = vpack.c.b16 %v1373, %v1369
      %v1614 = vpack.c.b16 %v1378, %v1374
      %v1615 = vpack.c.b16 %v1379, %v1375
      %v1616 = vpack.c.b16 %v1380, %v1376
      %v1617 = vpack.c.b16 %v1381, %v1377
      %v1618 = vpack.c.b16 %v1386, %v1382
      %v1619 = vpack.c.b16 %v1387, %v1383
      %v1620 = vpack.c.b16 %v1388, %v1384
      %v1621 = vpack.c.b16 %v1389, %v1385
      %v1622 = vpack.c.b16 %v1394, %v1390
      %v1623 = vpack.c.b16 %v1395, %v1391
      %v1624 = vpack.c.b16 %v1396, %v1392
      %v1625 = vpack.c.b16 %v1397, %v1393
      %v1626 = vpack.c.b16 %v1402, %v1398
      %v1627 = vpack.c.b16 %v1403, %v1399
      %v1628 = vpack.c.b16 %v1404, %v1400
      %v1629 = vpack.c.b16 %v1405, %v1401
      %v1630 = vpack.c.b16 %v1410, %v1406
      %v1631 = vpack.c.b16 %v1411, %v1407
      %v1632 = vpack.c.b16 %v1412, %v1408
      %v1633 = vpack.c.b16 %v1413, %v1409
      %v1634 = vpack.c.b16 %v1418, %v1414
      %v1635 = vpack.c.b16 %v1419, %v1415
      %v1636 = vpack.c.b16 %v1420, %v1416
      %v1637 = vpack.c.b16 %v1421, %v1417
      %v1638 = vpack.c.b16 %v1426, %v1422
      %v1639 = vpack.c.b16 %v1427, %v1423
      %v1640 = vpack.c.b16 %v1428, %v1424
      %v1641 = vpack.c.b16 %v1429, %v1425
      %v1642 = vpack.c.b16 %v1434, %v1430
      %v1643 = vpack.c.b16 %v1435, %v1431
      %v1644 = vpack.c.b16 %v1436, %v1432
      %v1645 = vpack.c.b16 %v1437, %v1433
      %v1646 = vpack.c.b16 %v1442, %v1438
      %v1647 = vpack.c.b16 %v1443, %v1439
      %v1648 = vpack.c.b16 %v1444, %v1440
      %v1649 = vpack.c.b16 %v1445, %v1441
      %v1650 = vpack.c.b16 %v1450, %v1446
      %v1651 = vpack.c.b16 %v1451, %v1447
      %v1652 = vpack.c.b16 %v1452, %v1448
      %v1653 = vpack.c.b16 %v1453, %v1449
      %v1654 = vpack.c.b16 %v1458, %v1454
      %v1655 = vpack.c.b16 %v1459, %v1455
      %v1656 = vpack.c.b16 %v1460, %v1456
      %v1657 = vpack.c.b16 %v1461, %v1457
      %vm1854 = vcmask 130048
      %v1856 = vsel %vm1854, %v606, 0
      %v1859 = vsel %vm1854, %v613, 0
      %v1862 = vsel %vm1854, %v620, 0
      %v1865 = vsel %vm1854, %v627, 0
      %v1868 = vsel %vm1854, %v634, 0
      %v1871 = vsel %vm1854, %v641, 0
      %v1874 = vsel %vm1854, %v648, 0
      %v1877 = vsel %vm1854, %v655, 0
      %1879 = vmatprep.subr.bf16.mxu0 %v1491
      %1880 = vmatpush1.bf16.msra.mxu0 %v1490
      %1881 = vmatprep.subr.bf16.mxu0 %v1487
      %1882 = vmatpush1.bf16.msra.mxu0 %v1486
      %1883 = vmatprep.subr.bf16.mxu0 %v1483
      %1884 = vmatpush1.bf16.msra.mxu0 %v1482
      %1885 = vmatprep.subr.bf16.mxu0 %v1479
      %1886 = vmatpush1.bf16.msra.mxu0 %v1478
      %1887 = vmatprep.subr.bf16.mxu0 %v1475
      %1888 = vmatpush1.bf16.msra.mxu0 %v1474
      %1889 = vmatprep.subr.bf16.mxu0 %v1471
      %1890 = vmatpush1.bf16.msra.mxu0 %v1470
      %1891 = vmatprep.subr.bf16.mxu0 %v1467
      %1892 = vmatpush1.bf16.msra.mxu0 %v1466
      %1893 = vmatprep.subr.bf16.mxu0 %v1463
      %1894 = vmatpush1.bf16.msra.mxu0 %v1462
      %1895 = vmatprep.subr.bf16.mxu0 %v1523
      %1896 = vmatpush2.bf16.msra.mxu0 %v1522
      %1897 = vmatprep.subr.bf16.mxu0 %v1519
      %1898 = vmatpush2.bf16.msra.mxu0 %v1518
      %1899 = vmatprep.subr.bf16.mxu0 %v1515
      %1900 = vmatpush2.bf16.msra.mxu0 %v1514
      %1901 = vmatprep.subr.bf16.mxu0 %v1511
      %1902 = vmatpush2.bf16.msra.mxu0 %v1510
      %1903 = vmatprep.subr.bf16.mxu0 %v1507
      %1904 = vmatpush2.bf16.msra.mxu0 %v1506
      %1905 = vmatprep.subr.bf16.mxu0 %v1503
      %1906 = vmatpush2.bf16.msra.mxu0 %v1502
      %1907 = vmatprep.subr.bf16.mxu0 %v1499
      %1908 = vmatpush2.bf16.msra.mxu0 %v1498
      %1909 = vmatprep.subr.bf16.mxu0 %v1495
      %1910 = vmatpush2.bf16.msra.mxu0 %v1494
      %1911 = vmatprep.mubr.bf16.mxu0 %v601
      %1912 = vmatmul.mubr.bf16.gmra.mxu0 %v600
      %v1913 = vpop.f32.mrf.mxu0
      %v1914 = vadd.f32 %v857, %v1913
      %v1915 = vpop.f32.mrf.mxu0
      %v1916 = vadd.f32 %v861, %v1915
      %v1917 = vpop.f32.mrf.mxu0
      %v1918 = vadd.f32 %v857, %v1917
      %v1919 = vpop.f32.mrf.mxu0
      %v1920 = vadd.f32 %v861, %v1919
      %1921 = vmatprep.mubr.bf16.mxu0 %v608
      %1922 = vmatmul.mubr.bf16.gmra.mxu0 %v607
      %v1923 = vpop.f32.mrf.mxu0
      %v1924 = vadd.f32 %v857, %v1923
      %v1925 = vpop.f32.mrf.mxu0
      %v1926 = vadd.f32 %v861, %v1925
      %v1927 = vpop.f32.mrf.mxu0
      %v1928 = vadd.f32 %v857, %v1927
      %v1929 = vpop.f32.mrf.mxu0
      %v1930 = vadd.f32 %v861, %v1929
      %1931 = vmatprep.mubr.bf16.mxu0 %v615
      %1932 = vmatmul.mubr.bf16.gmra.mxu0 %v614
      %v1933 = vpop.f32.mrf.mxu0
      %v1934 = vadd.f32 %v857, %v1933
      %v1935 = vpop.f32.mrf.mxu0
      %v1936 = vadd.f32 %v861, %v1935
      %v1937 = vpop.f32.mrf.mxu0
      %v1938 = vadd.f32 %v857, %v1937
      %v1939 = vpop.f32.mrf.mxu0
      %v1940 = vadd.f32 %v861, %v1939
      %1941 = vmatprep.mubr.bf16.mxu0 %v622
      %1942 = vmatmul.mubr.bf16.gmra.mxu0 %v621
      %v1943 = vpop.f32.mrf.mxu0
      %v1944 = vadd.f32 %v857, %v1943
      %v1945 = vpop.f32.mrf.mxu0
      %v1946 = vadd.f32 %v861, %v1945
      %v1947 = vpop.f32.mrf.mxu0
      %v1948 = vadd.f32 %v857, %v1947
      %v1949 = vpop.f32.mrf.mxu0
      %v1950 = vadd.f32 %v861, %v1949
      %1951 = vmatprep.mubr.bf16.mxu0 %v629
      %1952 = vmatmul.mubr.bf16.gmra.mxu0 %v628
      %v1953 = vpop.f32.mrf.mxu0
      %v1954 = vadd.f32 %v857, %v1953
      %v1955 = vpop.f32.mrf.mxu0
      %v1956 = vadd.f32 %v861, %v1955
      %v1957 = vpop.f32.mrf.mxu0
      %v1958 = vadd.f32 %v857, %v1957
      %v1959 = vpop.f32.mrf.mxu0
      %v1960 = vadd.f32 %v861, %v1959
      %1961 = vmatprep.mubr.bf16.mxu0 %v636
      %1962 = vmatmul.mubr.bf16.gmra.mxu0 %v635
      %v1963 = vpop.f32.mrf.mxu0
      %v1964 = vadd.f32 %v857, %v1963
      %v1965 = vpop.f32.mrf.mxu0
      %v1966 = vadd.f32 %v861, %v1965
      %v1967 = vpop.f32.mrf.mxu0
      %v1968 = vadd.f32 %v857, %v1967
      %v1969 = vpop.f32.mrf.mxu0
      %v1970 = vadd.f32 %v861, %v1969
      %1971 = vmatprep.mubr.bf16.mxu0 %v643
      %1972 = vmatmul.mubr.bf16.gmra.mxu0 %v642
      %v1973 = vpop.f32.mrf.mxu0
      %v1974 = vadd.f32 %v857, %v1973
      %v1975 = vpop.f32.mrf.mxu0
      %v1976 = vadd.f32 %v861, %v1975
      %v1977 = vpop.f32.mrf.mxu0
      %v1978 = vadd.f32 %v857, %v1977
      %v1979 = vpop.f32.mrf.mxu0
      %v1980 = vadd.f32 %v861, %v1979
      %1981 = vmatprep.mubr.bf16.mxu0 %v650
      %1982 = vmatmul.mubr.bf16.gmra.mxu0 %v649
      %v1983 = vpop.f32.mrf.mxu0
      %v1984 = vadd.f32 %v857, %v1983
      %v1985 = vpop.f32.mrf.mxu0
      %v1986 = vadd.f32 %v861, %v1985
      %v1987 = vpop.f32.mrf.mxu0
      %v1988 = vadd.f32 %v857, %v1987
      %v1989 = vpop.f32.mrf.mxu0
      %v1990 = vadd.f32 %v861, %v1989
      %1991 = vdwg.mxu0
      %1992 = vmatprep.subr.bf16.mxu0 %v1555
      %1993 = vmatpush1.bf16.msra.mxu0 %v1554
      %1994 = vmatprep.subr.bf16.mxu0 %v1551
      %1995 = vmatpush1.bf16.msra.mxu0 %v1550
      %1996 = vmatprep.subr.bf16.mxu0 %v1547
      %1997 = vmatpush1.bf16.msra.mxu0 %v1546
      %1998 = vmatprep.subr.bf16.mxu0 %v1543
      %1999 = vmatpush1.bf16.msra.mxu0 %v1542
      %2000 = vmatprep.subr.bf16.mxu0 %v1539
      %2001 = vmatpush1.bf16.msra.mxu0 %v1538
      %2002 = vmatprep.subr.bf16.mxu0 %v1535
      %2003 = vmatpush1.bf16.msra.mxu0 %v1534
      %2004 = vmatprep.subr.bf16.mxu0 %v1531
      %2005 = vmatpush1.bf16.msra.mxu0 %v1530
      %2006 = vmatprep.subr.bf16.mxu0 %v1527
      %2007 = vmatpush1.bf16.msra.mxu0 %v1526
      %2008 = vmatprep.subr.bf16.mxu0 %v1587
      %2009 = vmatpush2.bf16.msra.mxu0 %v1586
      %2010 = vmatprep.subr.bf16.mxu0 %v1583
      %2011 = vmatpush2.bf16.msra.mxu0 %v1582
      %2012 = vmatprep.subr.bf16.mxu0 %v1579
      %2013 = vmatpush2.bf16.msra.mxu0 %v1578
      %2014 = vmatprep.subr.bf16.mxu0 %v1575
      %2015 = vmatpush2.bf16.msra.mxu0 %v1574
      %2016 = vmatprep.subr.bf16.mxu0 %v1571
      %2017 = vmatpush2.bf16.msra.mxu0 %v1570
      %2018 = vmatprep.subr.bf16.mxu0 %v1567
      %2019 = vmatpush2.bf16.msra.mxu0 %v1566
      %2020 = vmatprep.subr.bf16.mxu0 %v1563
      %2021 = vmatpush2.bf16.msra.mxu0 %v1562
      %2022 = vmatprep.subr.bf16.mxu0 %v1559
      %2023 = vmatpush2.bf16.msra.mxu0 %v1558
      %2024 = vmatprep.mubr.bf16.mxu0 %v603
      %2025 = vmatmul.mubr.bf16.gmra.mxu0 %v602
      %v2026 = vpop.f32.mrf.mxu0
      %v2027 = vadd.f32 %v1914, %v2026
      %v2028 = vpop.f32.mrf.mxu0
      %v2029 = vadd.f32 %v1916, %v2028
      %v2030 = vpop.f32.mrf.mxu0
      %v2031 = vadd.f32 %v1918, %v2030
      %v2032 = vpop.f32.mrf.mxu0
      %v2033 = vadd.f32 %v1920, %v2032
      %2034 = vmatprep.mubr.bf16.mxu0 %v610
      %2035 = vmatmul.mubr.bf16.gmra.mxu0 %v609
      %v2036 = vpop.f32.mrf.mxu0
      %v2037 = vadd.f32 %v1924, %v2036
      %v2038 = vpop.f32.mrf.mxu0
      %v2039 = vadd.f32 %v1926, %v2038
      %v2040 = vpop.f32.mrf.mxu0
      %v2041 = vadd.f32 %v1928, %v2040
      %v2042 = vpop.f32.mrf.mxu0
      %v2043 = vadd.f32 %v1930, %v2042
      %2044 = vmatprep.mubr.bf16.mxu0 %v617
      %2045 = vmatmul.mubr.bf16.gmra.mxu0 %v616
      %v2046 = vpop.f32.mrf.mxu0
      %v2047 = vadd.f32 %v1934, %v2046
      %v2048 = vpop.f32.mrf.mxu0
      %v2049 = vadd.f32 %v1936, %v2048
      %v2050 = vpop.f32.mrf.mxu0
      %v2051 = vadd.f32 %v1938, %v2050
      %v2052 = vpop.f32.mrf.mxu0
      %v2053 = vadd.f32 %v1940, %v2052
      %2054 = vmatprep.mubr.bf16.mxu0 %v624
      %2055 = vmatmul.mubr.bf16.gmra.mxu0 %v623
      %v2056 = vpop.f32.mrf.mxu0
      %v2057 = vadd.f32 %v1944, %v2056
      %v2058 = vpop.f32.mrf.mxu0
      %v2059 = vadd.f32 %v1946, %v2058
      %v2060 = vpop.f32.mrf.mxu0
      %v2061 = vadd.f32 %v1948, %v2060
      %v2062 = vpop.f32.mrf.mxu0
      %v2063 = vadd.f32 %v1950, %v2062
      %2064 = vmatprep.mubr.bf16.mxu0 %v631
      %2065 = vmatmul.mubr.bf16.gmra.mxu0 %v630
      %v2066 = vpop.f32.mrf.mxu0
      %v2067 = vadd.f32 %v1954, %v2066
      %v2068 = vpop.f32.mrf.mxu0
      %v2069 = vadd.f32 %v1956, %v2068
      %v2070 = vpop.f32.mrf.mxu0
      %v2071 = vadd.f32 %v1958, %v2070
      %v2072 = vpop.f32.mrf.mxu0
      %v2073 = vadd.f32 %v1960, %v2072
      %2074 = vmatprep.mubr.bf16.mxu0 %v638
      %2075 = vmatmul.mubr.bf16.gmra.mxu0 %v637
      %v2076 = vpop.f32.mrf.mxu0
      %v2077 = vadd.f32 %v1964, %v2076
      %v2078 = vpop.f32.mrf.mxu0
      %v2079 = vadd.f32 %v1966, %v2078
      %v2080 = vpop.f32.mrf.mxu0
      %v2081 = vadd.f32 %v1968, %v2080
      %v2082 = vpop.f32.mrf.mxu0
      %v2083 = vadd.f32 %v1970, %v2082
      %2084 = vmatprep.mubr.bf16.mxu0 %v645
      %2085 = vmatmul.mubr.bf16.gmra.mxu0 %v644
      %v2086 = vpop.f32.mrf.mxu0
      %v2087 = vadd.f32 %v1974, %v2086
      %v2088 = vpop.f32.mrf.mxu0
      %v2089 = vadd.f32 %v1976, %v2088
      %v2090 = vpop.f32.mrf.mxu0
      %v2091 = vadd.f32 %v1978, %v2090
      %v2092 = vpop.f32.mrf.mxu0
      %v2093 = vadd.f32 %v1980, %v2092
      %2094 = vmatprep.mubr.bf16.mxu0 %v652
      %2095 = vmatmul.mubr.bf16.gmra.mxu0 %v651
      %v2096 = vpop.f32.mrf.mxu0
      %v2097 = vadd.f32 %v1984, %v2096
      %v2098 = vpop.f32.mrf.mxu0
      %v2099 = vadd.f32 %v1986, %v2098
      %v2100 = vpop.f32.mrf.mxu0
      %v2101 = vadd.f32 %v1988, %v2100
      %v2102 = vpop.f32.mrf.mxu0
      %v2103 = vadd.f32 %v1990, %v2102
      %2104 = vdwg.mxu0
      %2105 = vmatprep.subr.bf16.mxu0 %v1619
      %2106 = vmatpush1.bf16.msra.mxu0 %v1618
      %2107 = vmatprep.subr.bf16.mxu0 %v1615
      %2108 = vmatpush1.bf16.msra.mxu0 %v1614
      %2109 = vmatprep.subr.bf16.mxu0 %v1611
      %2110 = vmatpush1.bf16.msra.mxu0 %v1610
      %2111 = vmatprep.subr.bf16.mxu0 %v1607
      %2112 = vmatpush1.bf16.msra.mxu0 %v1606
      %2113 = vmatprep.subr.bf16.mxu0 %v1603
      %2114 = vmatpush1.bf16.msra.mxu0 %v1602
      %2115 = vmatprep.subr.bf16.mxu0 %v1599
      %2116 = vmatpush1.bf16.msra.mxu0 %v1598
      %2117 = vmatprep.subr.bf16.mxu0 %v1595
      %2118 = vmatpush1.bf16.msra.mxu0 %v1594
      %2119 = vmatprep.subr.bf16.mxu0 %v1591
      %2120 = vmatpush1.bf16.msra.mxu0 %v1590
      %2121 = vmatprep.subr.bf16.mxu0 %v1651
      %2122 = vmatpush2.bf16.msra.mxu0 %v1650
      %2123 = vmatprep.subr.bf16.mxu0 %v1647
      %2124 = vmatpush2.bf16.msra.mxu0 %v1646
      %2125 = vmatprep.subr.bf16.mxu0 %v1643
      %2126 = vmatpush2.bf16.msra.mxu0 %v1642
      %2127 = vmatprep.subr.bf16.mxu0 %v1639
      %2128 = vmatpush2.bf16.msra.mxu0 %v1638
      %2129 = vmatprep.subr.bf16.mxu0 %v1635
      %2130 = vmatpush2.bf16.msra.mxu0 %v1634
      %2131 = vmatprep.subr.bf16.mxu0 %v1631
      %2132 = vmatpush2.bf16.msra.mxu0 %v1630
      %2133 = vmatprep.subr.bf16.mxu0 %v1627
      %2134 = vmatpush2.bf16.msra.mxu0 %v1626
      %2135 = vmatprep.subr.bf16.mxu0 %v1623
      %2136 = vmatpush2.bf16.msra.mxu0 %v1622
      %2137 = vmatprep.mubr.bf16.mxu0 %v605
      %2138 = vmatmul.mubr.bf16.gmra.mxu0 %v604
      %v2139 = vpop.f32.mrf.mxu0
      %v2140 = vadd.f32 %v2027, %v2139
      %v2141 = vpop.f32.mrf.mxu0
      %v2142 = vadd.f32 %v2029, %v2141
      %v2143 = vpop.f32.mrf.mxu0
      %v2144 = vadd.f32 %v2031, %v2143
      %v2145 = vpop.f32.mrf.mxu0
      %v2146 = vadd.f32 %v2033, %v2145
      %2147 = vmatprep.mubr.bf16.mxu0 %v612
      %2148 = vmatmul.mubr.bf16.gmra.mxu0 %v611
      %v2149 = vpop.f32.mrf.mxu0
      %v2150 = vadd.f32 %v2037, %v2149
      %v2151 = vpop.f32.mrf.mxu0
      %v2152 = vadd.f32 %v2039, %v2151
      %v2153 = vpop.f32.mrf.mxu0
      %v2154 = vadd.f32 %v2041, %v2153
      %v2155 = vpop.f32.mrf.mxu0
      %v2156 = vadd.f32 %v2043, %v2155
      %2157 = vmatprep.mubr.bf16.mxu0 %v619
      %2158 = vmatmul.mubr.bf16.gmra.mxu0 %v618
      %v2159 = vpop.f32.mrf.mxu0
      %v2160 = vadd.f32 %v2047, %v2159
      %v2161 = vpop.f32.mrf.mxu0
      %v2162 = vadd.f32 %v2049, %v2161
      %v2163 = vpop.f32.mrf.mxu0
      %v2164 = vadd.f32 %v2051, %v2163
      %v2165 = vpop.f32.mrf.mxu0
      %v2166 = vadd.f32 %v2053, %v2165
      %2167 = vmatprep.mubr.bf16.mxu0 %v626
      %2168 = vmatmul.mubr.bf16.gmra.mxu0 %v625
      %v2169 = vpop.f32.mrf.mxu0
      %v2170 = vadd.f32 %v2057, %v2169
      %v2171 = vpop.f32.mrf.mxu0
      %v2172 = vadd.f32 %v2059, %v2171
      %v2173 = vpop.f32.mrf.mxu0
      %v2174 = vadd.f32 %v2061, %v2173
      %v2175 = vpop.f32.mrf.mxu0
      %v2176 = vadd.f32 %v2063, %v2175
      %2177 = vmatprep.mubr.bf16.mxu0 %v633
      %2178 = vmatmul.mubr.bf16.gmra.mxu0 %v632
      %v2179 = vpop.f32.mrf.mxu0
      %v2180 = vadd.f32 %v2067, %v2179
      %v2181 = vpop.f32.mrf.mxu0
      %v2182 = vadd.f32 %v2069, %v2181
      %v2183 = vpop.f32.mrf.mxu0
      %v2184 = vadd.f32 %v2071, %v2183
      %v2185 = vpop.f32.mrf.mxu0
      %v2186 = vadd.f32 %v2073, %v2185
      %2187 = vmatprep.mubr.bf16.mxu0 %v640
      %2188 = vmatmul.mubr.bf16.gmra.mxu0 %v639
      %v2189 = vpop.f32.mrf.mxu0
      %v2190 = vadd.f32 %v2077, %v2189
      %v2191 = vpop.f32.mrf.mxu0
      %v2192 = vadd.f32 %v2079, %v2191
      %v2193 = vpop.f32.mrf.mxu0
      %v2194 = vadd.f32 %v2081, %v2193
      %v2195 = vpop.f32.mrf.mxu0
      %v2196 = vadd.f32 %v2083, %v2195
      %2197 = vmatprep.mubr.bf16.mxu0 %v647
      %2198 = vmatmul.mubr.bf16.gmra.mxu0 %v646
      %v2199 = vpop.f32.mrf.mxu0
      %v2200 = vadd.f32 %v2087, %v2199
      %v2201 = vpop.f32.mrf.mxu0
      %v2202 = vadd.f32 %v2089, %v2201
      %v2203 = vpop.f32.mrf.mxu0
      %v2204 = vadd.f32 %v2091, %v2203
      %v2205 = vpop.f32.mrf.mxu0
      %v2206 = vadd.f32 %v2093, %v2205
      %2207 = vmatprep.mubr.bf16.mxu0 %v654
      %2208 = vmatmul.mubr.bf16.gmra.mxu0 %v653
      %v2209 = vpop.f32.mrf.mxu0
      %v2210 = vadd.f32 %v2097, %v2209
      %v2211 = vpop.f32.mrf.mxu0
      %v2212 = vadd.f32 %v2099, %v2211
      %v2213 = vpop.f32.mrf.mxu0
      %v2214 = vadd.f32 %v2101, %v2213
      %v2215 = vpop.f32.mrf.mxu0
      %v2216 = vadd.f32 %v2103, %v2215
      %2217 = vdwg.mxu0
      %2218 = vmatprep.subr.bf16.mxu0 0
      %2219 = vmatpush1.bf16.msra.mxu0 0
      %2220 = vmatprep.subr.bf16.mxu0 0
      %2221 = vmatpush1.bf16.msra.mxu0 0
      %2222 = vmatprep.subr.bf16.mxu0 0
      %2223 = vmatpush1.bf16.msra.mxu0 0
      %2224 = vmatprep.subr.bf16.mxu0 0
      %2225 = vmatpush1.bf16.msra.mxu0 0
      %2226 = vmatprep.subr.bf16.mxu0 0
      %2227 = vmatpush1.bf16.msra.mxu0 0
      %2228 = vmatprep.subr.bf16.mxu0 0
      %2229 = vmatpush1.bf16.msra.mxu0 0
      %2230 = vmatprep.subr.bf16.mxu0 0
      %2231 = vmatpush1.bf16.msra.mxu0 0
      %2232 = vmatprep.subr.bf16.mxu0 %v1655
      %2233 = vmatpush1.bf16.msra.mxu0 %v1654
      %2234 = vmatprep.subr.bf16.mxu0 0
      %2235 = vmatpush2.bf16.msra.mxu0 0
      %2236 = vmatprep.subr.bf16.mxu0 0
      %2237 = vmatpush2.bf16.msra.mxu0 0
      %2238 = vmatprep.subr.bf16.mxu0 0
      %2239 = vmatpush2.bf16.msra.mxu0 0
      %2240 = vmatprep.subr.bf16.mxu0 0
      %2241 = vmatpush2.bf16.msra.mxu0 0
      %2242 = vmatprep.subr.bf16.mxu0 0
      %2243 = vmatpush2.bf16.msra.mxu0 0
      %2244 = vmatprep.subr.bf16.mxu0 0
      %2245 = vmatpush2.bf16.msra.mxu0 0
      %2246 = vmatprep.subr.bf16.mxu0 0
      %2247 = vmatpush2.bf16.msra.mxu0 0
      %2248 = vmatprep.subr.bf16.mxu0 0
      %2249 = vmatpush2.bf16.msra.mxu0 0
      %2250 = vmatprep.mubr.bf16.mxu0 0
      %2251 = vmatmul.mubr.bf16.gmra.mxu0 %v1856
      %v2252 = vpop.f32.mrf.mxu0
      %v2253 = vadd.f32 %v2140, %v2252
      %v2254 = vpop.f32.mrf.mxu0
      %v2255 = vadd.f32 %v2142, %v2254
      %v2256 = vpop.f32.mrf.mxu0
      %v2257 = vadd.f32 %v2144, %v2256
      %v2258 = vpop.f32.mrf.mxu0
      %v2259 = vadd.f32 %v2146, %v2258
      %2260 = vmatprep.mubr.bf16.mxu0 0
      %2261 = vmatmul.mubr.bf16.gmra.mxu0 %v1859
      %v2262 = vpop.f32.mrf.mxu0
      %v2263 = vadd.f32 %v2150, %v2262
      %v2264 = vpop.f32.mrf.mxu0
      %v2265 = vadd.f32 %v2152, %v2264
      %v2266 = vpop.f32.mrf.mxu0
      %v2267 = vadd.f32 %v2154, %v2266
      %v2268 = vpop.f32.mrf.mxu0
      %v2269 = vadd.f32 %v2156, %v2268
      %2270 = vmatprep.mubr.bf16.mxu0 0
      %2271 = vmatmul.mubr.bf16.gmra.mxu0 %v1862
      %v2272 = vpop.f32.mrf.mxu0
      %v2273 = vadd.f32 %v2160, %v2272
      %v2274 = vpop.f32.mrf.mxu0
      %v2275 = vadd.f32 %v2162, %v2274
      %v2276 = vpop.f32.mrf.mxu0
      %v2277 = vadd.f32 %v2164, %v2276
      %v2278 = vpop.f32.mrf.mxu0
      %v2279 = vadd.f32 %v2166, %v2278
      %2280 = vmatprep.mubr.bf16.mxu0 0
      %2281 = vmatmul.mubr.bf16.gmra.mxu0 %v1865
      %v2282 = vpop.f32.mrf.mxu0
      %v2283 = vadd.f32 %v2170, %v2282
      %v2284 = vpop.f32.mrf.mxu0
      %v2285 = vadd.f32 %v2172, %v2284
      %v2286 = vpop.f32.mrf.mxu0
      %v2287 = vadd.f32 %v2174, %v2286
      %v2288 = vpop.f32.mrf.mxu0
      %v2289 = vadd.f32 %v2176, %v2288
      %2290 = vmatprep.mubr.bf16.mxu0 0
      %2291 = vmatmul.mubr.bf16.gmra.mxu0 %v1868
      %v2292 = vpop.f32.mrf.mxu0
      %v2293 = vadd.f32 %v2180, %v2292
      %v2294 = vpop.f32.mrf.mxu0
      %v2295 = vadd.f32 %v2182, %v2294
      %v2296 = vpop.f32.mrf.mxu0
      %v2297 = vadd.f32 %v2184, %v2296
      %v2298 = vpop.f32.mrf.mxu0
      %v2299 = vadd.f32 %v2186, %v2298
      %2300 = vmatprep.mubr.bf16.mxu0 0
      %2301 = vmatmul.mubr.bf16.gmra.mxu0 %v1871
      %v2302 = vpop.f32.mrf.mxu0
      %v2303 = vadd.f32 %v2190, %v2302
      %v2304 = vpop.f32.mrf.mxu0
      %v2305 = vadd.f32 %v2192, %v2304
      %v2306 = vpop.f32.mrf.mxu0
      %v2307 = vadd.f32 %v2194, %v2306
      %v2308 = vpop.f32.mrf.mxu0
      %v2309 = vadd.f32 %v2196, %v2308
      %2310 = vmatprep.mubr.bf16.mxu0 0
      %2311 = vmatmul.mubr.bf16.gmra.mxu0 %v1874
      %v2312 = vpop.f32.mrf.mxu0
      %v2313 = vadd.f32 %v2200, %v2312
      %v2314 = vpop.f32.mrf.mxu0
      %v2315 = vadd.f32 %v2202, %v2314
      %v2316 = vpop.f32.mrf.mxu0
      %v2317 = vadd.f32 %v2204, %v2316
      %v2318 = vpop.f32.mrf.mxu0
      %v2319 = vadd.f32 %v2206, %v2318
      %2320 = vmatprep.mubr.bf16.mxu0 0
      %2321 = vmatmul.mubr.bf16.gmra.mxu0 %v1877
      %v2322 = vpop.f32.mrf.mxu0
      %v2323 = vadd.f32 %v2210, %v2322
      %v2324 = vpop.f32.mrf.mxu0
      %v2325 = vadd.f32 %v2212, %v2324
      %v2326 = vpop.f32.mrf.mxu0
      %v2327 = vadd.f32 %v2214, %v2326
      %v2328 = vpop.f32.mrf.mxu0
      %v2329 = vadd.f32 %v2216, %v2328
      %2330 = vdwg.mxu0
      %2331 = vmatprep.subr.bf16.mxu0 %v1493
      %2332 = vmatpush1.bf16.msra.mxu0 %v1492
      %2333 = vmatprep.subr.bf16.mxu0 %v1489
      %2334 = vmatpush1.bf16.msra.mxu0 %v1488
      %2335 = vmatprep.subr.bf16.mxu0 %v1485
      %2336 = vmatpush1.bf16.msra.mxu0 %v1484
      %2337 = vmatprep.subr.bf16.mxu0 %v1481
      %2338 = vmatpush1.bf16.msra.mxu0 %v1480
      %2339 = vmatprep.subr.bf16.mxu0 %v1477
      %2340 = vmatpush1.bf16.msra.mxu0 %v1476
      %2341 = vmatprep.subr.bf16.mxu0 %v1473
      %2342 = vmatpush1.bf16.msra.mxu0 %v1472
      %2343 = vmatprep.subr.bf16.mxu0 %v1469
      %2344 = vmatpush1.bf16.msra.mxu0 %v1468
      %2345 = vmatprep.subr.bf16.mxu0 %v1465
      %2346 = vmatpush1.bf16.msra.mxu0 %v1464
      %2347 = vmatprep.subr.bf16.mxu0 %v1525
      %2348 = vmatpush2.bf16.msra.mxu0 %v1524
      %2349 = vmatprep.subr.bf16.mxu0 %v1521
      %2350 = vmatpush2.bf16.msra.mxu0 %v1520
      %2351 = vmatprep.subr.bf16.mxu0 %v1517
      %2352 = vmatpush2.bf16.msra.mxu0 %v1516
      %2353 = vmatprep.subr.bf16.mxu0 %v1513
      %2354 = vmatpush2.bf16.msra.mxu0 %v1512
      %2355 = vmatprep.subr.bf16.mxu0 %v1509
      %2356 = vmatpush2.bf16.msra.mxu0 %v1508
      %2357 = vmatprep.subr.bf16.mxu0 %v1505
      %2358 = vmatpush2.bf16.msra.mxu0 %v1504
      %2359 = vmatprep.subr.bf16.mxu0 %v1501
      %2360 = vmatpush2.bf16.msra.mxu0 %v1500
      %2361 = vmatprep.subr.bf16.mxu0 %v1497
      %2362 = vmatpush2.bf16.msra.mxu0 %v1496
      %2363 = vmatprep.mubr.bf16.mxu0 %v601
      %2364 = vmatmul.mubr.bf16.gmra.mxu0 %v600
      %v2365 = vpop.f32.mrf.mxu0
      %v2366 = vadd.f32 %v865, %v2365
      %v2367 = vpop.f32.mrf.mxu0
      %v2368 = vadd.f32 %v869, %v2367
      %v2369 = vpop.f32.mrf.mxu0
      %v2370 = vadd.f32 %v865, %v2369
      %v2371 = vpop.f32.mrf.mxu0
      %v2372 = vadd.f32 %v869, %v2371
      %2373 = vmatprep.mubr.bf16.mxu0 %v608
      %2374 = vmatmul.mubr.bf16.gmra.mxu0 %v607
      %v2375 = vpop.f32.mrf.mxu0
      %v2376 = vadd.f32 %v865, %v2375
      %v2377 = vpop.f32.mrf.mxu0
      %v2378 = vadd.f32 %v869, %v2377
      %v2379 = vpop.f32.mrf.mxu0
      %v2380 = vadd.f32 %v865, %v2379
      %v2381 = vpop.f32.mrf.mxu0
      %v2382 = vadd.f32 %v869, %v2381
      %2383 = vmatprep.mubr.bf16.mxu0 %v615
      %2384 = vmatmul.mubr.bf16.gmra.mxu0 %v614
      %v2385 = vpop.f32.mrf.mxu0
      %v2386 = vadd.f32 %v865, %v2385
      %v2387 = vpop.f32.mrf.mxu0
      %v2388 = vadd.f32 %v869, %v2387
      %v2389 = vpop.f32.mrf.mxu0
      %v2390 = vadd.f32 %v865, %v2389
      %v2391 = vpop.f32.mrf.mxu0
      %v2392 = vadd.f32 %v869, %v2391
      %2393 = vmatprep.mubr.bf16.mxu0 %v622
      %2394 = vmatmul.mubr.bf16.gmra.mxu0 %v621
      %v2395 = vpop.f32.mrf.mxu0
      %v2396 = vadd.f32 %v865, %v2395
      %v2397 = vpop.f32.mrf.mxu0
      %v2398 = vadd.f32 %v869, %v2397
      %v2399 = vpop.f32.mrf.mxu0
      %v2400 = vadd.f32 %v865, %v2399
      %v2401 = vpop.f32.mrf.mxu0
      %v2402 = vadd.f32 %v869, %v2401
      %2403 = vmatprep.mubr.bf16.mxu0 %v629
      %2404 = vmatmul.mubr.bf16.gmra.mxu0 %v628
      %v2405 = vpop.f32.mrf.mxu0
      %v2406 = vadd.f32 %v865, %v2405
      %v2407 = vpop.f32.mrf.mxu0
      %v2408 = vadd.f32 %v869, %v2407
      %v2409 = vpop.f32.mrf.mxu0
      %v2410 = vadd.f32 %v865, %v2409
      %v2411 = vpop.f32.mrf.mxu0
      %v2412 = vadd.f32 %v869, %v2411
      %2413 = vmatprep.mubr.bf16.mxu0 %v636
      %2414 = vmatmul.mubr.bf16.gmra.mxu0 %v635
      %v2415 = vpop.f32.mrf.mxu0
      %v2416 = vadd.f32 %v865, %v2415
      %v2417 = vpop.f32.mrf.mxu0
      %v2418 = vadd.f32 %v869, %v2417
      %v2419 = vpop.f32.mrf.mxu0
      %v2420 = vadd.f32 %v865, %v2419
      %v2421 = vpop.f32.mrf.mxu0
      %v2422 = vadd.f32 %v869, %v2421
      %2423 = vmatprep.mubr.bf16.mxu0 %v643
      %2424 = vmatmul.mubr.bf16.gmra.mxu0 %v642
      %v2425 = vpop.f32.mrf.mxu0
      %v2426 = vadd.f32 %v865, %v2425
      %v2427 = vpop.f32.mrf.mxu0
      %v2428 = vadd.f32 %v869, %v2427
      %v2429 = vpop.f32.mrf.mxu0
      %v2430 = vadd.f32 %v865, %v2429
      %v2431 = vpop.f32.mrf.mxu0
      %v2432 = vadd.f32 %v869, %v2431
      %2433 = vmatprep.mubr.bf16.mxu0 %v650
      %2434 = vmatmul.mubr.bf16.gmra.mxu0 %v649
      %v2435 = vpop.f32.mrf.mxu0
      %v2436 = vadd.f32 %v865, %v2435
      %v2437 = vpop.f32.mrf.mxu0
      %v2438 = vadd.f32 %v869, %v2437
      %v2439 = vpop.f32.mrf.mxu0
      %v2440 = vadd.f32 %v865, %v2439
      %v2441 = vpop.f32.mrf.mxu0
      %v2442 = vadd.f32 %v869, %v2441
      %2443 = vdwg.mxu0
      %2444 = vmatprep.subr.bf16.mxu0 %v1557
      %2445 = vmatpush1.bf16.msra.mxu0 %v1556
      %2446 = vmatprep.subr.bf16.mxu0 %v1553
      %2447 = vmatpush1.bf16.msra.mxu0 %v1552
      %2448 = vmatprep.subr.bf16.mxu0 %v1549
      %2449 = vmatpush1.bf16.msra.mxu0 %v1548
      %2450 = vmatprep.subr.bf16.mxu0 %v1545
      %2451 = vmatpush1.bf16.msra.mxu0 %v1544
      %2452 = vmatprep.subr.bf16.mxu0 %v1541
      %2453 = vmatpush1.bf16.msra.mxu0 %v1540
      %2454 = vmatprep.subr.bf16.mxu0 %v1537
      %2455 = vmatpush1.bf16.msra.mxu0 %v1536
      %2456 = vmatprep.subr.bf16.mxu0 %v1533
      %2457 = vmatpush1.bf16.msra.mxu0 %v1532
      %2458 = vmatprep.subr.bf16.mxu0 %v1529
      %2459 = vmatpush1.bf16.msra.mxu0 %v1528
      %2460 = vmatprep.subr.bf16.mxu0 %v1589
      %2461 = vmatpush2.bf16.msra.mxu0 %v1588
      %2462 = vmatprep.subr.bf16.mxu0 %v1585
      %2463 = vmatpush2.bf16.msra.mxu0 %v1584
      %2464 = vmatprep.subr.bf16.mxu0 %v1581
      %2465 = vmatpush2.bf16.msra.mxu0 %v1580
      %2466 = vmatprep.subr.bf16.mxu0 %v1577
      %2467 = vmatpush2.bf16.msra.mxu0 %v1576
      %2468 = vmatprep.subr.bf16.mxu0 %v1573
      %2469 = vmatpush2.bf16.msra.mxu0 %v1572
      %2470 = vmatprep.subr.bf16.mxu0 %v1569
      %2471 = vmatpush2.bf16.msra.mxu0 %v1568
      %2472 = vmatprep.subr.bf16.mxu0 %v1565
      %2473 = vmatpush2.bf16.msra.mxu0 %v1564
      %2474 = vmatprep.subr.bf16.mxu0 %v1561
      %2475 = vmatpush2.bf16.msra.mxu0 %v1560
      %2476 = vmatprep.mubr.bf16.mxu0 %v603
      %2477 = vmatmul.mubr.bf16.gmra.mxu0 %v602
      %v2478 = vpop.f32.mrf.mxu0
      %v2479 = vadd.f32 %v2366, %v2478
      %v2480 = vpop.f32.mrf.mxu0
      %v2481 = vadd.f32 %v2368, %v2480
      %v2482 = vpop.f32.mrf.mxu0
      %v2483 = vadd.f32 %v2370, %v2482
      %v2484 = vpop.f32.mrf.mxu0
      %v2485 = vadd.f32 %v2372, %v2484
      %2486 = vmatprep.mubr.bf16.mxu0 %v610
      %2487 = vmatmul.mubr.bf16.gmra.mxu0 %v609
      %v2488 = vpop.f32.mrf.mxu0
      %v2489 = vadd.f32 %v2376, %v2488
      %v2490 = vpop.f32.mrf.mxu0
      %v2491 = vadd.f32 %v2378, %v2490
      %v2492 = vpop.f32.mrf.mxu0
      %v2493 = vadd.f32 %v2380, %v2492
      %v2494 = vpop.f32.mrf.mxu0
      %v2495 = vadd.f32 %v2382, %v2494
      %2496 = vmatprep.mubr.bf16.mxu0 %v617
      %2497 = vmatmul.mubr.bf16.gmra.mxu0 %v616
      %v2498 = vpop.f32.mrf.mxu0
      %v2499 = vadd.f32 %v2386, %v2498
      %v2500 = vpop.f32.mrf.mxu0
      %v2501 = vadd.f32 %v2388, %v2500
      %v2502 = vpop.f32.mrf.mxu0
      %v2503 = vadd.f32 %v2390, %v2502
      %v2504 = vpop.f32.mrf.mxu0
      %v2505 = vadd.f32 %v2392, %v2504
      %2506 = vmatprep.mubr.bf16.mxu0 %v624
      %2507 = vmatmul.mubr.bf16.gmra.mxu0 %v623
      %v2508 = vpop.f32.mrf.mxu0
      %v2509 = vadd.f32 %v2396, %v2508
      %v2510 = vpop.f32.mrf.mxu0
      %v2511 = vadd.f32 %v2398, %v2510
      %v2512 = vpop.f32.mrf.mxu0
      %v2513 = vadd.f32 %v2400, %v2512
      %v2514 = vpop.f32.mrf.mxu0
      %v2515 = vadd.f32 %v2402, %v2514
      %2516 = vmatprep.mubr.bf16.mxu0 %v631
      %2517 = vmatmul.mubr.bf16.gmra.mxu0 %v630
      %v2518 = vpop.f32.mrf.mxu0
      %v2519 = vadd.f32 %v2406, %v2518
      %v2520 = vpop.f32.mrf.mxu0
      %v2521 = vadd.f32 %v2408, %v2520
      %v2522 = vpop.f32.mrf.mxu0
      %v2523 = vadd.f32 %v2410, %v2522
      %v2524 = vpop.f32.mrf.mxu0
      %v2525 = vadd.f32 %v2412, %v2524
      %2526 = vmatprep.mubr.bf16.mxu0 %v638
      %2527 = vmatmul.mubr.bf16.gmra.mxu0 %v637
      %v2528 = vpop.f32.mrf.mxu0
      %v2529 = vadd.f32 %v2416, %v2528
      %v2530 = vpop.f32.mrf.mxu0
      %v2531 = vadd.f32 %v2418, %v2530
      %v2532 = vpop.f32.mrf.mxu0
      %v2533 = vadd.f32 %v2420, %v2532
      %v2534 = vpop.f32.mrf.mxu0
      %v2535 = vadd.f32 %v2422, %v2534
      %2536 = vmatprep.mubr.bf16.mxu0 %v645
      %2537 = vmatmul.mubr.bf16.gmra.mxu0 %v644
      %v2538 = vpop.f32.mrf.mxu0
      %v2539 = vadd.f32 %v2426, %v2538
      %v2540 = vpop.f32.mrf.mxu0
      %v2541 = vadd.f32 %v2428, %v2540
      %v2542 = vpop.f32.mrf.mxu0
      %v2543 = vadd.f32 %v2430, %v2542
      %v2544 = vpop.f32.mrf.mxu0
      %v2545 = vadd.f32 %v2432, %v2544
      %2546 = vmatprep.mubr.bf16.mxu0 %v652
      %2547 = vmatmul.mubr.bf16.gmra.mxu0 %v651
      %v2548 = vpop.f32.mrf.mxu0
      %v2549 = vadd.f32 %v2436, %v2548
      %v2550 = vpop.f32.mrf.mxu0
      %v2551 = vadd.f32 %v2438, %v2550
      %v2552 = vpop.f32.mrf.mxu0
      %v2553 = vadd.f32 %v2440, %v2552
      %v2554 = vpop.f32.mrf.mxu0
      %v2555 = vadd.f32 %v2442, %v2554
      %2556 = vdwg.mxu0
      %2557 = vmatprep.subr.bf16.mxu0 %v1621
      %2558 = vmatpush1.bf16.msra.mxu0 %v1620
      %2559 = vmatprep.subr.bf16.mxu0 %v1617
      %2560 = vmatpush1.bf16.msra.mxu0 %v1616
      %2561 = vmatprep.subr.bf16.mxu0 %v1613
      %2562 = vmatpush1.bf16.msra.mxu0 %v1612
      %2563 = vmatprep.subr.bf16.mxu0 %v1609
      %2564 = vmatpush1.bf16.msra.mxu0 %v1608
      %2565 = vmatprep.subr.bf16.mxu0 %v1605
      %2566 = vmatpush1.bf16.msra.mxu0 %v1604
      %2567 = vmatprep.subr.bf16.mxu0 %v1601
      %2568 = vmatpush1.bf16.msra.mxu0 %v1600
      %2569 = vmatprep.subr.bf16.mxu0 %v1597
      %2570 = vmatpush1.bf16.msra.mxu0 %v1596
      %2571 = vmatprep.subr.bf16.mxu0 %v1593
      %2572 = vmatpush1.bf16.msra.mxu0 %v1592
      %2573 = vmatprep.subr.bf16.mxu0 %v1653
      %2574 = vmatpush2.bf16.msra.mxu0 %v1652
      %2575 = vmatprep.subr.bf16.mxu0 %v1649
      %2576 = vmatpush2.bf16.msra.mxu0 %v1648
      %2577 = vmatprep.subr.bf16.mxu0 %v1645
      %2578 = vmatpush2.bf16.msra.mxu0 %v1644
      %2579 = vmatprep.subr.bf16.mxu0 %v1641
      %2580 = vmatpush2.bf16.msra.mxu0 %v1640
      %2581 = vmatprep.subr.bf16.mxu0 %v1637
      %2582 = vmatpush2.bf16.msra.mxu0 %v1636
      %2583 = vmatprep.subr.bf16.mxu0 %v1633
      %2584 = vmatpush2.bf16.msra.mxu0 %v1632
      %2585 = vmatprep.subr.bf16.mxu0 %v1629
      %2586 = vmatpush2.bf16.msra.mxu0 %v1628
      %2587 = vmatprep.subr.bf16.mxu0 %v1625
      %2588 = vmatpush2.bf16.msra.mxu0 %v1624
      %2589 = vmatprep.mubr.bf16.mxu0 %v605
      %2590 = vmatmul.mubr.bf16.gmra.mxu0 %v604
      %v2591 = vpop.f32.mrf.mxu0
      %v2592 = vadd.f32 %v2479, %v2591
      %v2593 = vpop.f32.mrf.mxu0
      %v2594 = vadd.f32 %v2481, %v2593
      %v2595 = vpop.f32.mrf.mxu0
      %v2596 = vadd.f32 %v2483, %v2595
      %v2597 = vpop.f32.mrf.mxu0
      %v2598 = vadd.f32 %v2485, %v2597
      %2599 = vmatprep.mubr.bf16.mxu0 %v612
      %2600 = vmatmul.mubr.bf16.gmra.mxu0 %v611
      %v2601 = vpop.f32.mrf.mxu0
      %v2602 = vadd.f32 %v2489, %v2601
      %v2603 = vpop.f32.mrf.mxu0
      %v2604 = vadd.f32 %v2491, %v2603
      %v2605 = vpop.f32.mrf.mxu0
      %v2606 = vadd.f32 %v2493, %v2605
      %v2607 = vpop.f32.mrf.mxu0
      %v2608 = vadd.f32 %v2495, %v2607
      %2609 = vmatprep.mubr.bf16.mxu0 %v619
      %2610 = vmatmul.mubr.bf16.gmra.mxu0 %v618
      %v2611 = vpop.f32.mrf.mxu0
      %v2612 = vadd.f32 %v2499, %v2611
      %v2613 = vpop.f32.mrf.mxu0
      %v2614 = vadd.f32 %v2501, %v2613
      %v2615 = vpop.f32.mrf.mxu0
      %v2616 = vadd.f32 %v2503, %v2615
      %v2617 = vpop.f32.mrf.mxu0
      %v2618 = vadd.f32 %v2505, %v2617
      %2619 = vmatprep.mubr.bf16.mxu0 %v626
      %2620 = vmatmul.mubr.bf16.gmra.mxu0 %v625
      %v2621 = vpop.f32.mrf.mxu0
      %v2622 = vadd.f32 %v2509, %v2621
      %v2623 = vpop.f32.mrf.mxu0
      %v2624 = vadd.f32 %v2511, %v2623
      %v2625 = vpop.f32.mrf.mxu0
      %v2626 = vadd.f32 %v2513, %v2625
      %v2627 = vpop.f32.mrf.mxu0
      %v2628 = vadd.f32 %v2515, %v2627
      %2629 = vmatprep.mubr.bf16.mxu0 %v633
      %2630 = vmatmul.mubr.bf16.gmra.mxu0 %v632
      %v2631 = vpop.f32.mrf.mxu0
      %v2632 = vadd.f32 %v2519, %v2631
      %v2633 = vpop.f32.mrf.mxu0
      %v2634 = vadd.f32 %v2521, %v2633
      %v2635 = vpop.f32.mrf.mxu0
      %v2636 = vadd.f32 %v2523, %v2635
      %v2637 = vpop.f32.mrf.mxu0
      %v2638 = vadd.f32 %v2525, %v2637
      %2639 = vmatprep.mubr.bf16.mxu0 %v640
      %2640 = vmatmul.mubr.bf16.gmra.mxu0 %v639
      %v2641 = vpop.f32.mrf.mxu0
      %v2642 = vadd.f32 %v2529, %v2641
      %v2643 = vpop.f32.mrf.mxu0
      %v2644 = vadd.f32 %v2531, %v2643
      %v2645 = vpop.f32.mrf.mxu0
      %v2646 = vadd.f32 %v2533, %v2645
      %v2647 = vpop.f32.mrf.mxu0
      %v2648 = vadd.f32 %v2535, %v2647
      %2649 = vmatprep.mubr.bf16.mxu0 %v647
      %2650 = vmatmul.mubr.bf16.gmra.mxu0 %v646
      %v2651 = vpop.f32.mrf.mxu0
      %v2652 = vadd.f32 %v2539, %v2651
      %v2653 = vpop.f32.mrf.mxu0
      %v2654 = vadd.f32 %v2541, %v2653
      %v2655 = vpop.f32.mrf.mxu0
      %v2656 = vadd.f32 %v2543, %v2655
      %v2657 = vpop.f32.mrf.mxu0
      %v2658 = vadd.f32 %v2545, %v2657
      %2659 = vmatprep.mubr.bf16.mxu0 %v654
      %2660 = vmatmul.mubr.bf16.gmra.mxu0 %v653
      %v2661 = vpop.f32.mrf.mxu0
      %v2662 = vadd.f32 %v2549, %v2661
      %v2663 = vpop.f32.mrf.mxu0
      %v2664 = vadd.f32 %v2551, %v2663
      %v2665 = vpop.f32.mrf.mxu0
      %v2666 = vadd.f32 %v2553, %v2665
      %v2667 = vpop.f32.mrf.mxu0
      %v2668 = vadd.f32 %v2555, %v2667
      %2669 = vdwg.mxu0
      %2670 = vmatprep.subr.bf16.mxu0 0
      %2671 = vmatpush1.bf16.msra.mxu0 0
      %2672 = vmatprep.subr.bf16.mxu0 0
      %2673 = vmatpush1.bf16.msra.mxu0 0
      %2674 = vmatprep.subr.bf16.mxu0 0
      %2675 = vmatpush1.bf16.msra.mxu0 0
      %2676 = vmatprep.subr.bf16.mxu0 0
      %2677 = vmatpush1.bf16.msra.mxu0 0
      %2678 = vmatprep.subr.bf16.mxu0 0
      %2679 = vmatpush1.bf16.msra.mxu0 0
      %2680 = vmatprep.subr.bf16.mxu0 0
      %2681 = vmatpush1.bf16.msra.mxu0 0
      %2682 = vmatprep.subr.bf16.mxu0 0
      %2683 = vmatpush1.bf16.msra.mxu0 0
      %2684 = vmatprep.subr.bf16.mxu0 %v1657
      %2685 = vmatpush1.bf16.msra.mxu0 %v1656
      %2686 = vmatprep.subr.bf16.mxu0 0
      %2687 = vmatpush2.bf16.msra.mxu0 0
      %2688 = vmatprep.subr.bf16.mxu0 0
      %2689 = vmatpush2.bf16.msra.mxu0 0
      %2690 = vmatprep.subr.bf16.mxu0 0
      %2691 = vmatpush2.bf16.msra.mxu0 0
      %2692 = vmatprep.subr.bf16.mxu0 0
      %2693 = vmatpush2.bf16.msra.mxu0 0
      %2694 = vmatprep.subr.bf16.mxu0 0
      %2695 = vmatpush2.bf16.msra.mxu0 0
      %2696 = vmatprep.subr.bf16.mxu0 0
      %2697 = vmatpush2.bf16.msra.mxu0 0
      %2698 = vmatprep.subr.bf16.mxu0 0
      %2699 = vmatpush2.bf16.msra.mxu0 0
      %2700 = vmatprep.subr.bf16.mxu0 0
      %2701 = vmatpush2.bf16.msra.mxu0 0
      %2702 = vmatprep.mubr.bf16.mxu0 0
      %2703 = vmatmul.mubr.bf16.gmra.mxu0 %v1856
      %v2704 = vpop.f32.mrf.mxu0
      %v2705 = vadd.f32 %v2592, %v2704
      %v2706 = vpop.f32.mrf.mxu0
      %v2707 = vadd.f32 %v2594, %v2706
      %v2708 = vpop.f32.mrf.mxu0
      %v2709 = vadd.f32 %v2596, %v2708
      %v2710 = vpop.f32.mrf.mxu0
      %v2711 = vadd.f32 %v2598, %v2710
      %2712 = vmatprep.mubr.bf16.mxu0 0
      %2713 = vmatmul.mubr.bf16.gmra.mxu0 %v1859
      %v2714 = vpop.f32.mrf.mxu0
      %v2715 = vadd.f32 %v2602, %v2714
      %v2716 = vpop.f32.mrf.mxu0
      %v2717 = vadd.f32 %v2604, %v2716
      %v2718 = vpop.f32.mrf.mxu0
      %v2719 = vadd.f32 %v2606, %v2718
      %v2720 = vpop.f32.mrf.mxu0
      %v2721 = vadd.f32 %v2608, %v2720
      %2722 = vmatprep.mubr.bf16.mxu0 0
      %2723 = vmatmul.mubr.bf16.gmra.mxu0 %v1862
      %v2724 = vpop.f32.mrf.mxu0
      %v2725 = vadd.f32 %v2612, %v2724
      %v2726 = vpop.f32.mrf.mxu0
      %v2727 = vadd.f32 %v2614, %v2726
      %v2728 = vpop.f32.mrf.mxu0
      %v2729 = vadd.f32 %v2616, %v2728
      %v2730 = vpop.f32.mrf.mxu0
      %v2731 = vadd.f32 %v2618, %v2730
      %2732 = vmatprep.mubr.bf16.mxu0 0
      %2733 = vmatmul.mubr.bf16.gmra.mxu0 %v1865
      %v2734 = vpop.f32.mrf.mxu0
      %v2735 = vadd.f32 %v2622, %v2734
      %v2736 = vpop.f32.mrf.mxu0
      %v2737 = vadd.f32 %v2624, %v2736
      %v2738 = vpop.f32.mrf.mxu0
      %v2739 = vadd.f32 %v2626, %v2738
      %v2740 = vpop.f32.mrf.mxu0
      %v2741 = vadd.f32 %v2628, %v2740
      %2742 = vmatprep.mubr.bf16.mxu0 0
      %2743 = vmatmul.mubr.bf16.gmra.mxu0 %v1868
      %v2744 = vpop.f32.mrf.mxu0
      %v2745 = vadd.f32 %v2632, %v2744
      %v2746 = vpop.f32.mrf.mxu0
      %v2747 = vadd.f32 %v2634, %v2746
      %v2748 = vpop.f32.mrf.mxu0
      %v2749 = vadd.f32 %v2636, %v2748
      %v2750 = vpop.f32.mrf.mxu0
      %v2751 = vadd.f32 %v2638, %v2750
      %2752 = vmatprep.mubr.bf16.mxu0 0
      %2753 = vmatmul.mubr.bf16.gmra.mxu0 %v1871
      %v2754 = vpop.f32.mrf.mxu0
      %v2755 = vadd.f32 %v2642, %v2754
      %v2756 = vpop.f32.mrf.mxu0
      %v2757 = vadd.f32 %v2644, %v2756
      %v2758 = vpop.f32.mrf.mxu0
      %v2759 = vadd.f32 %v2646, %v2758
      %v2760 = vpop.f32.mrf.mxu0
      %v2761 = vadd.f32 %v2648, %v2760
      %2762 = vmatprep.mubr.bf16.mxu0 0
      %2763 = vmatmul.mubr.bf16.gmra.mxu0 %v1874
      %v2764 = vpop.f32.mrf.mxu0
      %v2765 = vadd.f32 %v2652, %v2764
      %v2766 = vpop.f32.mrf.mxu0
      %v2767 = vadd.f32 %v2654, %v2766
      %v2768 = vpop.f32.mrf.mxu0
      %v2769 = vadd.f32 %v2656, %v2768
      %v2770 = vpop.f32.mrf.mxu0
      %v2771 = vadd.f32 %v2658, %v2770
      %2772 = vmatprep.mubr.bf16.mxu0 0
      %2773 = vmatmul.mubr.bf16.gmra.mxu0 %v1877
      %v2774 = vpop.f32.mrf.mxu0
      %v2775 = vadd.f32 %v2662, %v2774
      %v2776 = vpop.f32.mrf.mxu0
      %v2777 = vadd.f32 %v2664, %v2776
      %v2778 = vpop.f32.mrf.mxu0
      %v2779 = vadd.f32 %v2666, %v2778
      %v2780 = vpop.f32.mrf.mxu0
      %v2781 = vadd.f32 %v2668, %v2780
      %2782 = vdwg.mxu0
      %v2783 = vmax.f32 %v2253, 0.0
      %v2784 = vmax.f32 %v2255, 0.0
      %v2785 = vmax.f32 %v2705, 0.0
      %v2786 = vmax.f32 %v2707, 0.0
      %v2787 = vmax.f32 %v2257, 0.0
      %v2788 = vmax.f32 %v2259, 0.0
      %v2789 = vmax.f32 %v2709, 0.0
      %v2790 = vmax.f32 %v2711, 0.0
      %v2791 = vmax.f32 %v2263, 0.0
      %v2792 = vmax.f32 %v2265, 0.0
      %v2793 = vmax.f32 %v2715, 0.0
      %v2794 = vmax.f32 %v2717, 0.0
      %v2795 = vmax.f32 %v2267, 0.0
      %v2796 = vmax.f32 %v2269, 0.0
      %v2797 = vmax.f32 %v2719, 0.0
      %v2798 = vmax.f32 %v2721, 0.0
      %v2799 = vmax.f32 %v2273, 0.0
      %v2800 = vmax.f32 %v2275, 0.0
      %v2801 = vmax.f32 %v2725, 0.0
      %v2802 = vmax.f32 %v2727, 0.0
      %v2803 = vmax.f32 %v2277, 0.0
      %v2804 = vmax.f32 %v2279, 0.0
      %v2805 = vmax.f32 %v2729, 0.0
      %v2806 = vmax.f32 %v2731, 0.0
      %v2807 = vmax.f32 %v2283, 0.0
      %v2808 = vmax.f32 %v2285, 0.0
      %v2809 = vmax.f32 %v2735, 0.0
      %v2810 = vmax.f32 %v2737, 0.0
      %v2811 = vmax.f32 %v2287, 0.0
      %v2812 = vmax.f32 %v2289, 0.0
      %v2813 = vmax.f32 %v2739, 0.0
      %v2814 = vmax.f32 %v2741, 0.0
      %v2815 = vmax.f32 %v2293, 0.0
      %v2816 = vmax.f32 %v2295, 0.0
      %v2817 = vmax.f32 %v2745, 0.0
      %v2818 = vmax.f32 %v2747, 0.0
      %v2819 = vmax.f32 %v2297, 0.0
      %v2820 = vmax.f32 %v2299, 0.0
      %v2821 = vmax.f32 %v2749, 0.0
      %v2822 = vmax.f32 %v2751, 0.0
      %v2823 = vmax.f32 %v2303, 0.0
      %v2824 = vmax.f32 %v2305, 0.0
      %v2825 = vmax.f32 %v2755, 0.0
      %v2826 = vmax.f32 %v2757, 0.0
      %v2827 = vmax.f32 %v2307, 0.0
      %v2828 = vmax.f32 %v2309, 0.0
      %v2829 = vmax.f32 %v2759, 0.0
      %v2830 = vmax.f32 %v2761, 0.0
      %v2831 = vmax.f32 %v2313, 0.0
      %v2832 = vmax.f32 %v2315, 0.0
      %v2833 = vmax.f32 %v2765, 0.0
      %v2834 = vmax.f32 %v2767, 0.0
      %v2835 = vmax.f32 %v2317, 0.0
      %v2836 = vmax.f32 %v2319, 0.0
      %v2837 = vmax.f32 %v2769, 0.0
      %v2838 = vmax.f32 %v2771, 0.0
      %v2839 = vmax.f32 %v2323, 0.0
      %v2840 = vmax.f32 %v2325, 0.0
      %v2841 = vmax.f32 %v2775, 0.0
      %v2842 = vmax.f32 %v2777, 0.0
      %v2843 = vmax.f32 %v2327, 0.0
      %v2844 = vmax.f32 %v2329, 0.0
      %v2845 = vmax.f32 %v2779, 0.0
      %v2846 = vmax.f32 %v2781, 0.0
      %v2847 = vpack.c.bf16 %v2787, %v2783
      %v2848 = vpack.c.bf16 %v2788, %v2784
      %v2849 = vpack.c.bf16 %v2789, %v2785
      %v2850 = vpack.c.bf16 %v2790, %v2786
      %v2851 = vpack.c.bf16 %v2795, %v2791
      %v2852 = vpack.c.bf16 %v2796, %v2792
      %v2853 = vpack.c.bf16 %v2797, %v2793
      %v2854 = vpack.c.bf16 %v2798, %v2794
      %v2855 = vpack.c.bf16 %v2803, %v2799
      %v2856 = vpack.c.bf16 %v2804, %v2800
      %v2857 = vpack.c.bf16 %v2805, %v2801
      %v2858 = vpack.c.bf16 %v2806, %v2802
      %v2859 = vpack.c.bf16 %v2811, %v2807
      %v2860 = vpack.c.bf16 %v2812, %v2808
      %v2861 = vpack.c.bf16 %v2813, %v2809
      %v2862 = vpack.c.bf16 %v2814, %v2810
      %v2863 = vpack.c.bf16 %v2819, %v2815
      %v2864 = vpack.c.bf16 %v2820, %v2816
      %v2865 = vpack.c.bf16 %v2821, %v2817
      %v2866 = vpack.c.bf16 %v2822, %v2818
      %v2867 = vpack.c.bf16 %v2827, %v2823
      %v2868 = vpack.c.bf16 %v2828, %v2824
      %v2869 = vpack.c.bf16 %v2829, %v2825
      %v2870 = vpack.c.bf16 %v2830, %v2826
      %v2871 = vpack.c.bf16 %v2835, %v2831
      %v2872 = vpack.c.bf16 %v2836, %v2832
      %v2873 = vpack.c.bf16 %v2837, %v2833
      %v2874 = vpack.c.bf16 %v2838, %v2834
      %v2875 = vpack.c.bf16 %v2843, %v2839
      %v2876 = vpack.c.bf16 %v2844, %v2840
      %v2877 = vpack.c.bf16 %v2845, %v2841
      %v2878 = vpack.c.bf16 %v2846, %v2842
      %v2879 = vld [vmem:[%s4] sm:$0xf]
      %v2880 = vld [vmem:[%s4 + $0x4] sm:$0xf]
      %v2881 = vld [vmem:[%s4 + $0x8] sm:$0xf]
      %v2882 = vld [vmem:[%s4 + $0xc] sm:$0xf]
      %v2883 = vld [vmem:[%s4 + $0x10] sm:$0xf]
      %v2884 = vld [vmem:[%s4 + $0x14] sm:$0xf]
      %v2885 = vld [vmem:[%s4 + $0x18] sm:$0xf]
      %v2886 = vld [vmem:[%s4 + $0x1c] sm:$0xf]
      %v2887 = vld [vmem:[%s4 + $0x20] sm:$0xf]
      %v2888 = vld [vmem:[%s4 + $0x24] sm:$0xf]
      %v2889 = vld [vmem:[%s4 + $0x28] sm:$0xf]
      %v2890 = vld [vmem:[%s4 + $0x2c] sm:$0xf]
      %v2891 = vld [vmem:[%s4 + $0x30] sm:$0xf]
      %v2892 = vld [vmem:[%s4 + $0x34] sm:$0xf]
      %v2893 = vld [vmem:[%s4 + $0x38] sm:$0xf]
      %v2894 = vld [vmem:[%s4 + $0x3c] sm:$0xf]
      %v2895 = vld [vmem:[%s4 + $0x40] sm:$0xf]
      %v2896 = vld [vmem:[%s4 + $0x44] sm:$0xf]
      %v2897 = vld [vmem:[%s4 + $0x48] sm:$0xf]
      %v2898 = vld [vmem:[%s4 + $0x4c] sm:$0xf]
      %v2899 = vld [vmem:[%s4 + $0x50] sm:$0xf]
      %v2900 = vld [vmem:[%s4 + $0x54] sm:$0xf]
      %v2901 = vld [vmem:[%s4 + $0x58] sm:$0xf]
      %v2902 = vld [vmem:[%s4 + $0x5c] sm:$0xf]
      %v2903 = vld [vmem:[%s4 + $0x60] sm:$0xf]
      %v2904 = vld [vmem:[%s4 + $0x64] sm:$0xf]
      %v2905 = vld [vmem:[%s4 + $0x68] sm:$0xf]
      %v2906 = vld [vmem:[%s4 + $0x6c] sm:$0xf]
      %v2907 = vld [vmem:[%s4 + $0x70] sm:$0xf]
      %v2908 = vld [vmem:[%s4 + $0x74] sm:$0xf]
      %v2909 = vld [vmem:[%s4 + $0x78] sm:$0xf]
      %v2910 = vld [vmem:[%s4 + $0x7c] sm:$0xf]
      %v2911 = vld [vmem:[%s4 + $0x80] sm:$0xf]
      %v2912 = vld [vmem:[%s4 + $0x84] sm:$0xf]
      %v2913 = vld [vmem:[%s4 + $0x88] sm:$0xf]
      %v2914 = vld [vmem:[%s4 + $0x8c] sm:$0xf]
      %v2915 = vld [vmem:[%s4 + $0x90] sm:$0xf]
      %v2916 = vld [vmem:[%s4 + $0x94] sm:$0xf]
      %v2917 = vld [vmem:[%s4 + $0x98] sm:$0xf]
      %v2918 = vld [vmem:[%s4 + $0x9c] sm:$0xf]
      %v2919 = vld [vmem:[%s4 + $0xa0] sm:$0xf]
      %v2920 = vld [vmem:[%s4 + $0xa4] sm:$0xf]
      %v2921 = vld [vmem:[%s4 + $0xa8] sm:$0xf]
      %v2922 = vld [vmem:[%s4 + $0xac] sm:$0xf]
      %v2923 = vld [vmem:[%s4 + $0xb0] sm:$0xf]
      %v2924 = vld [vmem:[%s4 + $0xb4] sm:$0xf]
      %v2925 = vld [vmem:[%s4 + $0xb8] sm:$0xf]
      %v2926 = vld [vmem:[%s4 + $0xbc] sm:$0xf]
      %v2927 = vld [vmem:[%s4 + $0xc0] sm:$0xf]
      %v2928 = vld [vmem:[%s4 + $0xc4] sm:$0xf]
      %v2929 = vld [vmem:[%s4 + $0xc8] sm:$0xf]
      %v2930 = vld [vmem:[%s4 + $0xcc] sm:$0xf]
      %v2931 = vld [vmem:[%s4 + $0xd0] sm:$0xf]
      %v2932 = vld [vmem:[%s4 + $0xd4] sm:$0xf]
      %v2933 = vld [vmem:[%s4 + $0xd8] sm:$0xf]
      %v2934 = vld [vmem:[%s4 + $0xdc] sm:$0xf]
      %v2935 = vld [vmem:[%s4 + $0xe0] sm:$0xf]
      %v2936 = vld [vmem:[%s4 + $0xe4] sm:$0xf]
      %v2937 = vld [vmem:[%s4 + $0xe8] sm:$0xf]
      %v2938 = vld [vmem:[%s4 + $0xec] sm:$0xf]
      %v2939 = vld [vmem:[%s4 + $0xf0] sm:$0xf]
      %v2940 = vld [vmem:[%s4 + $0xf4] sm:$0xf]
      %v2941 = vld [vmem:[%s4 + $0xf8] sm:$0xf]
      %v2942 = vld [vmem:[%s4 + $0xfc] sm:$0xf]
      %v2943 = vld [vmem:[%s5] sm:$0x1]
      %v2945 = vlaneseq
      %v2946 = vshrl.u32 %v2945, 7
      %v2947 = vsub.s32 0, %v2946
      %v2948 = vrot.slane %v2943, %v2947
      %v3014 = vunpack.c.l.b16 %v2879
      %v3015 = vunpack.c.l.b16 %v2880
      %v3016 = vunpack.c.l.b16 %v2881
      %v3017 = vunpack.c.l.b16 %v2882
      %v3018 = vunpack.c.l.b16 %v2883
      %v3019 = vunpack.c.l.b16 %v2884
      %v3020 = vunpack.c.l.b16 %v2885
      %v3021 = vunpack.c.l.b16 %v2886
      %v3022 = vunpack.c.l.b16 %v2887
      %v3023 = vunpack.c.l.b16 %v2888
      %v3024 = vunpack.c.l.b16 %v2889
      %v3025 = vunpack.c.l.b16 %v2890
      %v3026 = vunpack.c.l.b16 %v2891
      %v3027 = vunpack.c.l.b16 %v2892
      %v3028 = vunpack.c.l.b16 %v2893
      %v3029 = vunpack.c.l.b16 %v2894
      %v3030 = vunpack.c.l.b16 %v2895
      %v3031 = vunpack.c.l.b16 %v2896
      %v3032 = vunpack.c.l.b16 %v2897
      %v3033 = vunpack.c.l.b16 %v2898
      %v3034 = vunpack.c.l.b16 %v2899
      %v3035 = vunpack.c.l.b16 %v2900
      %v3036 = vunpack.c.l.b16 %v2901
      %v3037 = vunpack.c.l.b16 %v2902
      %v3038 = vunpack.c.l.b16 %v2903
      %v3039 = vunpack.c.l.b16 %v2904
      %v3040 = vunpack.c.l.b16 %v2905
      %v3041 = vunpack.c.l.b16 %v2906
      %v3042 = vunpack.c.l.b16 %v2907
      %v3043 = vunpack.c.l.b16 %v2908
      %v3044 = vunpack.c.l.b16 %v2909
      %v3045 = vunpack.c.l.b16 %v2910
      %v3046 = vunpack.c.l.b16 %v2911
      %v3047 = vunpack.c.l.b16 %v2912
      %v3048 = vunpack.c.l.b16 %v2913
      %v3049 = vunpack.c.l.b16 %v2914
      %v3050 = vunpack.c.l.b16 %v2915
      %v3051 = vunpack.c.l.b16 %v2916
      %v3052 = vunpack.c.l.b16 %v2917
      %v3053 = vunpack.c.l.b16 %v2918
      %v3054 = vunpack.c.l.b16 %v2919
      %v3055 = vunpack.c.l.b16 %v2920
      %v3056 = vunpack.c.l.b16 %v2921
      %v3057 = vunpack.c.l.b16 %v2922
      %v3058 = vunpack.c.l.b16 %v2923
      %v3059 = vunpack.c.l.b16 %v2924
      %v3060 = vunpack.c.l.b16 %v2925
      %v3061 = vunpack.c.l.b16 %v2926
      %v3062 = vunpack.c.l.b16 %v2927
      %v3063 = vunpack.c.l.b16 %v2928
      %v3064 = vunpack.c.l.b16 %v2929
      %v3065 = vunpack.c.l.b16 %v2930
      %v3066 = vunpack.c.l.b16 %v2931
      %v3067 = vunpack.c.l.b16 %v2932
      %v3068 = vunpack.c.l.b16 %v2933
      %v3069 = vunpack.c.l.b16 %v2934
      %v3070 = vunpack.c.l.b16 %v2935
      %v3071 = vunpack.c.l.b16 %v2936
      %v3072 = vunpack.c.l.b16 %v2937
      %v3073 = vunpack.c.l.b16 %v2938
      %v3074 = vunpack.c.l.b16 %v2939
      %v3075 = vunpack.c.l.b16 %v2940
      %v3076 = vunpack.c.l.b16 %v2941
      %v3077 = vunpack.c.l.b16 %v2942
      %v3078 = vpack.c.b16 %v3015, %v3014
      %v3079 = vpack.c.b16 %v3017, %v3016
      %v3080 = vpack.c.b16 %v3019, %v3018
      %v3081 = vpack.c.b16 %v3021, %v3020
      %v3082 = vpack.c.b16 %v3023, %v3022
      %v3083 = vpack.c.b16 %v3025, %v3024
      %v3084 = vpack.c.b16 %v3027, %v3026
      %v3085 = vpack.c.b16 %v3029, %v3028
      %v3086 = vpack.c.b16 %v3031, %v3030
      %v3087 = vpack.c.b16 %v3033, %v3032
      %v3088 = vpack.c.b16 %v3035, %v3034
      %v3089 = vpack.c.b16 %v3037, %v3036
      %v3090 = vpack.c.b16 %v3039, %v3038
      %v3091 = vpack.c.b16 %v3041, %v3040
      %v3092 = vpack.c.b16 %v3043, %v3042
      %v3093 = vpack.c.b16 %v3045, %v3044
      %v3094 = vpack.c.b16 %v3047, %v3046
      %v3095 = vpack.c.b16 %v3049, %v3048
      %v3096 = vpack.c.b16 %v3051, %v3050
      %v3097 = vpack.c.b16 %v3053, %v3052
      %v3098 = vpack.c.b16 %v3055, %v3054
      %v3099 = vpack.c.b16 %v3057, %v3056
      %v3100 = vpack.c.b16 %v3059, %v3058
      %v3101 = vpack.c.b16 %v3061, %v3060
      %v3102 = vpack.c.b16 %v3063, %v3062
      %v3103 = vpack.c.b16 %v3065, %v3064
      %v3104 = vpack.c.b16 %v3067, %v3066
      %v3105 = vpack.c.b16 %v3069, %v3068
      %v3106 = vpack.c.b16 %v3071, %v3070
      %v3107 = vpack.c.b16 %v3073, %v3072
      %v3108 = vpack.c.b16 %v3075, %v3074
      %v3109 = vpack.c.b16 %v3077, %v3076
      %3142 = vmatprep.subr.bf16.mxu0 0
      %3143 = vmatpush1.bf16.msra.mxu0 %v3085
      %3144 = vmatprep.subr.bf16.mxu0 0
      %3145 = vmatpush1.bf16.msra.mxu0 %v3084
      %3146 = vmatprep.subr.bf16.mxu0 0
      %3147 = vmatpush1.bf16.msra.mxu0 %v3083
      %3148 = vmatprep.subr.bf16.mxu0 0
      %3149 = vmatpush1.bf16.msra.mxu0 %v3082
      %3150 = vmatprep.subr.bf16.mxu0 0
      %3151 = vmatpush1.bf16.msra.mxu0 %v3081
      %3152 = vmatprep.subr.bf16.mxu0 0
      %3153 = vmatpush1.bf16.msra.mxu0 %v3080
      %3154 = vmatprep.subr.bf16.mxu0 0
      %3155 = vmatpush1.bf16.msra.mxu0 %v3079
      %3156 = vmatprep.subr.bf16.mxu0 0
      %3157 = vmatpush1.bf16.msra.mxu0 %v3078
      %3158 = vmatprep.subr.bf16.mxu0 0
      %3159 = vmatpush2.bf16.msra.mxu0 %v3093
      %3160 = vmatprep.subr.bf16.mxu0 0
      %3161 = vmatpush2.bf16.msra.mxu0 %v3092
      %3162 = vmatprep.subr.bf16.mxu0 0
      %3163 = vmatpush2.bf16.msra.mxu0 %v3091
      %3164 = vmatprep.subr.bf16.mxu0 0
      %3165 = vmatpush2.bf16.msra.mxu0 %v3090
      %3166 = vmatprep.subr.bf16.mxu0 0
      %3167 = vmatpush2.bf16.msra.mxu0 %v3089
      %3168 = vmatprep.subr.bf16.mxu0 0
      %3169 = vmatpush2.bf16.msra.mxu0 %v3088
      %3170 = vmatprep.subr.bf16.mxu0 0
      %3171 = vmatpush2.bf16.msra.mxu0 %v3087
      %3172 = vmatprep.subr.bf16.mxu0 0
      %3173 = vmatpush2.bf16.msra.mxu0 %v3086
      %3174 = vmatprep.mubr.bf16.mxu0 %v2848
      %3175 = vmatmul.mubr.bf16.gmra.mxu0 %v2847
      %v3176 = vpop.f32.mrf.mxu0
      %v3177 = vadd.f32 %v2948, %v3176
      %v3178 = vpop.f32.mrf.mxu0
      %v3179 = vpop.f32.mrf.mxu0
      %v3180 = vadd.f32 %v2948, %v3179
      %v3181 = vpop.f32.mrf.mxu0
      %3182 = vmatprep.mubr.bf16.mxu0 %v2852
      %3183 = vmatmul.mubr.bf16.gmra.mxu0 %v2851
      %v3184 = vpop.f32.mrf.mxu0
      %v3185 = vadd.f32 %v2948, %v3184
      %v3186 = vpop.f32.mrf.mxu0
      %v3187 = vpop.f32.mrf.mxu0
      %v3188 = vadd.f32 %v2948, %v3187
      %v3189 = vpop.f32.mrf.mxu0
      %3190 = vmatprep.mubr.bf16.mxu0 %v2856
      %3191 = vmatmul.mubr.bf16.gmra.mxu0 %v2855
      %v3192 = vpop.f32.mrf.mxu0
      %v3193 = vadd.f32 %v2948, %v3192
      %v3194 = vpop.f32.mrf.mxu0
      %v3195 = vpop.f32.mrf.mxu0
      %v3196 = vadd.f32 %v2948, %v3195
      %v3197 = vpop.f32.mrf.mxu0
      %3198 = vmatprep.mubr.bf16.mxu0 %v2860
      %3199 = vmatmul.mubr.bf16.gmra.mxu0 %v2859
      %v3200 = vpop.f32.mrf.mxu0
      %v3201 = vadd.f32 %v2948, %v3200
      %v3202 = vpop.f32.mrf.mxu0
      %v3203 = vpop.f32.mrf.mxu0
      %v3204 = vadd.f32 %v2948, %v3203
      %v3205 = vpop.f32.mrf.mxu0
      %3206 = vmatprep.mubr.bf16.mxu0 %v2864
      %3207 = vmatmul.mubr.bf16.gmra.mxu0 %v2863
      %v3208 = vpop.f32.mrf.mxu0
      %v3209 = vadd.f32 %v2948, %v3208
      %v3210 = vpop.f32.mrf.mxu0
      %v3211 = vpop.f32.mrf.mxu0
      %v3212 = vadd.f32 %v2948, %v3211
      %v3213 = vpop.f32.mrf.mxu0
      %3214 = vmatprep.mubr.bf16.mxu0 %v2868
      %3215 = vmatmul.mubr.bf16.gmra.mxu0 %v2867
      %v3216 = vpop.f32.mrf.mxu0
      %v3217 = vadd.f32 %v2948, %v3216
      %v3218 = vpop.f32.mrf.mxu0
      %v3219 = vpop.f32.mrf.mxu0
      %v3220 = vadd.f32 %v2948, %v3219
      %v3221 = vpop.f32.mrf.mxu0
      %3222 = vmatprep.mubr.bf16.mxu0 %v2872
      %3223 = vmatmul.mubr.bf16.gmra.mxu0 %v2871
      %v3224 = vpop.f32.mrf.mxu0
      %v3225 = vadd.f32 %v2948, %v3224
      %v3226 = vpop.f32.mrf.mxu0
      %v3227 = vpop.f32.mrf.mxu0
      %v3228 = vadd.f32 %v2948, %v3227
      %v3229 = vpop.f32.mrf.mxu0
      %3230 = vmatprep.mubr.bf16.mxu0 %v2876
      %3231 = vmatmul.mubr.bf16.gmra.mxu0 %v2875
      %v3232 = vpop.f32.mrf.mxu0
      %v3233 = vadd.f32 %v2948, %v3232
      %v3234 = vpop.f32.mrf.mxu0
      %v3235 = vpop.f32.mrf.mxu0
      %v3236 = vadd.f32 %v2948, %v3235
      %v3237 = vpop.f32.mrf.mxu0
      %3238 = vdwg.mxu0
      %3239 = vmatprep.subr.bf16.mxu0 0
      %3240 = vmatpush1.bf16.msra.mxu0 %v3101
      %3241 = vmatprep.subr.bf16.mxu0 0
      %3242 = vmatpush1.bf16.msra.mxu0 %v3100
      %3243 = vmatprep.subr.bf16.mxu0 0
      %3244 = vmatpush1.bf16.msra.mxu0 %v3099
      %3245 = vmatprep.subr.bf16.mxu0 0
      %3246 = vmatpush1.bf16.msra.mxu0 %v3098
      %3247 = vmatprep.subr.bf16.mxu0 0
      %3248 = vmatpush1.bf16.msra.mxu0 %v3097
      %3249 = vmatprep.subr.bf16.mxu0 0
      %3250 = vmatpush1.bf16.msra.mxu0 %v3096
      %3251 = vmatprep.subr.bf16.mxu0 0
      %3252 = vmatpush1.bf16.msra.mxu0 %v3095
      %3253 = vmatprep.subr.bf16.mxu0 0
      %3254 = vmatpush1.bf16.msra.mxu0 %v3094
      %3255 = vmatprep.subr.bf16.mxu0 0
      %3256 = vmatpush2.bf16.msra.mxu0 %v3109
      %3257 = vmatprep.subr.bf16.mxu0 0
      %3258 = vmatpush2.bf16.msra.mxu0 %v3108
      %3259 = vmatprep.subr.bf16.mxu0 0
      %3260 = vmatpush2.bf16.msra.mxu0 %v3107
      %3261 = vmatprep.subr.bf16.mxu0 0
      %3262 = vmatpush2.bf16.msra.mxu0 %v3106
      %3263 = vmatprep.subr.bf16.mxu0 0
      %3264 = vmatpush2.bf16.msra.mxu0 %v3105
      %3265 = vmatprep.subr.bf16.mxu0 0
      %3266 = vmatpush2.bf16.msra.mxu0 %v3104
      %3267 = vmatprep.subr.bf16.mxu0 0
      %3268 = vmatpush2.bf16.msra.mxu0 %v3103
      %3269 = vmatprep.subr.bf16.mxu0 0
      %3270 = vmatpush2.bf16.msra.mxu0 %v3102
      %3271 = vmatprep.mubr.bf16.mxu0 %v2850
      %3272 = vmatmul.mubr.bf16.gmra.mxu0 %v2849
      %v3273 = vpop.f32.mrf.mxu0
      %v3274 = vadd.f32 %v3177, %v3273
      %v3275 = vpop.f32.mrf.mxu0
      %v3276 = vpop.f32.mrf.mxu0
      %v3277 = vadd.f32 %v3180, %v3276
      %v3278 = vpop.f32.mrf.mxu0
      %3279 = vmatprep.mubr.bf16.mxu0 %v2854
      %3280 = vmatmul.mubr.bf16.gmra.mxu0 %v2853
      %v3281 = vpop.f32.mrf.mxu0
      %v3282 = vadd.f32 %v3185, %v3281
      %v3283 = vpop.f32.mrf.mxu0
      %v3284 = vpop.f32.mrf.mxu0
      %v3285 = vadd.f32 %v3188, %v3284
      %v3286 = vpop.f32.mrf.mxu0
      %3287 = vmatprep.mubr.bf16.mxu0 %v2858
      %3288 = vmatmul.mubr.bf16.gmra.mxu0 %v2857
      %v3289 = vpop.f32.mrf.mxu0
      %v3290 = vadd.f32 %v3193, %v3289
      %v3291 = vpop.f32.mrf.mxu0
      %v3292 = vpop.f32.mrf.mxu0
      %v3293 = vadd.f32 %v3196, %v3292
      %v3294 = vpop.f32.mrf.mxu0
      %3295 = vmatprep.mubr.bf16.mxu0 %v2862
      %3296 = vmatmul.mubr.bf16.gmra.mxu0 %v2861
      %v3297 = vpop.f32.mrf.mxu0
      %v3298 = vadd.f32 %v3201, %v3297
      %v3299 = vpop.f32.mrf.mxu0
      %v3300 = vpop.f32.mrf.mxu0
      %v3301 = vadd.f32 %v3204, %v3300
      %v3302 = vpop.f32.mrf.mxu0
      %3303 = vmatprep.mubr.bf16.mxu0 %v2866
      %3304 = vmatmul.mubr.bf16.gmra.mxu0 %v2865
      %v3305 = vpop.f32.mrf.mxu0
      %v3306 = vadd.f32 %v3209, %v3305
      %v3307 = vpop.f32.mrf.mxu0
      %v3308 = vpop.f32.mrf.mxu0
      %v3309 = vadd.f32 %v3212, %v3308
      %v3310 = vpop.f32.mrf.mxu0
      %3311 = vmatprep.mubr.bf16.mxu0 %v2870
      %3312 = vmatmul.mubr.bf16.gmra.mxu0 %v2869
      %v3313 = vpop.f32.mrf.mxu0
      %v3314 = vadd.f32 %v3217, %v3313
      %v3315 = vpop.f32.mrf.mxu0
      %v3316 = vpop.f32.mrf.mxu0
      %v3317 = vadd.f32 %v3220, %v3316
      %v3318 = vpop.f32.mrf.mxu0
      %3319 = vmatprep.mubr.bf16.mxu0 %v2874
      %3320 = vmatmul.mubr.bf16.gmra.mxu0 %v2873
      %v3321 = vpop.f32.mrf.mxu0
      %v3322 = vadd.f32 %v3225, %v3321
      %v3323 = vpop.f32.mrf.mxu0
      %v3324 = vpop.f32.mrf.mxu0
      %v3325 = vadd.f32 %v3228, %v3324
      %v3326 = vpop.f32.mrf.mxu0
      %3327 = vmatprep.mubr.bf16.mxu0 %v2878
      %3328 = vmatmul.mubr.bf16.gmra.mxu0 %v2877
      %v3329 = vpop.f32.mrf.mxu0
      %v3330 = vadd.f32 %v3233, %v3329
      %v3331 = vpop.f32.mrf.mxu0
      %v3332 = vpop.f32.mrf.mxu0
      %v3333 = vadd.f32 %v3236, %v3332
      %v3334 = vpop.f32.mrf.mxu0
      %3335 = vdwg.mxu0
      %v3336 = vmul.f32 %v3274, 0.5
      %v3337 = vmul.f32 %v3277, 0.5
      %v3338 = vmul.f32 %v3282, 0.5
      %v3339 = vmul.f32 %v3285, 0.5
      %v3340 = vmul.f32 %v3290, 0.5
      %v3341 = vmul.f32 %v3293, 0.5
      %v3342 = vmul.f32 %v3298, 0.5
      %v3343 = vmul.f32 %v3301, 0.5
      %v3344 = vmul.f32 %v3306, 0.5
      %v3345 = vmul.f32 %v3309, 0.5
      %v3346 = vmul.f32 %v3314, 0.5
      %v3347 = vmul.f32 %v3317, 0.5
      %v3348 = vmul.f32 %v3322, 0.5
      %v3349 = vmul.f32 %v3325, 0.5
      %v3350 = vmul.f32 %v3330, 0.5
      %v3351 = vmul.f32 %v3333, 0.5
      %v3352 = vmul.f32 %v3336, 1.442695
      %v3353 = vpow.pop %v3352
      %v3354 = vmul.f32 %v3337, 1.442695
      %v3355 = vpow.pop %v3354
      %v3356 = vmul.f32 %v3338, 1.442695
      %v3357 = vpow.pop %v3356
      %v3358 = vmul.f32 %v3339, 1.442695
      %v3359 = vpow.pop %v3358
      %v3360 = vmul.f32 %v3340, 1.442695
      %v3361 = vpow.pop %v3360
      %v3362 = vmul.f32 %v3341, 1.442695
      %v3363 = vpow.pop %v3362
      %v3364 = vmul.f32 %v3342, 1.442695
      %v3365 = vpow.pop %v3364
      %v3366 = vmul.f32 %v3343, 1.442695
      %v3367 = vpow.pop %v3366
      %v3368 = vmul.f32 %v3344, 1.442695
      %v3369 = vpow.pop %v3368
      %v3370 = vmul.f32 %v3345, 1.442695
      %v3371 = vpow.pop %v3370
      %v3372 = vmul.f32 %v3346, 1.442695
      %v3373 = vpow.pop %v3372
      %v3374 = vmul.f32 %v3347, 1.442695
      %v3375 = vpow.pop %v3374
      %v3376 = vmul.f32 %v3348, 1.442695
      %v3377 = vpow.pop %v3376
      %v3378 = vmul.f32 %v3349, 1.442695
      %v3379 = vpow.pop %v3378
      %v3380 = vmul.f32 %v3350, 1.442695
      %v3381 = vpow.pop %v3380
      %v3382 = vmul.f32 %v3351, 1.442695
      %v3383 = vpow.pop %v3382
      %v3384 = vld [vmem:[%s472] sm:$0xff]
      %v3385 = vld [vmem:[%s472 + $0x8] sm:$0xff]
      %v3386 = vld [vmem:[%s472 + $0x10] sm:$0xff]
      %v3387 = vld [vmem:[%s472 + $0x18] sm:$0xff]
      %v3388 = vld [vmem:[%s472 + $0x20] sm:$0xff]
      %v3389 = vld [vmem:[%s472 + $0x28] sm:$0xff]
      %v3390 = vld [vmem:[%s472 + $0x30] sm:$0xff]
      %v3391 = vld [vmem:[%s472 + $0x38] sm:$0xff]
      %v3392 = vld [vmem:[%s472 + $0x40] sm:$0xff]
      %v3393 = vld [vmem:[%s472 + $0x48] sm:$0xff]
      %v3394 = vld [vmem:[%s472 + $0x50] sm:$0xff]
      %v3395 = vld [vmem:[%s472 + $0x58] sm:$0xff]
      %v3396 = vld [vmem:[%s472 + $0x60] sm:$0xff]
      %v3397 = vld [vmem:[%s472 + $0x68] sm:$0xff]
      %v3398 = vld [vmem:[%s472 + $0x70] sm:$0xff]
      %v3399 = vld [vmem:[%s472 + $0x78] sm:$0xff]
      %3416 = vrot.lane.b32.xlu0 %v3353, 124
      %v3417 = vpop.permute.xlu0 %3416
      %3418 = vrot.lane.b32.xlu0 %v3355, 124
      %v3419 = vpop.permute.xlu0 %3418
      %3420 = vrot.lane.b32.xlu0 %v3357, 124
      %v3421 = vpop.permute.xlu0 %3420
      %3422 = vrot.lane.b32.xlu0 %v3359, 124
      %v3423 = vpop.permute.xlu0 %3422
      %3424 = vrot.lane.b32.xlu0 %v3361, 124
      %v3425 = vpop.permute.xlu0 %3424
      %3426 = vrot.lane.b32.xlu0 %v3363, 124
      %v3427 = vpop.permute.xlu0 %3426
      %3428 = vrot.lane.b32.xlu0 %v3365, 124
      %v3429 = vpop.permute.xlu0 %3428
      %3430 = vrot.lane.b32.xlu0 %v3367, 124
      %v3431 = vpop.permute.xlu0 %3430
      %3432 = vrot.lane.b32.xlu0 %v3369, 124
      %v3433 = vpop.permute.xlu0 %3432
      %3434 = vrot.lane.b32.xlu0 %v3371, 124
      %v3435 = vpop.permute.xlu0 %3434
      %3436 = vrot.lane.b32.xlu0 %v3373, 124
      %v3437 = vpop.permute.xlu0 %3436
      %3438 = vrot.lane.b32.xlu0 %v3375, 124
      %v3439 = vpop.permute.xlu0 %3438
      %3440 = vrot.lane.b32.xlu0 %v3377, 124
      %v3441 = vpop.permute.xlu0 %3440
      %3442 = vrot.lane.b32.xlu0 %v3379, 124
      %v3443 = vpop.permute.xlu0 %3442
      %3444 = vrot.lane.b32.xlu0 %v3381, 124
      %v3445 = vpop.permute.xlu0 %3444
      %3446 = vrot.lane.b32.xlu0 %v3383, 124
      %v3447 = vpop.permute.xlu0 %3446
      %v3464 = vmul.f32 %v3384, %v3417
      %v3465 = vmul.f32 %v3385, %v3419
      %v3466 = vmul.f32 %v3386, %v3421
      %v3467 = vmul.f32 %v3387, %v3423
      %v3468 = vmul.f32 %v3388, %v3425
      %v3469 = vmul.f32 %v3389, %v3427
      %v3470 = vmul.f32 %v3390, %v3429
      %v3471 = vmul.f32 %v3391, %v3431
      %v3472 = vmul.f32 %v3392, %v3433
      %v3473 = vmul.f32 %v3393, %v3435
      %v3474 = vmul.f32 %v3394, %v3437
      %v3475 = vmul.f32 %v3395, %v3439
      %v3476 = vmul.f32 %v3396, %v3441
      %v3477 = vmul.f32 %v3397, %v3443
      %v3478 = vmul.f32 %v3398, %v3445
      %v3479 = vmul.f32 %v3399, %v3447
      %v3480 = vadd.f32 %v3274, %v3464
      %v3481 = vadd.f32 %v3277, %v3465
      %v3482 = vadd.f32 %v3282, %v3466
      %v3483 = vadd.f32 %v3285, %v3467
      %v3484 = vadd.f32 %v3290, %v3468
      %v3485 = vadd.f32 %v3293, %v3469
      %v3486 = vadd.f32 %v3298, %v3470
      %v3487 = vadd.f32 %v3301, %v3471
      %v3488 = vadd.f32 %v3306, %v3472
      %v3489 = vadd.f32 %v3309, %v3473
      %v3490 = vadd.f32 %v3314, %v3474
      %v3491 = vadd.f32 %v3317, %v3475
      %v3492 = vadd.f32 %v3322, %v3476
      %v3493 = vadd.f32 %v3325, %v3477
      %v3494 = vadd.f32 %v3330, %v3478
      %v3495 = vadd.f32 %v3333, %v3479
      %s3496 = sld [smem:[#allocation2]]
      %v3497 = vstv %s3496
      %v3498 = vmul.f32 %v3480, %v3497
      %v3499 = vmul.f32 %v3481, %v3497
      %v3500 = vmul.f32 %v3482, %v3497
      %v3501 = vmul.f32 %v3483, %v3497
      %v3502 = vmul.f32 %v3484, %v3497
      %v3503 = vmul.f32 %v3485, %v3497
      %v3504 = vmul.f32 %v3486, %v3497
      %v3505 = vmul.f32 %v3487, %v3497
      %v3506 = vmul.f32 %v3488, %v3497
      %v3507 = vmul.f32 %v3489, %v3497
      %v3508 = vmul.f32 %v3490, %v3497
      %v3509 = vmul.f32 %v3491, %v3497
      %v3510 = vmul.f32 %v3492, %v3497
      %v3511 = vmul.f32 %v3493, %v3497
      %v3512 = vmul.f32 %v3494, %v3497
      %v3513 = vmul.f32 %v3495, %v3497
      %s3514 = sld [smem:[#allocation3]]
      %v3515 = vstv %s3514
      %v3516 = vadd.f32 %v3498, %v3515
      %v3517 = vadd.f32 %v3499, %v3515
      %v3518 = vadd.f32 %v3500, %v3515
      %v3519 = vadd.f32 %v3501, %v3515
      %v3520 = vadd.f32 %v3502, %v3515
      %v3521 = vadd.f32 %v3503, %v3515
      %v3522 = vadd.f32 %v3504, %v3515
      %v3523 = vadd.f32 %v3505, %v3515
      %v3524 = vadd.f32 %v3506, %v3515
      %v3525 = vadd.f32 %v3507, %v3515
      %v3526 = vadd.f32 %v3508, %v3515
      %v3527 = vadd.f32 %v3509, %v3515
      %v3528 = vadd.f32 %v3510, %v3515
      %v3529 = vadd.f32 %v3511, %v3515
      %v3530 = vadd.f32 %v3512, %v3515
      %v3531 = vadd.f32 %v3513, %v3515
      %v3532 = vpack.c.bf16 %v3481, %v3480
      %v3533 = vpack.c.bf16 %v3483, %v3482
      %v3534 = vpack.c.bf16 %v3485, %v3484
      %v3535 = vpack.c.bf16 %v3487, %v3486
      %v3536 = vpack.c.bf16 %v3489, %v3488
      %v3537 = vpack.c.bf16 %v3491, %v3490
      %v3538 = vpack.c.bf16 %v3493, %v3492
      %v3539 = vpack.c.bf16 %v3495, %v3494
      %v3540 = vld [vmem:[%s6] sm:$0xff]
      %v3541 = vld [vmem:[%s7] sm:$0xf]
      %v3543 = vlaneseq
      %v3544 = vshrl.u32 %v3543, 7
      %v3545 = vsub.s32 0, %v3544
      %v3546 = vrot.slane %v3541, %v3545
      %v3547 = vlaneseq
      %v3548 = vshrl.u32 %v3547, 7
      %v3549 = vsub.s32 1, %v3548
      %v3550 = vrot.slane %v3541, %v3549
      %v3551 = vlaneseq
      %v3552 = vshrl.u32 %v3551, 7
      %v3553 = vsub.s32 2, %v3552
      %v3554 = vrot.slane %v3541, %v3553
      %v3555 = vlaneseq
      %v3556 = vshrl.u32 %v3555, 7
      %v3557 = vsub.s32 3, %v3556
      %v3558 = vrot.slane %v3541, %v3557
      %v3564 = vcombine.high %v3540, %v3540
      %v3566 = vunpack.c.l.s4 1983009808
      %v3567 = vunpack.c.0.s8 %v3566
      %v3568 = vlaneseq
      %v3569 = vshrl.u32 %v3568, 7
      %v3570 = vsub.s32 %v3567, %v3569
      %v3571 = vrot.slane %v3540, %v3570
      %v3573 = vunpack.c.l.s4 1983009808
      %v3574 = vunpack.c.0.s8 %v3573
      %v3575 = vlaneseq
      %v3576 = vshrl.u32 %v3575, 7
      %v3577 = vsub.s32 %v3574, %v3576
      %v3578 = vrot.slane %v3564, %v3577
      %v3579 = vcombine.high %v3571, %v3571
      %v3580 = vcombine.high %v3578, %v3578
      %vm3581 = vcmask 31744
      %v3583 = vsel %vm3581, %v3532, 0
      %v3586 = vsel %vm3581, %v3533, 0
      %v3589 = vsel %vm3581, %v3534, 0
      %v3592 = vsel %vm3581, %v3535, 0
      %v3595 = vsel %vm3581, %v3536, 0
      %v3598 = vsel %vm3581, %v3537, 0
      %v3601 = vsel %vm3581, %v3538, 0
      %v3604 = vsel %vm3581, %v3539, 0
      %vm3606 = vcmask 1041408
      %v3608 = vsel %vm3606, %v3571, 0
      %v3611 = vsel %vm3606, %v3579, 0
      %v3614 = vsel %vm3606, %v3578, 0
      %v3617 = vsel %vm3606, %v3580, 0
      %3619 = vmatprep.subr.bf16.mxu0 0
      %3620 = vmatpush1.bf16.msra.mxu0 0
      %3621 = vmatprep.subr.bf16.mxu0 0
      %3622 = vmatpush1.bf16.msra.mxu0 0
      %3623 = vmatprep.subr.bf16.mxu0 0
      %3624 = vmatpush1.bf16.msra.mxu0 0
      %3625 = vmatprep.subr.bf16.mxu0 0
      %3626 = vmatpush1.bf16.msra.mxu0 0
      %3627 = vmatprep.subr.bf16.mxu0 0
      %3628 = vmatpush1.bf16.msra.mxu0 0
      %3629 = vmatprep.subr.bf16.mxu0 0
      %3630 = vmatpush1.bf16.msra.mxu0 0
      %3631 = vmatprep.subr.bf16.mxu0 0
      %3632 = vmatpush1.bf16.msra.mxu0 0
      %3633 = vmatprep.subr.bf16.mxu0 %v3611
      %3634 = vmatpush1.bf16.msra.mxu0 %v3608
      %3635 = vmatprep.subr.bf16.mxu0 0
      %3636 = vmatpush2.bf16.msra.mxu0 0
      %3637 = vmatprep.subr.bf16.mxu0 0
      %3638 = vmatpush2.bf16.msra.mxu0 0
      %3639 = vmatprep.subr.bf16.mxu0 0
      %3640 = vmatpush2.bf16.msra.mxu0 0
      %3641 = vmatprep.subr.bf16.mxu0 0
      %3642 = vmatpush2.bf16.msra.mxu0 0
      %3643 = vmatprep.subr.bf16.mxu0 0
      %3644 = vmatpush2.bf16.msra.mxu0 0
      %3645 = vmatprep.subr.bf16.mxu0 0
      %3646 = vmatpush2.bf16.msra.mxu0 0
      %3647 = vmatprep.subr.bf16.mxu0 0
      %3648 = vmatpush2.bf16.msra.mxu0 0
      %3649 = vmatprep.subr.bf16.mxu0 0
      %3650 = vmatpush2.bf16.msra.mxu0 0
      %3651 = vmatprep.mubr.bf16.mxu0 0
      %3652 = vmatmul.mubr.bf16.gmra.mxu0 %v3583
      %v3653 = vpop.f32.mrf.mxu0
      %v3654 = vadd.f32 %v3546, %v3653
      %v3655 = vpop.f32.mrf.mxu0
      %v3656 = vadd.f32 %v3550, %v3655
      %v3657 = vpop.f32.mrf.mxu0
      %v3658 = vadd.f32 %v3546, %v3657
      %v3659 = vpop.f32.mrf.mxu0
      %v3660 = vadd.f32 %v3550, %v3659
      %3661 = vmatprep.mubr.bf16.mxu0 0
      %3662 = vmatmul.mubr.bf16.gmra.mxu0 %v3586
      %v3663 = vpop.f32.mrf.mxu0
      %v3664 = vadd.f32 %v3546, %v3663
      %v3665 = vpop.f32.mrf.mxu0
      %v3666 = vadd.f32 %v3550, %v3665
      %v3667 = vpop.f32.mrf.mxu0
      %v3668 = vadd.f32 %v3546, %v3667
      %v3669 = vpop.f32.mrf.mxu0
      %v3670 = vadd.f32 %v3550, %v3669
      %3671 = vmatprep.mubr.bf16.mxu0 0
      %3672 = vmatmul.mubr.bf16.gmra.mxu0 %v3589
      %v3673 = vpop.f32.mrf.mxu0
      %v3674 = vadd.f32 %v3546, %v3673
      %v3675 = vpop.f32.mrf.mxu0
      %v3676 = vadd.f32 %v3550, %v3675
      %v3677 = vpop.f32.mrf.mxu0
      %v3678 = vadd.f32 %v3546, %v3677
      %v3679 = vpop.f32.mrf.mxu0
      %v3680 = vadd.f32 %v3550, %v3679
      %3681 = vmatprep.mubr.bf16.mxu0 0
      %3682 = vmatmul.mubr.bf16.gmra.mxu0 %v3592
      %v3683 = vpop.f32.mrf.mxu0
      %v3684 = vadd.f32 %v3546, %v3683
      %v3685 = vpop.f32.mrf.mxu0
      %v3686 = vadd.f32 %v3550, %v3685
      %v3687 = vpop.f32.mrf.mxu0
      %v3688 = vadd.f32 %v3546, %v3687
      %v3689 = vpop.f32.mrf.mxu0
      %v3690 = vadd.f32 %v3550, %v3689
      %3691 = vmatprep.mubr.bf16.mxu0 0
      %3692 = vmatmul.mubr.bf16.gmra.mxu0 %v3595
      %v3693 = vpop.f32.mrf.mxu0
      %v3694 = vadd.f32 %v3546, %v3693
      %v3695 = vpop.f32.mrf.mxu0
      %v3696 = vadd.f32 %v3550, %v3695
      %v3697 = vpop.f32.mrf.mxu0
      %v3698 = vadd.f32 %v3546, %v3697
      %v3699 = vpop.f32.mrf.mxu0
      %v3700 = vadd.f32 %v3550, %v3699
      %3701 = vmatprep.mubr.bf16.mxu0 0
      %3702 = vmatmul.mubr.bf16.gmra.mxu0 %v3598
      %v3703 = vpop.f32.mrf.mxu0
      %v3704 = vadd.f32 %v3546, %v3703
      %v3705 = vpop.f32.mrf.mxu0
      %v3706 = vadd.f32 %v3550, %v3705
      %v3707 = vpop.f32.mrf.mxu0
      %v3708 = vadd.f32 %v3546, %v3707
      %v3709 = vpop.f32.mrf.mxu0
      %v3710 = vadd.f32 %v3550, %v3709
      %3711 = vmatprep.mubr.bf16.mxu0 0
      %3712 = vmatmul.mubr.bf16.gmra.mxu0 %v3601
      %v3713 = vpop.f32.mrf.mxu0
      %v3714 = vadd.f32 %v3546, %v3713
      %v3715 = vpop.f32.mrf.mxu0
      %v3716 = vadd.f32 %v3550, %v3715
      %v3717 = vpop.f32.mrf.mxu0
      %v3718 = vadd.f32 %v3546, %v3717
      %v3719 = vpop.f32.mrf.mxu0
      %v3720 = vadd.f32 %v3550, %v3719
      %3721 = vmatprep.mubr.bf16.mxu0 0
      %3722 = vmatmul.mubr.bf16.gmra.mxu0 %v3604
      %v3723 = vpop.f32.mrf.mxu0
      %v3724 = vadd.f32 %v3546, %v3723
      %v3725 = vpop.f32.mrf.mxu0
      %v3726 = vadd.f32 %v3550, %v3725
      %v3727 = vpop.f32.mrf.mxu0
      %v3728 = vadd.f32 %v3546, %v3727
      %v3729 = vpop.f32.mrf.mxu0
      %v3730 = vadd.f32 %v3550, %v3729
      %3731 = vdwg.mxu0
      %3732 = vmatprep.subr.bf16.mxu0 0
      %3733 = vmatpush1.bf16.msra.mxu0 0
      %3734 = vmatprep.subr.bf16.mxu0 0
      %3735 = vmatpush1.bf16.msra.mxu0 0
      %3736 = vmatprep.subr.bf16.mxu0 0
      %3737 = vmatpush1.bf16.msra.mxu0 0
      %3738 = vmatprep.subr.bf16.mxu0 0
      %3739 = vmatpush1.bf16.msra.mxu0 0
      %3740 = vmatprep.subr.bf16.mxu0 0
      %3741 = vmatpush1.bf16.msra.mxu0 0
      %3742 = vmatprep.subr.bf16.mxu0 0
      %3743 = vmatpush1.bf16.msra.mxu0 0
      %3744 = vmatprep.subr.bf16.mxu0 0
      %3745 = vmatpush1.bf16.msra.mxu0 0
      %3746 = vmatprep.subr.bf16.mxu0 %v3617
      %3747 = vmatpush1.bf16.msra.mxu0 %v3614
      %3748 = vmatprep.subr.bf16.mxu0 0
      %3749 = vmatpush2.bf16.msra.mxu0 0
      %3750 = vmatprep.subr.bf16.mxu0 0
      %3751 = vmatpush2.bf16.msra.mxu0 0
      %3752 = vmatprep.subr.bf16.mxu0 0
      %3753 = vmatpush2.bf16.msra.mxu0 0
      %3754 = vmatprep.subr.bf16.mxu0 0
      %3755 = vmatpush2.bf16.msra.mxu0 0
      %3756 = vmatprep.subr.bf16.mxu0 0
      %3757 = vmatpush2.bf16.msra.mxu0 0
      %3758 = vmatprep.subr.bf16.mxu0 0
      %3759 = vmatpush2.bf16.msra.mxu0 0
      %3760 = vmatprep.subr.bf16.mxu0 0
      %3761 = vmatpush2.bf16.msra.mxu0 0
      %3762 = vmatprep.subr.bf16.mxu0 0
      %3763 = vmatpush2.bf16.msra.mxu0 0
      %3764 = vmatprep.mubr.bf16.mxu0 0
      %3765 = vmatmul.mubr.bf16.gmra.mxu0 %v3583
      %v3766 = vpop.f32.mrf.mxu0
      %v3767 = vadd.f32 %v3554, %v3766
      %v3768 = vpop.f32.mrf.mxu0
      %v3769 = vadd.f32 %v3558, %v3768
      %v3770 = vpop.f32.mrf.mxu0
      %v3771 = vadd.f32 %v3554, %v3770
      %v3772 = vpop.f32.mrf.mxu0
      %v3773 = vadd.f32 %v3558, %v3772
      %3774 = vmatprep.mubr.bf16.mxu0 0
      %3775 = vmatmul.mubr.bf16.gmra.mxu0 %v3586
      %v3776 = vpop.f32.mrf.mxu0
      %v3777 = vadd.f32 %v3554, %v3776
      %v3778 = vpop.f32.mrf.mxu0
      %v3779 = vadd.f32 %v3558, %v3778
      %v3780 = vpop.f32.mrf.mxu0
      %v3781 = vadd.f32 %v3554, %v3780
      %v3782 = vpop.f32.mrf.mxu0
      %v3783 = vadd.f32 %v3558, %v3782
      %3784 = vmatprep.mubr.bf16.mxu0 0
      %3785 = vmatmul.mubr.bf16.gmra.mxu0 %v3589
      %v3786 = vpop.f32.mrf.mxu0
      %v3787 = vadd.f32 %v3554, %v3786
      %v3788 = vpop.f32.mrf.mxu0
      %v3789 = vadd.f32 %v3558, %v3788
      %v3790 = vpop.f32.mrf.mxu0
      %v3791 = vadd.f32 %v3554, %v3790
      %v3792 = vpop.f32.mrf.mxu0
      %v3793 = vadd.f32 %v3558, %v3792
      %3794 = vmatprep.mubr.bf16.mxu0 0
      %3795 = vmatmul.mubr.bf16.gmra.mxu0 %v3592
      %v3796 = vpop.f32.mrf.mxu0
      %v3797 = vadd.f32 %v3554, %v3796
      %v3798 = vpop.f32.mrf.mxu0
      %v3799 = vadd.f32 %v3558, %v3798
      %v3800 = vpop.f32.mrf.mxu0
      %v3801 = vadd.f32 %v3554, %v3800
      %v3802 = vpop.f32.mrf.mxu0
      %v3803 = vadd.f32 %v3558, %v3802
      %3804 = vmatprep.mubr.bf16.mxu0 0
      %3805 = vmatmul.mubr.bf16.gmra.mxu0 %v3595
      %v3806 = vpop.f32.mrf.mxu0
      %v3807 = vadd.f32 %v3554, %v3806
      %v3808 = vpop.f32.mrf.mxu0
      %v3809 = vadd.f32 %v3558, %v3808
      %v3810 = vpop.f32.mrf.mxu0
      %v3811 = vadd.f32 %v3554, %v3810
      %v3812 = vpop.f32.mrf.mxu0
      %v3813 = vadd.f32 %v3558, %v3812
      %3814 = vmatprep.mubr.bf16.mxu0 0
      %3815 = vmatmul.mubr.bf16.gmra.mxu0 %v3598
      %v3816 = vpop.f32.mrf.mxu0
      %v3817 = vadd.f32 %v3554, %v3816
      %v3818 = vpop.f32.mrf.mxu0
      %v3819 = vadd.f32 %v3558, %v3818
      %v3820 = vpop.f32.mrf.mxu0
      %v3821 = vadd.f32 %v3554, %v3820
      %v3822 = vpop.f32.mrf.mxu0
      %v3823 = vadd.f32 %v3558, %v3822
      %3824 = vmatprep.mubr.bf16.mxu0 0
      %3825 = vmatmul.mubr.bf16.gmra.mxu0 %v3601
      %v3826 = vpop.f32.mrf.mxu0
      %v3827 = vadd.f32 %v3554, %v3826
      %v3828 = vpop.f32.mrf.mxu0
      %v3829 = vadd.f32 %v3558, %v3828
      %v3830 = vpop.f32.mrf.mxu0
      %v3831 = vadd.f32 %v3554, %v3830
      %v3832 = vpop.f32.mrf.mxu0
      %v3833 = vadd.f32 %v3558, %v3832
      %3834 = vmatprep.mubr.bf16.mxu0 0
      %3835 = vmatmul.mubr.bf16.gmra.mxu0 %v3604
      %v3836 = vpop.f32.mrf.mxu0
      %v3837 = vadd.f32 %v3554, %v3836
      %v3838 = vpop.f32.mrf.mxu0
      %v3839 = vadd.f32 %v3558, %v3838
      %v3840 = vpop.f32.mrf.mxu0
      %v3841 = vadd.f32 %v3554, %v3840
      %v3842 = vpop.f32.mrf.mxu0
      %v3843 = vadd.f32 %v3558, %v3842
      %3844 = vdwg.mxu0
      %v3845 = vmax.f32 %v3654, 0.0
      %v3846 = vmax.f32 %v3656, 0.0
      %v3847 = vmax.f32 %v3767, 0.0
      %v3848 = vmax.f32 %v3769, 0.0
      %v3849 = vmax.f32 %v3658, 0.0
      %v3850 = vmax.f32 %v3660, 0.0
      %v3851 = vmax.f32 %v3771, 0.0
      %v3852 = vmax.f32 %v3773, 0.0
      %v3853 = vmax.f32 %v3664, 0.0
      %v3854 = vmax.f32 %v3666, 0.0
      %v3855 = vmax.f32 %v3777, 0.0
      %v3856 = vmax.f32 %v3779, 0.0
      %v3857 = vmax.f32 %v3668, 0.0
      %v3858 = vmax.f32 %v3670, 0.0
      %v3859 = vmax.f32 %v3781, 0.0
      %v3860 = vmax.f32 %v3783, 0.0
      %v3861 = vmax.f32 %v3674, 0.0
      %v3862 = vmax.f32 %v3676, 0.0
      %v3863 = vmax.f32 %v3787, 0.0
      %v3864 = vmax.f32 %v3789, 0.0
      %v3865 = vmax.f32 %v3678, 0.0
      %v3866 = vmax.f32 %v3680, 0.0
      %v3867 = vmax.f32 %v3791, 0.0
      %v3868 = vmax.f32 %v3793, 0.0
      %v3869 = vmax.f32 %v3684, 0.0
      %v3870 = vmax.f32 %v3686, 0.0
      %v3871 = vmax.f32 %v3797, 0.0
      %v3872 = vmax.f32 %v3799, 0.0
      %v3873 = vmax.f32 %v3688, 0.0
      %v3874 = vmax.f32 %v3690, 0.0
      %v3875 = vmax.f32 %v3801, 0.0
      %v3876 = vmax.f32 %v3803, 0.0
      %v3877 = vmax.f32 %v3694, 0.0
      %v3878 = vmax.f32 %v3696, 0.0
      %v3879 = vmax.f32 %v3807, 0.0
      %v3880 = vmax.f32 %v3809, 0.0
      %v3881 = vmax.f32 %v3698, 0.0
      %v3882 = vmax.f32 %v3700, 0.0
      %v3883 = vmax.f32 %v3811, 0.0
      %v3884 = vmax.f32 %v3813, 0.0
      %v3885 = vmax.f32 %v3704, 0.0
      %v3886 = vmax.f32 %v3706, 0.0
      %v3887 = vmax.f32 %v3817, 0.0
      %v3888 = vmax.f32 %v3819, 0.0
      %v3889 = vmax.f32 %v3708, 0.0
      %v3890 = vmax.f32 %v3710, 0.0
      %v3891 = vmax.f32 %v3821, 0.0
      %v3892 = vmax.f32 %v3823, 0.0
      %v3893 = vmax.f32 %v3714, 0.0
      %v3894 = vmax.f32 %v3716, 0.0
      %v3895 = vmax.f32 %v3827, 0.0
      %v3896 = vmax.f32 %v3829, 0.0
      %v3897 = vmax.f32 %v3718, 0.0
      %v3898 = vmax.f32 %v3720, 0.0
      %v3899 = vmax.f32 %v3831, 0.0
      %v3900 = vmax.f32 %v3833, 0.0
      %v3901 = vmax.f32 %v3724, 0.0
      %v3902 = vmax.f32 %v3726, 0.0
      %v3903 = vmax.f32 %v3837, 0.0
      %v3904 = vmax.f32 %v3839, 0.0
      %v3905 = vmax.f32 %v3728, 0.0
      %v3906 = vmax.f32 %v3730, 0.0
      %v3907 = vmax.f32 %v3841, 0.0
      %v3908 = vmax.f32 %v3843, 0.0
      %v3909 = vpack.c.bf16 %v3849, %v3845
      %v3910 = vpack.c.bf16 %v3850, %v3846
      %v3911 = vpack.c.bf16 %v3851, %v3847
      %v3912 = vpack.c.bf16 %v3852, %v3848
      %v3913 = vpack.c.bf16 %v3857, %v3853
      %v3914 = vpack.c.bf16 %v3858, %v3854
      %v3915 = vpack.c.bf16 %v3859, %v3855
      %v3916 = vpack.c.bf16 %v3860, %v3856
      %v3917 = vpack.c.bf16 %v3865, %v3861
      %v3918 = vpack.c.bf16 %v3866, %v3862
      %v3919 = vpack.c.bf16 %v3867, %v3863
      %v3920 = vpack.c.bf16 %v3868, %v3864
      %v3921 = vpack.c.bf16 %v3873, %v3869
      %v3922 = vpack.c.bf16 %v3874, %v3870
      %v3923 = vpack.c.bf16 %v3875, %v3871
      %v3924 = vpack.c.bf16 %v3876, %v3872
      %v3925 = vpack.c.bf16 %v3881, %v3877
      %v3926 = vpack.c.bf16 %v3882, %v3878
      %v3927 = vpack.c.bf16 %v3883, %v3879
      %v3928 = vpack.c.bf16 %v3884, %v3880
      %v3929 = vpack.c.bf16 %v3889, %v3885
      %v3930 = vpack.c.bf16 %v3890, %v3886
      %v3931 = vpack.c.bf16 %v3891, %v3887
      %v3932 = vpack.c.bf16 %v3892, %v3888
      %v3933 = vpack.c.bf16 %v3897, %v3893
      %v3934 = vpack.c.bf16 %v3898, %v3894
      %v3935 = vpack.c.bf16 %v3899, %v3895
      %v3936 = vpack.c.bf16 %v3900, %v3896
      %v3937 = vpack.c.bf16 %v3905, %v3901
      %v3938 = vpack.c.bf16 %v3906, %v3902
      %v3939 = vpack.c.bf16 %v3907, %v3903
      %v3940 = vpack.c.bf16 %v3908, %v3904
      %v3941 = vld [vmem:[%s8] sm:$0xff]
      %v3942 = vld [vmem:[%s8 + $0x8] sm:$0xff]
      %v3943 = vld [vmem:[%s8 + $0x10] sm:$0xff]
      %v3944 = vld [vmem:[%s8 + $0x18] sm:$0xf]
      %v3945 = vld [vmem:[%s8 + $0x1c] sm:$0xff]
      %v3946 = vld [vmem:[%s8 + $0x24] sm:$0xff]
      %v3947 = vld [vmem:[%s8 + $0x2c] sm:$0xff]
      %v3948 = vld [vmem:[%s8 + $0x34] sm:$0xf]
      %v3949 = vld [vmem:[%s8 + $0x38] sm:$0xff]
      %v3950 = vld [vmem:[%s8 + $0x40] sm:$0xff]
      %v3951 = vld [vmem:[%s8 + $0x48] sm:$0xff]
      %v3952 = vld [vmem:[%s8 + $0x50] sm:$0xf]
      %v3953 = vld [vmem:[%s8 + $0x54] sm:$0xff]
      %v3954 = vld [vmem:[%s8 + $0x5c] sm:$0xff]
      %v3955 = vld [vmem:[%s8 + $0x64] sm:$0xff]
      %v3956 = vld [vmem:[%s8 + $0x6c] sm:$0xf]
      %v3957 = vld [vmem:[%s8 + $0x70] sm:$0xff]
      %v3958 = vld [vmem:[%s8 + $0x78] sm:$0xff]
      %v3959 = vld [vmem:[%s8 + $0x80] sm:$0xff]
      %v3960 = vld [vmem:[%s8 + $0x88] sm:$0xf]
      %v3961 = vld [vmem:[%s8 + $0x8c] sm:$0xff]
      %v3962 = vld [vmem:[%s8 + $0x94] sm:$0xff]
      %v3963 = vld [vmem:[%s8 + $0x9c] sm:$0xff]
      %v3964 = vld [vmem:[%s8 + $0xa4] sm:$0xf]
      %v3965 = vld [vmem:[%s8 + $0xa8] sm:$0xff]
      %v3966 = vld [vmem:[%s8 + $0xb0] sm:$0xff]
      %v3967 = vld [vmem:[%s8 + $0xb8] sm:$0xff]
      %v3968 = vld [vmem:[%s8 + $0xc0] sm:$0xf]
      %v3969 = vld [vmem:[%s8 + $0xc4] sm:$0xff]
      %v3970 = vld [vmem:[%s8 + $0xcc] sm:$0xff]
      %v3971 = vld [vmem:[%s8 + $0xd4] sm:$0xff]
      %v3972 = vld [vmem:[%s8 + $0xdc] sm:$0xf]
      %v3973 = vld [vmem:[%s8 + $0xe0] sm:$0xff]
      %v3974 = vld [vmem:[%s8 + $0xe8] sm:$0xff]
      %v3975 = vld [vmem:[%s8 + $0xf0] sm:$0xff]
      %v3976 = vld [vmem:[%s8 + $0xf8] sm:$0xf]
      %v3977 = vld [vmem:[%s8 + $0xfc] sm:$0xff]
      %v3978 = vld [vmem:[%s8 + $0x104] sm:$0xff]
      %v3979 = vld [vmem:[%s8 + $0x10c] sm:$0xff]
      %v3980 = vld [vmem:[%s8 + $0x114] sm:$0xf]
      %v3981 = vld [vmem:[%s8 + $0x118] sm:$0xff]
      %v3982 = vld [vmem:[%s8 + $0x120] sm:$0xff]
      %v3983 = vld [vmem:[%s8 + $0x128] sm:$0xff]
      %v3984 = vld [vmem:[%s8 + $0x130] sm:$0xf]
      %v3985 = vld [vmem:[%s8 + $0x134] sm:$0xff]
      %v3986 = vld [vmem:[%s8 + $0x13c] sm:$0xff]
      %v3987 = vld [vmem:[%s8 + $0x144] sm:$0xff]
      %v3988 = vld [vmem:[%s8 + $0x14c] sm:$0xf]
      %v3989 = vld [vmem:[%s8 + $0x150] sm:$0xff]
      %v3990 = vld [vmem:[%s8 + $0x158] sm:$0xff]
      %v3991 = vld [vmem:[%s8 + $0x160] sm:$0xff]
      %v3992 = vld [vmem:[%s8 + $0x168] sm:$0xf]
      %v3993 = vld [vmem:[%s8 + $0x16c] sm:$0xff]
      %v3994 = vld [vmem:[%s8 + $0x174] sm:$0xff]
      %v3995 = vld [vmem:[%s8 + $0x17c] sm:$0xff]
      %v3996 = vld [vmem:[%s8 + $0x184] sm:$0xf]
      %v3997 = vld [vmem:[%s8 + $0x188] sm:$0xff]
      %v3998 = vld [vmem:[%s8 + $0x190] sm:$0xff]
      %v3999 = vld [vmem:[%s8 + $0x198] sm:$0xff]
      %v4000 = vld [vmem:[%s8 + $0x1a0] sm:$0xf]
      %v4001 = vld [vmem:[%s8 + $0x1a4] sm:$0xff]
      %v4002 = vld [vmem:[%s8 + $0x1ac] sm:$0xff]
      %v4003 = vld [vmem:[%s8 + $0x1b4] sm:$0xff]
      %v4004 = vld [vmem:[%s8 + $0x1bc] sm:$0xf]
      %v4005 = vld [vmem:[%s8 + $0x1c0] sm:$0xff]
      %v4006 = vld [vmem:[%s8 + $0x1c8] sm:$0xff]
      %v4007 = vld [vmem:[%s8 + $0x1d0] sm:$0xff]
      %v4008 = vld [vmem:[%s8 + $0x1d8] sm:$0xf]
      %v4009 = vld [vmem:[%s8 + $0x1dc] sm:$0xff]
      %v4010 = vld [vmem:[%s8 + $0x1e4] sm:$0xff]
      %v4011 = vld [vmem:[%s8 + $0x1ec] sm:$0xff]
      %v4012 = vld [vmem:[%s8 + $0x1f4] sm:$0xf]
      %v4013 = vld [vmem:[%s8 + $0x1f8] sm:$0xff]
      %v4014 = vld [vmem:[%s8 + $0x200] sm:$0xff]
      %v4015 = vld [vmem:[%s8 + $0x208] sm:$0xff]
      %v4016 = vld [vmem:[%s8 + $0x210] sm:$0xf]
      %v4017 = vld [vmem:[%s8 + $0x214] sm:$0xff]
      %v4018 = vld [vmem:[%s8 + $0x21c] sm:$0xff]
      %v4019 = vld [vmem:[%s8 + $0x224] sm:$0xff]
      %v4020 = vld [vmem:[%s8 + $0x22c] sm:$0xf]
      %v4021 = vld [vmem:[%s8 + $0x230] sm:$0xff]
      %v4022 = vld [vmem:[%s8 + $0x238] sm:$0xff]
      %v4023 = vld [vmem:[%s8 + $0x240] sm:$0xff]
      %v4024 = vld [vmem:[%s8 + $0x248] sm:$0xf]
      %v4025 = vld [vmem:[%s8 + $0x24c] sm:$0xff]
      %v4026 = vld [vmem:[%s8 + $0x254] sm:$0xff]
      %v4027 = vld [vmem:[%s8 + $0x25c] sm:$0xff]
      %v4028 = vld [vmem:[%s8 + $0x264] sm:$0xf]
      %v4029 = vld [vmem:[%s8 + $0x268] sm:$0xff]
      %v4030 = vld [vmem:[%s8 + $0x270] sm:$0xff]
      %v4031 = vld [vmem:[%s8 + $0x278] sm:$0xff]
      %v4032 = vld [vmem:[%s8 + $0x280] sm:$0xf]
      %v4033 = vld [vmem:[%s8 + $0x284] sm:$0xff]
      %v4034 = vld [vmem:[%s8 + $0x28c] sm:$0xff]
      %v4035 = vld [vmem:[%s8 + $0x294] sm:$0xff]
      %v4036 = vld [vmem:[%s8 + $0x29c] sm:$0xf]
      %v4037 = vld [vmem:[%s8 + $0x2a0] sm:$0xff]
      %v4038 = vld [vmem:[%s8 + $0x2a8] sm:$0xff]
      %v4039 = vld [vmem:[%s8 + $0x2b0] sm:$0xff]
      %v4040 = vld [vmem:[%s8 + $0x2b8] sm:$0xf]
      %v4041 = vld [vmem:[%s8 + $0x2bc] sm:$0xff]
      %v4042 = vld [vmem:[%s8 + $0x2c4] sm:$0xff]
      %v4043 = vld [vmem:[%s8 + $0x2cc] sm:$0xff]
      %v4044 = vld [vmem:[%s8 + $0x2d4] sm:$0xf]
      %v4045 = vld [vmem:[%s8 + $0x2d8] sm:$0xff]
      %v4046 = vld [vmem:[%s8 + $0x2e0] sm:$0xff]
      %v4047 = vld [vmem:[%s8 + $0x2e8] sm:$0xff]
      %v4048 = vld [vmem:[%s8 + $0x2f0] sm:$0xf]
      %v4049 = vld [vmem:[%s8 + $0x2f4] sm:$0xff]
      %v4050 = vld [vmem:[%s8 + $0x2fc] sm:$0xff]
      %v4051 = vld [vmem:[%s8 + $0x304] sm:$0xff]
      %v4052 = vld [vmem:[%s8 + $0x30c] sm:$0xf]
      %v4053 = vld [vmem:[%s8 + $0x310] sm:$0xff]
      %v4054 = vld [vmem:[%s8 + $0x318] sm:$0xff]
      %v4055 = vld [vmem:[%s8 + $0x320] sm:$0xff]
      %v4056 = vld [vmem:[%s8 + $0x328] sm:$0xf]
      %v4057 = vld [vmem:[%s8 + $0x32c] sm:$0xff]
      %v4058 = vld [vmem:[%s8 + $0x334] sm:$0xff]
      %v4059 = vld [vmem:[%s8 + $0x33c] sm:$0xff]
      %v4060 = vld [vmem:[%s8 + $0x344] sm:$0xf]
      %v4061 = vld [vmem:[%s8 + $0x348] sm:$0xff]
      %v4062 = vld [vmem:[%s8 + $0x350] sm:$0xff]
      %v4063 = vld [vmem:[%s8 + $0x358] sm:$0xff]
      %v4064 = vld [vmem:[%s8 + $0x360] sm:$0xf]
      %v4065 = vld [vmem:[%s8 + $0x364] sm:$0xff]
      %v4066 = vld [vmem:[%s8 + $0x36c] sm:$0xff]
      %v4067 = vld [vmem:[%s8 + $0x374] sm:$0xff]
      %v4068 = vld [vmem:[%s8 + $0x37c] sm:$0xf]
      %v4069 = vld [vmem:[%s8 + $0x380] sm:$0xff]
      %v4070 = vld [vmem:[%s8 + $0x388] sm:$0xff]
      %v4071 = vld [vmem:[%s8 + $0x390] sm:$0xff]
      %v4072 = vld [vmem:[%s8 + $0x398] sm:$0xf]
      %v4073 = vld [vmem:[%s8 + $0x39c] sm:$0xff]
      %v4074 = vld [vmem:[%s8 + $0x3a4] sm:$0xff]
      %v4075 = vld [vmem:[%s8 + $0x3ac] sm:$0xff]
      %v4076 = vld [vmem:[%s8 + $0x3b4] sm:$0xf]
      %v4077 = vld [vmem:[%s8 + $0x3b8] sm:$0xff]
      %v4078 = vld [vmem:[%s8 + $0x3c0] sm:$0xff]
      %v4079 = vld [vmem:[%s8 + $0x3c8] sm:$0xff]
      %v4080 = vld [vmem:[%s8 + $0x3d0] sm:$0xf]
      %v4081 = vld [vmem:[%s8 + $0x3d4] sm:$0xff]
      %v4082 = vld [vmem:[%s8 + $0x3dc] sm:$0xff]
      %v4083 = vld [vmem:[%s8 + $0x3e4] sm:$0xff]
      %v4084 = vld [vmem:[%s8 + $0x3ec] sm:$0xf]
      %v4085 = vld [vmem:[%s8 + $0x3f0] sm:$0xff]
      %v4086 = vld [vmem:[%s8 + $0x3f8] sm:$0xff]
      %v4087 = vld [vmem:[%s8 + $0x400] sm:$0xff]
      %v4088 = vld [vmem:[%s8 + $0x408] sm:$0xf]
      %v4089 = vld [vmem:[%s8 + $0x40c] sm:$0xff]
      %v4090 = vld [vmem:[%s8 + $0x414] sm:$0xff]
      %v4091 = vld [vmem:[%s8 + $0x41c] sm:$0xff]
      %v4092 = vld [vmem:[%s8 + $0x424] sm:$0xf]
      %v4093 = vld [vmem:[%s8 + $0x428] sm:$0xff]
      %v4094 = vld [vmem:[%s8 + $0x430] sm:$0xff]
      %v4095 = vld [vmem:[%s8 + $0x438] sm:$0xff]
      %v4096 = vld [vmem:[%s8 + $0x440] sm:$0xf]
      %v4097 = vld [vmem:[%s8 + $0x444] sm:$0xff]
      %v4098 = vld [vmem:[%s8 + $0x44c] sm:$0xff]
      %v4099 = vld [vmem:[%s8 + $0x454] sm:$0xff]
      %v4100 = vld [vmem:[%s8 + $0x45c] sm:$0xf]
      %v4101 = vld [vmem:[%s8 + $0x460] sm:$0xff]
      %v4102 = vld [vmem:[%s8 + $0x468] sm:$0xff]
      %v4103 = vld [vmem:[%s8 + $0x470] sm:$0xff]
      %v4104 = vld [vmem:[%s8 + $0x478] sm:$0xf]
      %v4105 = vld [vmem:[%s8 + $0x47c] sm:$0xff]
      %v4106 = vld [vmem:[%s8 + $0x484] sm:$0xff]
      %v4107 = vld [vmem:[%s8 + $0x48c] sm:$0xff]
      %v4108 = vld [vmem:[%s8 + $0x494] sm:$0xf]
      %v4109 = vld [vmem:[%s8 + $0x498] sm:$0xff]
      %v4110 = vld [vmem:[%s8 + $0x4a0] sm:$0xff]
      %v4111 = vld [vmem:[%s8 + $0x4a8] sm:$0xff]
      %v4112 = vld [vmem:[%s8 + $0x4b0] sm:$0xf]
      %v4113 = vld [vmem:[%s8 + $0x4b4] sm:$0xff]
      %v4114 = vld [vmem:[%s8 + $0x4bc] sm:$0xff]
      %v4115 = vld [vmem:[%s8 + $0x4c4] sm:$0xff]
      %v4116 = vld [vmem:[%s8 + $0x4cc] sm:$0xf]
      %v4117 = vld [vmem:[%s8 + $0x4d0] sm:$0xff]
      %v4118 = vld [vmem:[%s8 + $0x4d8] sm:$0xff]
      %v4119 = vld [vmem:[%s8 + $0x4e0] sm:$0xff]
      %v4120 = vld [vmem:[%s8 + $0x4e8] sm:$0xf]
      %v4121 = vld [vmem:[%s8 + $0x4ec] sm:$0xff]
      %v4122 = vld [vmem:[%s8 + $0x4f4] sm:$0xff]
      %v4123 = vld [vmem:[%s8 + $0x4fc] sm:$0xff]
      %v4124 = vld [vmem:[%s8 + $0x504] sm:$0xf]
      %v4125 = vld [vmem:[%s8 + $0x508] sm:$0xff]
      %v4126 = vld [vmem:[%s8 + $0x510] sm:$0xff]
      %v4127 = vld [vmem:[%s8 + $0x518] sm:$0xff]
      %v4128 = vld [vmem:[%s8 + $0x520] sm:$0xf]
      %v4129 = vld [vmem:[%s8 + $0x524] sm:$0xff]
      %v4130 = vld [vmem:[%s8 + $0x52c] sm:$0xff]
      %v4131 = vld [vmem:[%s8 + $0x534] sm:$0xff]
      %v4132 = vld [vmem:[%s8 + $0x53c] sm:$0xf]
      %v4133 = vld [vmem:[%s8 + $0x540] sm:$0xff]
      %v4134 = vld [vmem:[%s8 + $0x548] sm:$0xff]
      %v4135 = vld [vmem:[%s8 + $0x550] sm:$0xff]
      %v4136 = vld [vmem:[%s8 + $0x558] sm:$0xf]
      %v4137 = vld [vmem:[%s8 + $0x55c] sm:$0xff]
      %v4138 = vld [vmem:[%s8 + $0x564] sm:$0xff]
      %v4139 = vld [vmem:[%s8 + $0x56c] sm:$0xff]
      %v4140 = vld [vmem:[%s8 + $0x574] sm:$0xf]
      %v4141 = vld [vmem:[%s8 + $0x578] sm:$0xff]
      %v4142 = vld [vmem:[%s8 + $0x580] sm:$0xff]
      %v4143 = vld [vmem:[%s8 + $0x588] sm:$0xff]
      %v4144 = vld [vmem:[%s8 + $0x590] sm:$0xf]
      %v4145 = vld [vmem:[%s8 + $0x594] sm:$0xff]
      %v4146 = vld [vmem:[%s8 + $0x59c] sm:$0xff]
      %v4147 = vld [vmem:[%s8 + $0x5a4] sm:$0xff]
      %v4148 = vld [vmem:[%s8 + $0x5ac] sm:$0xf]
      %v4149 = vld [vmem:[%s8 + $0x5b0] sm:$0xff]
      %v4150 = vld [vmem:[%s8 + $0x5b8] sm:$0xff]
      %v4151 = vld [vmem:[%s8 + $0x5c0] sm:$0xff]
      %v4152 = vld [vmem:[%s8 + $0x5c8] sm:$0xf]
      %v4153 = vld [vmem:[%s8 + $0x5cc] sm:$0xff]
      %v4154 = vld [vmem:[%s8 + $0x5d4] sm:$0xff]
      %v4155 = vld [vmem:[%s8 + $0x5dc] sm:$0xff]
      %v4156 = vld [vmem:[%s8 + $0x5e4] sm:$0xf]
      %v4157 = vld [vmem:[%s8 + $0x5e8] sm:$0xff]
      %v4158 = vld [vmem:[%s8 + $0x5f0] sm:$0xff]
      %v4159 = vld [vmem:[%s8 + $0x5f8] sm:$0xff]
      %v4160 = vld [vmem:[%s8 + $0x600] sm:$0xf]
      %v4161 = vld [vmem:[%s8 + $0x604] sm:$0xff]
      %v4162 = vld [vmem:[%s8 + $0x60c] sm:$0xff]
      %v4163 = vld [vmem:[%s8 + $0x614] sm:$0xff]
      %v4164 = vld [vmem:[%s8 + $0x61c] sm:$0xf]
      %v4165 = vld [vmem:[%s8 + $0x620] sm:$0xff]
      %v4166 = vld [vmem:[%s8 + $0x628] sm:$0xff]
      %v4167 = vld [vmem:[%s8 + $0x630] sm:$0xff]
      %v4168 = vld [vmem:[%s8 + $0x638] sm:$0xf]
      %v4169 = vld [vmem:[%s8 + $0x63c] sm:$0xff]
      %v4170 = vld [vmem:[%s8 + $0x644] sm:$0xff]
      %v4171 = vld [vmem:[%s8 + $0x64c] sm:$0xff]
      %v4172 = vld [vmem:[%s8 + $0x654] sm:$0xf]
      %v4173 = vld [vmem:[%s8 + $0x658] sm:$0xff]
      %v4174 = vld [vmem:[%s8 + $0x660] sm:$0xff]
      %v4175 = vld [vmem:[%s8 + $0x668] sm:$0xff]
      %v4176 = vld [vmem:[%s8 + $0x670] sm:$0xf]
      %v4177 = vld [vmem:[%s8 + $0x674] sm:$0xff]
      %v4178 = vld [vmem:[%s8 + $0x67c] sm:$0xff]
      %v4179 = vld [vmem:[%s8 + $0x684] sm:$0xff]
      %v4180 = vld [vmem:[%s8 + $0x68c] sm:$0xf]
      %v4181 = vld [vmem:[%s8 + $0x690] sm:$0xff]
      %v4182 = vld [vmem:[%s8 + $0x698] sm:$0xff]
      %v4183 = vld [vmem:[%s8 + $0x6a0] sm:$0xff]
      %v4184 = vld [vmem:[%s8 + $0x6a8] sm:$0xf]
      %v4185 = vld [vmem:[%s8 + $0x6ac] sm:$0xff]
      %v4186 = vld [vmem:[%s8 + $0x6b4] sm:$0xff]
      %v4187 = vld [vmem:[%s8 + $0x6bc] sm:$0xff]
      %v4188 = vld [vmem:[%s8 + $0x6c4] sm:$0xf]
      %v4189 = vld [vmem:[%s8 + $0x6c8] sm:$0xff]
      %v4190 = vld [vmem:[%s8 + $0x6d0] sm:$0xff]
      %v4191 = vld [vmem:[%s8 + $0x6d8] sm:$0xff]
      %v4192 = vld [vmem:[%s8 + $0x6e0] sm:$0xf]
      %v4193 = vld [vmem:[%s8 + $0x6e4] sm:$0xff]
      %v4194 = vld [vmem:[%s8 + $0x6ec] sm:$0xff]
      %v4195 = vld [vmem:[%s8 + $0x6f4] sm:$0xff]
      %v4196 = vld [vmem:[%s8 + $0x6fc] sm:$0xf]
      %v4197 = vld [vmem:[%s9] sm:$0x7f]
      %v4199 = vlaneseq
      %v4200 = vshrl.u32 %v4199, 7
      %v4201 = vsub.s32 0, %v4200
      %v4202 = vrot.slane %v4197, %v4201
      %v4203 = vlaneseq
      %v4204 = vshrl.u32 %v4203, 7
      %v4205 = vsub.s32 1, %v4204
      %v4206 = vrot.slane %v4197, %v4205
      %v4207 = vlaneseq
      %v4208 = vshrl.u32 %v4207, 7
      %v4209 = vsub.s32 2, %v4208
      %v4210 = vrot.slane %v4197, %v4209
      %v4211 = vlaneseq
      %v4212 = vshrl.u32 %v4211, 7
      %v4213 = vsub.s32 3, %v4212
      %v4214 = vrot.slane %v4197, %v4213
      %v4215 = vlaneseq
      %v4216 = vshrl.u32 %v4215, 7
      %v4217 = vsub.s32 4, %v4216
      %v4218 = vrot.slane %v4197, %v4217
      %v4219 = vlaneseq
      %v4220 = vshrl.u32 %v4219, 7
      %v4221 = vsub.s32 5, %v4220
      %v4222 = vrot.slane %v4197, %v4221
      %v4223 = vlaneseq
      %v4224 = vshrl.u32 %v4223, 7
      %v4225 = vsub.s32 6, %v4224
      %v4226 = vrot.slane %v4197, %v4225
      %v4490 = vunpack.c.l.b16 %v3941
      %v4491 = vunpack.c.h.b16 %v3941
      %v4492 = vunpack.c.l.b16 %v3942
      %v4493 = vunpack.c.h.b16 %v3942
      %v4494 = vunpack.c.l.b16 %v3943
      %v4495 = vunpack.c.h.b16 %v3943
      %v4496 = vunpack.c.l.b16 %v3944
      %v4497 = vunpack.c.l.b16 %v3945
      %v4498 = vunpack.c.h.b16 %v3945
      %v4499 = vunpack.c.l.b16 %v3946
      %v4500 = vunpack.c.h.b16 %v3946
      %v4501 = vunpack.c.l.b16 %v3947
      %v4502 = vunpack.c.h.b16 %v3947
      %v4503 = vunpack.c.l.b16 %v3948
      %v4504 = vunpack.c.l.b16 %v3949
      %v4505 = vunpack.c.h.b16 %v3949
      %v4506 = vunpack.c.l.b16 %v3950
      %v4507 = vunpack.c.h.b16 %v3950
      %v4508 = vunpack.c.l.b16 %v3951
      %v4509 = vunpack.c.h.b16 %v3951
      %v4510 = vunpack.c.l.b16 %v3952
      %v4511 = vunpack.c.l.b16 %v3953
      %v4512 = vunpack.c.h.b16 %v3953
      %v4513 = vunpack.c.l.b16 %v3954
      %v4514 = vunpack.c.h.b16 %v3954
      %v4515 = vunpack.c.l.b16 %v3955
      %v4516 = vunpack.c.h.b16 %v3955
      %v4517 = vunpack.c.l.b16 %v3956
      %v4518 = vunpack.c.l.b16 %v3957
      %v4519 = vunpack.c.h.b16 %v3957
      %v4520 = vunpack.c.l.b16 %v3958
      %v4521 = vunpack.c.h.b16 %v3958
      %v4522 = vunpack.c.l.b16 %v3959
      %v4523 = vunpack.c.h.b16 %v3959
      %v4524 = vunpack.c.l.b16 %v3960
      %v4525 = vunpack.c.l.b16 %v3961
      %v4526 = vunpack.c.h.b16 %v3961
      %v4527 = vunpack.c.l.b16 %v3962
      %v4528 = vunpack.c.h.b16 %v3962
      %v4529 = vunpack.c.l.b16 %v3963
      %v4530 = vunpack.c.h.b16 %v3963
      %v4531 = vunpack.c.l.b16 %v3964
      %v4532 = vunpack.c.l.b16 %v3965
      %v4533 = vunpack.c.h.b16 %v3965
      %v4534 = vunpack.c.l.b16 %v3966
      %v4535 = vunpack.c.h.b16 %v3966
      %v4536 = vunpack.c.l.b16 %v3967
      %v4537 = vunpack.c.h.b16 %v3967
      %v4538 = vunpack.c.l.b16 %v3968
      %v4539 = vunpack.c.l.b16 %v3969
      %v4540 = vunpack.c.h.b16 %v3969
      %v4541 = vunpack.c.l.b16 %v3970
      %v4542 = vunpack.c.h.b16 %v3970
      %v4543 = vunpack.c.l.b16 %v3971
      %v4544 = vunpack.c.h.b16 %v3971
      %v4545 = vunpack.c.l.b16 %v3972
      %v4546 = vunpack.c.l.b16 %v3973
      %v4547 = vunpack.c.h.b16 %v3973
      %v4548 = vunpack.c.l.b16 %v3974
      %v4549 = vunpack.c.h.b16 %v3974
      %v4550 = vunpack.c.l.b16 %v3975
      %v4551 = vunpack.c.h.b16 %v3975
      %v4552 = vunpack.c.l.b16 %v3976
      %v4553 = vunpack.c.l.b16 %v3977
      %v4554 = vunpack.c.h.b16 %v3977
      %v4555 = vunpack.c.l.b16 %v3978
      %v4556 = vunpack.c.h.b16 %v3978
      %v4557 = vunpack.c.l.b16 %v3979
      %v4558 = vunpack.c.h.b16 %v3979
      %v4559 = vunpack.c.l.b16 %v3980
      %v4560 = vunpack.c.l.b16 %v3981
      %v4561 = vunpack.c.h.b16 %v3981
      %v4562 = vunpack.c.l.b16 %v3982
      %v4563 = vunpack.c.h.b16 %v3982
      %v4564 = vunpack.c.l.b16 %v3983
      %v4565 = vunpack.c.h.b16 %v3983
      %v4566 = vunpack.c.l.b16 %v3984
      %v4567 = vunpack.c.l.b16 %v3985
      %v4568 = vunpack.c.h.b16 %v3985
      %v4569 = vunpack.c.l.b16 %v3986
      %v4570 = vunpack.c.h.b16 %v3986
      %v4571 = vunpack.c.l.b16 %v3987
      %v4572 = vunpack.c.h.b16 %v3987
      %v4573 = vunpack.c.l.b16 %v3988
      %v4574 = vunpack.c.l.b16 %v3989
      %v4575 = vunpack.c.h.b16 %v3989
      %v4576 = vunpack.c.l.b16 %v3990
      %v4577 = vunpack.c.h.b16 %v3990
      %v4578 = vunpack.c.l.b16 %v3991
      %v4579 = vunpack.c.h.b16 %v3991
      %v4580 = vunpack.c.l.b16 %v3992
      %v4581 = vunpack.c.l.b16 %v3993
      %v4582 = vunpack.c.h.b16 %v3993
      %v4583 = vunpack.c.l.b16 %v3994
      %v4584 = vunpack.c.h.b16 %v3994
      %v4585 = vunpack.c.l.b16 %v3995
      %v4586 = vunpack.c.h.b16 %v3995
      %v4587 = vunpack.c.l.b16 %v3996
      %v4588 = vunpack.c.l.b16 %v3997
      %v4589 = vunpack.c.h.b16 %v3997
      %v4590 = vunpack.c.l.b16 %v3998
      %v4591 = vunpack.c.h.b16 %v3998
      %v4592 = vunpack.c.l.b16 %v3999
      %v4593 = vunpack.c.h.b16 %v3999
      %v4594 = vunpack.c.l.b16 %v4000
      %v4595 = vunpack.c.l.b16 %v4001
      %v4596 = vunpack.c.h.b16 %v4001
      %v4597 = vunpack.c.l.b16 %v4002
      %v4598 = vunpack.c.h.b16 %v4002
      %v4599 = vunpack.c.l.b16 %v4003
      %v4600 = vunpack.c.h.b16 %v4003
      %v4601 = vunpack.c.l.b16 %v4004
      %v4602 = vunpack.c.l.b16 %v4005
      %v4603 = vunpack.c.h.b16 %v4005
      %v4604 = vunpack.c.l.b16 %v4006
      %v4605 = vunpack.c.h.b16 %v4006
      %v4606 = vunpack.c.l.b16 %v4007
      %v4607 = vunpack.c.h.b16 %v4007
      %v4608 = vunpack.c.l.b16 %v4008
      %v4609 = vunpack.c.l.b16 %v4009
      %v4610 = vunpack.c.h.b16 %v4009
      %v4611 = vunpack.c.l.b16 %v4010
      %v4612 = vunpack.c.h.b16 %v4010
      %v4613 = vunpack.c.l.b16 %v4011
      %v4614 = vunpack.c.h.b16 %v4011
      %v4615 = vunpack.c.l.b16 %v4012
      %v4616 = vunpack.c.l.b16 %v4013
      %v4617 = vunpack.c.h.b16 %v4013
      %v4618 = vunpack.c.l.b16 %v4014
      %v4619 = vunpack.c.h.b16 %v4014
      %v4620 = vunpack.c.l.b16 %v4015
      %v4621 = vunpack.c.h.b16 %v4015
      %v4622 = vunpack.c.l.b16 %v4016
      %v4623 = vunpack.c.l.b16 %v4017
      %v4624 = vunpack.c.h.b16 %v4017
      %v4625 = vunpack.c.l.b16 %v4018
      %v4626 = vunpack.c.h.b16 %v4018
      %v4627 = vunpack.c.l.b16 %v4019
      %v4628 = vunpack.c.h.b16 %v4019
      %v4629 = vunpack.c.l.b16 %v4020
      %v4630 = vunpack.c.l.b16 %v4021
      %v4631 = vunpack.c.h.b16 %v4021
      %v4632 = vunpack.c.l.b16 %v4022
      %v4633 = vunpack.c.h.b16 %v4022
      %v4634 = vunpack.c.l.b16 %v4023
      %v4635 = vunpack.c.h.b16 %v4023
      %v4636 = vunpack.c.l.b16 %v4024
      %v4637 = vunpack.c.l.b16 %v4025
      %v4638 = vunpack.c.h.b16 %v4025
      %v4639 = vunpack.c.l.b16 %v4026
      %v4640 = vunpack.c.h.b16 %v4026
      %v4641 = vunpack.c.l.b16 %v4027
      %v4642 = vunpack.c.h.b16 %v4027
      %v4643 = vunpack.c.l.b16 %v4028
      %v4644 = vunpack.c.l.b16 %v4029
      %v4645 = vunpack.c.h.b16 %v4029
      %v4646 = vunpack.c.l.b16 %v4030
      %v4647 = vunpack.c.h.b16 %v4030
      %v4648 = vunpack.c.l.b16 %v4031
      %v4649 = vunpack.c.h.b16 %v4031
      %v4650 = vunpack.c.l.b16 %v4032
      %v4651 = vunpack.c.l.b16 %v4033
      %v4652 = vunpack.c.h.b16 %v4033
      %v4653 = vunpack.c.l.b16 %v4034
      %v4654 = vunpack.c.h.b16 %v4034
      %v4655 = vunpack.c.l.b16 %v4035
      %v4656 = vunpack.c.h.b16 %v4035
      %v4657 = vunpack.c.l.b16 %v4036
      %v4658 = vunpack.c.l.b16 %v4037
      %v4659 = vunpack.c.h.b16 %v4037
      %v4660 = vunpack.c.l.b16 %v4038
      %v4661 = vunpack.c.h.b16 %v4038
      %v4662 = vunpack.c.l.b16 %v4039
      %v4663 = vunpack.c.h.b16 %v4039
      %v4664 = vunpack.c.l.b16 %v4040
      %v4665 = vunpack.c.l.b16 %v4041
      %v4666 = vunpack.c.h.b16 %v4041
      %v4667 = vunpack.c.l.b16 %v4042
      %v4668 = vunpack.c.h.b16 %v4042
      %v4669 = vunpack.c.l.b16 %v4043
      %v4670 = vunpack.c.h.b16 %v4043
      %v4671 = vunpack.c.l.b16 %v4044
      %v4672 = vunpack.c.l.b16 %v4045
      %v4673 = vunpack.c.h.b16 %v4045
      %v4674 = vunpack.c.l.b16 %v4046
      %v4675 = vunpack.c.h.b16 %v4046
      %v4676 = vunpack.c.l.b16 %v4047
      %v4677 = vunpack.c.h.b16 %v4047
      %v4678 = vunpack.c.l.b16 %v4048
      %v4679 = vunpack.c.l.b16 %v4049
      %v4680 = vunpack.c.h.b16 %v4049
      %v4681 = vunpack.c.l.b16 %v4050
      %v4682 = vunpack.c.h.b16 %v4050
      %v4683 = vunpack.c.l.b16 %v4051
      %v4684 = vunpack.c.h.b16 %v4051
      %v4685 = vunpack.c.l.b16 %v4052
      %v4686 = vunpack.c.l.b16 %v4053
      %v4687 = vunpack.c.h.b16 %v4053
      %v4688 = vunpack.c.l.b16 %v4054
      %v4689 = vunpack.c.h.b16 %v4054
      %v4690 = vunpack.c.l.b16 %v4055
      %v4691 = vunpack.c.h.b16 %v4055
      %v4692 = vunpack.c.l.b16 %v4056
      %v4693 = vunpack.c.l.b16 %v4057
      %v4694 = vunpack.c.h.b16 %v4057
      %v4695 = vunpack.c.l.b16 %v4058
      %v4696 = vunpack.c.h.b16 %v4058
      %v4697 = vunpack.c.l.b16 %v4059
      %v4698 = vunpack.c.h.b16 %v4059
      %v4699 = vunpack.c.l.b16 %v4060
      %v4700 = vunpack.c.l.b16 %v4061
      %v4701 = vunpack.c.h.b16 %v4061
      %v4702 = vunpack.c.l.b16 %v4062
      %v4703 = vunpack.c.h.b16 %v4062
      %v4704 = vunpack.c.l.b16 %v4063
      %v4705 = vunpack.c.h.b16 %v4063
      %v4706 = vunpack.c.l.b16 %v4064
      %v4707 = vunpack.c.l.b16 %v4065
      %v4708 = vunpack.c.h.b16 %v4065
      %v4709 = vunpack.c.l.b16 %v4066
      %v4710 = vunpack.c.h.b16 %v4066
      %v4711 = vunpack.c.l.b16 %v4067
      %v4712 = vunpack.c.h.b16 %v4067
      %v4713 = vunpack.c.l.b16 %v4068
      %v4714 = vunpack.c.l.b16 %v4069
      %v4715 = vunpack.c.h.b16 %v4069
      %v4716 = vunpack.c.l.b16 %v4070
      %v4717 = vunpack.c.h.b16 %v4070
      %v4718 = vunpack.c.l.b16 %v4071
      %v4719 = vunpack.c.h.b16 %v4071
      %v4720 = vunpack.c.l.b16 %v4072
      %v4721 = vunpack.c.l.b16 %v4073
      %v4722 = vunpack.c.h.b16 %v4073
      %v4723 = vunpack.c.l.b16 %v4074
      %v4724 = vunpack.c.h.b16 %v4074
      %v4725 = vunpack.c.l.b16 %v4075
      %v4726 = vunpack.c.h.b16 %v4075
      %v4727 = vunpack.c.l.b16 %v4076
      %v4728 = vunpack.c.l.b16 %v4077
      %v4729 = vunpack.c.h.b16 %v4077
      %v4730 = vunpack.c.l.b16 %v4078
      %v4731 = vunpack.c.h.b16 %v4078
      %v4732 = vunpack.c.l.b16 %v4079
      %v4733 = vunpack.c.h.b16 %v4079
      %v4734 = vunpack.c.l.b16 %v4080
      %v4735 = vunpack.c.l.b16 %v4081
      %v4736 = vunpack.c.h.b16 %v4081
      %v4737 = vunpack.c.l.b16 %v4082
      %v4738 = vunpack.c.h.b16 %v4082
      %v4739 = vunpack.c.l.b16 %v4083
      %v4740 = vunpack.c.h.b16 %v4083
      %v4741 = vunpack.c.l.b16 %v4084
      %v4742 = vunpack.c.l.b16 %v4085
      %v4743 = vunpack.c.h.b16 %v4085
      %v4744 = vunpack.c.l.b16 %v4086
      %v4745 = vunpack.c.h.b16 %v4086
      %v4746 = vunpack.c.l.b16 %v4087
      %v4747 = vunpack.c.h.b16 %v4087
      %v4748 = vunpack.c.l.b16 %v4088
      %v4749 = vunpack.c.l.b16 %v4089
      %v4750 = vunpack.c.h.b16 %v4089
      %v4751 = vunpack.c.l.b16 %v4090
      %v4752 = vunpack.c.h.b16 %v4090
      %v4753 = vunpack.c.l.b16 %v4091
      %v4754 = vunpack.c.h.b16 %v4091
      %v4755 = vunpack.c.l.b16 %v4092
      %v4756 = vunpack.c.l.b16 %v4093
      %v4757 = vunpack.c.h.b16 %v4093
      %v4758 = vunpack.c.l.b16 %v4094
      %v4759 = vunpack.c.h.b16 %v4094
      %v4760 = vunpack.c.l.b16 %v4095
      %v4761 = vunpack.c.h.b16 %v4095
      %v4762 = vunpack.c.l.b16 %v4096
      %v4763 = vunpack.c.l.b16 %v4097
      %v4764 = vunpack.c.h.b16 %v4097
      %v4765 = vunpack.c.l.b16 %v4098
      %v4766 = vunpack.c.h.b16 %v4098
      %v4767 = vunpack.c.l.b16 %v4099
      %v4768 = vunpack.c.h.b16 %v4099
      %v4769 = vunpack.c.l.b16 %v4100
      %v4770 = vunpack.c.l.b16 %v4101
      %v4771 = vunpack.c.h.b16 %v4101
      %v4772 = vunpack.c.l.b16 %v4102
      %v4773 = vunpack.c.h.b16 %v4102
      %v4774 = vunpack.c.l.b16 %v4103
      %v4775 = vunpack.c.h.b16 %v4103
      %v4776 = vunpack.c.l.b16 %v4104
      %v4777 = vunpack.c.l.b16 %v4105
      %v4778 = vunpack.c.h.b16 %v4105
      %v4779 = vunpack.c.l.b16 %v4106
      %v4780 = vunpack.c.h.b16 %v4106
      %v4781 = vunpack.c.l.b16 %v4107
      %v4782 = vunpack.c.h.b16 %v4107
      %v4783 = vunpack.c.l.b16 %v4108
      %v4784 = vunpack.c.l.b16 %v4109
      %v4785 = vunpack.c.h.b16 %v4109
      %v4786 = vunpack.c.l.b16 %v4110
      %v4787 = vunpack.c.h.b16 %v4110
      %v4788 = vunpack.c.l.b16 %v4111
      %v4789 = vunpack.c.h.b16 %v4111
      %v4790 = vunpack.c.l.b16 %v4112
      %v4791 = vunpack.c.l.b16 %v4113
      %v4792 = vunpack.c.h.b16 %v4113
      %v4793 = vunpack.c.l.b16 %v4114
      %v4794 = vunpack.c.h.b16 %v4114
      %v4795 = vunpack.c.l.b16 %v4115
      %v4796 = vunpack.c.h.b16 %v4115
      %v4797 = vunpack.c.l.b16 %v4116
      %v4798 = vunpack.c.l.b16 %v4117
      %v4799 = vunpack.c.h.b16 %v4117
      %v4800 = vunpack.c.l.b16 %v4118
      %v4801 = vunpack.c.h.b16 %v4118
      %v4802 = vunpack.c.l.b16 %v4119
      %v4803 = vunpack.c.h.b16 %v4119
      %v4804 = vunpack.c.l.b16 %v4120
      %v4805 = vunpack.c.l.b16 %v4121
      %v4806 = vunpack.c.h.b16 %v4121
      %v4807 = vunpack.c.l.b16 %v4122
      %v4808 = vunpack.c.h.b16 %v4122
      %v4809 = vunpack.c.l.b16 %v4123
      %v4810 = vunpack.c.h.b16 %v4123
      %v4811 = vunpack.c.l.b16 %v4124
      %v4812 = vunpack.c.l.b16 %v4125
      %v4813 = vunpack.c.h.b16 %v4125
      %v4814 = vunpack.c.l.b16 %v4126
      %v4815 = vunpack.c.h.b16 %v4126
      %v4816 = vunpack.c.l.b16 %v4127
      %v4817 = vunpack.c.h.b16 %v4127
      %v4818 = vunpack.c.l.b16 %v4128
      %v4819 = vunpack.c.l.b16 %v4129
      %v4820 = vunpack.c.h.b16 %v4129
      %v4821 = vunpack.c.l.b16 %v4130
      %v4822 = vunpack.c.h.b16 %v4130
      %v4823 = vunpack.c.l.b16 %v4131
      %v4824 = vunpack.c.h.b16 %v4131
      %v4825 = vunpack.c.l.b16 %v4132
      %v4826 = vunpack.c.l.b16 %v4133
      %v4827 = vunpack.c.h.b16 %v4133
      %v4828 = vunpack.c.l.b16 %v4134
      %v4829 = vunpack.c.h.b16 %v4134
      %v4830 = vunpack.c.l.b16 %v4135
      %v4831 = vunpack.c.h.b16 %v4135
      %v4832 = vunpack.c.l.b16 %v4136
      %v4833 = vunpack.c.l.b16 %v4137
      %v4834 = vunpack.c.h.b16 %v4137
      %v4835 = vunpack.c.l.b16 %v4138
      %v4836 = vunpack.c.h.b16 %v4138
      %v4837 = vunpack.c.l.b16 %v4139
      %v4838 = vunpack.c.h.b16 %v4139
      %v4839 = vunpack.c.l.b16 %v4140
      %v4840 = vunpack.c.l.b16 %v4141
      %v4841 = vunpack.c.h.b16 %v4141
      %v4842 = vunpack.c.l.b16 %v4142
      %v4843 = vunpack.c.h.b16 %v4142
      %v4844 = vunpack.c.l.b16 %v4143
      %v4845 = vunpack.c.h.b16 %v4143
      %v4846 = vunpack.c.l.b16 %v4144
      %v4847 = vunpack.c.l.b16 %v4145
      %v4848 = vunpack.c.h.b16 %v4145
      %v4849 = vunpack.c.l.b16 %v4146
      %v4850 = vunpack.c.h.b16 %v4146
      %v4851 = vunpack.c.l.b16 %v4147
      %v4852 = vunpack.c.h.b16 %v4147
      %v4853 = vunpack.c.l.b16 %v4148
      %v4854 = vunpack.c.l.b16 %v4149
      %v4855 = vunpack.c.h.b16 %v4149
      %v4856 = vunpack.c.l.b16 %v4150
      %v4857 = vunpack.c.h.b16 %v4150
      %v4858 = vunpack.c.l.b16 %v4151
      %v4859 = vunpack.c.h.b16 %v4151
      %v4860 = vunpack.c.l.b16 %v4152
      %v4861 = vunpack.c.l.b16 %v4153
      %v4862 = vunpack.c.h.b16 %v4153
      %v4863 = vunpack.c.l.b16 %v4154
      %v4864 = vunpack.c.h.b16 %v4154
      %v4865 = vunpack.c.l.b16 %v4155
      %v4866 = vunpack.c.h.b16 %v4155
      %v4867 = vunpack.c.l.b16 %v4156
      %v4868 = vunpack.c.l.b16 %v4157
      %v4869 = vunpack.c.h.b16 %v4157
      %v4870 = vunpack.c.l.b16 %v4158
      %v4871 = vunpack.c.h.b16 %v4158
      %v4872 = vunpack.c.l.b16 %v4159
      %v4873 = vunpack.c.h.b16 %v4159
      %v4874 = vunpack.c.l.b16 %v4160
      %v4875 = vunpack.c.l.b16 %v4161
      %v4876 = vunpack.c.h.b16 %v4161
      %v4877 = vunpack.c.l.b16 %v4162
      %v4878 = vunpack.c.h.b16 %v4162
      %v4879 = vunpack.c.l.b16 %v4163
      %v4880 = vunpack.c.h.b16 %v4163
      %v4881 = vunpack.c.l.b16 %v4164
      %v4882 = vunpack.c.l.b16 %v4165
      %v4883 = vunpack.c.h.b16 %v4165
      %v4884 = vunpack.c.l.b16 %v4166
      %v4885 = vunpack.c.h.b16 %v4166
      %v4886 = vunpack.c.l.b16 %v4167
      %v4887 = vunpack.c.h.b16 %v4167
      %v4888 = vunpack.c.l.b16 %v4168
      %v4889 = vunpack.c.l.b16 %v4169
      %v4890 = vunpack.c.h.b16 %v4169
      %v4891 = vunpack.c.l.b16 %v4170
      %v4892 = vunpack.c.h.b16 %v4170
      %v4893 = vunpack.c.l.b16 %v4171
      %v4894 = vunpack.c.h.b16 %v4171
      %v4895 = vunpack.c.l.b16 %v4172
      %v4896 = vunpack.c.l.b16 %v4173
      %v4897 = vunpack.c.h.b16 %v4173
      %v4898 = vunpack.c.l.b16 %v4174
      %v4899 = vunpack.c.h.b16 %v4174
      %v4900 = vunpack.c.l.b16 %v4175
      %v4901 = vunpack.c.h.b16 %v4175
      %v4902 = vunpack.c.l.b16 %v4176
      %v4903 = vunpack.c.l.b16 %v4177
      %v4904 = vunpack.c.h.b16 %v4177
      %v4905 = vunpack.c.l.b16 %v4178
      %v4906 = vunpack.c.h.b16 %v4178
      %v4907 = vunpack.c.l.b16 %v4179
      %v4908 = vunpack.c.h.b16 %v4179
      %v4909 = vunpack.c.l.b16 %v4180
      %v4910 = vunpack.c.l.b16 %v4181
      %v4911 = vunpack.c.h.b16 %v4181
      %v4912 = vunpack.c.l.b16 %v4182
      %v4913 = vunpack.c.h.b16 %v4182
      %v4914 = vunpack.c.l.b16 %v4183
      %v4915 = vunpack.c.h.b16 %v4183
      %v4916 = vunpack.c.l.b16 %v4184
      %v4917 = vunpack.c.l.b16 %v4185
      %v4918 = vunpack.c.h.b16 %v4185
      %v4919 = vunpack.c.l.b16 %v4186
      %v4920 = vunpack.c.h.b16 %v4186
      %v4921 = vunpack.c.l.b16 %v4187
      %v4922 = vunpack.c.h.b16 %v4187
      %v4923 = vunpack.c.l.b16 %v4188
      %v4924 = vunpack.c.l.b16 %v4189
      %v4925 = vunpack.c.h.b16 %v4189
      %v4926 = vunpack.c.l.b16 %v4190
      %v4927 = vunpack.c.h.b16 %v4190
      %v4928 = vunpack.c.l.b16 %v4191
      %v4929 = vunpack.c.h.b16 %v4191
      %v4930 = vunpack.c.l.b16 %v4192
      %v4931 = vunpack.c.l.b16 %v4193
      %v4932 = vunpack.c.h.b16 %v4193
      %v4933 = vunpack.c.l.b16 %v4194
      %v4934 = vunpack.c.h.b16 %v4194
      %v4935 = vunpack.c.l.b16 %v4195
      %v4936 = vunpack.c.h.b16 %v4195
      %v4937 = vunpack.c.l.b16 %v4196
      %v4938 = vpack.c.b16 %v4497, %v4490
      %v4939 = vpack.c.b16 %v4498, %v4491
      %v4940 = vpack.c.b16 %v4499, %v4492
      %v4941 = vpack.c.b16 %v4500, %v4493
      %v4942 = vpack.c.b16 %v4501, %v4494
      %v4943 = vpack.c.b16 %v4502, %v4495
      %v4944 = vpack.c.b16 %v4503, %v4496
      %v4945 = vpack.c.b16 %v4511, %v4504
      %v4946 = vpack.c.b16 %v4512, %v4505
      %v4947 = vpack.c.b16 %v4513, %v4506
      %v4948 = vpack.c.b16 %v4514, %v4507
      %v4949 = vpack.c.b16 %v4515, %v4508
      %v4950 = vpack.c.b16 %v4516, %v4509
      %v4951 = vpack.c.b16 %v4517, %v4510
      %v4952 = vpack.c.b16 %v4525, %v4518
      %v4953 = vpack.c.b16 %v4526, %v4519
      %v4954 = vpack.c.b16 %v4527, %v4520
      %v4955 = vpack.c.b16 %v4528, %v4521
      %v4956 = vpack.c.b16 %v4529, %v4522
      %v4957 = vpack.c.b16 %v4530, %v4523
      %v4958 = vpack.c.b16 %v4531, %v4524
      %v4959 = vpack.c.b16 %v4539, %v4532
      %v4960 = vpack.c.b16 %v4540, %v4533
      %v4961 = vpack.c.b16 %v4541, %v4534
      %v4962 = vpack.c.b16 %v4542, %v4535
      %v4963 = vpack.c.b16 %v4543, %v4536
      %v4964 = vpack.c.b16 %v4544, %v4537
      %v4965 = vpack.c.b16 %v4545, %v4538
      %v4966 = vpack.c.b16 %v4553, %v4546
      %v4967 = vpack.c.b16 %v4554, %v4547
      %v4968 = vpack.c.b16 %v4555, %v4548
      %v4969 = vpack.c.b16 %v4556, %v4549
      %v4970 = vpack.c.b16 %v4557, %v4550
      %v4971 = vpack.c.b16 %v4558, %v4551
      %v4972 = vpack.c.b16 %v4559, %v4552
      %v4973 = vpack.c.b16 %v4567, %v4560
      %v4974 = vpack.c.b16 %v4568, %v4561
      %v4975 = vpack.c.b16 %v4569, %v4562
      %v4976 = vpack.c.b16 %v4570, %v4563
      %v4977 = vpack.c.b16 %v4571, %v4564
      %v4978 = vpack.c.b16 %v4572, %v4565
      %v4979 = vpack.c.b16 %v4573, %v4566
      %v4980 = vpack.c.b16 %v4581, %v4574
      %v4981 = vpack.c.b16 %v4582, %v4575
      %v4982 = vpack.c.b16 %v4583, %v4576
      %v4983 = vpack.c.b16 %v4584, %v4577
      %v4984 = vpack.c.b16 %v4585, %v4578
      %v4985 = vpack.c.b16 %v4586, %v4579
      %v4986 = vpack.c.b16 %v4587, %v4580
      %v4987 = vpack.c.b16 %v4595, %v4588
      %v4988 = vpack.c.b16 %v4596, %v4589
      %v4989 = vpack.c.b16 %v4597, %v4590
      %v4990 = vpack.c.b16 %v4598, %v4591
      %v4991 = vpack.c.b16 %v4599, %v4592
      %v4992 = vpack.c.b16 %v4600, %v4593
      %v4993 = vpack.c.b16 %v4601, %v4594
      %v4994 = vpack.c.b16 %v4609, %v4602
      %v4995 = vpack.c.b16 %v4610, %v4603
      %v4996 = vpack.c.b16 %v4611, %v4604
      %v4997 = vpack.c.b16 %v4612, %v4605
      %v4998 = vpack.c.b16 %v4613, %v4606
      %v4999 = vpack.c.b16 %v4614, %v4607
      %v5000 = vpack.c.b16 %v4615, %v4608
      %v5001 = vpack.c.b16 %v4623, %v4616
      %v5002 = vpack.c.b16 %v4624, %v4617
      %v5003 = vpack.c.b16 %v4625, %v4618
      %v5004 = vpack.c.b16 %v4626, %v4619
      %v5005 = vpack.c.b16 %v4627, %v4620
      %v5006 = vpack.c.b16 %v4628, %v4621
      %v5007 = vpack.c.b16 %v4629, %v4622
      %v5008 = vpack.c.b16 %v4637, %v4630
      %v5009 = vpack.c.b16 %v4638, %v4631
      %v5010 = vpack.c.b16 %v4639, %v4632
      %v5011 = vpack.c.b16 %v4640, %v4633
      %v5012 = vpack.c.b16 %v4641, %v4634
      %v5013 = vpack.c.b16 %v4642, %v4635
      %v5014 = vpack.c.b16 %v4643, %v4636
      %v5015 = vpack.c.b16 %v4651, %v4644
      %v5016 = vpack.c.b16 %v4652, %v4645
      %v5017 = vpack.c.b16 %v4653, %v4646
      %v5018 = vpack.c.b16 %v4654, %v4647
      %v5019 = vpack.c.b16 %v4655, %v4648
      %v5020 = vpack.c.b16 %v4656, %v4649
      %v5021 = vpack.c.b16 %v4657, %v4650
      %v5022 = vpack.c.b16 %v4665, %v4658
      %v5023 = vpack.c.b16 %v4666, %v4659
      %v5024 = vpack.c.b16 %v4667, %v4660
      %v5025 = vpack.c.b16 %v4668, %v4661
      %v5026 = vpack.c.b16 %v4669, %v4662
      %v5027 = vpack.c.b16 %v4670, %v4663
      %v5028 = vpack.c.b16 %v4671, %v4664
      %v5029 = vpack.c.b16 %v4679, %v4672
      %v5030 = vpack.c.b16 %v4680, %v4673
      %v5031 = vpack.c.b16 %v4681, %v4674
      %v5032 = vpack.c.b16 %v4682, %v4675
      %v5033 = vpack.c.b16 %v4683, %v4676
      %v5034 = vpack.c.b16 %v4684, %v4677
      %v5035 = vpack.c.b16 %v4685, %v4678
      %v5036 = vpack.c.b16 %v4693, %v4686
      %v5037 = vpack.c.b16 %v4694, %v4687
      %v5038 = vpack.c.b16 %v4695, %v4688
      %v5039 = vpack.c.b16 %v4696, %v4689
      %v5040 = vpack.c.b16 %v4697, %v4690
      %v5041 = vpack.c.b16 %v4698, %v4691
      %v5042 = vpack.c.b16 %v4699, %v4692
      %v5043 = vpack.c.b16 %v4707, %v4700
      %v5044 = vpack.c.b16 %v4708, %v4701
      %v5045 = vpack.c.b16 %v4709, %v4702
      %v5046 = vpack.c.b16 %v4710, %v4703
      %v5047 = vpack.c.b16 %v4711, %v4704
      %v5048 = vpack.c.b16 %v4712, %v4705
      %v5049 = vpack.c.b16 %v4713, %v4706
      %v5050 = vpack.c.b16 %v4721, %v4714
      %v5051 = vpack.c.b16 %v4722, %v4715
      %v5052 = vpack.c.b16 %v4723, %v4716
      %v5053 = vpack.c.b16 %v4724, %v4717
      %v5054 = vpack.c.b16 %v4725, %v4718
      %v5055 = vpack.c.b16 %v4726, %v4719
      %v5056 = vpack.c.b16 %v4727, %v4720
      %v5057 = vpack.c.b16 %v4735, %v4728
      %v5058 = vpack.c.b16 %v4736, %v4729
      %v5059 = vpack.c.b16 %v4737, %v4730
      %v5060 = vpack.c.b16 %v4738, %v4731
      %v5061 = vpack.c.b16 %v4739, %v4732
      %v5062 = vpack.c.b16 %v4740, %v4733
      %v5063 = vpack.c.b16 %v4741, %v4734
      %v5064 = vpack.c.b16 %v4749, %v4742
      %v5065 = vpack.c.b16 %v4750, %v4743
      %v5066 = vpack.c.b16 %v4751, %v4744
      %v5067 = vpack.c.b16 %v4752, %v4745
      %v5068 = vpack.c.b16 %v4753, %v4746
      %v5069 = vpack.c.b16 %v4754, %v4747
      %v5070 = vpack.c.b16 %v4755, %v4748
      %v5071 = vpack.c.b16 %v4763, %v4756
      %v5072 = vpack.c.b16 %v4764, %v4757
      %v5073 = vpack.c.b16 %v4765, %v4758
      %v5074 = vpack.c.b16 %v4766, %v4759
      %v5075 = vpack.c.b16 %v4767, %v4760
      %v5076 = vpack.c.b16 %v4768, %v4761
      %v5077 = vpack.c.b16 %v4769, %v4762
      %v5078 = vpack.c.b16 %v4777, %v4770
      %v5079 = vpack.c.b16 %v4778, %v4771
      %v5080 = vpack.c.b16 %v4779, %v4772
      %v5081 = vpack.c.b16 %v4780, %v4773
      %v5082 = vpack.c.b16 %v4781, %v4774
      %v5083 = vpack.c.b16 %v4782, %v4775
      %v5084 = vpack.c.b16 %v4783, %v4776
      %v5085 = vpack.c.b16 %v4791, %v4784
      %v5086 = vpack.c.b16 %v4792, %v4785
      %v5087 = vpack.c.b16 %v4793, %v4786
      %v5088 = vpack.c.b16 %v4794, %v4787
      %v5089 = vpack.c.b16 %v4795, %v4788
      %v5090 = vpack.c.b16 %v4796, %v4789
      %v5091 = vpack.c.b16 %v4797, %v4790
      %v5092 = vpack.c.b16 %v4805, %v4798
      %v5093 = vpack.c.b16 %v4806, %v4799
      %v5094 = vpack.c.b16 %v4807, %v4800
      %v5095 = vpack.c.b16 %v4808, %v4801
      %v5096 = vpack.c.b16 %v4809, %v4802
      %v5097 = vpack.c.b16 %v4810, %v4803
      %v5098 = vpack.c.b16 %v4811, %v4804
      %v5099 = vpack.c.b16 %v4819, %v4812
      %v5100 = vpack.c.b16 %v4820, %v4813
      %v5101 = vpack.c.b16 %v4821, %v4814
      %v5102 = vpack.c.b16 %v4822, %v4815
      %v5103 = vpack.c.b16 %v4823, %v4816
      %v5104 = vpack.c.b16 %v4824, %v4817
      %v5105 = vpack.c.b16 %v4825, %v4818
      %v5106 = vpack.c.b16 %v4833, %v4826
      %v5107 = vpack.c.b16 %v4834, %v4827
      %v5108 = vpack.c.b16 %v4835, %v4828
      %v5109 = vpack.c.b16 %v4836, %v4829
      %v5110 = vpack.c.b16 %v4837, %v4830
      %v5111 = vpack.c.b16 %v4838, %v4831
      %v5112 = vpack.c.b16 %v4839, %v4832
      %v5113 = vpack.c.b16 %v4847, %v4840
      %v5114 = vpack.c.b16 %v4848, %v4841
      %v5115 = vpack.c.b16 %v4849, %v4842
      %v5116 = vpack.c.b16 %v4850, %v4843
      %v5117 = vpack.c.b16 %v4851, %v4844
      %v5118 = vpack.c.b16 %v4852, %v4845
      %v5119 = vpack.c.b16 %v4853, %v4846
      %v5120 = vpack.c.b16 %v4861, %v4854
      %v5121 = vpack.c.b16 %v4862, %v4855
      %v5122 = vpack.c.b16 %v4863, %v4856
      %v5123 = vpack.c.b16 %v4864, %v4857
      %v5124 = vpack.c.b16 %v4865, %v4858
      %v5125 = vpack.c.b16 %v4866, %v4859
      %v5126 = vpack.c.b16 %v4867, %v4860
      %v5127 = vpack.c.b16 %v4875, %v4868
      %v5128 = vpack.c.b16 %v4876, %v4869
      %v5129 = vpack.c.b16 %v4877, %v4870
      %v5130 = vpack.c.b16 %v4878, %v4871
      %v5131 = vpack.c.b16 %v4879, %v4872
      %v5132 = vpack.c.b16 %v4880, %v4873
      %v5133 = vpack.c.b16 %v4881, %v4874
      %v5134 = vpack.c.b16 %v4889, %v4882
      %v5135 = vpack.c.b16 %v4890, %v4883
      %v5136 = vpack.c.b16 %v4891, %v4884
      %v5137 = vpack.c.b16 %v4892, %v4885
      %v5138 = vpack.c.b16 %v4893, %v4886
      %v5139 = vpack.c.b16 %v4894, %v4887
      %v5140 = vpack.c.b16 %v4895, %v4888
      %v5141 = vpack.c.b16 %v4903, %v4896
      %v5142 = vpack.c.b16 %v4904, %v4897
      %v5143 = vpack.c.b16 %v4905, %v4898
      %v5144 = vpack.c.b16 %v4906, %v4899
      %v5145 = vpack.c.b16 %v4907, %v4900
      %v5146 = vpack.c.b16 %v4908, %v4901
      %v5147 = vpack.c.b16 %v4909, %v4902
      %v5148 = vpack.c.b16 %v4917, %v4910
      %v5149 = vpack.c.b16 %v4918, %v4911
      %v5150 = vpack.c.b16 %v4919, %v4912
      %v5151 = vpack.c.b16 %v4920, %v4913
      %v5152 = vpack.c.b16 %v4921, %v4914
      %v5153 = vpack.c.b16 %v4922, %v4915
      %v5154 = vpack.c.b16 %v4923, %v4916
      %v5155 = vpack.c.b16 %v4931, %v4924
      %v5156 = vpack.c.b16 %v4932, %v4925
      %v5157 = vpack.c.b16 %v4933, %v4926
      %v5158 = vpack.c.b16 %v4934, %v4927
      %v5159 = vpack.c.b16 %v4935, %v4928
      %v5160 = vpack.c.b16 %v4936, %v4929
      %v5161 = vpack.c.b16 %v4937, %v4930
      %5386 = vmatprep.subr.bf16.mxu0 %v4988
      %5387 = vmatpush1.bf16.msra.mxu0 %v4987
      %5388 = vmatprep.subr.bf16.mxu0 %v4981
      %5389 = vmatpush1.bf16.msra.mxu0 %v4980
      %5390 = vmatprep.subr.bf16.mxu0 %v4974
      %5391 = vmatpush1.bf16.msra.mxu0 %v4973
      %5392 = vmatprep.subr.bf16.mxu0 %v4967
      %5393 = vmatpush1.bf16.msra.mxu0 %v4966
      %5394 = vmatprep.subr.bf16.mxu0 %v4960
      %5395 = vmatpush1.bf16.msra.mxu0 %v4959
      %5396 = vmatprep.subr.bf16.mxu0 %v4953
      %5397 = vmatpush1.bf16.msra.mxu0 %v4952
      %5398 = vmatprep.subr.bf16.mxu0 %v4946
      %5399 = vmatpush1.bf16.msra.mxu0 %v4945
      %5400 = vmatprep.subr.bf16.mxu0 %v4939
      %5401 = vmatpush1.bf16.msra.mxu0 %v4938
      %5402 = vmatprep.subr.bf16.mxu0 %v5044
      %5403 = vmatpush2.bf16.msra.mxu0 %v5043
      %5404 = vmatprep.subr.bf16.mxu0 %v5037
      %5405 = vmatpush2.bf16.msra.mxu0 %v5036
      %5406 = vmatprep.subr.bf16.mxu0 %v5030
      %5407 = vmatpush2.bf16.msra.mxu0 %v5029
      %5408 = vmatprep.subr.bf16.mxu0 %v5023
      %5409 = vmatpush2.bf16.msra.mxu0 %v5022
      %5410 = vmatprep.subr.bf16.mxu0 %v5016
      %5411 = vmatpush2.bf16.msra.mxu0 %v5015
      %5412 = vmatprep.subr.bf16.mxu0 %v5009
      %5413 = vmatpush2.bf16.msra.mxu0 %v5008
      %5414 = vmatprep.subr.bf16.mxu0 %v5002
      %5415 = vmatpush2.bf16.msra.mxu0 %v5001
      %5416 = vmatprep.subr.bf16.mxu0 %v4995
      %5417 = vmatpush2.bf16.msra.mxu0 %v4994
      %5418 = vmatprep.mubr.bf16.mxu0 %v3910
      %5419 = vmatmul.mubr.bf16.gmra.mxu0 %v3909
      %v5420 = vpop.f32.mrf.mxu0
      %v5421 = vadd.f32 %v4202, %v5420
      %v5422 = vpop.f32.mrf.mxu0
      %v5423 = vadd.f32 %v4206, %v5422
      %v5424 = vpop.f32.mrf.mxu0
      %v5425 = vadd.f32 %v4202, %v5424
      %v5426 = vpop.f32.mrf.mxu0
      %v5427 = vadd.f32 %v4206, %v5426
      %5428 = vmatprep.mubr.bf16.mxu0 %v3914
      %5429 = vmatmul.mubr.bf16.gmra.mxu0 %v3913
      %v5430 = vpop.f32.mrf.mxu0
      %v5431 = vadd.f32 %v4202, %v5430
      %v5432 = vpop.f32.mrf.mxu0
      %v5433 = vadd.f32 %v4206, %v5432
      %v5434 = vpop.f32.mrf.mxu0
      %v5435 = vadd.f32 %v4202, %v5434
      %v5436 = vpop.f32.mrf.mxu0
      %v5437 = vadd.f32 %v4206, %v5436
      %5438 = vmatprep.mubr.bf16.mxu0 %v3918
      %5439 = vmatmul.mubr.bf16.gmra.mxu0 %v3917
      %v5440 = vpop.f32.mrf.mxu0
      %v5441 = vadd.f32 %v4202, %v5440
      %v5442 = vpop.f32.mrf.mxu0
      %v5443 = vadd.f32 %v4206, %v5442
      %v5444 = vpop.f32.mrf.mxu0
      %v5445 = vadd.f32 %v4202, %v5444
      %v5446 = vpop.f32.mrf.mxu0
      %v5447 = vadd.f32 %v4206, %v5446
      %5448 = vmatprep.mubr.bf16.mxu0 %v3922
      %5449 = vmatmul.mubr.bf16.gmra.mxu0 %v3921
      %v5450 = vpop.f32.mrf.mxu0
      %v5451 = vadd.f32 %v4202, %v5450
      %v5452 = vpop.f32.mrf.mxu0
      %v5453 = vadd.f32 %v4206, %v5452
      %v5454 = vpop.f32.mrf.mxu0
      %v5455 = vadd.f32 %v4202, %v5454
      %v5456 = vpop.f32.mrf.mxu0
      %v5457 = vadd.f32 %v4206, %v5456
      %5458 = vmatprep.mubr.bf16.mxu0 %v3926
      %5459 = vmatmul.mubr.bf16.gmra.mxu0 %v3925
      %v5460 = vpop.f32.mrf.mxu0
      %v5461 = vadd.f32 %v4202, %v5460
      %v5462 = vpop.f32.mrf.mxu0
      %v5463 = vadd.f32 %v4206, %v5462
      %v5464 = vpop.f32.mrf.mxu0
      %v5465 = vadd.f32 %v4202, %v5464
      %v5466 = vpop.f32.mrf.mxu0
      %v5467 = vadd.f32 %v4206, %v5466
      %5468 = vmatprep.mubr.bf16.mxu0 %v3930
      %5469 = vmatmul.mubr.bf16.gmra.mxu0 %v3929
      %v5470 = vpop.f32.mrf.mxu0
      %v5471 = vadd.f32 %v4202, %v5470
      %v5472 = vpop.f32.mrf.mxu0
      %v5473 = vadd.f32 %v4206, %v5472
      %v5474 = vpop.f32.mrf.mxu0
      %v5475 = vadd.f32 %v4202, %v5474
      %v5476 = vpop.f32.mrf.mxu0
      %v5477 = vadd.f32 %v4206, %v5476
      %5478 = vmatprep.mubr.bf16.mxu0 %v3934
      %5479 = vmatmul.mubr.bf16.gmra.mxu0 %v3933
      %v5480 = vpop.f32.mrf.mxu0
      %v5481 = vadd.f32 %v4202, %v5480
      %v5482 = vpop.f32.mrf.mxu0
      %v5483 = vadd.f32 %v4206, %v5482
      %v5484 = vpop.f32.mrf.mxu0
      %v5485 = vadd.f32 %v4202, %v5484
      %v5486 = vpop.f32.mrf.mxu0
      %v5487 = vadd.f32 %v4206, %v5486
      %5488 = vmatprep.mubr.bf16.mxu0 %v3938
      %5489 = vmatmul.mubr.bf16.gmra.mxu0 %v3937
      %v5490 = vpop.f32.mrf.mxu0
      %v5491 = vadd.f32 %v4202, %v5490
      %v5492 = vpop.f32.mrf.mxu0
      %v5493 = vadd.f32 %v4206, %v5492
      %v5494 = vpop.f32.mrf.mxu0
      %v5495 = vadd.f32 %v4202, %v5494
      %v5496 = vpop.f32.mrf.mxu0
      %v5497 = vadd.f32 %v4206, %v5496
      %5498 = vdwg.mxu0
      %5499 = vmatprep.subr.bf16.mxu0 %v5100
      %5500 = vmatpush1.bf16.msra.mxu0 %v5099
      %5501 = vmatprep.subr.bf16.mxu0 %v5093
      %5502 = vmatpush1.bf16.msra.mxu0 %v5092
      %5503 = vmatprep.subr.bf16.mxu0 %v5086
      %5504 = vmatpush1.bf16.msra.mxu0 %v5085
      %5505 = vmatprep.subr.bf16.mxu0 %v5079
      %5506 = vmatpush1.bf16.msra.mxu0 %v5078
      %5507 = vmatprep.subr.bf16.mxu0 %v5072
      %5508 = vmatpush1.bf16.msra.mxu0 %v5071
      %5509 = vmatprep.subr.bf16.mxu0 %v5065
      %5510 = vmatpush1.bf16.msra.mxu0 %v5064
      %5511 = vmatprep.subr.bf16.mxu0 %v5058
      %5512 = vmatpush1.bf16.msra.mxu0 %v5057
      %5513 = vmatprep.subr.bf16.mxu0 %v5051
      %5514 = vmatpush1.bf16.msra.mxu0 %v5050
      %5515 = vmatprep.subr.bf16.mxu0 %v5156
      %5516 = vmatpush2.bf16.msra.mxu0 %v5155
      %5517 = vmatprep.subr.bf16.mxu0 %v5149
      %5518 = vmatpush2.bf16.msra.mxu0 %v5148
      %5519 = vmatprep.subr.bf16.mxu0 %v5142
      %5520 = vmatpush2.bf16.msra.mxu0 %v5141
      %5521 = vmatprep.subr.bf16.mxu0 %v5135
      %5522 = vmatpush2.bf16.msra.mxu0 %v5134
      %5523 = vmatprep.subr.bf16.mxu0 %v5128
      %5524 = vmatpush2.bf16.msra.mxu0 %v5127
      %5525 = vmatprep.subr.bf16.mxu0 %v5121
      %5526 = vmatpush2.bf16.msra.mxu0 %v5120
      %5527 = vmatprep.subr.bf16.mxu0 %v5114
      %5528 = vmatpush2.bf16.msra.mxu0 %v5113
      %5529 = vmatprep.subr.bf16.mxu0 %v5107
      %5530 = vmatpush2.bf16.msra.mxu0 %v5106
      %5531 = vmatprep.mubr.bf16.mxu0 %v3912
      %5532 = vmatmul.mubr.bf16.gmra.mxu0 %v3911
      %v5533 = vpop.f32.mrf.mxu0
      %v5534 = vadd.f32 %v5421, %v5533
      %v5535 = vpop.f32.mrf.mxu0
      %v5536 = vadd.f32 %v5423, %v5535
      %v5537 = vpop.f32.mrf.mxu0
      %v5538 = vadd.f32 %v5425, %v5537
      %v5539 = vpop.f32.mrf.mxu0
      %v5540 = vadd.f32 %v5427, %v5539
      %5541 = vmatprep.mubr.bf16.mxu0 %v3916
      %5542 = vmatmul.mubr.bf16.gmra.mxu0 %v3915
      %v5543 = vpop.f32.mrf.mxu0
      %v5544 = vadd.f32 %v5431, %v5543
      %v5545 = vpop.f32.mrf.mxu0
      %v5546 = vadd.f32 %v5433, %v5545
      %v5547 = vpop.f32.mrf.mxu0
      %v5548 = vadd.f32 %v5435, %v5547
      %v5549 = vpop.f32.mrf.mxu0
      %v5550 = vadd.f32 %v5437, %v5549
      %5551 = vmatprep.mubr.bf16.mxu0 %v3920
      %5552 = vmatmul.mubr.bf16.gmra.mxu0 %v3919
      %v5553 = vpop.f32.mrf.mxu0
      %v5554 = vadd.f32 %v5441, %v5553
      %v5555 = vpop.f32.mrf.mxu0
      %v5556 = vadd.f32 %v5443, %v5555
      %v5557 = vpop.f32.mrf.mxu0
      %v5558 = vadd.f32 %v5445, %v5557
      %v5559 = vpop.f32.mrf.mxu0
      %v5560 = vadd.f32 %v5447, %v5559
      %5561 = vmatprep.mubr.bf16.mxu0 %v3924
      %5562 = vmatmul.mubr.bf16.gmra.mxu0 %v3923
      %v5563 = vpop.f32.mrf.mxu0
      %v5564 = vadd.f32 %v5451, %v5563
      %v5565 = vpop.f32.mrf.mxu0
      %v5566 = vadd.f32 %v5453, %v5565
      %v5567 = vpop.f32.mrf.mxu0
      %v5568 = vadd.f32 %v5455, %v5567
      %v5569 = vpop.f32.mrf.mxu0
      %v5570 = vadd.f32 %v5457, %v5569
      %5571 = vmatprep.mubr.bf16.mxu0 %v3928
      %5572 = vmatmul.mubr.bf16.gmra.mxu0 %v3927
      %v5573 = vpop.f32.mrf.mxu0
      %v5574 = vadd.f32 %v5461, %v5573
      %v5575 = vpop.f32.mrf.mxu0
      %v5576 = vadd.f32 %v5463, %v5575
      %v5577 = vpop.f32.mrf.mxu0
      %v5578 = vadd.f32 %v5465, %v5577
      %v5579 = vpop.f32.mrf.mxu0
      %v5580 = vadd.f32 %v5467, %v5579
      %5581 = vmatprep.mubr.bf16.mxu0 %v3932
      %5582 = vmatmul.mubr.bf16.gmra.mxu0 %v3931
      %v5583 = vpop.f32.mrf.mxu0
      %v5584 = vadd.f32 %v5471, %v5583
      %v5585 = vpop.f32.mrf.mxu0
      %v5586 = vadd.f32 %v5473, %v5585
      %v5587 = vpop.f32.mrf.mxu0
      %v5588 = vadd.f32 %v5475, %v5587
      %v5589 = vpop.f32.mrf.mxu0
      %v5590 = vadd.f32 %v5477, %v5589
      %5591 = vmatprep.mubr.bf16.mxu0 %v3936
      %5592 = vmatmul.mubr.bf16.gmra.mxu0 %v3935
      %v5593 = vpop.f32.mrf.mxu0
      %v5594 = vadd.f32 %v5481, %v5593
      %v5595 = vpop.f32.mrf.mxu0
      %v5596 = vadd.f32 %v5483, %v5595
      %v5597 = vpop.f32.mrf.mxu0
      %v5598 = vadd.f32 %v5485, %v5597
      %v5599 = vpop.f32.mrf.mxu0
      %v5600 = vadd.f32 %v5487, %v5599
      %5601 = vmatprep.mubr.bf16.mxu0 %v3940
      %5602 = vmatmul.mubr.bf16.gmra.mxu0 %v3939
      %v5603 = vpop.f32.mrf.mxu0
      %v5604 = vadd.f32 %v5491, %v5603
      %v5605 = vpop.f32.mrf.mxu0
      %v5606 = vadd.f32 %v5493, %v5605
      %v5607 = vpop.f32.mrf.mxu0
      %v5608 = vadd.f32 %v5495, %v5607
      %v5609 = vpop.f32.mrf.mxu0
      %v5610 = vadd.f32 %v5497, %v5609
      %5611 = vdwg.mxu0
      %5612 = vmatprep.subr.bf16.mxu0 %v4990
      %5613 = vmatpush1.bf16.msra.mxu0 %v4989
      %5614 = vmatprep.subr.bf16.mxu0 %v4983
      %5615 = vmatpush1.bf16.msra.mxu0 %v4982
      %5616 = vmatprep.subr.bf16.mxu0 %v4976
      %5617 = vmatpush1.bf16.msra.mxu0 %v4975
      %5618 = vmatprep.subr.bf16.mxu0 %v4969
      %5619 = vmatpush1.bf16.msra.mxu0 %v4968
      %5620 = vmatprep.subr.bf16.mxu0 %v4962
      %5621 = vmatpush1.bf16.msra.mxu0 %v4961
      %5622 = vmatprep.subr.bf16.mxu0 %v4955
      %5623 = vmatpush1.bf16.msra.mxu0 %v4954
      %5624 = vmatprep.subr.bf16.mxu0 %v4948
      %5625 = vmatpush1.bf16.msra.mxu0 %v4947
      %5626 = vmatprep.subr.bf16.mxu0 %v4941
      %5627 = vmatpush1.bf16.msra.mxu0 %v4940
      %5628 = vmatprep.subr.bf16.mxu0 %v5046
      %5629 = vmatpush2.bf16.msra.mxu0 %v5045
      %5630 = vmatprep.subr.bf16.mxu0 %v5039
      %5631 = vmatpush2.bf16.msra.mxu0 %v5038
      %5632 = vmatprep.subr.bf16.mxu0 %v5032
      %5633 = vmatpush2.bf16.msra.mxu0 %v5031
      %5634 = vmatprep.subr.bf16.mxu0 %v5025
      %5635 = vmatpush2.bf16.msra.mxu0 %v5024
      %5636 = vmatprep.subr.bf16.mxu0 %v5018
      %5637 = vmatpush2.bf16.msra.mxu0 %v5017
      %5638 = vmatprep.subr.bf16.mxu0 %v5011
      %5639 = vmatpush2.bf16.msra.mxu0 %v5010
      %5640 = vmatprep.subr.bf16.mxu0 %v5004
      %5641 = vmatpush2.bf16.msra.mxu0 %v5003
      %5642 = vmatprep.subr.bf16.mxu0 %v4997
      %5643 = vmatpush2.bf16.msra.mxu0 %v4996
      %5644 = vmatprep.mubr.bf16.mxu0 %v3910
      %5645 = vmatmul.mubr.bf16.gmra.mxu0 %v3909
      %v5646 = vpop.f32.mrf.mxu0
      %v5647 = vadd.f32 %v4210, %v5646
      %v5648 = vpop.f32.mrf.mxu0
      %v5649 = vadd.f32 %v4214, %v5648
      %v5650 = vpop.f32.mrf.mxu0
      %v5651 = vadd.f32 %v4210, %v5650
      %v5652 = vpop.f32.mrf.mxu0
      %v5653 = vadd.f32 %v4214, %v5652
      %5654 = vmatprep.mubr.bf16.mxu0 %v3914
      %5655 = vmatmul.mubr.bf16.gmra.mxu0 %v3913
      %v5656 = vpop.f32.mrf.mxu0
      %v5657 = vadd.f32 %v4210, %v5656
      %v5658 = vpop.f32.mrf.mxu0
      %v5659 = vadd.f32 %v4214, %v5658
      %v5660 = vpop.f32.mrf.mxu0
      %v5661 = vadd.f32 %v4210, %v5660
      %v5662 = vpop.f32.mrf.mxu0
      %v5663 = vadd.f32 %v4214, %v5662
      %5664 = vmatprep.mubr.bf16.mxu0 %v3918
      %5665 = vmatmul.mubr.bf16.gmra.mxu0 %v3917
      %v5666 = vpop.f32.mrf.mxu0
      %v5667 = vadd.f32 %v4210, %v5666
      %v5668 = vpop.f32.mrf.mxu0
      %v5669 = vadd.f32 %v4214, %v5668
      %v5670 = vpop.f32.mrf.mxu0
      %v5671 = vadd.f32 %v4210, %v5670
      %v5672 = vpop.f32.mrf.mxu0
      %v5673 = vadd.f32 %v4214, %v5672
      %5674 = vmatprep.mubr.bf16.mxu0 %v3922
      %5675 = vmatmul.mubr.bf16.gmra.mxu0 %v3921
      %v5676 = vpop.f32.mrf.mxu0
      %v5677 = vadd.f32 %v4210, %v5676
      %v5678 = vpop.f32.mrf.mxu0
      %v5679 = vadd.f32 %v4214, %v5678
      %v5680 = vpop.f32.mrf.mxu0
      %v5681 = vadd.f32 %v4210, %v5680
      %v5682 = vpop.f32.mrf.mxu0
      %v5683 = vadd.f32 %v4214, %v5682
      %5684 = vmatprep.mubr.bf16.mxu0 %v3926
      %5685 = vmatmul.mubr.bf16.gmra.mxu0 %v3925
      %v5686 = vpop.f32.mrf.mxu0
      %v5687 = vadd.f32 %v4210, %v5686
      %v5688 = vpop.f32.mrf.mxu0
      %v5689 = vadd.f32 %v4214, %v5688
      %v5690 = vpop.f32.mrf.mxu0
      %v5691 = vadd.f32 %v4210, %v5690
      %v5692 = vpop.f32.mrf.mxu0
      %v5693 = vadd.f32 %v4214, %v5692
      %5694 = vmatprep.mubr.bf16.mxu0 %v3930
      %5695 = vmatmul.mubr.bf16.gmra.mxu0 %v3929
      %v5696 = vpop.f32.mrf.mxu0
      %v5697 = vadd.f32 %v4210, %v5696
      %v5698 = vpop.f32.mrf.mxu0
      %v5699 = vadd.f32 %v4214, %v5698
      %v5700 = vpop.f32.mrf.mxu0
      %v5701 = vadd.f32 %v4210, %v5700
      %v5702 = vpop.f32.mrf.mxu0
      %v5703 = vadd.f32 %v4214, %v5702
      %5704 = vmatprep.mubr.bf16.mxu0 %v3934
      %5705 = vmatmul.mubr.bf16.gmra.mxu0 %v3933
      %v5706 = vpop.f32.mrf.mxu0
      %v5707 = vadd.f32 %v4210, %v5706
      %v5708 = vpop.f32.mrf.mxu0
      %v5709 = vadd.f32 %v4214, %v5708
      %v5710 = vpop.f32.mrf.mxu0
      %v5711 = vadd.f32 %v4210, %v5710
      %v5712 = vpop.f32.mrf.mxu0
      %v5713 = vadd.f32 %v4214, %v5712
      %5714 = vmatprep.mubr.bf16.mxu0 %v3938
      %5715 = vmatmul.mubr.bf16.gmra.mxu0 %v3937
      %v5716 = vpop.f32.mrf.mxu0
      %v5717 = vadd.f32 %v4210, %v5716
      %v5718 = vpop.f32.mrf.mxu0
      %v5719 = vadd.f32 %v4214, %v5718
      %v5720 = vpop.f32.mrf.mxu0
      %v5721 = vadd.f32 %v4210, %v5720
      %v5722 = vpop.f32.mrf.mxu0
      %v5723 = vadd.f32 %v4214, %v5722
      %5724 = vdwg.mxu0
      %5725 = vmatprep.subr.bf16.mxu0 %v5102
      %5726 = vmatpush1.bf16.msra.mxu0 %v5101
      %5727 = vmatprep.subr.bf16.mxu0 %v5095
      %5728 = vmatpush1.bf16.msra.mxu0 %v5094
      %5729 = vmatprep.subr.bf16.mxu0 %v5088
      %5730 = vmatpush1.bf16.msra.mxu0 %v5087
      %5731 = vmatprep.subr.bf16.mxu0 %v5081
      %5732 = vmatpush1.bf16.msra.mxu0 %v5080
      %5733 = vmatprep.subr.bf16.mxu0 %v5074
      %5734 = vmatpush1.bf16.msra.mxu0 %v5073
      %5735 = vmatprep.subr.bf16.mxu0 %v5067
      %5736 = vmatpush1.bf16.msra.mxu0 %v5066
      %5737 = vmatprep.subr.bf16.mxu0 %v5060
      %5738 = vmatpush1.bf16.msra.mxu0 %v5059
      %5739 = vmatprep.subr.bf16.mxu0 %v5053
      %5740 = vmatpush1.bf16.msra.mxu0 %v5052
      %5741 = vmatprep.subr.bf16.mxu0 %v5158
      %5742 = vmatpush2.bf16.msra.mxu0 %v5157
      %5743 = vmatprep.subr.bf16.mxu0 %v5151
      %5744 = vmatpush2.bf16.msra.mxu0 %v5150
      %5745 = vmatprep.subr.bf16.mxu0 %v5144
      %5746 = vmatpush2.bf16.msra.mxu0 %v5143
      %5747 = vmatprep.subr.bf16.mxu0 %v5137
      %5748 = vmatpush2.bf16.msra.mxu0 %v5136
      %5749 = vmatprep.subr.bf16.mxu0 %v5130
      %5750 = vmatpush2.bf16.msra.mxu0 %v5129
      %5751 = vmatprep.subr.bf16.mxu0 %v5123
      %5752 = vmatpush2.bf16.msra.mxu0 %v5122
      %5753 = vmatprep.subr.bf16.mxu0 %v5116
      %5754 = vmatpush2.bf16.msra.mxu0 %v5115
      %5755 = vmatprep.subr.bf16.mxu0 %v5109
      %5756 = vmatpush2.bf16.msra.mxu0 %v5108
      %5757 = vmatprep.mubr.bf16.mxu0 %v3912
      %5758 = vmatmul.mubr.bf16.gmra.mxu0 %v3911
      %v5759 = vpop.f32.mrf.mxu0
      %v5760 = vadd.f32 %v5647, %v5759
      %v5761 = vpop.f32.mrf.mxu0
      %v5762 = vadd.f32 %v5649, %v5761
      %v5763 = vpop.f32.mrf.mxu0
      %v5764 = vadd.f32 %v5651, %v5763
      %v5765 = vpop.f32.mrf.mxu0
      %v5766 = vadd.f32 %v5653, %v5765
      %5767 = vmatprep.mubr.bf16.mxu0 %v3916
      %5768 = vmatmul.mubr.bf16.gmra.mxu0 %v3915
      %v5769 = vpop.f32.mrf.mxu0
      %v5770 = vadd.f32 %v5657, %v5769
      %v5771 = vpop.f32.mrf.mxu0
      %v5772 = vadd.f32 %v5659, %v5771
      %v5773 = vpop.f32.mrf.mxu0
      %v5774 = vadd.f32 %v5661, %v5773
      %v5775 = vpop.f32.mrf.mxu0
      %v5776 = vadd.f32 %v5663, %v5775
      %5777 = vmatprep.mubr.bf16.mxu0 %v3920
      %5778 = vmatmul.mubr.bf16.gmra.mxu0 %v3919
      %v5779 = vpop.f32.mrf.mxu0
      %v5780 = vadd.f32 %v5667, %v5779
      %v5781 = vpop.f32.mrf.mxu0
      %v5782 = vadd.f32 %v5669, %v5781
      %v5783 = vpop.f32.mrf.mxu0
      %v5784 = vadd.f32 %v5671, %v5783
      %v5785 = vpop.f32.mrf.mxu0
      %v5786 = vadd.f32 %v5673, %v5785
      %5787 = vmatprep.mubr.bf16.mxu0 %v3924
      %5788 = vmatmul.mubr.bf16.gmra.mxu0 %v3923
      %v5789 = vpop.f32.mrf.mxu0
      %v5790 = vadd.f32 %v5677, %v5789
      %v5791 = vpop.f32.mrf.mxu0
      %v5792 = vadd.f32 %v5679, %v5791
      %v5793 = vpop.f32.mrf.mxu0
      %v5794 = vadd.f32 %v5681, %v5793
      %v5795 = vpop.f32.mrf.mxu0
      %v5796 = vadd.f32 %v5683, %v5795
      %5797 = vmatprep.mubr.bf16.mxu0 %v3928
      %5798 = vmatmul.mubr.bf16.gmra.mxu0 %v3927
      %v5799 = vpop.f32.mrf.mxu0
      %v5800 = vadd.f32 %v5687, %v5799
      %v5801 = vpop.f32.mrf.mxu0
      %v5802 = vadd.f32 %v5689, %v5801
      %v5803 = vpop.f32.mrf.mxu0
      %v5804 = vadd.f32 %v5691, %v5803
      %v5805 = vpop.f32.mrf.mxu0
      %v5806 = vadd.f32 %v5693, %v5805
      %5807 = vmatprep.mubr.bf16.mxu0 %v3932
      %5808 = vmatmul.mubr.bf16.gmra.mxu0 %v3931
      %v5809 = vpop.f32.mrf.mxu0
      %v5810 = vadd.f32 %v5697, %v5809
      %v5811 = vpop.f32.mrf.mxu0
      %v5812 = vadd.f32 %v5699, %v5811
      %v5813 = vpop.f32.mrf.mxu0
      %v5814 = vadd.f32 %v5701, %v5813
      %v5815 = vpop.f32.mrf.mxu0
      %v5816 = vadd.f32 %v5703, %v5815
      %5817 = vmatprep.mubr.bf16.mxu0 %v3936
      %5818 = vmatmul.mubr.bf16.gmra.mxu0 %v3935
      %v5819 = vpop.f32.mrf.mxu0
      %v5820 = vadd.f32 %v5707, %v5819
      %v5821 = vpop.f32.mrf.mxu0
      %v5822 = vadd.f32 %v5709, %v5821
      %v5823 = vpop.f32.mrf.mxu0
      %v5824 = vadd.f32 %v5711, %v5823
      %v5825 = vpop.f32.mrf.mxu0
      %v5826 = vadd.f32 %v5713, %v5825
      %5827 = vmatprep.mubr.bf16.mxu0 %v3940
      %5828 = vmatmul.mubr.bf16.gmra.mxu0 %v3939
      %v5829 = vpop.f32.mrf.mxu0
      %v5830 = vadd.f32 %v5717, %v5829
      %v5831 = vpop.f32.mrf.mxu0
      %v5832 = vadd.f32 %v5719, %v5831
      %v5833 = vpop.f32.mrf.mxu0
      %v5834 = vadd.f32 %v5721, %v5833
      %v5835 = vpop.f32.mrf.mxu0
      %v5836 = vadd.f32 %v5723, %v5835
      %5837 = vdwg.mxu0
      %5838 = vmatprep.subr.bf16.mxu0 %v4992
      %5839 = vmatpush1.bf16.msra.mxu0 %v4991
      %5840 = vmatprep.subr.bf16.mxu0 %v4985
      %5841 = vmatpush1.bf16.msra.mxu0 %v4984
      %5842 = vmatprep.subr.bf16.mxu0 %v4978
      %5843 = vmatpush1.bf16.msra.mxu0 %v4977
      %5844 = vmatprep.subr.bf16.mxu0 %v4971
      %5845 = vmatpush1.bf16.msra.mxu0 %v4970
      %5846 = vmatprep.subr.bf16.mxu0 %v4964
      %5847 = vmatpush1.bf16.msra.mxu0 %v4963
      %5848 = vmatprep.subr.bf16.mxu0 %v4957
      %5849 = vmatpush1.bf16.msra.mxu0 %v4956
      %5850 = vmatprep.subr.bf16.mxu0 %v4950
      %5851 = vmatpush1.bf16.msra.mxu0 %v4949
      %5852 = vmatprep.subr.bf16.mxu0 %v4943
      %5853 = vmatpush1.bf16.msra.mxu0 %v4942
      %5854 = vmatprep.subr.bf16.mxu0 %v5048
      %5855 = vmatpush2.bf16.msra.mxu0 %v5047
      %5856 = vmatprep.subr.bf16.mxu0 %v5041
      %5857 = vmatpush2.bf16.msra.mxu0 %v5040
      %5858 = vmatprep.subr.bf16.mxu0 %v5034
      %5859 = vmatpush2.bf16.msra.mxu0 %v5033
      %5860 = vmatprep.subr.bf16.mxu0 %v5027
      %5861 = vmatpush2.bf16.msra.mxu0 %v5026
      %5862 = vmatprep.subr.bf16.mxu0 %v5020
      %5863 = vmatpush2.bf16.msra.mxu0 %v5019
      %5864 = vmatprep.subr.bf16.mxu0 %v5013
      %5865 = vmatpush2.bf16.msra.mxu0 %v5012
      %5866 = vmatprep.subr.bf16.mxu0 %v5006
      %5867 = vmatpush2.bf16.msra.mxu0 %v5005
      %5868 = vmatprep.subr.bf16.mxu0 %v4999
      %5869 = vmatpush2.bf16.msra.mxu0 %v4998
      %5870 = vmatprep.mubr.bf16.mxu0 %v3910
      %5871 = vmatmul.mubr.bf16.gmra.mxu0 %v3909
      %v5872 = vpop.f32.mrf.mxu0
      %v5873 = vadd.f32 %v4218, %v5872
      %v5874 = vpop.f32.mrf.mxu0
      %v5875 = vadd.f32 %v4222, %v5874
      %v5876 = vpop.f32.mrf.mxu0
      %v5877 = vadd.f32 %v4218, %v5876
      %v5878 = vpop.f32.mrf.mxu0
      %v5879 = vadd.f32 %v4222, %v5878
      %5880 = vmatprep.mubr.bf16.mxu0 %v3914
      %5881 = vmatmul.mubr.bf16.gmra.mxu0 %v3913
      %v5882 = vpop.f32.mrf.mxu0
      %v5883 = vadd.f32 %v4218, %v5882
      %v5884 = vpop.f32.mrf.mxu0
      %v5885 = vadd.f32 %v4222, %v5884
      %v5886 = vpop.f32.mrf.mxu0
      %v5887 = vadd.f32 %v4218, %v5886
      %v5888 = vpop.f32.mrf.mxu0
      %v5889 = vadd.f32 %v4222, %v5888
      %5890 = vmatprep.mubr.bf16.mxu0 %v3918
      %5891 = vmatmul.mubr.bf16.gmra.mxu0 %v3917
      %v5892 = vpop.f32.mrf.mxu0
      %v5893 = vadd.f32 %v4218, %v5892
      %v5894 = vpop.f32.mrf.mxu0
      %v5895 = vadd.f32 %v4222, %v5894
      %v5896 = vpop.f32.mrf.mxu0
      %v5897 = vadd.f32 %v4218, %v5896
      %v5898 = vpop.f32.mrf.mxu0
      %v5899 = vadd.f32 %v4222, %v5898
      %5900 = vmatprep.mubr.bf16.mxu0 %v3922
      %5901 = vmatmul.mubr.bf16.gmra.mxu0 %v3921
      %v5902 = vpop.f32.mrf.mxu0
      %v5903 = vadd.f32 %v4218, %v5902
      %v5904 = vpop.f32.mrf.mxu0
      %v5905 = vadd.f32 %v4222, %v5904
      %v5906 = vpop.f32.mrf.mxu0
      %v5907 = vadd.f32 %v4218, %v5906
      %v5908 = vpop.f32.mrf.mxu0
      %v5909 = vadd.f32 %v4222, %v5908
      %5910 = vmatprep.mubr.bf16.mxu0 %v3926
      %5911 = vmatmul.mubr.bf16.gmra.mxu0 %v3925
      %v5912 = vpop.f32.mrf.mxu0
      %v5913 = vadd.f32 %v4218, %v5912
      %v5914 = vpop.f32.mrf.mxu0
      %v5915 = vadd.f32 %v4222, %v5914
      %v5916 = vpop.f32.mrf.mxu0
      %v5917 = vadd.f32 %v4218, %v5916
      %v5918 = vpop.f32.mrf.mxu0
      %v5919 = vadd.f32 %v4222, %v5918
      %5920 = vmatprep.mubr.bf16.mxu0 %v3930
      %5921 = vmatmul.mubr.bf16.gmra.mxu0 %v3929
      %v5922 = vpop.f32.mrf.mxu0
      %v5923 = vadd.f32 %v4218, %v5922
      %v5924 = vpop.f32.mrf.mxu0
      %v5925 = vadd.f32 %v4222, %v5924
      %v5926 = vpop.f32.mrf.mxu0
      %v5927 = vadd.f32 %v4218, %v5926
      %v5928 = vpop.f32.mrf.mxu0
      %v5929 = vadd.f32 %v4222, %v5928
      %5930 = vmatprep.mubr.bf16.mxu0 %v3934
      %5931 = vmatmul.mubr.bf16.gmra.mxu0 %v3933
      %v5932 = vpop.f32.mrf.mxu0
      %v5933 = vadd.f32 %v4218, %v5932
      %v5934 = vpop.f32.mrf.mxu0
      %v5935 = vadd.f32 %v4222, %v5934
      %v5936 = vpop.f32.mrf.mxu0
      %v5937 = vadd.f32 %v4218, %v5936
      %v5938 = vpop.f32.mrf.mxu0
      %v5939 = vadd.f32 %v4222, %v5938
      %5940 = vmatprep.mubr.bf16.mxu0 %v3938
      %5941 = vmatmul.mubr.bf16.gmra.mxu0 %v3937
      %v5942 = vpop.f32.mrf.mxu0
      %v5943 = vadd.f32 %v4218, %v5942
      %v5944 = vpop.f32.mrf.mxu0
      %v5945 = vadd.f32 %v4222, %v5944
      %v5946 = vpop.f32.mrf.mxu0
      %v5947 = vadd.f32 %v4218, %v5946
      %v5948 = vpop.f32.mrf.mxu0
      %v5949 = vadd.f32 %v4222, %v5948
      %5950 = vdwg.mxu0
      %5951 = vmatprep.subr.bf16.mxu0 %v5104
      %5952 = vmatpush1.bf16.msra.mxu0 %v5103
      %5953 = vmatprep.subr.bf16.mxu0 %v5097
      %5954 = vmatpush1.bf16.msra.mxu0 %v5096
      %5955 = vmatprep.subr.bf16.mxu0 %v5090
      %5956 = vmatpush1.bf16.msra.mxu0 %v5089
      %5957 = vmatprep.subr.bf16.mxu0 %v5083
      %5958 = vmatpush1.bf16.msra.mxu0 %v5082
      %5959 = vmatprep.subr.bf16.mxu0 %v5076
      %5960 = vmatpush1.bf16.msra.mxu0 %v5075
      %5961 = vmatprep.subr.bf16.mxu0 %v5069
      %5962 = vmatpush1.bf16.msra.mxu0 %v5068
      %5963 = vmatprep.subr.bf16.mxu0 %v5062
      %5964 = vmatpush1.bf16.msra.mxu0 %v5061
      %5965 = vmatprep.subr.bf16.mxu0 %v5055
      %5966 = vmatpush1.bf16.msra.mxu0 %v5054
      %5967 = vmatprep.subr.bf16.mxu0 %v5160
      %5968 = vmatpush2.bf16.msra.mxu0 %v5159
      %5969 = vmatprep.subr.bf16.mxu0 %v5153
      %5970 = vmatpush2.bf16.msra.mxu0 %v5152
      %5971 = vmatprep.subr.bf16.mxu0 %v5146
      %5972 = vmatpush2.bf16.msra.mxu0 %v5145
      %5973 = vmatprep.subr.bf16.mxu0 %v5139
      %5974 = vmatpush2.bf16.msra.mxu0 %v5138
      %5975 = vmatprep.subr.bf16.mxu0 %v5132
      %5976 = vmatpush2.bf16.msra.mxu0 %v5131
      %5977 = vmatprep.subr.bf16.mxu0 %v5125
      %5978 = vmatpush2.bf16.msra.mxu0 %v5124
      %5979 = vmatprep.subr.bf16.mxu0 %v5118
      %5980 = vmatpush2.bf16.msra.mxu0 %v5117
      %5981 = vmatprep.subr.bf16.mxu0 %v5111
      %5982 = vmatpush2.bf16.msra.mxu0 %v5110
      %5983 = vmatprep.mubr.bf16.mxu0 %v3912
      %5984 = vmatmul.mubr.bf16.gmra.mxu0 %v3911
      %v5985 = vpop.f32.mrf.mxu0
      %v5986 = vadd.f32 %v5873, %v5985
      %v5987 = vpop.f32.mrf.mxu0
      %v5988 = vadd.f32 %v5875, %v5987
      %v5989 = vpop.f32.mrf.mxu0
      %v5990 = vadd.f32 %v5877, %v5989
      %v5991 = vpop.f32.mrf.mxu0
      %v5992 = vadd.f32 %v5879, %v5991
      %5993 = vmatprep.mubr.bf16.mxu0 %v3916
      %5994 = vmatmul.mubr.bf16.gmra.mxu0 %v3915
      %v5995 = vpop.f32.mrf.mxu0
      %v5996 = vadd.f32 %v5883, %v5995
      %v5997 = vpop.f32.mrf.mxu0
      %v5998 = vadd.f32 %v5885, %v5997
      %v5999 = vpop.f32.mrf.mxu0
      %v6000 = vadd.f32 %v5887, %v5999
      %v6001 = vpop.f32.mrf.mxu0
      %v6002 = vadd.f32 %v5889, %v6001
      %6003 = vmatprep.mubr.bf16.mxu0 %v3920
      %6004 = vmatmul.mubr.bf16.gmra.mxu0 %v3919
      %v6005 = vpop.f32.mrf.mxu0
      %v6006 = vadd.f32 %v5893, %v6005
      %v6007 = vpop.f32.mrf.mxu0
      %v6008 = vadd.f32 %v5895, %v6007
      %v6009 = vpop.f32.mrf.mxu0
      %v6010 = vadd.f32 %v5897, %v6009
      %v6011 = vpop.f32.mrf.mxu0
      %v6012 = vadd.f32 %v5899, %v6011
      %6013 = vmatprep.mubr.bf16.mxu0 %v3924
      %6014 = vmatmul.mubr.bf16.gmra.mxu0 %v3923
      %v6015 = vpop.f32.mrf.mxu0
      %v6016 = vadd.f32 %v5903, %v6015
      %v6017 = vpop.f32.mrf.mxu0
      %v6018 = vadd.f32 %v5905, %v6017
      %v6019 = vpop.f32.mrf.mxu0
      %v6020 = vadd.f32 %v5907, %v6019
      %v6021 = vpop.f32.mrf.mxu0
      %v6022 = vadd.f32 %v5909, %v6021
      %6023 = vmatprep.mubr.bf16.mxu0 %v3928
      %6024 = vmatmul.mubr.bf16.gmra.mxu0 %v3927
      %v6025 = vpop.f32.mrf.mxu0
      %v6026 = vadd.f32 %v5913, %v6025
      %v6027 = vpop.f32.mrf.mxu0
      %v6028 = vadd.f32 %v5915, %v6027
      %v6029 = vpop.f32.mrf.mxu0
      %v6030 = vadd.f32 %v5917, %v6029
      %v6031 = vpop.f32.mrf.mxu0
      %v6032 = vadd.f32 %v5919, %v6031
      %6033 = vmatprep.mubr.bf16.mxu0 %v3932
      %6034 = vmatmul.mubr.bf16.gmra.mxu0 %v3931
      %v6035 = vpop.f32.mrf.mxu0
      %v6036 = vadd.f32 %v5923, %v6035
      %v6037 = vpop.f32.mrf.mxu0
      %v6038 = vadd.f32 %v5925, %v6037
      %v6039 = vpop.f32.mrf.mxu0
      %v6040 = vadd.f32 %v5927, %v6039
      %v6041 = vpop.f32.mrf.mxu0
      %v6042 = vadd.f32 %v5929, %v6041
      %6043 = vmatprep.mubr.bf16.mxu0 %v3936
      %6044 = vmatmul.mubr.bf16.gmra.mxu0 %v3935
      %v6045 = vpop.f32.mrf.mxu0
      %v6046 = vadd.f32 %v5933, %v6045
      %v6047 = vpop.f32.mrf.mxu0
      %v6048 = vadd.f32 %v5935, %v6047
      %v6049 = vpop.f32.mrf.mxu0
      %v6050 = vadd.f32 %v5937, %v6049
      %v6051 = vpop.f32.mrf.mxu0
      %v6052 = vadd.f32 %v5939, %v6051
      %6053 = vmatprep.mubr.bf16.mxu0 %v3940
      %6054 = vmatmul.mubr.bf16.gmra.mxu0 %v3939
      %v6055 = vpop.f32.mrf.mxu0
      %v6056 = vadd.f32 %v5943, %v6055
      %v6057 = vpop.f32.mrf.mxu0
      %v6058 = vadd.f32 %v5945, %v6057
      %v6059 = vpop.f32.mrf.mxu0
      %v6060 = vadd.f32 %v5947, %v6059
      %v6061 = vpop.f32.mrf.mxu0
      %v6062 = vadd.f32 %v5949, %v6061
      %6063 = vdwg.mxu0
      %6064 = vmatprep.subr.bf16.mxu0 0
      %6065 = vmatpush1.bf16.msra.mxu0 %v4993
      %6066 = vmatprep.subr.bf16.mxu0 0
      %6067 = vmatpush1.bf16.msra.mxu0 %v4986
      %6068 = vmatprep.subr.bf16.mxu0 0
      %6069 = vmatpush1.bf16.msra.mxu0 %v4979
      %6070 = vmatprep.subr.bf16.mxu0 0
      %6071 = vmatpush1.bf16.msra.mxu0 %v4972
      %6072 = vmatprep.subr.bf16.mxu0 0
      %6073 = vmatpush1.bf16.msra.mxu0 %v4965
      %6074 = vmatprep.subr.bf16.mxu0 0
      %6075 = vmatpush1.bf16.msra.mxu0 %v4958
      %6076 = vmatprep.subr.bf16.mxu0 0
      %6077 = vmatpush1.bf16.msra.mxu0 %v4951
      %6078 = vmatprep.subr.bf16.mxu0 0
      %6079 = vmatpush1.bf16.msra.mxu0 %v4944
      %6080 = vmatprep.subr.bf16.mxu0 0
      %6081 = vmatpush2.bf16.msra.mxu0 %v5049
      %6082 = vmatprep.subr.bf16.mxu0 0
      %6083 = vmatpush2.bf16.msra.mxu0 %v5042
      %6084 = vmatprep.subr.bf16.mxu0 0
      %6085 = vmatpush2.bf16.msra.mxu0 %v5035
      %6086 = vmatprep.subr.bf16.mxu0 0
      %6087 = vmatpush2.bf16.msra.mxu0 %v5028
      %6088 = vmatprep.subr.bf16.mxu0 0
      %6089 = vmatpush2.bf16.msra.mxu0 %v5021
      %6090 = vmatprep.subr.bf16.mxu0 0
      %6091 = vmatpush2.bf16.msra.mxu0 %v5014
      %6092 = vmatprep.subr.bf16.mxu0 0
      %6093 = vmatpush2.bf16.msra.mxu0 %v5007
      %6094 = vmatprep.subr.bf16.mxu0 0
      %6095 = vmatpush2.bf16.msra.mxu0 %v5000
      %6096 = vmatprep.mubr.bf16.mxu0 %v3910
      %6097 = vmatmul.mubr.bf16.gmra.mxu0 %v3909
      %v6098 = vpop.f32.mrf.mxu0
      %v6099 = vadd.f32 %v4226, %v6098
      %v6100 = vpop.f32.mrf.mxu0
      %v6101 = vpop.f32.mrf.mxu0
      %v6102 = vadd.f32 %v4226, %v6101
      %v6103 = vpop.f32.mrf.mxu0
      %6104 = vmatprep.mubr.bf16.mxu0 %v3914
      %6105 = vmatmul.mubr.bf16.gmra.mxu0 %v3913
      %v6106 = vpop.f32.mrf.mxu0
      %v6107 = vadd.f32 %v4226, %v6106
      %v6108 = vpop.f32.mrf.mxu0
      %v6109 = vpop.f32.mrf.mxu0
      %v6110 = vadd.f32 %v4226, %v6109
      %v6111 = vpop.f32.mrf.mxu0
      %6112 = vmatprep.mubr.bf16.mxu0 %v3918
      %6113 = vmatmul.mubr.bf16.gmra.mxu0 %v3917
      %v6114 = vpop.f32.mrf.mxu0
      %v6115 = vadd.f32 %v4226, %v6114
      %v6116 = vpop.f32.mrf.mxu0
      %v6117 = vpop.f32.mrf.mxu0
      %v6118 = vadd.f32 %v4226, %v6117
      %v6119 = vpop.f32.mrf.mxu0
      %6120 = vmatprep.mubr.bf16.mxu0 %v3922
      %6121 = vmatmul.mubr.bf16.gmra.mxu0 %v3921
      %v6122 = vpop.f32.mrf.mxu0
      %v6123 = vadd.f32 %v4226, %v6122
      %v6124 = vpop.f32.mrf.mxu0
      %v6125 = vpop.f32.mrf.mxu0
      %v6126 = vadd.f32 %v4226, %v6125
      %v6127 = vpop.f32.mrf.mxu0
      %6128 = vmatprep.mubr.bf16.mxu0 %v3926
      %6129 = vmatmul.mubr.bf16.gmra.mxu0 %v3925
      %v6130 = vpop.f32.mrf.mxu0
      %v6131 = vadd.f32 %v4226, %v6130
      %v6132 = vpop.f32.mrf.mxu0
      %v6133 = vpop.f32.mrf.mxu0
      %v6134 = vadd.f32 %v4226, %v6133
      %v6135 = vpop.f32.mrf.mxu0
      %6136 = vmatprep.mubr.bf16.mxu0 %v3930
      %6137 = vmatmul.mubr.bf16.gmra.mxu0 %v3929
      %v6138 = vpop.f32.mrf.mxu0
      %v6139 = vadd.f32 %v4226, %v6138
      %v6140 = vpop.f32.mrf.mxu0
      %v6141 = vpop.f32.mrf.mxu0
      %v6142 = vadd.f32 %v4226, %v6141
      %v6143 = vpop.f32.mrf.mxu0
      %6144 = vmatprep.mubr.bf16.mxu0 %v3934
      %6145 = vmatmul.mubr.bf16.gmra.mxu0 %v3933
      %v6146 = vpop.f32.mrf.mxu0
      %v6147 = vadd.f32 %v4226, %v6146
      %v6148 = vpop.f32.mrf.mxu0
      %v6149 = vpop.f32.mrf.mxu0
      %v6150 = vadd.f32 %v4226, %v6149
      %v6151 = vpop.f32.mrf.mxu0
      %6152 = vmatprep.mubr.bf16.mxu0 %v3938
      %6153 = vmatmul.mubr.bf16.gmra.mxu0 %v3937
      %v6154 = vpop.f32.mrf.mxu0
      %v6155 = vadd.f32 %v4226, %v6154
      %v6156 = vpop.f32.mrf.mxu0
      %v6157 = vpop.f32.mrf.mxu0
      %v6158 = vadd.f32 %v4226, %v6157
      %v6159 = vpop.f32.mrf.mxu0
      %6160 = vdwg.mxu0
      %6161 = vmatprep.subr.bf16.mxu0 0
      %6162 = vmatpush1.bf16.msra.mxu0 %v5105
      %6163 = vmatprep.subr.bf16.mxu0 0
      %6164 = vmatpush1.bf16.msra.mxu0 %v5098
      %6165 = vmatprep.subr.bf16.mxu0 0
      %6166 = vmatpush1.bf16.msra.mxu0 %v5091
      %6167 = vmatprep.subr.bf16.mxu0 0
      %6168 = vmatpush1.bf16.msra.mxu0 %v5084
      %6169 = vmatprep.subr.bf16.mxu0 0
      %6170 = vmatpush1.bf16.msra.mxu0 %v5077
      %6171 = vmatprep.subr.bf16.mxu0 0
      %6172 = vmatpush1.bf16.msra.mxu0 %v5070
      %6173 = vmatprep.subr.bf16.mxu0 0
      %6174 = vmatpush1.bf16.msra.mxu0 %v5063
      %6175 = vmatprep.subr.bf16.mxu0 0
      %6176 = vmatpush1.bf16.msra.mxu0 %v5056
      %6177 = vmatprep.subr.bf16.mxu0 0
      %6178 = vmatpush2.bf16.msra.mxu0 %v5161
      %6179 = vmatprep.subr.bf16.mxu0 0
      %6180 = vmatpush2.bf16.msra.mxu0 %v5154
      %6181 = vmatprep.subr.bf16.mxu0 0
      %6182 = vmatpush2.bf16.msra.mxu0 %v5147
      %6183 = vmatprep.subr.bf16.mxu0 0
      %6184 = vmatpush2.bf16.msra.mxu0 %v5140
      %6185 = vmatprep.subr.bf16.mxu0 0
      %6186 = vmatpush2.bf16.msra.mxu0 %v5133
      %6187 = vmatprep.subr.bf16.mxu0 0
      %6188 = vmatpush2.bf16.msra.mxu0 %v5126
      %6189 = vmatprep.subr.bf16.mxu0 0
      %6190 = vmatpush2.bf16.msra.mxu0 %v5119
      %6191 = vmatprep.subr.bf16.mxu0 0
      %6192 = vmatpush2.bf16.msra.mxu0 %v5112
      %6193 = vmatprep.mubr.bf16.mxu0 %v3912
      %6194 = vmatmul.mubr.bf16.gmra.mxu0 %v3911
      %v6195 = vpop.f32.mrf.mxu0
      %v6196 = vadd.f32 %v6099, %v6195
      %v6197 = vpop.f32.mrf.mxu0
      %v6198 = vpop.f32.mrf.mxu0
      %v6199 = vadd.f32 %v6102, %v6198
      %v6200 = vpop.f32.mrf.mxu0
      %6201 = vmatprep.mubr.bf16.mxu0 %v3916
      %6202 = vmatmul.mubr.bf16.gmra.mxu0 %v3915
      %v6203 = vpop.f32.mrf.mxu0
      %v6204 = vadd.f32 %v6107, %v6203
      %v6205 = vpop.f32.mrf.mxu0
      %v6206 = vpop.f32.mrf.mxu0
      %v6207 = vadd.f32 %v6110, %v6206
      %v6208 = vpop.f32.mrf.mxu0
      %6209 = vmatprep.mubr.bf16.mxu0 %v3920
      %6210 = vmatmul.mubr.bf16.gmra.mxu0 %v3919
      %v6211 = vpop.f32.mrf.mxu0
      %v6212 = vadd.f32 %v6115, %v6211
      %v6213 = vpop.f32.mrf.mxu0
      %v6214 = vpop.f32.mrf.mxu0
      %v6215 = vadd.f32 %v6118, %v6214
      %v6216 = vpop.f32.mrf.mxu0
      %6217 = vmatprep.mubr.bf16.mxu0 %v3924
      %6218 = vmatmul.mubr.bf16.gmra.mxu0 %v3923
      %v6219 = vpop.f32.mrf.mxu0
      %v6220 = vadd.f32 %v6123, %v6219
      %v6221 = vpop.f32.mrf.mxu0
      %v6222 = vpop.f32.mrf.mxu0
      %v6223 = vadd.f32 %v6126, %v6222
      %v6224 = vpop.f32.mrf.mxu0
      %6225 = vmatprep.mubr.bf16.mxu0 %v3928
      %6226 = vmatmul.mubr.bf16.gmra.mxu0 %v3927
      %v6227 = vpop.f32.mrf.mxu0
      %v6228 = vadd.f32 %v6131, %v6227
      %v6229 = vpop.f32.mrf.mxu0
      %v6230 = vpop.f32.mrf.mxu0
      %v6231 = vadd.f32 %v6134, %v6230
      %v6232 = vpop.f32.mrf.mxu0
      %6233 = vmatprep.mubr.bf16.mxu0 %v3932
      %6234 = vmatmul.mubr.bf16.gmra.mxu0 %v3931
      %v6235 = vpop.f32.mrf.mxu0
      %v6236 = vadd.f32 %v6139, %v6235
      %v6237 = vpop.f32.mrf.mxu0
      %v6238 = vpop.f32.mrf.mxu0
      %v6239 = vadd.f32 %v6142, %v6238
      %v6240 = vpop.f32.mrf.mxu0
      %6241 = vmatprep.mubr.bf16.mxu0 %v3936
      %6242 = vmatmul.mubr.bf16.gmra.mxu0 %v3935
      %v6243 = vpop.f32.mrf.mxu0
      %v6244 = vadd.f32 %v6147, %v6243
      %v6245 = vpop.f32.mrf.mxu0
      %v6246 = vpop.f32.mrf.mxu0
      %v6247 = vadd.f32 %v6150, %v6246
      %v6248 = vpop.f32.mrf.mxu0
      %6249 = vmatprep.mubr.bf16.mxu0 %v3940
      %6250 = vmatmul.mubr.bf16.gmra.mxu0 %v3939
      %v6251 = vpop.f32.mrf.mxu0
      %v6252 = vadd.f32 %v6155, %v6251
      %v6253 = vpop.f32.mrf.mxu0
      %v6254 = vpop.f32.mrf.mxu0
      %v6255 = vadd.f32 %v6158, %v6254
      %v6256 = vpop.f32.mrf.mxu0
      %6257 = vdwg.mxu0
      %v6258 = vxor.u32 %v5534, 2147483648
      %v6259 = vxor.u32 %v5536, 2147483648
      %v6260 = vxor.u32 %v5760, 2147483648
      %v6261 = vxor.u32 %v5762, 2147483648
      %v6262 = vxor.u32 %v5986, 2147483648
      %v6263 = vxor.u32 %v5988, 2147483648
      %v6264 = vxor.u32 %v6196, 2147483648
      %v6265 = vxor.u32 %v5538, 2147483648
      %v6266 = vxor.u32 %v5540, 2147483648
      %v6267 = vxor.u32 %v5764, 2147483648
      %v6268 = vxor.u32 %v5766, 2147483648
      %v6269 = vxor.u32 %v5990, 2147483648
      %v6270 = vxor.u32 %v5992, 2147483648
      %v6271 = vxor.u32 %v6199, 2147483648
      %v6272 = vxor.u32 %v5544, 2147483648
      %v6273 = vxor.u32 %v5546, 2147483648
      %v6274 = vxor.u32 %v5770, 2147483648
      %v6275 = vxor.u32 %v5772, 2147483648
      %v6276 = vxor.u32 %v5996, 2147483648
      %v6277 = vxor.u32 %v5998, 2147483648
      %v6278 = vxor.u32 %v6204, 2147483648
      %v6279 = vxor.u32 %v5548, 2147483648
      %v6280 = vxor.u32 %v5550, 2147483648
      %v6281 = vxor.u32 %v5774, 2147483648
      %v6282 = vxor.u32 %v5776, 2147483648
      %v6283 = vxor.u32 %v6000, 2147483648
      %v6284 = vxor.u32 %v6002, 2147483648
      %v6285 = vxor.u32 %v6207, 2147483648
      %v6286 = vxor.u32 %v5554, 2147483648
      %v6287 = vxor.u32 %v5556, 2147483648
      %v6288 = vxor.u32 %v5780, 2147483648
      %v6289 = vxor.u32 %v5782, 2147483648
      %v6290 = vxor.u32 %v6006, 2147483648
      %v6291 = vxor.u32 %v6008, 2147483648
      %v6292 = vxor.u32 %v6212, 2147483648
      %v6293 = vxor.u32 %v5558, 2147483648
      %v6294 = vxor.u32 %v5560, 2147483648
      %v6295 = vxor.u32 %v5784, 2147483648
      %v6296 = vxor.u32 %v5786, 2147483648
      %v6297 = vxor.u32 %v6010, 2147483648
      %v6298 = vxor.u32 %v6012, 2147483648
      %v6299 = vxor.u32 %v6215, 2147483648
      %v6300 = vxor.u32 %v5564, 2147483648
      %v6301 = vxor.u32 %v5566, 2147483648
      %v6302 = vxor.u32 %v5790, 2147483648
      %v6303 = vxor.u32 %v5792, 2147483648
      %v6304 = vxor.u32 %v6016, 2147483648
      %v6305 = vxor.u32 %v6018, 2147483648
      %v6306 = vxor.u32 %v6220, 2147483648
      %v6307 = vxor.u32 %v5568, 2147483648
      %v6308 = vxor.u32 %v5570, 2147483648
      %v6309 = vxor.u32 %v5794, 2147483648
      %v6310 = vxor.u32 %v5796, 2147483648
      %v6311 = vxor.u32 %v6020, 2147483648
      %v6312 = vxor.u32 %v6022, 2147483648
      %v6313 = vxor.u32 %v6223, 2147483648
      %v6314 = vxor.u32 %v5574, 2147483648
      %v6315 = vxor.u32 %v5576, 2147483648
      %v6316 = vxor.u32 %v5800, 2147483648
      %v6317 = vxor.u32 %v5802, 2147483648
      %v6318 = vxor.u32 %v6026, 2147483648
      %v6319 = vxor.u32 %v6028, 2147483648
      %v6320 = vxor.u32 %v6228, 2147483648
      %v6321 = vxor.u32 %v5578, 2147483648
      %v6322 = vxor.u32 %v5580, 2147483648
      %v6323 = vxor.u32 %v5804, 2147483648
      %v6324 = vxor.u32 %v5806, 2147483648
      %v6325 = vxor.u32 %v6030, 2147483648
      %v6326 = vxor.u32 %v6032, 2147483648
      %v6327 = vxor.u32 %v6231, 2147483648
      %v6328 = vxor.u32 %v5584, 2147483648
      %v6329 = vxor.u32 %v5586, 2147483648
      %v6330 = vxor.u32 %v5810, 2147483648
      %v6331 = vxor.u32 %v5812, 2147483648
      %v6332 = vxor.u32 %v6036, 2147483648
      %v6333 = vxor.u32 %v6038, 2147483648
      %v6334 = vxor.u32 %v6236, 2147483648
      %v6335 = vxor.u32 %v5588, 2147483648
      %v6336 = vxor.u32 %v5590, 2147483648
      %v6337 = vxor.u32 %v5814, 2147483648
      %v6338 = vxor.u32 %v5816, 2147483648
      %v6339 = vxor.u32 %v6040, 2147483648
      %v6340 = vxor.u32 %v6042, 2147483648
      %v6341 = vxor.u32 %v6239, 2147483648
      %v6342 = vxor.u32 %v5594, 2147483648
      %v6343 = vxor.u32 %v5596, 2147483648
      %v6344 = vxor.u32 %v5820, 2147483648
      %v6345 = vxor.u32 %v5822, 2147483648
      %v6346 = vxor.u32 %v6046, 2147483648
      %v6347 = vxor.u32 %v6048, 2147483648
      %v6348 = vxor.u32 %v6244, 2147483648
      %v6349 = vxor.u32 %v5598, 2147483648
      %v6350 = vxor.u32 %v5600, 2147483648
      %v6351 = vxor.u32 %v5824, 2147483648
      %v6352 = vxor.u32 %v5826, 2147483648
      %v6353 = vxor.u32 %v6050, 2147483648
      %v6354 = vxor.u32 %v6052, 2147483648
      %v6355 = vxor.u32 %v6247, 2147483648
      %v6356 = vxor.u32 %v5604, 2147483648
      %v6357 = vxor.u32 %v5606, 2147483648
      %v6358 = vxor.u32 %v5830, 2147483648
      %v6359 = vxor.u32 %v5832, 2147483648
      %v6360 = vxor.u32 %v6056, 2147483648
      %v6361 = vxor.u32 %v6058, 2147483648
      %v6362 = vxor.u32 %v6252, 2147483648
      %v6363 = vxor.u32 %v5608, 2147483648
      %v6364 = vxor.u32 %v5610, 2147483648
      %v6365 = vxor.u32 %v5834, 2147483648
      %v6366 = vxor.u32 %v5836, 2147483648
      %v6367 = vxor.u32 %v6060, 2147483648
      %v6368 = vxor.u32 %v6062, 2147483648
      %v6369 = vxor.u32 %v6255, 2147483648
      %v6370 = vmul.f32 %v6258, 1.442695
      %v6371 = vpow.pop %v6370
      %v6372 = vmul.f32 %v6259, 1.442695
      %v6373 = vpow.pop %v6372
      %v6374 = vmul.f32 %v6260, 1.442695
      %v6375 = vpow.pop %v6374
      %v6376 = vmul.f32 %v6261, 1.442695
      %v6377 = vpow.pop %v6376
      %v6378 = vmul.f32 %v6262, 1.442695
      %v6379 = vpow.pop %v6378
      %v6380 = vmul.f32 %v6263, 1.442695
      %v6381 = vpow.pop %v6380
      %v6382 = vmul.f32 %v6264, 1.442695
      %v6383 = vpow.pop %v6382
      %v6384 = vmul.f32 %v6265, 1.442695
      %v6385 = vpow.pop %v6384
      %v6386 = vmul.f32 %v6266, 1.442695
      %v6387 = vpow.pop %v6386
      %v6388 = vmul.f32 %v6267, 1.442695
      %v6389 = vpow.pop %v6388
      %v6390 = vmul.f32 %v6268, 1.442695
      %v6391 = vpow.pop %v6390
      %v6392 = vmul.f32 %v6269, 1.442695
      %v6393 = vpow.pop %v6392
      %v6394 = vmul.f32 %v6270, 1.442695
      %v6395 = vpow.pop %v6394
      %v6396 = vmul.f32 %v6271, 1.442695
      %v6397 = vpow.pop %v6396
      %v6398 = vmul.f32 %v6272, 1.442695
      %v6399 = vpow.pop %v6398
      %v6400 = vmul.f32 %v6273, 1.442695
      %v6401 = vpow.pop %v6400
      %v6402 = vmul.f32 %v6274, 1.442695
      %v6403 = vpow.pop %v6402
      %v6404 = vmul.f32 %v6275, 1.442695
      %v6405 = vpow.pop %v6404
      %v6406 = vmul.f32 %v6276, 1.442695
      %v6407 = vpow.pop %v6406
      %v6408 = vmul.f32 %v6277, 1.442695
      %v6409 = vpow.pop %v6408
      %v6410 = vmul.f32 %v6278, 1.442695
      %v6411 = vpow.pop %v6410
      %v6412 = vmul.f32 %v6279, 1.442695
      %v6413 = vpow.pop %v6412
      %v6414 = vmul.f32 %v6280, 1.442695
      %v6415 = vpow.pop %v6414
      %v6416 = vmul.f32 %v6281, 1.442695
      %v6417 = vpow.pop %v6416
      %v6418 = vmul.f32 %v6282, 1.442695
      %v6419 = vpow.pop %v6418
      %v6420 = vmul.f32 %v6283, 1.442695
      %v6421 = vpow.pop %v6420
      %v6422 = vmul.f32 %v6284, 1.442695
      %v6423 = vpow.pop %v6422
      %v6424 = vmul.f32 %v6285, 1.442695
      %v6425 = vpow.pop %v6424
      %v6426 = vmul.f32 %v6286, 1.442695
      %v6427 = vpow.pop %v6426
      %v6428 = vmul.f32 %v6287, 1.442695
      %v6429 = vpow.pop %v6428
      %v6430 = vmul.f32 %v6288, 1.442695
      %v6431 = vpow.pop %v6430
      %v6432 = vmul.f32 %v6289, 1.442695
      %v6433 = vpow.pop %v6432
      %v6434 = vmul.f32 %v6290, 1.442695
      %v6435 = vpow.pop %v6434
      %v6436 = vmul.f32 %v6291, 1.442695
      %v6437 = vpow.pop %v6436
      %v6438 = vmul.f32 %v6292, 1.442695
      %v6439 = vpow.pop %v6438
      %v6440 = vmul.f32 %v6293, 1.442695
      %v6441 = vpow.pop %v6440
      %v6442 = vmul.f32 %v6294, 1.442695
      %v6443 = vpow.pop %v6442
      %v6444 = vmul.f32 %v6295, 1.442695
      %v6445 = vpow.pop %v6444
      %v6446 = vmul.f32 %v6296, 1.442695
      %v6447 = vpow.pop %v6446
      %v6448 = vmul.f32 %v6297, 1.442695
      %v6449 = vpow.pop %v6448
      %v6450 = vmul.f32 %v6298, 1.442695
      %v6451 = vpow.pop %v6450
      %v6452 = vmul.f32 %v6299, 1.442695
      %v6453 = vpow.pop %v6452
      %v6454 = vmul.f32 %v6300, 1.442695
      %v6455 = vpow.pop %v6454
      %v6456 = vmul.f32 %v6301, 1.442695
      %v6457 = vpow.pop %v6456
      %v6458 = vmul.f32 %v6302, 1.442695
      %v6459 = vpow.pop %v6458
      %v6460 = vmul.f32 %v6303, 1.442695
      %v6461 = vpow.pop %v6460
      %v6462 = vmul.f32 %v6304, 1.442695
      %v6463 = vpow.pop %v6462
      %v6464 = vmul.f32 %v6305, 1.442695
      %v6465 = vpow.pop %v6464
      %v6466 = vmul.f32 %v6306, 1.442695
      %v6467 = vpow.pop %v6466
      %v6468 = vmul.f32 %v6307, 1.442695
      %v6469 = vpow.pop %v6468
      %v6470 = vmul.f32 %v6308, 1.442695
      %v6471 = vpow.pop %v6470
      %v6472 = vmul.f32 %v6309, 1.442695
      %v6473 = vpow.pop %v6472
      %v6474 = vmul.f32 %v6310, 1.442695
      %v6475 = vpow.pop %v6474
      %v6476 = vmul.f32 %v6311, 1.442695
      %v6477 = vpow.pop %v6476
      %v6478 = vmul.f32 %v6312, 1.442695
      %v6479 = vpow.pop %v6478
      %v6480 = vmul.f32 %v6313, 1.442695
      %v6481 = vpow.pop %v6480
      %v6482 = vmul.f32 %v6314, 1.442695
      %v6483 = vpow.pop %v6482
      %v6484 = vmul.f32 %v6315, 1.442695
      %v6485 = vpow.pop %v6484
      %v6486 = vmul.f32 %v6316, 1.442695
      %v6487 = vpow.pop %v6486
      %v6488 = vmul.f32 %v6317, 1.442695
      %v6489 = vpow.pop %v6488
      %v6490 = vmul.f32 %v6318, 1.442695
      %v6491 = vpow.pop %v6490
      %v6492 = vmul.f32 %v6319, 1.442695
      %v6493 = vpow.pop %v6492
      %v6494 = vmul.f32 %v6320, 1.442695
      %v6495 = vpow.pop %v6494
      %v6496 = vmul.f32 %v6321, 1.442695
      %v6497 = vpow.pop %v6496
      %v6498 = vmul.f32 %v6322, 1.442695
      %v6499 = vpow.pop %v6498
      %v6500 = vmul.f32 %v6323, 1.442695
      %v6501 = vpow.pop %v6500
      %v6502 = vmul.f32 %v6324, 1.442695
      %v6503 = vpow.pop %v6502
      %v6504 = vmul.f32 %v6325, 1.442695
      %v6505 = vpow.pop %v6504
      %v6506 = vmul.f32 %v6326, 1.442695
      %v6507 = vpow.pop %v6506
      %v6508 = vmul.f32 %v6327, 1.442695
      %v6509 = vpow.pop %v6508
      %v6510 = vmul.f32 %v6328, 1.442695
      %v6511 = vpow.pop %v6510
      %v6512 = vmul.f32 %v6329, 1.442695
      %v6513 = vpow.pop %v6512
      %v6514 = vmul.f32 %v6330, 1.442695
      %v6515 = vpow.pop %v6514
      %v6516 = vmul.f32 %v6331, 1.442695
      %v6517 = vpow.pop %v6516
      %v6518 = vmul.f32 %v6332, 1.442695
      %v6519 = vpow.pop %v6518
      %v6520 = vmul.f32 %v6333, 1.442695
      %v6521 = vpow.pop %v6520
      %v6522 = vmul.f32 %v6334, 1.442695
      %v6523 = vpow.pop %v6522
      %v6524 = vmul.f32 %v6335, 1.442695
      %v6525 = vpow.pop %v6524
      %v6526 = vmul.f32 %v6336, 1.442695
      %v6527 = vpow.pop %v6526
      %v6528 = vmul.f32 %v6337, 1.442695
      %v6529 = vpow.pop %v6528
      %v6530 = vmul.f32 %v6338, 1.442695
      %v6531 = vpow.pop %v6530
      %v6532 = vmul.f32 %v6339, 1.442695
      %v6533 = vpow.pop %v6532
      %v6534 = vmul.f32 %v6340, 1.442695
      %v6535 = vpow.pop %v6534
      %v6536 = vmul.f32 %v6341, 1.442695
      %v6537 = vpow.pop %v6536
      %v6538 = vmul.f32 %v6342, 1.442695
      %v6539 = vpow.pop %v6538
      %v6540 = vmul.f32 %v6343, 1.442695
      %v6541 = vpow.pop %v6540
      %v6542 = vmul.f32 %v6344, 1.442695
      %v6543 = vpow.pop %v6542
      %v6544 = vmul.f32 %v6345, 1.442695
      %v6545 = vpow.pop %v6544
      %v6546 = vmul.f32 %v6346, 1.442695
      %v6547 = vpow.pop %v6546
      %v6548 = vmul.f32 %v6347, 1.442695
      %v6549 = vpow.pop %v6548
      %v6550 = vmul.f32 %v6348, 1.442695
      %v6551 = vpow.pop %v6550
      %v6552 = vmul.f32 %v6349, 1.442695
      %v6553 = vpow.pop %v6552
      %v6554 = vmul.f32 %v6350, 1.442695
      %v6555 = vpow.pop %v6554
      %v6556 = vmul.f32 %v6351, 1.442695
      %v6557 = vpow.pop %v6556
      %v6558 = vmul.f32 %v6352, 1.442695
      %v6559 = vpow.pop %v6558
      %v6560 = vmul.f32 %v6353, 1.442695
      %v6561 = vpow.pop %v6560
      %v6562 = vmul.f32 %v6354, 1.442695
      %v6563 = vpow.pop %v6562
      %v6564 = vmul.f32 %v6355, 1.442695
      %v6565 = vpow.pop %v6564
      %v6566 = vmul.f32 %v6356, 1.442695
      %v6567 = vpow.pop %v6566
      %v6568 = vmul.f32 %v6357, 1.442695
      %v6569 = vpow.pop %v6568
      %v6570 = vmul.f32 %v6358, 1.442695
      %v6571 = vpow.pop %v6570
      %v6572 = vmul.f32 %v6359, 1.442695
      %v6573 = vpow.pop %v6572
      %v6574 = vmul.f32 %v6360, 1.442695
      %v6575 = vpow.pop %v6574
      %v6576 = vmul.f32 %v6361, 1.442695
      %v6577 = vpow.pop %v6576
      %v6578 = vmul.f32 %v6362, 1.442695
      %v6579 = vpow.pop %v6578
      %v6580 = vmul.f32 %v6363, 1.442695
      %v6581 = vpow.pop %v6580
      %v6582 = vmul.f32 %v6364, 1.442695
      %v6583 = vpow.pop %v6582
      %v6584 = vmul.f32 %v6365, 1.442695
      %v6585 = vpow.pop %v6584
      %v6586 = vmul.f32 %v6366, 1.442695
      %v6587 = vpow.pop %v6586
      %v6588 = vmul.f32 %v6367, 1.442695
      %v6589 = vpow.pop %v6588
      %v6590 = vmul.f32 %v6368, 1.442695
      %v6591 = vpow.pop %v6590
      %v6592 = vmul.f32 %v6369, 1.442695
      %v6593 = vpow.pop %v6592
      %v6594 = vadd.f32 %v6371, 1.0
      %v6595 = vadd.f32 %v6373, 1.0
      %v6596 = vadd.f32 %v6375, 1.0
      %v6597 = vadd.f32 %v6377, 1.0
      %v6598 = vadd.f32 %v6379, 1.0
      %v6599 = vadd.f32 %v6381, 1.0
      %v6600 = vadd.f32 %v6383, 1.0
      %v6601 = vadd.f32 %v6385, 1.0
      %v6602 = vadd.f32 %v6387, 1.0
      %v6603 = vadd.f32 %v6389, 1.0
      %v6604 = vadd.f32 %v6391, 1.0
      %v6605 = vadd.f32 %v6393, 1.0
      %v6606 = vadd.f32 %v6395, 1.0
      %v6607 = vadd.f32 %v6397, 1.0
      %v6608 = vadd.f32 %v6399, 1.0
      %v6609 = vadd.f32 %v6401, 1.0
      %v6610 = vadd.f32 %v6403, 1.0
      %v6611 = vadd.f32 %v6405, 1.0
      %v6612 = vadd.f32 %v6407, 1.0
      %v6613 = vadd.f32 %v6409, 1.0
      %v6614 = vadd.f32 %v6411, 1.0
      %v6615 = vadd.f32 %v6413, 1.0
      %v6616 = vadd.f32 %v6415, 1.0
      %v6617 = vadd.f32 %v6417, 1.0
      %v6618 = vadd.f32 %v6419, 1.0
      %v6619 = vadd.f32 %v6421, 1.0
      %v6620 = vadd.f32 %v6423, 1.0
      %v6621 = vadd.f32 %v6425, 1.0
      %v6622 = vadd.f32 %v6427, 1.0
      %v6623 = vadd.f32 %v6429, 1.0
      %v6624 = vadd.f32 %v6431, 1.0
      %v6625 = vadd.f32 %v6433, 1.0
      %v6626 = vadd.f32 %v6435, 1.0
      %v6627 = vadd.f32 %v6437, 1.0
      %v6628 = vadd.f32 %v6439, 1.0
      %v6629 = vadd.f32 %v6441, 1.0
      %v6630 = vadd.f32 %v6443, 1.0
      %v6631 = vadd.f32 %v6445, 1.0
      %v6632 = vadd.f32 %v6447, 1.0
      %v6633 = vadd.f32 %v6449, 1.0
      %v6634 = vadd.f32 %v6451, 1.0
      %v6635 = vadd.f32 %v6453, 1.0
      %v6636 = vadd.f32 %v6455, 1.0
      %v6637 = vadd.f32 %v6457, 1.0
      %v6638 = vadd.f32 %v6459, 1.0
      %v6639 = vadd.f32 %v6461, 1.0
      %v6640 = vadd.f32 %v6463, 1.0
      %v6641 = vadd.f32 %v6465, 1.0
      %v6642 = vadd.f32 %v6467, 1.0
      %v6643 = vadd.f32 %v6469, 1.0
      %v6644 = vadd.f32 %v6471, 1.0
      %v6645 = vadd.f32 %v6473, 1.0
      %v6646 = vadd.f32 %v6475, 1.0
      %v6647 = vadd.f32 %v6477, 1.0
      %v6648 = vadd.f32 %v6479, 1.0
      %v6649 = vadd.f32 %v6481, 1.0
      %v6650 = vadd.f32 %v6483, 1.0
      %v6651 = vadd.f32 %v6485, 1.0
      %v6652 = vadd.f32 %v6487, 1.0
      %v6653 = vadd.f32 %v6489, 1.0
      %v6654 = vadd.f32 %v6491, 1.0
      %v6655 = vadd.f32 %v6493, 1.0
      %v6656 = vadd.f32 %v6495, 1.0
      %v6657 = vadd.f32 %v6497, 1.0
      %v6658 = vadd.f32 %v6499, 1.0
      %v6659 = vadd.f32 %v6501, 1.0
      %v6660 = vadd.f32 %v6503, 1.0
      %v6661 = vadd.f32 %v6505, 1.0
      %v6662 = vadd.f32 %v6507, 1.0
      %v6663 = vadd.f32 %v6509, 1.0
      %v6664 = vadd.f32 %v6511, 1.0
      %v6665 = vadd.f32 %v6513, 1.0
      %v6666 = vadd.f32 %v6515, 1.0
      %v6667 = vadd.f32 %v6517, 1.0
      %v6668 = vadd.f32 %v6519, 1.0
      %v6669 = vadd.f32 %v6521, 1.0
      %v6670 = vadd.f32 %v6523, 1.0
      %v6671 = vadd.f32 %v6525, 1.0
      %v6672 = vadd.f32 %v6527, 1.0
      %v6673 = vadd.f32 %v6529, 1.0
      %v6674 = vadd.f32 %v6531, 1.0
      %v6675 = vadd.f32 %v6533, 1.0
      %v6676 = vadd.f32 %v6535, 1.0
      %v6677 = vadd.f32 %v6537, 1.0
      %v6678 = vadd.f32 %v6539, 1.0
      %v6679 = vadd.f32 %v6541, 1.0
      %v6680 = vadd.f32 %v6543, 1.0
      %v6681 = vadd.f32 %v6545, 1.0
      %v6682 = vadd.f32 %v6547, 1.0
      %v6683 = vadd.f32 %v6549, 1.0
      %v6684 = vadd.f32 %v6551, 1.0
      %v6685 = vadd.f32 %v6553, 1.0
      %v6686 = vadd.f32 %v6555, 1.0
      %v6687 = vadd.f32 %v6557, 1.0
      %v6688 = vadd.f32 %v6559, 1.0
      %v6689 = vadd.f32 %v6561, 1.0
      %v6690 = vadd.f32 %v6563, 1.0
      %v6691 = vadd.f32 %v6565, 1.0
      %v6692 = vadd.f32 %v6567, 1.0
      %v6693 = vadd.f32 %v6569, 1.0
      %v6694 = vadd.f32 %v6571, 1.0
      %v6695 = vadd.f32 %v6573, 1.0
      %v6696 = vadd.f32 %v6575, 1.0
      %v6697 = vadd.f32 %v6577, 1.0
      %v6698 = vadd.f32 %v6579, 1.0
      %v6699 = vadd.f32 %v6581, 1.0
      %v6700 = vadd.f32 %v6583, 1.0
      %v6701 = vadd.f32 %v6585, 1.0
      %v6702 = vadd.f32 %v6587, 1.0
      %v6703 = vadd.f32 %v6589, 1.0
      %v6704 = vadd.f32 %v6591, 1.0
      %v6705 = vadd.f32 %v6593, 1.0
      %v6706 = vrcp.pop %v6594
      %v6707 = vmul.f32 1.0, %v6706
      %v6708 = vrcp.pop %v6595
      %v6709 = vmul.f32 1.0, %v6708
      %v6710 = vrcp.pop %v6596
      %v6711 = vmul.f32 1.0, %v6710
      %v6712 = vrcp.pop %v6597
      %v6713 = vmul.f32 1.0, %v6712
      %v6714 = vrcp.pop %v6598
      %v6715 = vmul.f32 1.0, %v6714
      %v6716 = vrcp.pop %v6599
      %v6717 = vmul.f32 1.0, %v6716
      %v6718 = vrcp.pop %v6600
      %v6719 = vmul.f32 1.0, %v6718
      %v6720 = vrcp.pop %v6601
      %v6721 = vmul.f32 1.0, %v6720
      %v6722 = vrcp.pop %v6602
      %v6723 = vmul.f32 1.0, %v6722
      %v6724 = vrcp.pop %v6603
      %v6725 = vmul.f32 1.0, %v6724
      %v6726 = vrcp.pop %v6604
      %v6727 = vmul.f32 1.0, %v6726
      %v6728 = vrcp.pop %v6605
      %v6729 = vmul.f32 1.0, %v6728
      %v6730 = vrcp.pop %v6606
      %v6731 = vmul.f32 1.0, %v6730
      %v6732 = vrcp.pop %v6607
      %v6733 = vmul.f32 1.0, %v6732
      %v6734 = vrcp.pop %v6608
      %v6735 = vmul.f32 1.0, %v6734
      %v6736 = vrcp.pop %v6609
      %v6737 = vmul.f32 1.0, %v6736
      %v6738 = vrcp.pop %v6610
      %v6739 = vmul.f32 1.0, %v6738
      %v6740 = vrcp.pop %v6611
      %v6741 = vmul.f32 1.0, %v6740
      %v6742 = vrcp.pop %v6612
      %v6743 = vmul.f32 1.0, %v6742
      %v6744 = vrcp.pop %v6613
      %v6745 = vmul.f32 1.0, %v6744
      %v6746 = vrcp.pop %v6614
      %v6747 = vmul.f32 1.0, %v6746
      %v6748 = vrcp.pop %v6615
      %v6749 = vmul.f32 1.0, %v6748
      %v6750 = vrcp.pop %v6616
      %v6751 = vmul.f32 1.0, %v6750
      %v6752 = vrcp.pop %v6617
      %v6753 = vmul.f32 1.0, %v6752
      %v6754 = vrcp.pop %v6618
      %v6755 = vmul.f32 1.0, %v6754
      %v6756 = vrcp.pop %v6619
      %v6757 = vmul.f32 1.0, %v6756
      %v6758 = vrcp.pop %v6620
      %v6759 = vmul.f32 1.0, %v6758
      %v6760 = vrcp.pop %v6621
      %v6761 = vmul.f32 1.0, %v6760
      %v6762 = vrcp.pop %v6622
      %v6763 = vmul.f32 1.0, %v6762
      %v6764 = vrcp.pop %v6623
      %v6765 = vmul.f32 1.0, %v6764
      %v6766 = vrcp.pop %v6624
      %v6767 = vmul.f32 1.0, %v6766
      %v6768 = vrcp.pop %v6625
      %v6769 = vmul.f32 1.0, %v6768
      %v6770 = vrcp.pop %v6626
      %v6771 = vmul.f32 1.0, %v6770
      %v6772 = vrcp.pop %v6627
      %v6773 = vmul.f32 1.0, %v6772
      %v6774 = vrcp.pop %v6628
      %v6775 = vmul.f32 1.0, %v6774
      %v6776 = vrcp.pop %v6629
      %v6777 = vmul.f32 1.0, %v6776
      %v6778 = vrcp.pop %v6630
      %v6779 = vmul.f32 1.0, %v6778
      %v6780 = vrcp.pop %v6631
      %v6781 = vmul.f32 1.0, %v6780
      %v6782 = vrcp.pop %v6632
      %v6783 = vmul.f32 1.0, %v6782
      %v6784 = vrcp.pop %v6633
      %v6785 = vmul.f32 1.0, %v6784
      %v6786 = vrcp.pop %v6634
      %v6787 = vmul.f32 1.0, %v6786
      %v6788 = vrcp.pop %v6635
      %v6789 = vmul.f32 1.0, %v6788
      %v6790 = vrcp.pop %v6636
      %v6791 = vmul.f32 1.0, %v6790
      %v6792 = vrcp.pop %v6637
      %v6793 = vmul.f32 1.0, %v6792
      %v6794 = vrcp.pop %v6638
      %v6795 = vmul.f32 1.0, %v6794
      %v6796 = vrcp.pop %v6639
      %v6797 = vmul.f32 1.0, %v6796
      %v6798 = vrcp.pop %v6640
      %v6799 = vmul.f32 1.0, %v6798
      %v6800 = vrcp.pop %v6641
      %v6801 = vmul.f32 1.0, %v6800
      %v6802 = vrcp.pop %v6642
      %v6803 = vmul.f32 1.0, %v6802
      %v6804 = vrcp.pop %v6643
      %v6805 = vmul.f32 1.0, %v6804
      %v6806 = vrcp.pop %v6644
      %v6807 = vmul.f32 1.0, %v6806
      %v6808 = vrcp.pop %v6645
      %v6809 = vmul.f32 1.0, %v6808
      %v6810 = vrcp.pop %v6646
      %v6811 = vmul.f32 1.0, %v6810
      %v6812 = vrcp.pop %v6647
      %v6813 = vmul.f32 1.0, %v6812
      %v6814 = vrcp.pop %v6648
      %v6815 = vmul.f32 1.0, %v6814
      %v6816 = vrcp.pop %v6649
      %v6817 = vmul.f32 1.0, %v6816
      %v6818 = vrcp.pop %v6650
      %v6819 = vmul.f32 1.0, %v6818
      %v6820 = vrcp.pop %v6651
      %v6821 = vmul.f32 1.0, %v6820
      %v6822 = vrcp.pop %v6652
      %v6823 = vmul.f32 1.0, %v6822
      %v6824 = vrcp.pop %v6653
      %v6825 = vmul.f32 1.0, %v6824
      %v6826 = vrcp.pop %v6654
      %v6827 = vmul.f32 1.0, %v6826
      %v6828 = vrcp.pop %v6655
      %v6829 = vmul.f32 1.0, %v6828
      %v6830 = vrcp.pop %v6656
      %v6831 = vmul.f32 1.0, %v6830
      %v6832 = vrcp.pop %v6657
      %v6833 = vmul.f32 1.0, %v6832
      %v6834 = vrcp.pop %v6658
      %v6835 = vmul.f32 1.0, %v6834
      %v6836 = vrcp.pop %v6659
      %v6837 = vmul.f32 1.0, %v6836
      %v6838 = vrcp.pop %v6660
      %v6839 = vmul.f32 1.0, %v6838
      %v6840 = vrcp.pop %v6661
      %v6841 = vmul.f32 1.0, %v6840
      %v6842 = vrcp.pop %v6662
      %v6843 = vmul.f32 1.0, %v6842
      %v6844 = vrcp.pop %v6663
      %v6845 = vmul.f32 1.0, %v6844
      %v6846 = vrcp.pop %v6664
      %v6847 = vmul.f32 1.0, %v6846
      %v6848 = vrcp.pop %v6665
      %v6849 = vmul.f32 1.0, %v6848
      %v6850 = vrcp.pop %v6666
      %v6851 = vmul.f32 1.0, %v6850
      %v6852 = vrcp.pop %v6667
      %v6853 = vmul.f32 1.0, %v6852
      %v6854 = vrcp.pop %v6668
      %v6855 = vmul.f32 1.0, %v6854
      %v6856 = vrcp.pop %v6669
      %v6857 = vmul.f32 1.0, %v6856
      %v6858 = vrcp.pop %v6670
      %v6859 = vmul.f32 1.0, %v6858
      %v6860 = vrcp.pop %v6671
      %v6861 = vmul.f32 1.0, %v6860
      %v6862 = vrcp.pop %v6672
      %v6863 = vmul.f32 1.0, %v6862
      %v6864 = vrcp.pop %v6673
      %v6865 = vmul.f32 1.0, %v6864
      %v6866 = vrcp.pop %v6674
      %v6867 = vmul.f32 1.0, %v6866
      %v6868 = vrcp.pop %v6675
      %v6869 = vmul.f32 1.0, %v6868
      %v6870 = vrcp.pop %v6676
      %v6871 = vmul.f32 1.0, %v6870
      %v6872 = vrcp.pop %v6677
      %v6873 = vmul.f32 1.0, %v6872
      %v6874 = vrcp.pop %v6678
      %v6875 = vmul.f32 1.0, %v6874
      %v6876 = vrcp.pop %v6679
      %v6877 = vmul.f32 1.0, %v6876
      %v6878 = vrcp.pop %v6680
      %v6879 = vmul.f32 1.0, %v6878
      %v6880 = vrcp.pop %v6681
      %v6881 = vmul.f32 1.0, %v6880
      %v6882 = vrcp.pop %v6682
      %v6883 = vmul.f32 1.0, %v6882
      %v6884 = vrcp.pop %v6683
      %v6885 = vmul.f32 1.0, %v6884
      %v6886 = vrcp.pop %v6684
      %v6887 = vmul.f32 1.0, %v6886
      %v6888 = vrcp.pop %v6685
      %v6889 = vmul.f32 1.0, %v6888
      %v6890 = vrcp.pop %v6686
      %v6891 = vmul.f32 1.0, %v6890
      %v6892 = vrcp.pop %v6687
      %v6893 = vmul.f32 1.0, %v6892
      %v6894 = vrcp.pop %v6688
      %v6895 = vmul.f32 1.0, %v6894
      %v6896 = vrcp.pop %v6689
      %v6897 = vmul.f32 1.0, %v6896
      %v6898 = vrcp.pop %v6690
      %v6899 = vmul.f32 1.0, %v6898
      %v6900 = vrcp.pop %v6691
      %v6901 = vmul.f32 1.0, %v6900
      %v6902 = vrcp.pop %v6692
      %v6903 = vmul.f32 1.0, %v6902
      %v6904 = vrcp.pop %v6693
      %v6905 = vmul.f32 1.0, %v6904
      %v6906 = vrcp.pop %v6694
      %v6907 = vmul.f32 1.0, %v6906
      %v6908 = vrcp.pop %v6695
      %v6909 = vmul.f32 1.0, %v6908
      %v6910 = vrcp.pop %v6696
      %v6911 = vmul.f32 1.0, %v6910
      %v6912 = vrcp.pop %v6697
      %v6913 = vmul.f32 1.0, %v6912
      %v6914 = vrcp.pop %v6698
      %v6915 = vmul.f32 1.0, %v6914
      %v6916 = vrcp.pop %v6699
      %v6917 = vmul.f32 1.0, %v6916
      %v6918 = vrcp.pop %v6700
      %v6919 = vmul.f32 1.0, %v6918
      %v6920 = vrcp.pop %v6701
      %v6921 = vmul.f32 1.0, %v6920
      %v6922 = vrcp.pop %v6702
      %v6923 = vmul.f32 1.0, %v6922
      %v6924 = vrcp.pop %v6703
      %v6925 = vmul.f32 1.0, %v6924
      %v6926 = vrcp.pop %v6704
      %v6927 = vmul.f32 1.0, %v6926
      %v6928 = vrcp.pop %v6705
      %v6929 = vmul.f32 1.0, %v6928
      %6930 = vst [vmem:[%s479] sm:$0xff] %v6707
      %6931 = vst [vmem:[%s479 + $0x8] sm:$0xff] %v6709
      %6932 = vst [vmem:[%s479 + $0x10] sm:$0xff] %v6711
      %6933 = vst [vmem:[%s479 + $0x18] sm:$0xff] %v6713
      %6934 = vst [vmem:[%s479 + $0x20] sm:$0xff] %v6715
      %6935 = vst [vmem:[%s479 + $0x28] sm:$0xff] %v6717
      %6936 = vst.msk [vmem:[%s479 + $0x30] sm:$0xff] %vm1854, %v6719
      %6937 = vst [vmem:[%s479 + $0x38] sm:$0xff] %v6721
      %6938 = vst [vmem:[%s479 + $0x40] sm:$0xff] %v6723
      %6939 = vst [vmem:[%s479 + $0x48] sm:$0xff] %v6725
      %6940 = vst [vmem:[%s479 + $0x50] sm:$0xff] %v6727
      %6941 = vst [vmem:[%s479 + $0x58] sm:$0xff] %v6729
      %6942 = vst [vmem:[%s479 + $0x60] sm:$0xff] %v6731
      %6943 = vst.msk [vmem:[%s479 + $0x68] sm:$0xff] %vm1854, %v6733
      %6944 = vst [vmem:[%s479 + $0x70] sm:$0xff] %v6735
      %6945 = vst [vmem:[%s479 + $0x78] sm:$0xff] %v6737
      %6946 = vst [vmem:[%s479 + $0x80] sm:$0xff] %v6739
      %6947 = vst [vmem:[%s479 + $0x88] sm:$0xff] %v6741
      %6948 = vst [vmem:[%s479 + $0x90] sm:$0xff] %v6743
      %6949 = vst [vmem:[%s479 + $0x98] sm:$0xff] %v6745
      %6950 = vst.msk [vmem:[%s479 + $0xa0] sm:$0xff] %vm1854, %v6747
      %6951 = vst [vmem:[%s479 + $0xa8] sm:$0xff] %v6749
      %6952 = vst [vmem:[%s479 + $0xb0] sm:$0xff] %v6751
      %6953 = vst [vmem:[%s479 + $0xb8] sm:$0xff] %v6753
      %6954 = vst [vmem:[%s479 + $0xc0] sm:$0xff] %v6755
      %6955 = vst [vmem:[%s479 + $0xc8] sm:$0xff] %v6757
      %6956 = vst [vmem:[%s479 + $0xd0] sm:$0xff] %v6759
      %6957 = vst.msk [vmem:[%s479 + $0xd8] sm:$0xff] %vm1854, %v6761
      %6958 = vst [vmem:[%s479 + $0xe0] sm:$0xff] %v6763
      %6959 = vst [vmem:[%s479 + $0xe8] sm:$0xff] %v6765
      %6960 = vst [vmem:[%s479 + $0xf0] sm:$0xff] %v6767
      %6961 = vst [vmem:[%s479 + $0xf8] sm:$0xff] %v6769
      %6962 = vst [vmem:[%s479 + $0x100] sm:$0xff] %v6771
      %6963 = vst [vmem:[%s479 + $0x108] sm:$0xff] %v6773
      %6964 = vst.msk [vmem:[%s479 + $0x110] sm:$0xff] %vm1854, %v6775
      %6965 = vst [vmem:[%s479 + $0x118] sm:$0xff] %v6777
      %6966 = vst [vmem:[%s479 + $0x120] sm:$0xff] %v6779
      %6967 = vst [vmem:[%s479 + $0x128] sm:$0xff] %v6781
      %6968 = vst [vmem:[%s479 + $0x130] sm:$0xff] %v6783
      %6969 = vst [vmem:[%s479 + $0x138] sm:$0xff] %v6785
      %6970 = vst [vmem:[%s479 + $0x140] sm:$0xff] %v6787
      %6971 = vst.msk [vmem:[%s479 + $0x148] sm:$0xff] %vm1854, %v6789
      %6972 = vst [vmem:[%s479 + $0x150] sm:$0xff] %v6791
      %6973 = vst [vmem:[%s479 + $0x158] sm:$0xff] %v6793
      %6974 = vst [vmem:[%s479 + $0x160] sm:$0xff] %v6795
      %6975 = vst [vmem:[%s479 + $0x168] sm:$0xff] %v6797
      %6976 = vst [vmem:[%s479 + $0x170] sm:$0xff] %v6799
      %6977 = vst [vmem:[%s479 + $0x178] sm:$0xff] %v6801
      %6978 = vst.msk [vmem:[%s479 + $0x180] sm:$0xff] %vm1854, %v6803
      %6979 = vst [vmem:[%s479 + $0x188] sm:$0xff] %v6805
      %6980 = vst [vmem:[%s479 + $0x190] sm:$0xff] %v6807
      %6981 = vst [vmem:[%s479 + $0x198] sm:$0xff] %v6809
      %6982 = vst [vmem:[%s479 + $0x1a0] sm:$0xff] %v6811
      %6983 = vst [vmem:[%s479 + $0x1a8] sm:$0xff] %v6813
      %6984 = vst [vmem:[%s479 + $0x1b0] sm:$0xff] %v6815
      %6985 = vst.msk [vmem:[%s479 + $0x1b8] sm:$0xff] %vm1854, %v6817
      %6986 = vst [vmem:[%s479 + $0x1c0] sm:$0xff] %v6819
      %6987 = vst [vmem:[%s479 + $0x1c8] sm:$0xff] %v6821
      %6988 = vst [vmem:[%s479 + $0x1d0] sm:$0xff] %v6823
      %6989 = vst [vmem:[%s479 + $0x1d8] sm:$0xff] %v6825
      %6990 = vst [vmem:[%s479 + $0x1e0] sm:$0xff] %v6827
      %6991 = vst [vmem:[%s479 + $0x1e8] sm:$0xff] %v6829
      %6992 = vst.msk [vmem:[%s479 + $0x1f0] sm:$0xff] %vm1854, %v6831
      %6993 = vst [vmem:[%s479 + $0x1f8] sm:$0xff] %v6833
      %6994 = vst [vmem:[%s479 + $0x200] sm:$0xff] %v6835
      %6995 = vst [vmem:[%s479 + $0x208] sm:$0xff] %v6837
      %6996 = vst [vmem:[%s479 + $0x210] sm:$0xff] %v6839
      %6997 = vst [vmem:[%s479 + $0x218] sm:$0xff] %v6841
      %6998 = vst [vmem:[%s479 + $0x220] sm:$0xff] %v6843
      %6999 = vst.msk [vmem:[%s479 + $0x228] sm:$0xff] %vm1854, %v6845
      %7000 = vst [vmem:[%s479 + $0x230] sm:$0xff] %v6847
      %7001 = vst [vmem:[%s479 + $0x238] sm:$0xff] %v6849
      %7002 = vst [vmem:[%s479 + $0x240] sm:$0xff] %v6851
      %7003 = vst [vmem:[%s479 + $0x248] sm:$0xff] %v6853
      %7004 = vst [vmem:[%s479 + $0x250] sm:$0xff] %v6855
      %7005 = vst [vmem:[%s479 + $0x258] sm:$0xff] %v6857
      %7006 = vst.msk [vmem:[%s479 + $0x260] sm:$0xff] %vm1854, %v6859
      %7007 = vst [vmem:[%s479 + $0x268] sm:$0xff] %v6861
      %7008 = vst [vmem:[%s479 + $0x270] sm:$0xff] %v6863
      %7009 = vst [vmem:[%s479 + $0x278] sm:$0xff] %v6865
      %7010 = vst [vmem:[%s479 + $0x280] sm:$0xff] %v6867
      %7011 = vst [vmem:[%s479 + $0x288] sm:$0xff] %v6869
      %7012 = vst [vmem:[%s479 + $0x290] sm:$0xff] %v6871
      %7013 = vst.msk [vmem:[%s479 + $0x298] sm:$0xff] %vm1854, %v6873
      %7014 = vst [vmem:[%s479 + $0x2a0] sm:$0xff] %v6875
      %7015 = vst [vmem:[%s479 + $0x2a8] sm:$0xff] %v6877
      %7016 = vst [vmem:[%s479 + $0x2b0] sm:$0xff] %v6879
      %7017 = vst [vmem:[%s479 + $0x2b8] sm:$0xff] %v6881
      %7018 = vst [vmem:[%s479 + $0x2c0] sm:$0xff] %v6883
      %7019 = vst [vmem:[%s479 + $0x2c8] sm:$0xff] %v6885
      %7020 = vst.msk [vmem:[%s479 + $0x2d0] sm:$0xff] %vm1854, %v6887
      %7021 = vst [vmem:[%s479 + $0x2d8] sm:$0xff] %v6889
      %7022 = vst [vmem:[%s479 + $0x2e0] sm:$0xff] %v6891
      %7023 = vst [vmem:[%s479 + $0x2e8] sm:$0xff] %v6893
      %7024 = vst [vmem:[%s479 + $0x2f0] sm:$0xff] %v6895
      %7025 = vst [vmem:[%s479 + $0x2f8] sm:$0xff] %v6897
      %7026 = vst [vmem:[%s479 + $0x300] sm:$0xff] %v6899
      %7027 = vst.msk [vmem:[%s479 + $0x308] sm:$0xff] %vm1854, %v6901
      %7028 = vst [vmem:[%s479 + $0x310] sm:$0xff] %v6903
      %7029 = vst [vmem:[%s479 + $0x318] sm:$0xff] %v6905
      %7030 = vst [vmem:[%s479 + $0x320] sm:$0xff] %v6907
      %7031 = vst [vmem:[%s479 + $0x328] sm:$0xff] %v6909
      %7032 = vst [vmem:[%s479 + $0x330] sm:$0xff] %v6911
      %7033 = vst [vmem:[%s479 + $0x338] sm:$0xff] %v6913
      %7034 = vst.msk [vmem:[%s479 + $0x340] sm:$0xff] %vm1854, %v6915
      %7035 = vst [vmem:[%s479 + $0x348] sm:$0xff] %v6917
      %7036 = vst [vmem:[%s479 + $0x350] sm:$0xff] %v6919
      %7037 = vst [vmem:[%s479 + $0x358] sm:$0xff] %v6921
      %7038 = vst [vmem:[%s479 + $0x360] sm:$0xff] %v6923
      %7039 = vst [vmem:[%s479 + $0x368] sm:$0xff] %v6925
      %7040 = vst [vmem:[%s479 + $0x370] sm:$0xff] %v6927
      %7041 = vst.msk [vmem:[%s479 + $0x378] sm:$0xff] %vm1854, %v6929
      %7042 = vst.msk [vmem:[%s485] sm:$0xff] %vm1854, 0.0
      %7043 = vst.msk [vmem:[%s485 + $0x8] sm:$0xff] %vm1854, 0.0
      %7044 = vst.msk [vmem:[%s485 + $0x10] sm:$0xff] %vm1854, 0.0
      %7045 = vst.msk [vmem:[%s485 + $0x18] sm:$0xff] %vm1854, 0.0
      %7046 = vst.msk [vmem:[%s485 + $0x20] sm:$0xff] %vm1854, 0.0
      %7047 = vst.msk [vmem:[%s485 + $0x28] sm:$0xff] %vm1854, 0.0
      %7048 = vst.msk [vmem:[%s485 + $0x30] sm:$0xff] %vm1854, 0.0
      %7049 = vst.msk [vmem:[%s485 + $0x38] sm:$0xff] %vm1854, 0.0
      %7050 = vst.msk [vmem:[%s485 + $0x40] sm:$0xff] %vm1854, 0.0
      %7051 = vst.msk [vmem:[%s485 + $0x48] sm:$0xff] %vm1854, 0.0
      %7052 = vst.msk [vmem:[%s485 + $0x50] sm:$0xff] %vm1854, 0.0
      %7053 = vst.msk [vmem:[%s485 + $0x58] sm:$0xff] %vm1854, 0.0
      %7054 = vst.msk [vmem:[%s485 + $0x60] sm:$0xff] %vm1854, 0.0
      %7055 = vst.msk [vmem:[%s485 + $0x68] sm:$0xff] %vm1854, 0.0
      %7056 = vst.msk [vmem:[%s485 + $0x70] sm:$0xff] %vm1854, 0.0
      %7057 = vst.msk [vmem:[%s485 + $0x78] sm:$0xff] %vm1854, 0.0
      %vm7058 = vcmask 64512
      %7059 = vst.msk [vmem:[%s485] sm:$0xff] %vm7058, %v3274
      %7060 = vst.msk [vmem:[%s485 + $0x8] sm:$0xff] %vm7058, %v3277
      %7061 = vst.msk [vmem:[%s485 + $0x10] sm:$0xff] %vm7058, %v3282
      %7062 = vst.msk [vmem:[%s485 + $0x18] sm:$0xff] %vm7058, %v3285
      %7063 = vst.msk [vmem:[%s485 + $0x20] sm:$0xff] %vm7058, %v3290
      %7064 = vst.msk [vmem:[%s485 + $0x28] sm:$0xff] %vm7058, %v3293
      %7065 = vst.msk [vmem:[%s485 + $0x30] sm:$0xff] %vm7058, %v3298
      %7066 = vst.msk [vmem:[%s485 + $0x38] sm:$0xff] %vm7058, %v3301
      %7067 = vst.msk [vmem:[%s485 + $0x40] sm:$0xff] %vm7058, %v3306
      %7068 = vst.msk [vmem:[%s485 + $0x48] sm:$0xff] %vm7058, %v3309
      %7069 = vst.msk [vmem:[%s485 + $0x50] sm:$0xff] %vm7058, %v3314
      %7070 = vst.msk [vmem:[%s485 + $0x58] sm:$0xff] %vm7058, %v3317
      %7071 = vst.msk [vmem:[%s485 + $0x60] sm:$0xff] %vm7058, %v3322
      %7072 = vst.msk [vmem:[%s485 + $0x68] sm:$0xff] %vm7058, %v3325
      %7073 = vst.msk [vmem:[%s485 + $0x70] sm:$0xff] %vm7058, %v3330
      %7074 = vst.msk [vmem:[%s485 + $0x78] sm:$0xff] %vm7058, %v3333
      %7091 = vrot.lane.b32.xlu0 %v3516, 8
      %v7092 = vpop.permute.xlu0 %7091
      %7093 = vrot.lane.b32.xlu0 %v3517, 8
      %v7094 = vpop.permute.xlu0 %7093
      %7095 = vrot.lane.b32.xlu0 %v3518, 8
      %v7096 = vpop.permute.xlu0 %7095
      %7097 = vrot.lane.b32.xlu0 %v3519, 8
      %v7098 = vpop.permute.xlu0 %7097
      %7099 = vrot.lane.b32.xlu0 %v3520, 8
      %v7100 = vpop.permute.xlu0 %7099
      %7101 = vrot.lane.b32.xlu0 %v3521, 8
      %v7102 = vpop.permute.xlu0 %7101
      %7103 = vrot.lane.b32.xlu0 %v3522, 8
      %v7104 = vpop.permute.xlu0 %7103
      %7105 = vrot.lane.b32.xlu0 %v3523, 8
      %v7106 = vpop.permute.xlu0 %7105
      %7107 = vrot.lane.b32.xlu0 %v3524, 8
      %v7108 = vpop.permute.xlu0 %7107
      %7109 = vrot.lane.b32.xlu0 %v3525, 8
      %v7110 = vpop.permute.xlu0 %7109
      %7111 = vrot.lane.b32.xlu0 %v3526, 8
      %v7112 = vpop.permute.xlu0 %7111
      %7113 = vrot.lane.b32.xlu0 %v3527, 8
      %v7114 = vpop.permute.xlu0 %7113
      %7115 = vrot.lane.b32.xlu0 %v3528, 8
      %v7116 = vpop.permute.xlu0 %7115
      %7117 = vrot.lane.b32.xlu0 %v3529, 8
      %v7118 = vpop.permute.xlu0 %7117
      %7119 = vrot.lane.b32.xlu0 %v3530, 8
      %v7120 = vpop.permute.xlu0 %7119
      %7121 = vrot.lane.b32.xlu0 %v3531, 8
      %v7122 = vpop.permute.xlu0 %7121
      %vm7139 = vcmask 72768
      %7140 = vst.msk [vmem:[%s485] sm:$0xff] %vm7139, %v7092
      %7141 = vst.msk [vmem:[%s485 + $0x8] sm:$0xff] %vm7139, %v7094
      %7142 = vst.msk [vmem:[%s485 + $0x10] sm:$0xff] %vm7139, %v7096
      %7143 = vst.msk [vmem:[%s485 + $0x18] sm:$0xff] %vm7139, %v7098
      %7144 = vst.msk [vmem:[%s485 + $0x20] sm:$0xff] %vm7139, %v7100
      %7145 = vst.msk [vmem:[%s485 + $0x28] sm:$0xff] %vm7139, %v7102
      %7146 = vst.msk [vmem:[%s485 + $0x30] sm:$0xff] %vm7139, %v7104
      %7147 = vst.msk [vmem:[%s485 + $0x38] sm:$0xff] %vm7139, %v7106
      %7148 = vst.msk [vmem:[%s485 + $0x40] sm:$0xff] %vm7139, %v7108
      %7149 = vst.msk [vmem:[%s485 + $0x48] sm:$0xff] %vm7139, %v7110
      %7150 = vst.msk [vmem:[%s485 + $0x50] sm:$0xff] %vm7139, %v7112
      %7151 = vst.msk [vmem:[%s485 + $0x58] sm:$0xff] %vm7139, %v7114
      %7152 = vst.msk [vmem:[%s485 + $0x60] sm:$0xff] %vm7139, %v7116
      %7153 = vst.msk [vmem:[%s485 + $0x68] sm:$0xff] %vm7139, %v7118
      %7154 = vst.msk [vmem:[%s485 + $0x70] sm:$0xff] %vm7139, %v7120
      %7155 = vst.msk [vmem:[%s485 + $0x78] sm:$0xff] %vm7139, %v7122
      %s7156 = smul.u32 16, %s27
      %p7157 = scmp.lt.s32.totalorder %s7156, 31
      %s7158 = scalar_select %p7157, %s7156, 31
      %s7159 = smul.addr %s7158, 7
      %s7160 = smul.addr %s7159, 8
      %s7161 = scalar_lea.vmem %s12, %s7160
      %s7162 = smul.u32 16, %s27
      %p7163 = scmp.lt.s32.totalorder %s7162, 31
      %s7164 = scalar_select %p7163, %s7162, 31
      %s7165 = smul.addr %s7164, 8
      %s7166 = scalar_lea.vmem %s13, %s7165
      // Predicated region
      $region69: #{tpu_custom_call.1} parent=67 // pred_check
        %p7167 = pneg %p307
      $region70: #{tpu_custom_call.1} parent=67 // pred_check_branch
        %7169 = sbr.rel (%p7167) target = $region72
      $region71: #{tpu_custom_call.1} parent=67 // pred_region
        %s7170 = smul.u32 16, %s27
      $region72: #{tpu_custom_call.1} parent=67 // pred_fallthru
        _
      // Predicated region
      $region73: #{tpu_custom_call.1} parent=67 // pred_check
        %p7171 = pneg %p333
      $region74: #{tpu_custom_call.1} parent=67 // pred_check_branch
        %7173 = sbr.rel (%p7171) target = $region76
      $region75: #{tpu_custom_call.1} parent=67 // pred_region
        %s7174 = smul.u32 16, %s27
      $region76: #{tpu_custom_call.1} parent=67 // pred_fallthru
        _
    $region68: #{tpu_custom_call.1} parent=5 // pred_fallthru
      _
    %p7175 = scmp.le.s32.totalorder 2, %s22
    // Predicated region
    $region77: #{tpu_custom_call.1} parent=5 // pred_check
      %p7176 = pneg %p7175
    $region78: #{tpu_custom_call.1} parent=5 // pred_check_branch
      %7178 = sbr.rel (%p7176) target = $region80
    $region79: #{tpu_custom_call.1} parent=5 // pred_region
      %s7179 = ssub.s32 %s22, 2
      // Predicated region
      $region81: #{tpu_custom_call.1} parent=79 // pred_check
        %p7180 = pneg %p313
      $region82: #{tpu_custom_call.1} parent=79 // pred_check_branch
        %7182 = sbr.rel (%p7180) target = $region84
      $region83: #{tpu_custom_call.1} parent=79 // pred_region
        %s7183 = smul.u32 16, %s28
        %p7184 = scmp.lt.s32.totalorder %s7183, 31
        %s7185 = scalar_select %p7184, %s7183, 31
        %s7186 = smul.addr %s7185, 7
        %s7187 = smul.addr %s7186, 8
        %s7188 = scalar_lea.vmem %s12, %s7187
      $region84: #{tpu_custom_call.1} parent=79 // pred_fallthru
        _
      // Predicated region
      $region85: #{tpu_custom_call.1} parent=79 // pred_check
        %p7189 = pneg %p339
      $region86: #{tpu_custom_call.1} parent=79 // pred_check_branch
        %7191 = sbr.rel (%p7189) target = $region88
      $region87: #{tpu_custom_call.1} parent=79 // pred_region
        %s7192 = smul.u32 16, %s28
        %p7193 = scmp.lt.s32.totalorder %s7192, 31
        %s7194 = scalar_select %p7193, %s7192, 31
        %s7195 = smul.addr %s7194, 8
        %s7196 = scalar_lea.vmem %s13, %s7195
      $region88: #{tpu_custom_call.1} parent=79 // pred_fallthru
        _
    $region80: #{tpu_custom_call.1} parent=5 // pred_fallthru
      _
  $region6: #{tpu_custom_call.1} parent=0 // loop_footer
    %s26 = sadd.s32 1, %s22
  $region7: #{tpu_custom_call.1} parent=0 // loop_footer_branch
    %21 = sbr.rel target = $region3
  $region8: #{tpu_custom_call.1} parent=0 // loop_exit
    _

</llo_original>
